<compile_context>
chip_gen: v7x
topology: tpu7x:2x2x1
jax: 0.10.0
libtpu: 0.0.40
codegen_flags: <defaults>
</compile_context>

<pallas_src>
import functools
import math

import jax
import jax.numpy as jnp
from jax.experimental import pallas as pl
from jax.experimental.pallas import tpu as pltpu


# --------------------------- in-kernel helpers ---------------------------

def _gelu_tanh(x):
    # TODO(synk): torch's default F.gelu is the exact erf form; tanh approx
    # (EUP-friendly) differs at ~1e-3 level.
    return 0.5 * x * (1.0 + jnp.tanh(0.7978845608028654 * (x + 0.044715 * x * x * x)))


def _layernorm(h, g, b, lane_mask, d_real, eps=1e-5):
    # h: [T, Dp] with zeros in lanes >= d_real.  Two-pass moments over the real
    # lanes (padded lanes masked out of the centered term); zero-padded
    # gamma/beta keep padded lanes at exactly 0 on the way out.
    mu = jnp.sum(h, axis=-1, keepdims=True) / d_real
    diff = (h - mu) * lane_mask
    var = jnp.sum(diff * diff, axis=-1, keepdims=True) / d_real
    return diff * jax.lax.rsqrt(var + eps) * g + b


def _encoder_layer(x, in_w, in_b, out_w, out_b, ln1_g, ln1_b,
                   ff1_w, ff1_b, ff2_w, ff2_b, ln2_g, ln2_b, *, H, dh, d_real):
    """Post-norm nn.TransformerEncoderLayer (eval mode) on one [T, Dp] slab."""
    T, Dp = x.shape
    lane = jax.lax.broadcasted_iota(jnp.int32, (1, Dp), 1)
    real_mask = (lane < d_real).astype(jnp.float32)

    # ---- packed QKV projection: q|k|v each in its own Dp-wide lane block ----
    qkv = jnp.dot(x.astype(jnp.bfloat16), in_w,
                  preferred_element_type=jnp.float32) + in_b           # [T, 3*Dp]
    q = qkv[:, 0 * Dp:1 * Dp]
    k = qkv[:, 1 * Dp:2 * Dp]
    v = qkv[:, 2 * Dp:3 * Dp]

    # ---- multi-head attention via lane masks (head h lives in lanes h*dh..) --
    scale = 1.0 / math.sqrt(dh)
    attn = jnp.zeros((T, Dp), jnp.float32)
    for h in range(H):                                   # static, small H
        hm = ((lane >= h * dh) & (lane < (h + 1) * dh)).astype(jnp.float32)
        s = jax.lax.dot_general(q * hm, k, (((1,), (1,)), ((), ())),
                                preferred_element_type=jnp.float32) * scale  # [T, T]
        s = s - jnp.max(s, axis=-1, keepdims=True)
        e = jnp.exp(s)
        p = e / jnp.sum(e, axis=-1, keepdims=True)       # exact divide
        attn = attn + jnp.dot(p, v * hm, preferred_element_type=jnp.float32)
    # single concatenated output projection (no per-head accumulation)
    attn = jnp.dot(attn.astype(jnp.bfloat16), out_w,
                   preferred_element_type=jnp.float32) + out_b

    # ---- residual + LN1, FF(GELU), residual + LN2 (post-norm) ----
    h1 = _layernorm(x + attn, ln1_g, ln1_b, real_mask, d_real)
    z = jnp.dot(h1.astype(jnp.bfloat16), ff1_w,
                preferred_element_type=jnp.float32) + ff1_b
    z = _gelu_tanh(z)
    ff = jnp.dot(z.astype(jnp.bfloat16), ff2_w,
                 preferred_element_type=jnp.float32) + ff2_b
    return _layernorm(h1 + ff, ln2_g, ln2_b, real_mask, d_real)


# ------------------------- fused encoder stacks --------------------------

_LAYER_KEYS = ("in_w", "in_b", "out_w", "out_b", "ln1_g", "ln1_b",
               "ff1_w", "ff1_b", "ff2_w", "ff2_b", "ln2_g", "ln2_b")


def _const_spec(arr):
    n = arr.ndim
    return pl.BlockSpec(arr.shape, lambda b, l, n=n: (0,) * n)


def _layer_spec(arr):
    n = arr.ndim - 1
    return pl.BlockSpec((1,) + arr.shape[1:], lambda b, l, n=n: (l,) + (0,) * n)


def _batch_spec(arr):
    n = arr.ndim - 1
    return pl.BlockSpec((1,) + arr.shape[1:], lambda b, l, n=n: (b,) + (0,) * n)


def _cond_stack_kernel(cond_ref, pe_ref, cw, cb,
                       in_w, in_b, out_w, out_b, ln1_g, ln1_b,
                       ff1_w, ff1_b, ff2_w, ff2_b, ln2_g, ln2_b,
                       o_ref, *, H, dh, d_real):
    l = pl.program_id(1)

    @pl.when(l == 0)
    def _project():
        # cond_projection + sequence positional encoding, fused into the stack.
        c = cond_ref[0].astype(jnp.bfloat16)                           # [Ts, IFp]
        o_ref[0] = (jnp.dot(c, cw[...], preferred_element_type=jnp.float32)
                    + cb[...] + pe_ref[...])

    # o_ref stays resident in VMEM across the whole layer axis: layer l in place.
    o_ref[0] = _encoder_layer(
        o_ref[0], in_w[0], in_b[0], out_w[0], out_b[0], ln1_g[0], ln1_b[0],
        ff1_w[0], ff1_b[0], ff2_w[0], ff2_b[0], ln2_g[0], ln2_b[0],
        H=H, dh=dh, d_real=d_real)


def cond_encoder_stack(cond_feat, pe_cond, cond_w, cond_b, layers, *,
                       num_heads, head_dim, d_real, vmem_limit):
    B, Ts, _ = cond_feat.shape
    Dp = cond_w.shape[1]
    L = layers["in_w"].shape[0]
    kernel = functools.partial(_cond_stack_kernel, H=num_heads, dh=head_dim,
                               d_real=d_real)
    args = [cond_feat, pe_cond, cond_w, cond_b] + [layers[k] for k in _LAYER_KEYS]
    specs = ([_batch_spec(cond_feat), _const_spec(pe_cond),
              _const_spec(cond_w), _const_spec(cond_b)]
             + [_layer_spec(layers[k]) for k in _LAYER_KEYS])
    return pl.pallas_call(
        kernel,
        out_shape=jax.ShapeDtypeStruct((B, Ts, Dp), jnp.float32),
        grid=(B, L),
        in_specs=specs,
        out_specs=pl.BlockSpec((1, Ts, Dp), lambda b, l: (b, 0, 0)),
        compiler_params=pltpu.CompilerParams(
            dimension_semantics=("parallel", "arbitrary"),
            vmem_limit_bytes=vmem_limit),
    )(*args)


def _seq_stack_kernel(pe_t_ref, cond_ref, xin_ref,
                      tw1, tb1, tw2, tb2, iw, ib, pe_ref,
                      in_w, in_b, out_w, out_b, ln1_g, ln1_b,
                      ff1_w, ff1_b, ff2_w, ff2_b, ln2_g, ln2_b,
                      ow, ob, o_ref, xseq_ref, *, H, dh, d_real, out_start):
    l = pl.program_id(1)
    Ts = cond_ref.shape[1]
    F = xin_ref.shape[1]

    @pl.when(l == 0)
    def _prologue():
        # timestep embedding: pe[t] -> Linear -> SiLU -> Linear
        t0 = pe_t_ref[0].astype(jnp.bfloat16)                          # [1, Dp]
        th = jnp.dot(t0, tw1[...], preferred_element_type=jnp.float32) + tb1[...]
        th = th * jax.nn.sigmoid(th)                                   # SiLU
        temb = jnp.dot(th.astype(jnp.bfloat16), tw2[...],
                       preferred_element_type=jnp.float32) + tb2[...]  # [1, Dp]
        # input_process
        xt = jnp.dot(xin_ref[0].astype(jnp.bfloat16), iw[...],
                     preferred_element_type=jnp.float32) + ib[...]     # [F, Dp]
        # xseq = concat(t_emb, cond_tokens, x_tokens) + positional encoding,
        # assembled directly in the resident VMEM buffer.
        xseq_ref[0:1, :] = temb + pe_ref[0:1, :]
        xseq_ref[1:1 + Ts, :] = cond_ref[0] + pe_ref[1:1 + Ts, :]
        xseq_ref[1 + Ts:1 + Ts + F, :] = xt + pe_ref[1 + Ts:1 + Ts + F, :]

    h_new = _encoder_layer(
        xseq_ref[...], in_w[0], in_b[0], out_w[0], out_b[0], ln1_g[0], ln1_b[0],
        ff1_w[0], ff1_b[0], ff2_w[0], ff2_b[0], ln2_g[0], ln2_b[0],
        H=H, dh=dh, d_real=d_real)
    xseq_ref[...] = h_new

    @pl.when(l == pl.num_programs(1) - 1)
    def _epilogue():
        # output_process on rows [out_start:], fused — xseq never leaves VMEM.
        rows = h_new[out_start:, :]
        o_ref[0] = jnp.dot(rows.astype(jnp.bfloat16), ow[...],
                           preferred_element_type=jnp.float32) + ob[...]


def seq_encoder_stack(pe_t, cond_tok, xin_feat, pe_seq, params, layers, *,
                      num_heads, head_dim, d_real, out_start, vmem_limit):
    B, _, Dp = pe_t.shape
    Ts = cond_tok.shape[1]
    F = xin_feat.shape[1]
    T = 1 + Ts + F
    L = layers["in_w"].shape[0]
    F_out = T - out_start
    IFout = params["outp_w"].shape[1]
    kernel = functools.partial(_seq_stack_kernel, H=num_heads, dh=head_dim,
                               d_real=d_real, out_start=out_start)
    const_w = [params[k] for k in ("time_w1", "time_b1", "time_w2", "time_b2",
                                   "inp_w", "inp_b")]
    args = ([pe_t, cond_tok, xin_feat] + const_w + [pe_seq]
            + [layers[k] for k in _LAYER_KEYS]
            + [params["outp_w"], params["outp_b"]])
    specs = ([_batch_spec(pe_t), _batch_spec(cond_tok), _batch_spec(xin_feat)]
             + [_const_spec(w) for w in const_w] + [_const_spec(pe_seq)]
             + [_layer_spec(layers[k]) for k in _LAYER_KEYS]
             + [_const_spec(params["outp_w"]), _const_spec(params["outp_b"])])
    return pl.pallas_call(
        kernel,
        out_shape=jax.ShapeDtypeStruct((B, F_out, IFout), jnp.float32),
        grid=(B, L),
        in_specs=specs,
        out_specs=pl.BlockSpec((1, F_out, IFout), lambda b, l: (b, 0, 0)),
        scratch_shapes=[pltpu.VMEM((T, Dp), jnp.float32)],
        compiler_params=pltpu.CompilerParams(
            dimension_semantics=("parallel", "arbitrary"),
            vmem_limit_bytes=vmem_limit),
    )(*args)


# ------------------------------ parameters ------------------------------

def _round_up(n, m):
    return ((n + m - 1) // m) * m


def _init_linear(key, fan_in, fan_out):
    kw, kb = jax.random.split(key)
    bound = 1.0 / math.sqrt(fan_in)
    w = jax.random.uniform(kw, (fan_in, fan_out), jnp.float32, -bound, bound)
    b = jax.random.uniform(kb, (fan_out,), jnp.float32, -bound, bound)
    return w, b


def _make_pe(max_len, d):
    pos = jnp.arange(max_len, dtype=jnp.float32)[:, None]
    div = jnp.exp(jnp.arange(0, d, 2, dtype=jnp.float32) * (-math.log(10000.0) / d))
    pe = jnp.zeros((max_len, d), jnp.float32)
    pe = pe.at[:, 0::2].set(jnp.sin(pos * div))
    pe = pe.at[:, 1::2].set(jnp.cos(pos * div))
    return pe


def _pad_right(a, shape):
    return jnp.pad(a, [(0, t - s) for s, t in zip(a.shape, shape)])


def _prep_layer(key, d, ff, dp, ffp):
    """Init one encoder layer (PyTorch-style uniform init), pad to TPU layout."""
    keys = jax.random.split(key, 4)
    in_w, in_b = _init_linear(keys[0], d, 3 * d)       # packed q|k|v projection
    out_w, out_b = _init_linear(keys[1], d, d)
    ff1_w, ff1_b = _init_linear(keys[2], d, ff)
    ff2_w, ff2_b = _init_linear(keys[3], ff, d)

    # q|k|v each gets one dp-wide (128-aligned) lane block; heads stay packed
    # contiguously at their natural offsets inside the real d lanes.
    w_qkv = jnp.zeros((dp, 3 * dp), jnp.float32)
    b_qkv = jnp.zeros((1, 3 * dp), jnp.float32)
    for j in range(3):
        w_qkv = w_qkv.at[:d, j * dp:j * dp + d].set(in_w[:, j * d:(j + 1) * d])
        b_qkv = b_qkv.at[0, j * dp:j * dp + d].set(in_b[j * d:(j + 1) * d])
    w_out = jnp.zeros((dp, dp), jnp.float32).at[:d, :d].set(out_w)

    return {
        "in_w": w_qkv.astype(jnp.bfloat16), "in_b": b_qkv,
        "out_w": w_out.astype(jnp.bfloat16),
        "out_b": _pad_right(out_b[None, :], (1, dp)),
        "ln1_g": _pad_right(jnp.ones((1, d), jnp.float32), (1, dp)),
        "ln1_b": jnp.zeros((1, dp), jnp.float32),
        "ff1_w": _pad_right(ff1_w, (dp, ffp)).astype(jnp.bfloat16),
        "ff1_b": _pad_right(ff1_b[None, :], (1, ffp)),
        "ff2_w": _pad_right(ff2_w, (ffp, dp)).astype(jnp.bfloat16),
        "ff2_b": _pad_right(ff2_b[None, :], (1, dp)),
        "ln2_g": _pad_right(jnp.ones((1, d), jnp.float32), (1, dp)),
        "ln2_b": jnp.zeros((1, dp), jnp.float32),
    }


def _stack_layers(layer_dicts):
    return {k: jnp.stack([ld[k] for ld in layer_dicts], axis=0)
            for k in layer_dicts[0].keys()}


def init_model_params(key, njoints, nfeats, latent_dim, ff_size, num_layers,
                      num_heads, max_len=1000):
    input_feats = njoints * nfeats
    d, ff = latent_dim, ff_size
    dp, ffp = _round_up(d, 128), _round_up(ff, 128)
    ifp = _round_up(input_feats, 128)

    keys = jax.random.split(key, 7)
    tw1, tb1 = _init_linear(keys[0], d, d)
    tw2, tb2 = _init_linear(keys[1], d, d)
    cw, cb = _init_linear(keys[2], input_feats, d)
    iw, ib = _init_linear(keys[3], input_feats, d)
    ow, ob = _init_linear(keys[4], d, input_feats)

    # TODO(synk): embed_motion (nn.Linear) and Rot2xyz(smpl) are constructed by
    #             the PyTorch module but never used in its forward().
    return {
        "pe": _pad_right(_make_pe(max_len, d), (max_len, dp)),
        "time_w1": _pad_right(tw1, (dp, dp)).astype(jnp.bfloat16),
        "time_b1": _pad_right(tb1[None, :], (1, dp)),
        "time_w2": _pad_right(tw2, (dp, dp)).astype(jnp.bfloat16),
        "time_b2": _pad_right(tb2[None, :], (1, dp)),
        "cond_w": _pad_right(cw, (ifp, dp)).astype(jnp.bfloat16),
        "cond_b": _pad_right(cb[None, :], (1, dp)),
        "inp_w": _pad_right(iw, (ifp, dp)).astype(jnp.bfloat16),
        "inp_b": _pad_right(ib[None, :], (1, dp)),
        "outp_w": _pad_right(ow, (dp, ifp)).astype(jnp.bfloat16),
        "outp_b": _pad_right(ob[None, :], (1, ifp)),
        "cond_layers": _stack_layers([_prep_layer(k, d, ff, dp, ffp)
                                      for k in jax.random.split(keys[5], 2)]),
        "enc_layers": _stack_layers([_prep_layer(k, d, ff, dp, ffp)
                                     for k in jax.random.split(keys[6], num_layers)]),
    }


# -------------------------------- forward --------------------------------

def concat_seq_encoder_m2mdm_forward(params, x, timesteps, y, *,
                                     cond_mask_prob, num_heads, latent_dim, seq_len):
    """x: [B, njoints, nfeats, nframes]; timesteps: [B] int; y['motion']: [B, nj, nf, Ts]."""
    B, nj, nf, nframes = x.shape
    IF = nj * nf
    d = latent_dim
    dh = d // num_heads
    pe = params["pe"]
    IFp = params["inp_w"].shape[0]
    vmem_limit = 32 * 1024 * 1024

    cond = y["motion"]
    Ts = cond.shape[-1]

    # flatten motion tensors to [B, T, input_feats]; pad feature lanes to 128 once.
    cond_feat = _pad_right(jnp.transpose(cond, (0, 3, 1, 2)).reshape(B, Ts, IF),
                           (B, Ts, IFp))
    xin_feat = _pad_right(jnp.transpose(x, (0, 3, 1, 2)).reshape(B, nframes, IF),
                          (B, nframes, IFp))
    pe_t = pe[timesteps][:, None, :]                      # [B, 1, Dp] (JAX gather)

    # cond_projection + PE + cond_encoder (2 layers) in one fused call.
    cond_tok = cond_encoder_stack(cond_feat, pe[:Ts], params["cond_w"],
                                  params["cond_b"], params["cond_layers"],
                                  num_heads=num_heads, head_dim=dh, d_real=d,
                                  vmem_limit=vmem_limit)

    # mask_cond (eval mode): identity for p==0.0, zeros for p==1.0.
    # TODO(synk): training-mode Bernoulli masking (0 < p < 1) not implemented.
    if cond_mask_prob == 1.0:
        cond_tok = jnp.zeros_like(cond_tok)

    # timestep MLP + input proj + concat + PE + num_layers encoder layers +
    # output slice/projection, all in one fused call (xseq resident in VMEM).
    T = 1 + Ts + nframes
    out = seq_encoder_stack(pe_t, cond_tok, xin_feat, pe[:T], params,
                            params["enc_layers"], num_heads=num_heads,
                            head_dim=dh, d_real=d, out_start=seq_len + 1,
                            vmem_limit=vmem_limit)        # [B, F_out, IFp]
    F_out = out.shape[1]
    out = out[:, :, :IF].reshape(B, F_out, nj, nf)
    return jnp.transpose(out, (0, 2, 3, 1))               # [B, nj, nf, F_out]


# --------------------------------- main ---------------------------------

if __name__ == "__main__":
    # small but shape-consistent config
    B, njoints, nfeats, nframes = 2, 4, 4, 8
    latent_dim, ff_size, num_layers, num_heads = 32, 64, 2, 4
    seq_len = 8  # number of conditioning frames; forward slices rows [seq_len+1:]

    key = jax.random.PRNGKey(0)
    kp, kx, kc, kt = jax.random.split(key, 4)

    params = init_model_params(kp, njoints, nfeats, latent_dim, ff_size,
                               num_layers, num_heads)
    x = jax.random.normal(kx, (B, njoints, nfeats, nframes), jnp.float32)
    cond_motion = jax.random.normal(kc, (B, njoints, nfeats, seq_len), jnp.float32)
    timesteps = jax.random.randint(kt, (B,), 0, 1000)

    fwd = jax.jit(functools.partial(
        concat_seq_encoder_m2mdm_forward, cond_mask_prob=0.0,
        num_heads=num_heads, latent_dim=latent_dim, seq_len=seq_len))

    out = fwd(params, x, timesteps, {"motion": cond_motion})
    out = jax.block_until_ready(out)

    assert out.shape == (B, njoints, nfeats, nframes), out.shape
    assert out.dtype == jnp.float32
    print("KERNEL_OK")
</pallas_src>

<mosaic_0001>
module attributes {stable_mosaic.version = 11 : i64} {
  func.func @_cond_stack_kernel(%arg0: i32, %arg1: i32, %arg2: memref<1x8x128xf32, #tpu.memory_space<vmem>>, %arg3: memref<8x128xf32, #tpu.memory_space<vmem>>, %arg4: memref<128x128xbf16, #tpu.memory_space<vmem>>, %arg5: memref<1x128xf32, #tpu.memory_space<vmem>>, %arg6: memref<1x128x384xbf16, #tpu.memory_space<vmem>>, %arg7: memref<1x1x384xf32, #tpu.memory_space<vmem>>, %arg8: memref<1x128x128xbf16, #tpu.memory_space<vmem>>, %arg9: memref<1x1x128xf32, #tpu.memory_space<vmem>>, %arg10: memref<1x1x128xf32, #tpu.memory_space<vmem>>, %arg11: memref<1x1x128xf32, #tpu.memory_space<vmem>>, %arg12: memref<1x128x128xbf16, #tpu.memory_space<vmem>>, %arg13: memref<1x1x128xf32, #tpu.memory_space<vmem>>, %arg14: memref<1x128x128xbf16, #tpu.memory_space<vmem>>, %arg15: memref<1x1x128xf32, #tpu.memory_space<vmem>>, %arg16: memref<1x1x128xf32, #tpu.memory_space<vmem>>, %arg17: memref<1x1x128xf32, #tpu.memory_space<vmem>>, %arg18: memref<1x8x128xf32, #tpu.memory_space<vmem>>) attributes {dimension_semantics = [#tpu.dimension_semantics<parallel>, #tpu.dimension_semantics<arbitrary>], iteration_bounds = array<i64: 2, 2>, scalar_prefetch = 0 : i64, scratch_operands = 0 : i64, tpu.core_type = #tpu.core_type<tc>, window_params = [{transform_indices = @transform_0, window_bounds = array<i64: 1, 8, 128>}, {pipeline_mode = #tpu.pipeline_mode<synchronous>, transform_indices = @transform_1, window_bounds = array<i64: 8, 128>}, {pipeline_mode = #tpu.pipeline_mode<synchronous>, transform_indices = @transform_2, window_bounds = array<i64: 128, 128>}, {pipeline_mode = #tpu.pipeline_mode<synchronous>, transform_indices = @transform_3, window_bounds = array<i64: 1, 128>}, {transform_indices = @transform_4, window_bounds = array<i64: 1, 128, 384>}, {transform_indices = @transform_5, window_bounds = array<i64: 1, 1, 384>}, {transform_indices = @transform_6, window_bounds = array<i64: 1, 128, 128>}, {transform_indices = @transform_7, window_bounds = array<i64: 1, 1, 128>}, {transform_indices = @transform_8, window_bounds = array<i64: 1, 1, 128>}, {transform_indices = @transform_9, window_bounds = array<i64: 1, 1, 128>}, {transform_indices = @transform_10, window_bounds = array<i64: 1, 128, 128>}, {transform_indices = @transform_11, window_bounds = array<i64: 1, 1, 128>}, {transform_indices = @transform_12, window_bounds = array<i64: 1, 128, 128>}, {transform_indices = @transform_13, window_bounds = array<i64: 1, 1, 128>}, {transform_indices = @transform_14, window_bounds = array<i64: 1, 1, 128>}, {transform_indices = @transform_15, window_bounds = array<i64: 1, 1, 128>}, {transform_indices = @transform_16, window_bounds = array<i64: 1, 8, 128>}]} {
    %c0_i32 = arith.constant 0 : i32
    %0 = arith.cmpi eq, %arg1, %c0_i32 : i32
    %1 = arith.extui %0 : i1 to i32
    %c0_i32_0 = arith.constant 0 : i32
    %2 = arith.cmpi ne, %1, %c0_i32_0 : i32
    scf.if %2 {
      %c0_85 = arith.constant 0 : index
      %c0_86 = arith.constant 0 : index
      %c0_87 = arith.constant 0 : index
      %216 = vector.load %arg2[%c0_85, %c0_86, %c0_87] : memref<1x8x128xf32, #tpu.memory_space<vmem>>, vector<1x8x128xf32>
      %217 = vector.shape_cast %216 : vector<1x8x128xf32> to vector<8x128xf32>
      %218 = arith.truncf %217 : vector<8x128xf32> to vector<8x128xbf16>
      %c0_88 = arith.constant 0 : index
      %c0_89 = arith.constant 0 : index
      %219 = vector.load %arg4[%c0_88, %c0_89] : memref<128x128xbf16, #tpu.memory_space<vmem>>, vector<128x128xbf16>
      %cst_90 = arith.constant dense<0.000000e+00> : vector<8x128xf32>
      %220 = tpu.matmul %218, %219, %cst_90 {dimension_numbers = #tpu.dot_dimension_numbers<[1], [0], [0], [1], [0, 0, 1, 1], [], []>} : vector<8x128xbf16>, vector<128x128xbf16>, vector<8x128xf32> -> vector<8x128xf32>
      %c0_91 = arith.constant 0 : index
      %c0_92 = arith.constant 0 : index
      %221 = vector.load %arg5[%c0_91, %c0_92] : memref<1x128xf32, #tpu.memory_space<vmem>>, vector<1x128xf32>
      %222 = vector.broadcast %221 : vector<1x128xf32> to vector<8x128xf32>
      %223 = arith.addf %220, %222 : vector<8x128xf32>
      %c0_93 = arith.constant 0 : index
      %c0_94 = arith.constant 0 : index
      %224 = vector.load %arg3[%c0_93, %c0_94] : memref<8x128xf32, #tpu.memory_space<vmem>>, vector<8x128xf32>
      %225 = arith.addf %223, %224 : vector<8x128xf32>
      %c0_95 = arith.constant 0 : index
      %c0_96 = arith.constant 0 : index
      %c0_97 = arith.constant 0 : index
      %226 = vector.load %arg18[%c0_95, %c0_96, %c0_97] : memref<1x8x128xf32, #tpu.memory_space<vmem>>, vector<1x8x128xf32>
      %227 = vector.shape_cast %226 : vector<1x8x128xf32> to vector<8x128xf32>
      %228 = vector.shape_cast %225 : vector<8x128xf32> to vector<1x8x128xf32>
      tpu.vector_store %arg18[%c0_95, %c0_96, %c0_97], %228 {strides = array<i32>} : memref<1x8x128xf32, #tpu.memory_space<vmem>>, vector<1x8x128xf32>,
    } else {
    }
    %c0 = arith.constant 0 : index
    %c0_1 = arith.constant 0 : index
    %c0_2 = arith.constant 0 : index
    %3 = vector.load %arg18[%c0, %c0_1, %c0_2] : memref<1x8x128xf32, #tpu.memory_space<vmem>>, vector<1x8x128xf32>
    %4 = vector.shape_cast %3 : vector<1x8x128xf32> to vector<8x128xf32>
    %c0_3 = arith.constant 0 : index
    %c0_4 = arith.constant 0 : index
    %c0_5 = arith.constant 0 : index
    %5 = vector.load %arg6[%c0_3, %c0_4, %c0_5] : memref<1x128x384xbf16, #tpu.memory_space<vmem>>, vector<1x128x384xbf16>
    %6 = vector.shape_cast %5 : vector<1x128x384xbf16> to vector<128x384xbf16>
    %c0_6 = arith.constant 0 : index
    %c0_7 = arith.constant 0 : index
    %c0_8 = arith.constant 0 : index
    %7 = vector.load %arg7[%c0_6, %c0_7, %c0_8] : memref<1x1x384xf32, #tpu.memory_space<vmem>>, vector<1x1x384xf32>
    %8 = vector.shape_cast %7 : vector<1x1x384xf32> to vector<1x384xf32>
    %c0_9 = arith.constant 0 : index
    %c0_10 = arith.constant 0 : index
    %c0_11 = arith.constant 0 : index
    %9 = vector.load %arg8[%c0_9, %c0_10, %c0_11] : memref<1x128x128xbf16, #tpu.memory_space<vmem>>, vector<1x128x128xbf16>
    %10 = vector.shape_cast %9 : vector<1x128x128xbf16> to vector<128x128xbf16>
    %c0_12 = arith.constant 0 : index
    %c0_13 = arith.constant 0 : index
    %c0_14 = arith.constant 0 : index
    %11 = vector.load %arg9[%c0_12, %c0_13, %c0_14] : memref<1x1x128xf32, #tpu.memory_space<vmem>>, vector<1x1x128xf32>
    %12 = vector.shape_cast %11 : vector<1x1x128xf32> to vector<1x128xf32>
    %c0_15 = arith.constant 0 : index
    %c0_16 = arith.constant 0 : index
    %c0_17 = arith.constant 0 : index
    %13 = vector.load %arg10[%c0_15, %c0_16, %c0_17] : memref<1x1x128xf32, #tpu.memory_space<vmem>>, vector<1x1x128xf32>
    %14 = vector.shape_cast %13 : vector<1x1x128xf32> to vector<1x128xf32>
    %c0_18 = arith.constant 0 : index
    %c0_19 = arith.constant 0 : index
    %c0_20 = arith.constant 0 : index
    %15 = vector.load %arg11[%c0_18, %c0_19, %c0_20] : memref<1x1x128xf32, #tpu.memory_space<vmem>>, vector<1x1x128xf32>
    %16 = vector.shape_cast %15 : vector<1x1x128xf32> to vector<1x128xf32>
    %c0_21 = arith.constant 0 : index
    %c0_22 = arith.constant 0 : index
    %c0_23 = arith.constant 0 : index
    %17 = vector.load %arg12[%c0_21, %c0_22, %c0_23] : memref<1x128x128xbf16, #tpu.memory_space<vmem>>, vector<1x128x128xbf16>
    %18 = vector.shape_cast %17 : vector<1x128x128xbf16> to vector<128x128xbf16>
    %c0_24 = arith.constant 0 : index
    %c0_25 = arith.constant 0 : index
    %c0_26 = arith.constant 0 : index
    %19 = vector.load %arg13[%c0_24, %c0_25, %c0_26] : memref<1x1x128xf32, #tpu.memory_space<vmem>>, vector<1x1x128xf32>
    %20 = vector.shape_cast %19 : vector<1x1x128xf32> to vector<1x128xf32>
    %c0_27 = arith.constant 0 : index
    %c0_28 = arith.constant 0 : index
    %c0_29 = arith.constant 0 : index
    %21 = vector.load %arg14[%c0_27, %c0_28, %c0_29] : memref<1x128x128xbf16, #tpu.memory_space<vmem>>, vector<1x128x128xbf16>
    %22 = vector.shape_cast %21 : vector<1x128x128xbf16> to vector<128x128xbf16>
    %c0_30 = arith.constant 0 : index
    %c0_31 = arith.constant 0 : index
    %c0_32 = arith.constant 0 : index
    %23 = vector.load %arg15[%c0_30, %c0_31, %c0_32] : memref<1x1x128xf32, #tpu.memory_space<vmem>>, vector<1x1x128xf32>
    %24 = vector.shape_cast %23 : vector<1x1x128xf32> to vector<1x128xf32>
    %c0_33 = arith.constant 0 : index
    %c0_34 = arith.constant 0 : index
    %c0_35 = arith.constant 0 : index
    %25 = vector.load %arg16[%c0_33, %c0_34, %c0_35] : memref<1x1x128xf32, #tpu.memory_space<vmem>>, vector<1x1x128xf32>
    %26 = vector.shape_cast %25 : vector<1x1x128xf32> to vector<1x128xf32>
    %c0_36 = arith.constant 0 : index
    %c0_37 = arith.constant 0 : index
    %c0_38 = arith.constant 0 : index
    %27 = vector.load %arg17[%c0_36, %c0_37, %c0_38] : memref<1x1x128xf32, #tpu.memory_space<vmem>>, vector<1x1x128xf32>
    %28 = vector.shape_cast %27 : vector<1x1x128xf32> to vector<1x128xf32>
    %29 = tpu.iota {dimensions = array<i32: 1>} : vector<1x128xi32>
    %c32_i32 = arith.constant 32 : i32
    %30 = vector.broadcast %c32_i32 : i32 to vector<1x128xi32>
    %31 = arith.cmpi slt, %29, %30 : vector<1x128xi32>
    %32 = arith.extui %31 : vector<1x128xi1> to vector<1x128xi32>
    %33 = arith.sitofp %32 : vector<1x128xi32> to vector<1x128xf32>
    %34 = arith.truncf %4 : vector<8x128xf32> to vector<8x128xbf16>
    %cst = arith.constant dense<0.000000e+00> : vector<8x384xf32>
    %35 = tpu.matmul %34, %6, %cst {dimension_numbers = #tpu.dot_dimension_numbers<[1], [0], [0], [1], [0, 0, 1, 1], [], []>} : vector<8x128xbf16>, vector<128x384xbf16>, vector<8x384xf32> -> vector<8x384xf32>
    %36 = vector.broadcast %8 : vector<1x384xf32> to vector<8x384xf32>
    %37 = arith.addf %35, %36 : vector<8x384xf32>
    %38 = vector.extract_strided_slice %37 {offsets = [0, 0], sizes = [8, 128], strides = [1, 1]} : vector<8x384xf32> to vector<8x128xf32>
    %39 = vector.extract_strided_slice %37 {offsets = [0, 128], sizes = [8, 128], strides = [1, 1]} : vector<8x384xf32> to vector<8x128xf32>
    %40 = vector.extract_strided_slice %37 {offsets = [0, 256], sizes = [8, 128], strides = [1, 1]} : vector<8x384xf32> to vector<8x128xf32>
    %cst_39 = arith.constant 0.000000e+00 : f32
    %41 = vector.broadcast %cst_39 : f32 to vector<8x128xf32>
    %c0_i32_40 = arith.constant 0 : i32
    %42 = vector.broadcast %c0_i32_40 : i32 to vector<1x128xi32>
    %43 = arith.cmpi sge, %29, %42 : vector<1x128xi32>
    %c8_i32 = arith.constant 8 : i32
    %44 = vector.broadcast %c8_i32 : i32 to vector<1x128xi32>
    %45 = arith.cmpi slt, %29, %44 : vector<1x128xi32>
    %46 = arith.andi %43, %45 : vector<1x128xi1>
    %47 = arith.extui %46 : vector<1x128xi1> to vector<1x128xi32>
    %48 = arith.sitofp %47 : vector<1x128xi32> to vector<1x128xf32>
    %49 = vector.broadcast %48 : vector<1x128xf32> to vector<8x128xf32>
    %50 = arith.mulf %38, %49 : vector<8x128xf32>
    %cst_41 = arith.constant dense<0.000000e+00> : vector<8x8xf32>
    %51 = tpu.matmul %50, %39, %cst_41 {dimension_numbers = #tpu.dot_dimension_numbers<[1], [1], [0], [0], [0, 0, 1, 0], [], []>} : vector<8x128xf32>, vector<8x128xf32>, vector<8x8xf32> -> vector<8x8xf32>
    %cst_42 = arith.constant 0.353553385 : f32
    %52 = vector.broadcast %cst_42 : f32 to vector<8x8xf32>
    %53 = arith.mulf %51, %52 : vector<8x8xf32>
    %cst_43 = arith.constant dense<0xFF800000> : vector<8xf32>
    %54 = vector.multi_reduction <maximumf>, %53, %cst_43 [1] : vector<8x8xf32> to vector<8xf32>
    %55 = vector.shape_cast %54 : vector<8xf32> to vector<8x1xf32>
    %56 = vector.broadcast %55 : vector<8x1xf32> to vector<8x8xf32>
    %57 = arith.subf %53, %56 : vector<8x8xf32>
    %58 = math.exp %57 : vector<8x8xf32>
    %cst_44 = arith.constant dense<0.000000e+00> : vector<8xf32>
    %59 = vector.multi_reduction <add>, %58, %cst_44 [1] : vector<8x8xf32> to vector<8xf32>
    %60 = vector.shape_cast %59 : vector<8xf32> to vector<8x1xf32>
    %61 = vector.broadcast %60 : vector<8x1xf32> to vector<8x8xf32>
    %62 = arith.divf %58, %61 : vector<8x8xf32>
    %63 = vector.broadcast %48 : vector<1x128xf32> to vector<8x128xf32>
    %64 = arith.mulf %40, %63 : vector<8x128xf32>
    %cst_45 = arith.constant dense<0.000000e+00> : vector<8x128xf32>
    %65 = tpu.matmul %62, %64, %cst_45 {dimension_numbers = #tpu.dot_dimension_numbers<[1], [0], [0], [1], [0, 0, 1, 1], [], []>} : vector<8x8xf32>, vector<8x128xf32>, vector<8x128xf32> -> vector<8x128xf32>
    %66 = arith.addf %41, %65 : vector<8x128xf32>
    %c8_i32_46 = arith.constant 8 : i32
    %67 = vector.broadcast %c8_i32_46 : i32 to vector<1x128xi32>
    %68 = arith.cmpi sge, %29, %67 : vector<1x128xi32>
    %c16_i32 = arith.constant 16 : i32
    %69 = vector.broadcast %c16_i32 : i32 to vector<1x128xi32>
    %70 = arith.cmpi slt, %29, %69 : vector<1x128xi32>
    %71 = arith.andi %68, %70 : vector<1x128xi1>
    %72 = arith.extui %71 : vector<1x128xi1> to vector<1x128xi32>
    %73 = arith.sitofp %72 : vector<1x128xi32> to vector<1x128xf32>
    %74 = vector.broadcast %73 : vector<1x128xf32> to vector<8x128xf32>
    %75 = arith.mulf %38, %74 : vector<8x128xf32>
    %cst_47 = arith.constant dense<0.000000e+00> : vector<8x8xf32>
    %76 = tpu.matmul %75, %39, %cst_47 {dimension_numbers = #tpu.dot_dimension_numbers<[1], [1], [0], [0], [0, 0, 1, 0], [], []>} : vector<8x128xf32>, vector<8x128xf32>, vector<8x8xf32> -> vector<8x8xf32>
    %cst_48 = arith.constant 0.353553385 : f32
    %77 = vector.broadcast %cst_48 : f32 to vector<8x8xf32>
    %78 = arith.mulf %76, %77 : vector<8x8xf32>
    %cst_49 = arith.constant dense<0xFF800000> : vector<8xf32>
    %79 = vector.multi_reduction <maximumf>, %78, %cst_49 [1] : vector<8x8xf32> to vector<8xf32>
    %80 = vector.shape_cast %79 : vector<8xf32> to vector<8x1xf32>
    %81 = vector.broadcast %80 : vector<8x1xf32> to vector<8x8xf32>
    %82 = arith.subf %78, %81 : vector<8x8xf32>
    %83 = math.exp %82 : vector<8x8xf32>
    %cst_50 = arith.constant dense<0.000000e+00> : vector<8xf32>
    %84 = vector.multi_reduction <add>, %83, %cst_50 [1] : vector<8x8xf32> to vector<8xf32>
    %85 = vector.shape_cast %84 : vector<8xf32> to vector<8x1xf32>
    %86 = vector.broadcast %85 : vector<8x1xf32> to vector<8x8xf32>
    %87 = arith.divf %83, %86 : vector<8x8xf32>
    %88 = vector.broadcast %73 : vector<1x128xf32> to vector<8x128xf32>
    %89 = arith.mulf %40, %88 : vector<8x128xf32>
    %cst_51 = arith.constant dense<0.000000e+00> : vector<8x128xf32>
    %90 = tpu.matmul %87, %89, %cst_51 {dimension_numbers = #tpu.dot_dimension_numbers<[1], [0], [0], [1], [0, 0, 1, 1], [], []>} : vector<8x8xf32>, vector<8x128xf32>, vector<8x128xf32> -> vector<8x128xf32>
    %91 = arith.addf %66, %90 : vector<8x128xf32>
    %c16_i32_52 = arith.constant 16 : i32
    %92 = vector.broadcast %c16_i32_52 : i32 to vector<1x128xi32>
    %93 = arith.cmpi sge, %29, %92 : vector<1x128xi32>
    %c24_i32 = arith.constant 24 : i32
    %94 = vector.broadcast %c24_i32 : i32 to vector<1x128xi32>
    %95 = arith.cmpi slt, %29, %94 : vector<1x128xi32>
    %96 = arith.andi %93, %95 : vector<1x128xi1>
    %97 = arith.extui %96 : vector<1x128xi1> to vector<1x128xi32>
    %98 = arith.sitofp %97 : vector<1x128xi32> to vector<1x128xf32>
    %99 = vector.broadcast %98 : vector<1x128xf32> to vector<8x128xf32>
    %100 = arith.mulf %38, %99 : vector<8x128xf32>
    %cst_53 = arith.constant dense<0.000000e+00> : vector<8x8xf32>
    %101 = tpu.matmul %100, %39, %cst_53 {dimension_numbers = #tpu.dot_dimension_numbers<[1], [1], [0], [0], [0, 0, 1, 0], [], []>} : vector<8x128xf32>, vector<8x128xf32>, vector<8x8xf32> -> vector<8x8xf32>
    %cst_54 = arith.constant 0.353553385 : f32
    %102 = vector.broadcast %cst_54 : f32 to vector<8x8xf32>
    %103 = arith.mulf %101, %102 : vector<8x8xf32>
    %cst_55 = arith.constant dense<0xFF800000> : vector<8xf32>
    %104 = vector.multi_reduction <maximumf>, %103, %cst_55 [1] : vector<8x8xf32> to vector<8xf32>
    %105 = vector.shape_cast %104 : vector<8xf32> to vector<8x1xf32>
    %106 = vector.broadcast %105 : vector<8x1xf32> to vector<8x8xf32>
    %107 = arith.subf %103, %106 : vector<8x8xf32>
    %108 = math.exp %107 : vector<8x8xf32>
    %cst_56 = arith.constant dense<0.000000e+00> : vector<8xf32>
    %109 = vector.multi_reduction <add>, %108, %cst_56 [1] : vector<8x8xf32> to vector<8xf32>
    %110 = vector.shape_cast %109 : vector<8xf32> to vector<8x1xf32>
    %111 = vector.broadcast %110 : vector<8x1xf32> to vector<8x8xf32>
    %112 = arith.divf %108, %111 : vector<8x8xf32>
    %113 = vector.broadcast %98 : vector<1x128xf32> to vector<8x128xf32>
    %114 = arith.mulf %40, %113 : vector<8x128xf32>
    %cst_57 = arith.constant dense<0.000000e+00> : vector<8x128xf32>
    %115 = tpu.matmul %112, %114, %cst_57 {dimension_numbers = #tpu.dot_dimension_numbers<[1], [0], [0], [1], [0, 0, 1, 1], [], []>} : vector<8x8xf32>, vector<8x128xf32>, vector<8x128xf32> -> vector<8x128xf32>
    %116 = arith.addf %91, %115 : vector<8x128xf32>
    %c24_i32_58 = arith.constant 24 : i32
    %117 = vector.broadcast %c24_i32_58 : i32 to vector<1x128xi32>
    %118 = arith.cmpi sge, %29, %117 : vector<1x128xi32>
    %c32_i32_59 = arith.constant 32 : i32
    %119 = vector.broadcast %c32_i32_59 : i32 to vector<1x128xi32>
    %120 = arith.cmpi slt, %29, %119 : vector<1x128xi32>
    %121 = arith.andi %118, %120 : vector<1x128xi1>
    %122 = arith.extui %121 : vector<1x128xi1> to vector<1x128xi32>
    %123 = arith.sitofp %122 : vector<1x128xi32> to vector<1x128xf32>
    %124 = vector.broadcast %123 : vector<1x128xf32> to vector<8x128xf32>
    %125 = arith.mulf %38, %124 : vector<8x128xf32>
    %cst_60 = arith.constant dense<0.000000e+00> : vector<8x8xf32>
    %126 = tpu.matmul %125, %39, %cst_60 {dimension_numbers = #tpu.dot_dimension_numbers<[1], [1], [0], [0], [0, 0, 1, 0], [], []>} : vector<8x128xf32>, vector<8x128xf32>, vector<8x8xf32> -> vector<8x8xf32>
    %cst_61 = arith.constant 0.353553385 : f32
    %127 = vector.broadcast %cst_61 : f32 to vector<8x8xf32>
    %128 = arith.mulf %126, %127 : vector<8x8xf32>
    %cst_62 = arith.constant dense<0xFF800000> : vector<8xf32>
    %129 = vector.multi_reduction <maximumf>, %128, %cst_62 [1] : vector<8x8xf32> to vector<8xf32>
    %130 = vector.shape_cast %129 : vector<8xf32> to vector<8x1xf32>
    %131 = vector.broadcast %130 : vector<8x1xf32> to vector<8x8xf32>
    %132 = arith.subf %128, %131 : vector<8x8xf32>
    %133 = math.exp %132 : vector<8x8xf32>
    %cst_63 = arith.constant dense<0.000000e+00> : vector<8xf32>
    %134 = vector.multi_reduction <add>, %133, %cst_63 [1] : vector<8x8xf32> to vector<8xf32>
    %135 = vector.shape_cast %134 : vector<8xf32> to vector<8x1xf32>
    %136 = vector.broadcast %135 : vector<8x1xf32> to vector<8x8xf32>
    %137 = arith.divf %133, %136 : vector<8x8xf32>
    %138 = vector.broadcast %123 : vector<1x128xf32> to vector<8x128xf32>
    %139 = arith.mulf %40, %138 : vector<8x128xf32>
    %cst_64 = arith.constant dense<0.000000e+00> : vector<8x128xf32>
    %140 = tpu.matmul %137, %139, %cst_64 {dimension_numbers = #tpu.dot_dimension_numbers<[1], [0], [0], [1], [0, 0, 1, 1], [], []>} : vector<8x8xf32>, vector<8x128xf32>, vector<8x128xf32> -> vector<8x128xf32>
    %141 = arith.addf %116, %140 : vector<8x128xf32>
    %142 = arith.truncf %141 : vector<8x128xf32> to vector<8x128xbf16>
    %cst_65 = arith.constant dense<0.000000e+00> : vector<8x128xf32>
    %143 = tpu.matmul %142, %10, %cst_65 {dimension_numbers = #tpu.dot_dimension_numbers<[1], [0], [0], [1], [0, 0, 1, 1], [], []>} : vector<8x128xbf16>, vector<128x128xbf16>, vector<8x128xf32> -> vector<8x128xf32>
    %144 = vector.broadcast %12 : vector<1x128xf32> to vector<8x128xf32>
    %145 = arith.addf %143, %144 : vector<8x128xf32>
    %146 = arith.addf %4, %145 : vector<8x128xf32>
    %cst_66 = arith.constant dense<0.000000e+00> : vector<8xf32>
    %147 = vector.multi_reduction <add>, %146, %cst_66 [1] : vector<8x128xf32> to vector<8xf32>
    %148 = vector.shape_cast %147 : vector<8xf32> to vector<8x1xf32>
    %cst_67 = arith.constant 3.200000e+01 : f32
    %149 = vector.broadcast %cst_67 : f32 to vector<8x1xf32>
    %150 = arith.divf %148, %149 : vector<8x1xf32>
    %151 = vector.broadcast %150 : vector<8x1xf32> to vector<8x128xf32>
    %152 = arith.subf %146, %151 : vector<8x128xf32>
    %153 = vector.broadcast %33 : vector<1x128xf32> to vector<8x128xf32>
    %154 = arith.mulf %152, %153 : vector<8x128xf32>
    %155 = arith.mulf %154, %154 : vector<8x128xf32>
    %cst_68 = arith.constant dense<0.000000e+00> : vector<8xf32>
    %156 = vector.multi_reduction <add>, %155, %cst_68 [1] : vector<8x128xf32> to vector<8xf32>
    %157 = vector.shape_cast %156 : vector<8xf32> to vector<8x1xf32>
    %cst_69 = arith.constant 3.200000e+01 : f32
    %158 = vector.broadcast %cst_69 : f32 to vector<8x1xf32>
    %159 = arith.divf %157, %158 : vector<8x1xf32>
    %cst_70 = arith.constant 9.99999974E-6 : f32
    %160 = vector.broadcast %cst_70 : f32 to vector<8x1xf32>
    %161 = arith.addf %159, %160 : vector<8x1xf32>
    %162 = math.rsqrt %161 : vector<8x1xf32>
    %163 = vector.broadcast %162 : vector<8x1xf32> to vector<8x128xf32>
    %164 = arith.mulf %154, %163 : vector<8x128xf32>
    %165 = vector.broadcast %14 : vector<1x128xf32> to vector<8x128xf32>
    %166 = arith.mulf %164, %165 : vector<8x128xf32>
    %167 = vector.broadcast %16 : vector<1x128xf32> to vector<8x128xf32>
    %168 = arith.addf %166, %167 : vector<8x128xf32>
    %169 = arith.truncf %168 : vector<8x128xf32> to vector<8x128xbf16>
    %cst_71 = arith.constant dense<0.000000e+00> : vector<8x128xf32>
    %170 = tpu.matmul %169, %18, %cst_71 {dimension_numbers = #tpu.dot_dimension_numbers<[1], [0], [0], [1], [0, 0, 1, 1], [], []>} : vector<8x128xbf16>, vector<128x128xbf16>, vector<8x128xf32> -> vector<8x128xf32>
    %171 = vector.broadcast %20 : vector<1x128xf32> to vector<8x128xf32>
    %172 = arith.addf %170, %171 : vector<8x128xf32>
    %cst_72 = arith.constant 5.000000e-01 : f32
    %173 = vector.broadcast %cst_72 : f32 to vector<8x128xf32>
    %174 = arith.mulf %173, %172 : vector<8x128xf32>
    %cst_73 = arith.constant 4.471500e-02 : f32
    %175 = vector.broadcast %cst_73 : f32 to vector<8x128xf32>
    %176 = arith.mulf %175, %172 : vector<8x128xf32>
    %177 = arith.mulf %176, %172 : vector<8x128xf32>
    %178 = arith.mulf %177, %172 : vector<8x128xf32>
    %179 = arith.addf %172, %178 : vector<8x128xf32>
    %cst_74 = arith.constant 0.797884583 : f32
    %180 = vector.broadcast %cst_74 : f32 to vector<8x128xf32>
    %181 = arith.mulf %180, %179 : vector<8x128xf32>
    %182 = math.tanh %181 : vector<8x128xf32>
    %cst_75 = arith.constant 1.000000e+00 : f32
    %183 = vector.broadcast %cst_75 : f32 to vector<8x128xf32>
    %184 = arith.addf %183, %182 : vector<8x128xf32>
    %185 = arith.mulf %174, %184 : vector<8x128xf32>
    %186 = arith.truncf %185 : vector<8x128xf32> to vector<8x128xbf16>
    %cst_76 = arith.constant dense<0.000000e+00> : vector<8x128xf32>
    %187 = tpu.matmul %186, %22, %cst_76 {dimension_numbers = #tpu.dot_dimension_numbers<[1], [0], [0], [1], [0, 0, 1, 1], [], []>} : vector<8x128xbf16>, vector<128x128xbf16>, vector<8x128xf32> -> vector<8x128xf32>
    %188 = vector.broadcast %24 : vector<1x128xf32> to vector<8x128xf32>
    %189 = arith.addf %187, %188 : vector<8x128xf32>
    %190 = arith.addf %168, %189 : vector<8x128xf32>
    %cst_77 = arith.constant dense<0.000000e+00> : vector<8xf32>
    %191 = vector.multi_reduction <add>, %190, %cst_77 [1] : vector<8x128xf32> to vector<8xf32>
    %192 = vector.shape_cast %191 : vector<8xf32> to vector<8x1xf32>
    %cst_78 = arith.constant 3.200000e+01 : f32
    %193 = vector.broadcast %cst_78 : f32 to vector<8x1xf32>
    %194 = arith.divf %192, %193 : vector<8x1xf32>
    %195 = vector.broadcast %194 : vector<8x1xf32> to vector<8x128xf32>
    %196 = arith.subf %190, %195 : vector<8x128xf32>
    %197 = vector.broadcast %33 : vector<1x128xf32> to vector<8x128xf32>
    %198 = arith.mulf %196, %197 : vector<8x128xf32>
    %199 = arith.mulf %198, %198 : vector<8x128xf32>
    %cst_79 = arith.constant dense<0.000000e+00> : vector<8xf32>
    %200 = vector.multi_reduction <add>, %199, %cst_79 [1] : vector<8x128xf32> to vector<8xf32>
    %201 = vector.shape_cast %200 : vector<8xf32> to vector<8x1xf32>
    %cst_80 = arith.constant 3.200000e+01 : f32
    %202 = vector.broadcast %cst_80 : f32 to vector<8x1xf32>
    %203 = arith.divf %201, %202 : vector<8x1xf32>
    %cst_81 = arith.constant 9.99999974E-6 : f32
    %204 = vector.broadcast %cst_81 : f32 to vector<8x1xf32>
    %205 = arith.addf %203, %204 : vector<8x1xf32>
    %206 = math.rsqrt %205 : vector<8x1xf32>
    %207 = vector.broadcast %206 : vector<8x1xf32> to vector<8x128xf32>
    %208 = arith.mulf %198, %207 : vector<8x128xf32>
    %209 = vector.broadcast %26 : vector<1x128xf32> to vector<8x128xf32>
    %210 = arith.mulf %208, %209 : vector<8x128xf32>
    %211 = vector.broadcast %28 : vector<1x128xf32> to vector<8x128xf32>
    %212 = arith.addf %210, %211 : vector<8x128xf32>
    %c0_82 = arith.constant 0 : index
    %c0_83 = arith.constant 0 : index
    %c0_84 = arith.constant 0 : index
    %213 = vector.load %arg18[%c0_82, %c0_83, %c0_84] : memref<1x8x128xf32, #tpu.memory_space<vmem>>, vector<1x8x128xf32>
    %214 = vector.shape_cast %213 : vector<1x8x128xf32> to vector<8x128xf32>
    %215 = vector.shape_cast %212 : vector<8x128xf32> to vector<1x8x128xf32>
    tpu.vector_store %arg18[%c0_82, %c0_83, %c0_84], %215 {strides = array<i32>} : memref<1x8x128xf32, #tpu.memory_space<vmem>>, vector<1x8x128xf32>,
    return
  }
  func.func @transform_0(%arg0: i32, %arg1: i32) -> (i32, i32, i32) {
    %c0_i32 = arith.constant 0 : i32
    %c0_i32_0 = arith.constant 0 : i32
    %c0_i32_1 = arith.constant 0 : i32
    return %arg0, %c0_i32, %c0_i32_0 : i32, i32, i32
  }
  func.func @transform_1(%arg0: i32, %arg1: i32) -> (i32, i32) {
    %c0_i32 = arith.constant 0 : i32
    %c0_i32_0 = arith.constant 0 : i32
    %c0_i32_1 = arith.constant 0 : i32
    return %c0_i32, %c0_i32_0 : i32, i32
  }
  func.func @transform_2(%arg0: i32, %arg1: i32) -> (i32, i32) {
    %c0_i32 = arith.constant 0 : i32
    %c0_i32_0 = arith.constant 0 : i32
    %c0_i32_1 = arith.constant 0 : i32
    return %c0_i32, %c0_i32_0 : i32, i32
  }
  func.func @transform_3(%arg0: i32, %arg1: i32) -> (i32, i32) {
    %c0_i32 = arith.constant 0 : i32
    %c0_i32_0 = arith.constant 0 : i32
    %c0_i32_1 = arith.constant 0 : i32
    return %c0_i32, %c0_i32_0 : i32, i32
  }
  func.func @transform_4(%arg0: i32, %arg1: i32) -> (i32, i32, i32) {
    %c0_i32 = arith.constant 0 : i32
    %c0_i32_0 = arith.constant 0 : i32
    %c0_i32_1 = arith.constant 0 : i32
    return %arg1, %c0_i32, %c0_i32_0 : i32, i32, i32
  }
  func.func @transform_5(%arg0: i32, %arg1: i32) -> (i32, i32, i32) {
    %c0_i32 = arith.constant 0 : i32
    %c0_i32_0 = arith.constant 0 : i32
    %c0_i32_1 = arith.constant 0 : i32
    return %arg1, %c0_i32, %c0_i32_0 : i32, i32, i32
  }
  func.func @transform_6(%arg0: i32, %arg1: i32) -> (i32, i32, i32) {
    %c0_i32 = arith.constant 0 : i32
    %c0_i32_0 = arith.constant 0 : i32
    %c0_i32_1 = arith.constant 0 : i32
    return %arg1, %c0_i32, %c0_i32_0 : i32, i32, i32
  }
  func.func @transform_7(%arg0: i32, %arg1: i32) -> (i32, i32, i32) {
    %c0_i32 = arith.constant 0 : i32
    %c0_i32_0 = arith.constant 0 : i32
    %c0_i32_1 = arith.constant 0 : i32
    return %arg1, %c0_i32, %c0_i32_0 : i32, i32, i32
  }
  func.func @transform_8(%arg0: i32, %arg1: i32) -> (i32, i32, i32) {
    %c0_i32 = arith.constant 0 : i32
    %c0_i32_0 = arith.constant 0 : i32
    %c0_i32_1 = arith.constant 0 : i32
    return %arg1, %c0_i32, %c0_i32_0 : i32, i32, i32
  }
  func.func @transform_9(%arg0: i32, %arg1: i32) -> (i32, i32, i32) {
    %c0_i32 = arith.constant 0 : i32
    %c0_i32_0 = arith.constant 0 : i32
    %c0_i32_1 = arith.constant 0 : i32
    return %arg1, %c0_i32, %c0_i32_0 : i32, i32, i32
  }
  func.func @transform_10(%arg0: i32, %arg1: i32) -> (i32, i32, i32) {
    %c0_i32 = arith.constant 0 : i32
    %c0_i32_0 = arith.constant 0 : i32
    %c0_i32_1 = arith.constant 0 : i32
    return %arg1, %c0_i32, %c0_i32_0 : i32, i32, i32
  }
  func.func @transform_11(%arg0: i32, %arg1: i32) -> (i32, i32, i32) {
    %c0_i32 = arith.constant 0 : i32
    %c0_i32_0 = arith.constant 0 : i32
    %c0_i32_1 = arith.constant 0 : i32
    return %arg1, %c0_i32, %c0_i32_0 : i32, i32, i32
  }
  func.func @transform_12(%arg0: i32, %arg1: i32) -> (i32, i32, i32) {
    %c0_i32 = arith.constant 0 : i32
    %c0_i32_0 = arith.constant 0 : i32
    %c0_i32_1 = arith.constant 0 : i32
    return %arg1, %c0_i32, %c0_i32_0 : i32, i32, i32
  }
  func.func @transform_13(%arg0: i32, %arg1: i32) -> (i32, i32, i32) {
    %c0_i32 = arith.constant 0 : i32
    %c0_i32_0 = arith.constant 0 : i32
    %c0_i32_1 = arith.constant 0 : i32
    return %arg1, %c0_i32, %c0_i32_0 : i32, i32, i32
  }
  func.func @transform_14(%arg0: i32, %arg1: i32) -> (i32, i32, i32) {
    %c0_i32 = arith.constant 0 : i32
    %c0_i32_0 = arith.constant 0 : i32
    %c0_i32_1 = arith.constant 0 : i32
    return %arg1, %c0_i32, %c0_i32_0 : i32, i32, i32
  }
  func.func @transform_15(%arg0: i32, %arg1: i32) -> (i32, i32, i32) {
    %c0_i32 = arith.constant 0 : i32
    %c0_i32_0 = arith.constant 0 : i32
    %c0_i32_1 = arith.constant 0 : i32
    return %arg1, %c0_i32, %c0_i32_0 : i32, i32, i32
  }
  func.func @transform_16(%arg0: i32, %arg1: i32) -> (i32, i32, i32) {
    %c0_i32 = arith.constant 0 : i32
    %c0_i32_0 = arith.constant 0 : i32
    %c0_i32_1 = arith.constant 0 : i32
    return %arg0, %c0_i32, %c0_i32_0 : i32, i32, i32
  }
}

module attributes {stable_mosaic.version = 11 : i64} {
  func.func @_seq_stack_kernel(%arg0: i32, %arg1: i32, %arg2: memref<1x1x128xf32, #tpu.memory_space<vmem>>, %arg3: memref<1x8x128xf32, #tpu.memory_space<vmem>>, %arg4: memref<1x8x128xf32, #tpu.memory_space<vmem>>, %arg5: memref<128x128xbf16, #tpu.memory_space<vmem>>, %arg6: memref<1x128xf32, #tpu.memory_space<vmem>>, %arg7: memref<128x128xbf16, #tpu.memory_space<vmem>>, %arg8: memref<1x128xf32, #tpu.memory_space<vmem>>, %arg9: memref<128x128xbf16, #tpu.memory_space<vmem>>, %arg10: memref<1x128xf32, #tpu.memory_space<vmem>>, %arg11: memref<17x128xf32, #tpu.memory_space<vmem>>, %arg12: memref<1x128x384xbf16, #tpu.memory_space<vmem>>, %arg13: memref<1x1x384xf32, #tpu.memory_space<vmem>>, %arg14: memref<1x128x128xbf16, #tpu.memory_space<vmem>>, %arg15: memref<1x1x128xf32, #tpu.memory_space<vmem>>, %arg16: memref<1x1x128xf32, #tpu.memory_space<vmem>>, %arg17: memref<1x1x128xf32, #tpu.memory_space<vmem>>, %arg18: memref<1x128x128xbf16, #tpu.memory_space<vmem>>, %arg19: memref<1x1x128xf32, #tpu.memory_space<vmem>>, %arg20: memref<1x128x128xbf16, #tpu.memory_space<vmem>>, %arg21: memref<1x1x128xf32, #tpu.memory_space<vmem>>, %arg22: memref<1x1x128xf32, #tpu.memory_space<vmem>>, %arg23: memref<1x1x128xf32, #tpu.memory_space<vmem>>, %arg24: memref<128x128xbf16, #tpu.memory_space<vmem>>, %arg25: memref<1x128xf32, #tpu.memory_space<vmem>>, %arg26: memref<1x8x128xf32, #tpu.memory_space<vmem>>, %arg27: memref<17x128xf32, #tpu.memory_space<vmem>>) attributes {dimension_semantics = [#tpu.dimension_semantics<parallel>, #tpu.dimension_semantics<arbitrary>], iteration_bounds = array<i64: 2, 2>, scalar_prefetch = 0 : i64, scratch_operands = 1 : i64, tpu.core_type = #tpu.core_type<tc>, window_params = [{transform_indices = @transform_0, window_bounds = array<i64: 1, 1, 128>}, {transform_indices = @transform_1, window_bounds = array<i64: 1, 8, 128>}, {transform_indices = @transform_2, window_bounds = array<i64: 1, 8, 128>}, {pipeline_mode = #tpu.pipeline_mode<synchronous>, transform_indices = @transform_3, window_bounds = array<i64: 128, 128>}, {pipeline_mode = #tpu.pipeline_mode<synchronous>, transform_indices = @transform_4, window_bounds = array<i64: 1, 128>}, {pipeline_mode = #tpu.pipeline_mode<synchronous>, transform_indices = @transform_5, window_bounds = array<i64: 128, 128>}, {pipeline_mode = #tpu.pipeline_mode<synchronous>, transform_indices = @transform_6, window_bounds = array<i64: 1, 128>}, {pipeline_mode = #tpu.pipeline_mode<synchronous>, transform_indices = @transform_7, window_bounds = array<i64: 128, 128>}, {pipeline_mode = #tpu.pipeline_mode<synchronous>, transform_indices = @transform_8, window_bounds = array<i64: 1, 128>}, {pipeline_mode = #tpu.pipeline_mode<synchronous>, transform_indices = @transform_9, window_bounds = array<i64: 17, 128>}, {transform_indices = @transform_10, window_bounds = array<i64: 1, 128, 384>}, {transform_indices = @transform_11, window_bounds = array<i64: 1, 1, 384>}, {transform_indices = @transform_12, window_bounds = array<i64: 1, 128, 128>}, {transform_indices = @transform_13, window_bounds = array<i64: 1, 1, 128>}, {transform_indices = @transform_14, window_bounds = array<i64: 1, 1, 128>}, {transform_indices = @transform_15, window_bounds = array<i64: 1, 1, 128>}, {transform_indices = @transform_16, window_bounds = array<i64: 1, 128, 128>}, {transform_indices = @transform_17, window_bounds = array<i64: 1, 1, 128>}, {transform_indices = @transform_18, window_bounds = array<i64: 1, 128, 128>}, {transform_indices = @transform_19, window_bounds = array<i64: 1, 1, 128>}, {transform_indices = @transform_20, window_bounds = array<i64: 1, 1, 128>}, {transform_indices = @transform_21, window_bounds = array<i64: 1, 1, 128>}, {pipeline_mode = #tpu.pipeline_mode<synchronous>, transform_indices = @transform_22, window_bounds = array<i64: 128, 128>}, {pipeline_mode = #tpu.pipeline_mode<synchronous>, transform_indices = @transform_23, window_bounds = array<i64: 1, 128>}, {transform_indices = @transform_24, window_bounds = array<i64: 1, 8, 128>}]} {
    %c0_i32 = arith.constant 0 : i32
    %0 = arith.cmpi eq, %arg1, %c0_i32 : i32
    %1 = arith.extui %0 : i1 to i32
    %c0_i32_0 = arith.constant 0 : i32
    %2 = arith.cmpi ne, %1, %c0_i32_0 : i32
    scf.if %2 {
      %c0_84 = arith.constant 0 : index
      %c0_85 = arith.constant 0 : index
      %c0_86 = arith.constant 0 : index
      %216 = vector.load %arg2[%c0_84, %c0_85, %c0_86] : memref<1x1x128xf32, #tpu.memory_space<vmem>>, vector<1x1x128xf32>
      %217 = vector.shape_cast %216 : vector<1x1x128xf32> to vector<1x128xf32>
      %218 = arith.truncf %217 : vector<1x128xf32> to vector<1x128xbf16>
      %c0_87 = arith.constant 0 : index
      %c0_88 = arith.constant 0 : index
      %219 = vector.load %arg5[%c0_87, %c0_88] : memref<128x128xbf16, #tpu.memory_space<vmem>>, vector<128x128xbf16>
      %cst_89 = arith.constant dense<0.000000e+00> : vector<1x128xf32>
      %220 = tpu.matmul %218, %219, %cst_89 {dimension_numbers = #tpu.dot_dimension_numbers<[1], [0], [0], [1], [0, 0, 1, 1], [], []>} : vector<1x128xbf16>, vector<128x128xbf16>, vector<1x128xf32> -> vector<1x128xf32>
      %c0_90 = arith.constant 0 : index
      %c0_91 = arith.constant 0 : index
      %221 = vector.load %arg6[%c0_90, %c0_91] : memref<1x128xf32, #tpu.memory_space<vmem>>, vector<1x128xf32>
      %222 = arith.addf %220, %221 : vector<1x128xf32>
      %223 = arith.negf %222 : vector<1x128xf32>
      %224 = math.exp %223 : vector<1x128xf32>
      %cst_92 = arith.constant 1.000000e+00 : f32
      %225 = vector.broadcast %cst_92 : f32 to vector<1x128xf32>
      %226 = arith.addf %225, %224 : vector<1x128xf32>
      %227 = arith.divf %225, %226 : vector<1x128xf32>
      %228 = arith.mulf %222, %227 : vector<1x128xf32>
      %229 = arith.truncf %228 : vector<1x128xf32> to vector<1x128xbf16>
      %c0_93 = arith.constant 0 : index
      %c0_94 = arith.constant 0 : index
      %230 = vector.load %arg7[%c0_93, %c0_94] : memref<128x128xbf16, #tpu.memory_space<vmem>>, vector<128x128xbf16>
      %cst_95 = arith.constant dense<0.000000e+00> : vector<1x128xf32>
      %231 = tpu.matmul %229, %230, %cst_95 {dimension_numbers = #tpu.dot_dimension_numbers<[1], [0], [0], [1], [0, 0, 1, 1], [], []>} : vector<1x128xbf16>, vector<128x128xbf16>, vector<1x128xf32> -> vector<1x128xf32>
      %c0_96 = arith.constant 0 : index
      %c0_97 = arith.constant 0 : index
      %232 = vector.load %arg8[%c0_96, %c0_97] : memref<1x128xf32, #tpu.memory_space<vmem>>, vector<1x128xf32>
      %233 = arith.addf %231, %232 : vector<1x128xf32>
      %c0_98 = arith.constant 0 : index
      %c0_99 = arith.constant 0 : index
      %c0_100 = arith.constant 0 : index
      %234 = vector.load %arg4[%c0_98, %c0_99, %c0_100] : memref<1x8x128xf32, #tpu.memory_space<vmem>>, vector<1x8x128xf32>
      %235 = vector.shape_cast %234 : vector<1x8x128xf32> to vector<8x128xf32>
      %236 = arith.truncf %235 : vector<8x128xf32> to vector<8x128xbf16>
      %c0_101 = arith.constant 0 : index
      %c0_102 = arith.constant 0 : index
      %237 = vector.load %arg9[%c0_101, %c0_102] : memref<128x128xbf16, #tpu.memory_space<vmem>>, vector<128x128xbf16>
      %cst_103 = arith.constant dense<0.000000e+00> : vector<8x128xf32>
      %238 = tpu.matmul %236, %237, %cst_103 {dimension_numbers = #tpu.dot_dimension_numbers<[1], [0], [0], [1], [0, 0, 1, 1], [], []>} : vector<8x128xbf16>, vector<128x128xbf16>, vector<8x128xf32> -> vector<8x128xf32>
      %c0_104 = arith.constant 0 : index
      %c0_105 = arith.constant 0 : index
      %239 = vector.load %arg10[%c0_104, %c0_105] : memref<1x128xf32, #tpu.memory_space<vmem>>, vector<1x128xf32>
      %240 = vector.broadcast %239 : vector<1x128xf32> to vector<8x128xf32>
      %241 = arith.addf %238, %240 : vector<8x128xf32>
      %c0_106 = arith.constant 0 : index
      %c0_107 = arith.constant 0 : index
      %242 = vector.load %arg11[%c0_106, %c0_107] : memref<17x128xf32, #tpu.memory_space<vmem>>, vector<1x128xf32>
      %243 = arith.addf %233, %242 : vector<1x128xf32>
      %c0_108 = arith.constant 0 : index
      %c0_109 = arith.constant 0 : index
      %244 = vector.load %arg27[%c0_108, %c0_109] : memref<17x128xf32, #tpu.memory_space<vmem>>, vector<1x128xf32>
      tpu.vector_store %arg27[%c0_108, %c0_109], %243 {strides = array<i32>} : memref<17x128xf32, #tpu.memory_space<vmem>>, vector<1x128xf32>,
      %c0_110 = arith.constant 0 : index
      %c0_111 = arith.constant 0 : index
      %c0_112 = arith.constant 0 : index
      %245 = vector.load %arg3[%c0_110, %c0_111, %c0_112] : memref<1x8x128xf32, #tpu.memory_space<vmem>>, vector<1x8x128xf32>
      %246 = vector.shape_cast %245 : vector<1x8x128xf32> to vector<8x128xf32>
      %c1 = arith.constant 1 : index
      %c0_113 = arith.constant 0 : index
      %247 = vector.load %arg11[%c1, %c0_113] : memref<17x128xf32, #tpu.memory_space<vmem>>, vector<8x128xf32>
      %248 = arith.addf %246, %247 : vector<8x128xf32>
      %c1_114 = arith.constant 1 : index
      %c0_115 = arith.constant 0 : index
      %249 = vector.load %arg27[%c1_114, %c0_115] : memref<17x128xf32, #tpu.memory_space<vmem>>, vector<8x128xf32>
      tpu.vector_store %arg27[%c1_114, %c0_115], %248 {strides = array<i32>} : memref<17x128xf32, #tpu.memory_space<vmem>>, vector<8x128xf32>,
      %c9 = arith.constant 9 : index
      %c0_116 = arith.constant 0 : index
      %250 = vector.load %arg11[%c9, %c0_116] : memref<17x128xf32, #tpu.memory_space<vmem>>, vector<8x128xf32>
      %251 = arith.addf %241, %250 : vector<8x128xf32>
      %c9_117 = arith.constant 9 : index
      %c0_118 = arith.constant 0 : index
      %252 = vector.load %arg27[%c9_117, %c0_118] : memref<17x128xf32, #tpu.memory_space<vmem>>, vector<8x128xf32>
      tpu.vector_store %arg27[%c9_117, %c0_118], %251 {strides = array<i32>} : memref<17x128xf32, #tpu.memory_space<vmem>>, vector<8x128xf32>,
    } else {
    }
    %c0 = arith.constant 0 : index
    %c0_1 = arith.constant 0 : index
    %3 = vector.load %arg27[%c0, %c0_1] : memref<17x128xf32, #tpu.memory_space<vmem>>, vector<17x128xf32>
    %c0_2 = arith.constant 0 : index
    %c0_3 = arith.constant 0 : index
    %c0_4 = arith.constant 0 : index
    %4 = vector.load %arg12[%c0_2, %c0_3, %c0_4] : memref<1x128x384xbf16, #tpu.memory_space<vmem>>, vector<1x128x384xbf16>
    %5 = vector.shape_cast %4 : vector<1x128x384xbf16> to vector<128x384xbf16>
    %c0_5 = arith.constant 0 : index
    %c0_6 = arith.constant 0 : index
    %c0_7 = arith.constant 0 : index
    %6 = vector.load %arg13[%c0_5, %c0_6, %c0_7] : memref<1x1x384xf32, #tpu.memory_space<vmem>>, vector<1x1x384xf32>
    %7 = vector.shape_cast %6 : vector<1x1x384xf32> to vector<1x384xf32>
    %c0_8 = arith.constant 0 : index
    %c0_9 = arith.constant 0 : index
    %c0_10 = arith.constant 0 : index
    %8 = vector.load %arg14[%c0_8, %c0_9, %c0_10] : memref<1x128x128xbf16, #tpu.memory_space<vmem>>, vector<1x128x128xbf16>
    %9 = vector.shape_cast %8 : vector<1x128x128xbf16> to vector<128x128xbf16>
    %c0_11 = arith.constant 0 : index
    %c0_12 = arith.constant 0 : index
    %c0_13 = arith.constant 0 : index
    %10 = vector.load %arg15[%c0_11, %c0_12, %c0_13] : memref<1x1x128xf32, #tpu.memory_space<vmem>>, vector<1x1x128xf32>
    %11 = vector.shape_cast %10 : vector<1x1x128xf32> to vector<1x128xf32>
    %c0_14 = arith.constant 0 : index
    %c0_15 = arith.constant 0 : index
    %c0_16 = arith.constant 0 : index
    %12 = vector.load %arg16[%c0_14, %c0_15, %c0_16] : memref<1x1x128xf32, #tpu.memory_space<vmem>>, vector<1x1x128xf32>
    %13 = vector.shape_cast %12 : vector<1x1x128xf32> to vector<1x128xf32>
    %c0_17 = arith.constant 0 : index
    %c0_18 = arith.constant 0 : index
    %c0_19 = arith.constant 0 : index
    %14 = vector.load %arg17[%c0_17, %c0_18, %c0_19] : memref<1x1x128xf32, #tpu.memory_space<vmem>>, vector<1x1x128xf32>
    %15 = vector.shape_cast %14 : vector<1x1x128xf32> to vector<1x128xf32>
    %c0_20 = arith.constant 0 : index
    %c0_21 = arith.constant 0 : index
    %c0_22 = arith.constant 0 : index
    %16 = vector.load %arg18[%c0_20, %c0_21, %c0_22] : memref<1x128x128xbf16, #tpu.memory_space<vmem>>, vector<1x128x128xbf16>
    %17 = vector.shape_cast %16 : vector<1x128x128xbf16> to vector<128x128xbf16>
    %c0_23 = arith.constant 0 : index
    %c0_24 = arith.constant 0 : index
    %c0_25 = arith.constant 0 : index
    %18 = vector.load %arg19[%c0_23, %c0_24, %c0_25] : memref<1x1x128xf32, #tpu.memory_space<vmem>>, vector<1x1x128xf32>
    %19 = vector.shape_cast %18 : vector<1x1x128xf32> to vector<1x128xf32>
    %c0_26 = arith.constant 0 : index
    %c0_27 = arith.constant 0 : index
    %c0_28 = arith.constant 0 : index
    %20 = vector.load %arg20[%c0_26, %c0_27, %c0_28] : memref<1x128x128xbf16, #tpu.memory_space<vmem>>, vector<1x128x128xbf16>
    %21 = vector.shape_cast %20 : vector<1x128x128xbf16> to vector<128x128xbf16>
    %c0_29 = arith.constant 0 : index
    %c0_30 = arith.constant 0 : index
    %c0_31 = arith.constant 0 : index
    %22 = vector.load %arg21[%c0_29, %c0_30, %c0_31] : memref<1x1x128xf32, #tpu.memory_space<vmem>>, vector<1x1x128xf32>
    %23 = vector.shape_cast %22 : vector<1x1x128xf32> to vector<1x128xf32>
    %c0_32 = arith.constant 0 : index
    %c0_33 = arith.constant 0 : index
    %c0_34 = arith.constant 0 : index
    %24 = vector.load %arg22[%c0_32, %c0_33, %c0_34] : memref<1x1x128xf32, #tpu.memory_space<vmem>>, vector<1x1x128xf32>
    %25 = vector.shape_cast %24 : vector<1x1x128xf32> to vector<1x128xf32>
    %c0_35 = arith.constant 0 : index
    %c0_36 = arith.constant 0 : index
    %c0_37 = arith.constant 0 : index
    %26 = vector.load %arg23[%c0_35, %c0_36, %c0_37] : memref<1x1x128xf32, #tpu.memory_space<vmem>>, vector<1x1x128xf32>
    %27 = vector.shape_cast %26 : vector<1x1x128xf32> to vector<1x128xf32>
    %28 = tpu.iota {dimensions = array<i32: 1>} : vector<1x128xi32>
    %c32_i32 = arith.constant 32 : i32
    %29 = vector.broadcast %c32_i32 : i32 to vector<1x128xi32>
    %30 = arith.cmpi slt, %28, %29 : vector<1x128xi32>
    %31 = arith.extui %30 : vector<1x128xi1> to vector<1x128xi32>
    %32 = arith.sitofp %31 : vector<1x128xi32> to vector<1x128xf32>
    %33 = arith.truncf %3 : vector<17x128xf32> to vector<17x128xbf16>
    %cst = arith.constant dense<0.000000e+00> : vector<17x384xf32>
    %34 = tpu.matmul %33, %5, %cst {dimension_numbers = #tpu.dot_dimension_numbers<[1], [0], [0], [1], [0, 0, 1, 1], [], []>} : vector<17x128xbf16>, vector<128x384xbf16>, vector<17x384xf32> -> vector<17x384xf32>
    %35 = vector.broadcast %7 : vector<1x384xf32> to vector<17x384xf32>
    %36 = arith.addf %34, %35 : vector<17x384xf32>
    %37 = vector.extract_strided_slice %36 {offsets = [0, 0], sizes = [17, 128], strides = [1, 1]} : vector<17x384xf32> to vector<17x128xf32>
    %38 = vector.extract_strided_slice %36 {offsets = [0, 128], sizes = [17, 128], strides = [1, 1]} : vector<17x384xf32> to vector<17x128xf32>
    %39 = vector.extract_strided_slice %36 {offsets = [0, 256], sizes = [17, 128], strides = [1, 1]} : vector<17x384xf32> to vector<17x128xf32>
    %cst_38 = arith.constant 0.000000e+00 : f32
    %40 = vector.broadcast %cst_38 : f32 to vector<17x128xf32>
    %c0_i32_39 = arith.constant 0 : i32
    %41 = vector.broadcast %c0_i32_39 : i32 to vector<1x128xi32>
    %42 = arith.cmpi sge, %28, %41 : vector<1x128xi32>
    %c8_i32 = arith.constant 8 : i32
    %43 = vector.broadcast %c8_i32 : i32 to vector<1x128xi32>
    %44 = arith.cmpi slt, %28, %43 : vector<1x128xi32>
    %45 = arith.andi %42, %44 : vector<1x128xi1>
    %46 = arith.extui %45 : vector<1x128xi1> to vector<1x128xi32>
    %47 = arith.sitofp %46 : vector<1x128xi32> to vector<1x128xf32>
    %48 = vector.broadcast %47 : vector<1x128xf32> to vector<17x128xf32>
    %49 = arith.mulf %37, %48 : vector<17x128xf32>
    %cst_40 = arith.constant dense<0.000000e+00> : vector<17x17xf32>
    %50 = tpu.matmul %49, %38, %cst_40 {dimension_numbers = #tpu.dot_dimension_numbers<[1], [1], [0], [0], [0, 0, 1, 0], [], []>} : vector<17x128xf32>, vector<17x128xf32>, vector<17x17xf32> -> vector<17x17xf32>
    %cst_41 = arith.constant 0.353553385 : f32
    %51 = vector.broadcast %cst_41 : f32 to vector<17x17xf32>
    %52 = arith.mulf %50, %51 : vector<17x17xf32>
    %cst_42 = arith.constant dense<0xFF800000> : vector<17xf32>
    %53 = vector.multi_reduction <maximumf>, %52, %cst_42 [1] : vector<17x17xf32> to vector<17xf32>
    %54 = vector.shape_cast %53 : vector<17xf32> to vector<17x1xf32>
    %55 = vector.broadcast %54 : vector<17x1xf32> to vector<17x17xf32>
    %56 = arith.subf %52, %55 : vector<17x17xf32>
    %57 = math.exp %56 : vector<17x17xf32>
    %cst_43 = arith.constant dense<0.000000e+00> : vector<17xf32>
    %58 = vector.multi_reduction <add>, %57, %cst_43 [1] : vector<17x17xf32> to vector<17xf32>
    %59 = vector.shape_cast %58 : vector<17xf32> to vector<17x1xf32>
    %60 = vector.broadcast %59 : vector<17x1xf32> to vector<17x17xf32>
    %61 = arith.divf %57, %60 : vector<17x17xf32>
    %62 = vector.broadcast %47 : vector<1x128xf32> to vector<17x128xf32>
    %63 = arith.mulf %39, %62 : vector<17x128xf32>
    %cst_44 = arith.constant dense<0.000000e+00> : vector<17x128xf32>
    %64 = tpu.matmul %61, %63, %cst_44 {dimension_numbers = #tpu.dot_dimension_numbers<[1], [0], [0], [1], [0, 0, 1, 1], [], []>} : vector<17x17xf32>, vector<17x128xf32>, vector<17x128xf32> -> vector<17x128xf32>
    %65 = arith.addf %40, %64 : vector<17x128xf32>
    %c8_i32_45 = arith.constant 8 : i32
    %66 = vector.broadcast %c8_i32_45 : i32 to vector<1x128xi32>
    %67 = arith.cmpi sge, %28, %66 : vector<1x128xi32>
    %c16_i32 = arith.constant 16 : i32
    %68 = vector.broadcast %c16_i32 : i32 to vector<1x128xi32>
    %69 = arith.cmpi slt, %28, %68 : vector<1x128xi32>
    %70 = arith.andi %67, %69 : vector<1x128xi1>
    %71 = arith.extui %70 : vector<1x128xi1> to vector<1x128xi32>
    %72 = arith.sitofp %71 : vector<1x128xi32> to vector<1x128xf32>
    %73 = vector.broadcast %72 : vector<1x128xf32> to vector<17x128xf32>
    %74 = arith.mulf %37, %73 : vector<17x128xf32>
    %cst_46 = arith.constant dense<0.000000e+00> : vector<17x17xf32>
    %75 = tpu.matmul %74, %38, %cst_46 {dimension_numbers = #tpu.dot_dimension_numbers<[1], [1], [0], [0], [0, 0, 1, 0], [], []>} : vector<17x128xf32>, vector<17x128xf32>, vector<17x17xf32> -> vector<17x17xf32>
    %cst_47 = arith.constant 0.353553385 : f32
    %76 = vector.broadcast %cst_47 : f32 to vector<17x17xf32>
    %77 = arith.mulf %75, %76 : vector<17x17xf32>
    %cst_48 = arith.constant dense<0xFF800000> : vector<17xf32>
    %78 = vector.multi_reduction <maximumf>, %77, %cst_48 [1] : vector<17x17xf32> to vector<17xf32>
    %79 = vector.shape_cast %78 : vector<17xf32> to vector<17x1xf32>
    %80 = vector.broadcast %79 : vector<17x1xf32> to vector<17x17xf32>
    %81 = arith.subf %77, %80 : vector<17x17xf32>
    %82 = math.exp %81 : vector<17x17xf32>
    %cst_49 = arith.constant dense<0.000000e+00> : vector<17xf32>
    %83 = vector.multi_reduction <add>, %82, %cst_49 [1] : vector<17x17xf32> to vector<17xf32>
    %84 = vector.shape_cast %83 : vector<17xf32> to vector<17x1xf32>
    %85 = vector.broadcast %84 : vector<17x1xf32> to vector<17x17xf32>
    %86 = arith.divf %82, %85 : vector<17x17xf32>
    %87 = vector.broadcast %72 : vector<1x128xf32> to vector<17x128xf32>
    %88 = arith.mulf %39, %87 : vector<17x128xf32>
    %cst_50 = arith.constant dense<0.000000e+00> : vector<17x128xf32>
    %89 = tpu.matmul %86, %88, %cst_50 {dimension_numbers = #tpu.dot_dimension_numbers<[1], [0], [0], [1], [0, 0, 1, 1], [], []>} : vector<17x17xf32>, vector<17x128xf32>, vector<17x128xf32> -> vector<17x128xf32>
    %90 = arith.addf %65, %89 : vector<17x128xf32>
    %c16_i32_51 = arith.constant 16 : i32
    %91 = vector.broadcast %c16_i32_51 : i32 to vector<1x128xi32>
    %92 = arith.cmpi sge, %28, %91 : vector<1x128xi32>
    %c24_i32 = arith.constant 24 : i32
    %93 = vector.broadcast %c24_i32 : i32 to vector<1x128xi32>
    %94 = arith.cmpi slt, %28, %93 : vector<1x128xi32>
    %95 = arith.andi %92, %94 : vector<1x128xi1>
    %96 = arith.extui %95 : vector<1x128xi1> to vector<1x128xi32>
    %97 = arith.sitofp %96 : vector<1x128xi32> to vector<1x128xf32>
    %98 = vector.broadcast %97 : vector<1x128xf32> to vector<17x128xf32>
    %99 = arith.mulf %37, %98 : vector<17x128xf32>
    %cst_52 = arith.constant dense<0.000000e+00> : vector<17x17xf32>
    %100 = tpu.matmul %99, %38, %cst_52 {dimension_numbers = #tpu.dot_dimension_numbers<[1], [1], [0], [0], [0, 0, 1, 0], [], []>} : vector<17x128xf32>, vector<17x128xf32>, vector<17x17xf32> -> vector<17x17xf32>
    %cst_53 = arith.constant 0.353553385 : f32
    %101 = vector.broadcast %cst_53 : f32 to vector<17x17xf32>
    %102 = arith.mulf %100, %101 : vector<17x17xf32>
    %cst_54 = arith.constant dense<0xFF800000> : vector<17xf32>
    %103 = vector.multi_reduction <maximumf>, %102, %cst_54 [1] : vector<17x17xf32> to vector<17xf32>
    %104 = vector.shape_cast %103 : vector<17xf32> to vector<17x1xf32>
    %105 = vector.broadcast %104 : vector<17x1xf32> to vector<17x17xf32>
    %106 = arith.subf %102, %105 : vector<17x17xf32>
    %107 = math.exp %106 : vector<17x17xf32>
    %cst_55 = arith.constant dense<0.000000e+00> : vector<17xf32>
    %108 = vector.multi_reduction <add>, %107, %cst_55 [1] : vector<17x17xf32> to vector<17xf32>
    %109 = vector.shape_cast %108 : vector<17xf32> to vector<17x1xf32>
    %110 = vector.broadcast %109 : vector<17x1xf32> to vector<17x17xf32>
    %111 = arith.divf %107, %110 : vector<17x17xf32>
    %112 = vector.broadcast %97 : vector<1x128xf32> to vector<17x128xf32>
    %113 = arith.mulf %39, %112 : vector<17x128xf32>
    %cst_56 = arith.constant dense<0.000000e+00> : vector<17x128xf32>
    %114 = tpu.matmul %111, %113, %cst_56 {dimension_numbers = #tpu.dot_dimension_numbers<[1], [0], [0], [1], [0, 0, 1, 1], [], []>} : vector<17x17xf32>, vector<17x128xf32>, vector<17x128xf32> -> vector<17x128xf32>
    %115 = arith.addf %90, %114 : vector<17x128xf32>
    %c24_i32_57 = arith.constant 24 : i32
    %116 = vector.broadcast %c24_i32_57 : i32 to vector<1x128xi32>
    %117 = arith.cmpi sge, %28, %116 : vector<1x128xi32>
    %c32_i32_58 = arith.constant 32 : i32
    %118 = vector.broadcast %c32_i32_58 : i32 to vector<1x128xi32>
    %119 = arith.cmpi slt, %28, %118 : vector<1x128xi32>
    %120 = arith.andi %117, %119 : vector<1x128xi1>
    %121 = arith.extui %120 : vector<1x128xi1> to vector<1x128xi32>
    %122 = arith.sitofp %121 : vector<1x128xi32> to vector<1x128xf32>
    %123 = vector.broadcast %122 : vector<1x128xf32> to vector<17x128xf32>
    %124 = arith.mulf %37, %123 : vector<17x128xf32>
    %cst_59 = arith.constant dense<0.000000e+00> : vector<17x17xf32>
    %125 = tpu.matmul %124, %38, %cst_59 {dimension_numbers = #tpu.dot_dimension_numbers<[1], [1], [0], [0], [0, 0, 1, 0], [], []>} : vector<17x128xf32>, vector<17x128xf32>, vector<17x17xf32> -> vector<17x17xf32>
    %cst_60 = arith.constant 0.353553385 : f32
    %126 = vector.broadcast %cst_60 : f32 to vector<17x17xf32>
    %127 = arith.mulf %125, %126 : vector<17x17xf32>
    %cst_61 = arith.constant dense<0xFF800000> : vector<17xf32>
    %128 = vector.multi_reduction <maximumf>, %127, %cst_61 [1] : vector<17x17xf32> to vector<17xf32>
    %129 = vector.shape_cast %128 : vector<17xf32> to vector<17x1xf32>
    %130 = vector.broadcast %129 : vector<17x1xf32> to vector<17x17xf32>
    %131 = arith.subf %127, %130 : vector<17x17xf32>
    %132 = math.exp %131 : vector<17x17xf32>
    %cst_62 = arith.constant dense<0.000000e+00> : vector<17xf32>
    %133 = vector.multi_reduction <add>, %132, %cst_62 [1] : vector<17x17xf32> to vector<17xf32>
    %134 = vector.shape_cast %133 : vector<17xf32> to vector<17x1xf32>
    %135 = vector.broadcast %134 : vector<17x1xf32> to vector<17x17xf32>
    %136 = arith.divf %132, %135 : vector<17x17xf32>
    %137 = vector.broadcast %122 : vector<1x128xf32> to vector<17x128xf32>
    %138 = arith.mulf %39, %137 : vector<17x128xf32>
    %cst_63 = arith.constant dense<0.000000e+00> : vector<17x128xf32>
    %139 = tpu.matmul %136, %138, %cst_63 {dimension_numbers = #tpu.dot_dimension_numbers<[1], [0], [0], [1], [0, 0, 1, 1], [], []>} : vector<17x17xf32>, vector<17x128xf32>, vector<17x128xf32> -> vector<17x128xf32>
    %140 = arith.addf %115, %139 : vector<17x128xf32>
    %141 = arith.truncf %140 : vector<17x128xf32> to vector<17x128xbf16>
    %cst_64 = arith.constant dense<0.000000e+00> : vector<17x128xf32>
    %142 = tpu.matmul %141, %9, %cst_64 {dimension_numbers = #tpu.dot_dimension_numbers<[1], [0], [0], [1], [0, 0, 1, 1], [], []>} : vector<17x128xbf16>, vector<128x128xbf16>, vector<17x128xf32> -> vector<17x128xf32>
    %143 = vector.broadcast %11 : vector<1x128xf32> to vector<17x128xf32>
    %144 = arith.addf %142, %143 : vector<17x128xf32>
    %145 = arith.addf %3, %144 : vector<17x128xf32>
    %cst_65 = arith.constant dense<0.000000e+00> : vector<17xf32>
    %146 = vector.multi_reduction <add>, %145, %cst_65 [1] : vector<17x128xf32> to vector<17xf32>
    %147 = vector.shape_cast %146 : vector<17xf32> to vector<17x1xf32>
    %cst_66 = arith.constant 3.200000e+01 : f32
    %148 = vector.broadcast %cst_66 : f32 to vector<17x1xf32>
    %149 = arith.divf %147, %148 : vector<17x1xf32>
    %150 = vector.broadcast %149 : vector<17x1xf32> to vector<17x128xf32>
    %151 = arith.subf %145, %150 : vector<17x128xf32>
    %152 = vector.broadcast %32 : vector<1x128xf32> to vector<17x128xf32>
    %153 = arith.mulf %151, %152 : vector<17x128xf32>
    %154 = arith.mulf %153, %153 : vector<17x128xf32>
    %cst_67 = arith.constant dense<0.000000e+00> : vector<17xf32>
    %155 = vector.multi_reduction <add>, %154, %cst_67 [1] : vector<17x128xf32> to vector<17xf32>
    %156 = vector.shape_cast %155 : vector<17xf32> to vector<17x1xf32>
    %cst_68 = arith.constant 3.200000e+01 : f32
    %157 = vector.broadcast %cst_68 : f32 to vector<17x1xf32>
    %158 = arith.divf %156, %157 : vector<17x1xf32>
    %cst_69 = arith.constant 9.99999974E-6 : f32
    %159 = vector.broadcast %cst_69 : f32 to vector<17x1xf32>
    %160 = arith.addf %158, %159 : vector<17x1xf32>
    %161 = math.rsqrt %160 : vector<17x1xf32>
    %162 = vector.broadcast %161 : vector<17x1xf32> to vector<17x128xf32>
    %163 = arith.mulf %153, %162 : vector<17x128xf32>
    %164 = vector.broadcast %13 : vector<1x128xf32> to vector<17x128xf32>
    %165 = arith.mulf %163, %164 : vector<17x128xf32>
    %166 = vector.broadcast %15 : vector<1x128xf32> to vector<17x128xf32>
    %167 = arith.addf %165, %166 : vector<17x128xf32>
    %168 = arith.truncf %167 : vector<17x128xf32> to vector<17x128xbf16>
    %cst_70 = arith.constant dense<0.000000e+00> : vector<17x128xf32>
    %169 = tpu.matmul %168, %17, %cst_70 {dimension_numbers = #tpu.dot_dimension_numbers<[1], [0], [0], [1], [0, 0, 1, 1], [], []>} : vector<17x128xbf16>, vector<128x128xbf16>, vector<17x128xf32> -> vector<17x128xf32>
    %170 = vector.broadcast %19 : vector<1x128xf32> to vector<17x128xf32>
    %171 = arith.addf %169, %170 : vector<17x128xf32>
    %cst_71 = arith.constant 5.000000e-01 : f32
    %172 = vector.broadcast %cst_71 : f32 to vector<17x128xf32>
    %173 = arith.mulf %172, %171 : vector<17x128xf32>
    %cst_72 = arith.constant 4.471500e-02 : f32
    %174 = vector.broadcast %cst_72 : f32 to vector<17x128xf32>
    %175 = arith.mulf %174, %171 : vector<17x128xf32>
    %176 = arith.mulf %175, %171 : vector<17x128xf32>
    %177 = arith.mulf %176, %171 : vector<17x128xf32>
    %178 = arith.addf %171, %177 : vector<17x128xf32>
    %cst_73 = arith.constant 0.797884583 : f32
    %179 = vector.broadcast %cst_73 : f32 to vector<17x128xf32>
    %180 = arith.mulf %179, %178 : vector<17x128xf32>
    %181 = math.tanh %180 : vector<17x128xf32>
    %cst_74 = arith.constant 1.000000e+00 : f32
    %182 = vector.broadcast %cst_74 : f32 to vector<17x128xf32>
    %183 = arith.addf %182, %181 : vector<17x128xf32>
    %184 = arith.mulf %173, %183 : vector<17x128xf32>
    %185 = arith.truncf %184 : vector<17x128xf32> to vector<17x128xbf16>
    %cst_75 = arith.constant dense<0.000000e+00> : vector<17x128xf32>
    %186 = tpu.matmul %185, %21, %cst_75 {dimension_numbers = #tpu.dot_dimension_numbers<[1], [0], [0], [1], [0, 0, 1, 1], [], []>} : vector<17x128xbf16>, vector<128x128xbf16>, vector<17x128xf32> -> vector<17x128xf32>
    %187 = vector.broadcast %23 : vector<1x128xf32> to vector<17x128xf32>
    %188 = arith.addf %186, %187 : vector<17x128xf32>
    %189 = arith.addf %167, %188 : vector<17x128xf32>
    %cst_76 = arith.constant dense<0.000000e+00> : vector<17xf32>
    %190 = vector.multi_reduction <add>, %189, %cst_76 [1] : vector<17x128xf32> to vector<17xf32>
    %191 = vector.shape_cast %190 : vector<17xf32> to vector<17x1xf32>
    %cst_77 = arith.constant 3.200000e+01 : f32
    %192 = vector.broadcast %cst_77 : f32 to vector<17x1xf32>
    %193 = arith.divf %191, %192 : vector<17x1xf32>
    %194 = vector.broadcast %193 : vector<17x1xf32> to vector<17x128xf32>
    %195 = arith.subf %189, %194 : vector<17x128xf32>
    %196 = vector.broadcast %32 : vector<1x128xf32> to vector<17x128xf32>
    %197 = arith.mulf %195, %196 : vector<17x128xf32>
    %198 = arith.mulf %197, %197 : vector<17x128xf32>
    %cst_78 = arith.constant dense<0.000000e+00> : vector<17xf32>
    %199 = vector.multi_reduction <add>, %198, %cst_78 [1] : vector<17x128xf32> to vector<17xf32>
    %200 = vector.shape_cast %199 : vector<17xf32> to vector<17x1xf32>
    %cst_79 = arith.constant 3.200000e+01 : f32
    %201 = vector.broadcast %cst_79 : f32 to vector<17x1xf32>
    %202 = arith.divf %200, %201 : vector<17x1xf32>
    %cst_80 = arith.constant 9.99999974E-6 : f32
    %203 = vector.broadcast %cst_80 : f32 to vector<17x1xf32>
    %204 = arith.addf %202, %203 : vector<17x1xf32>
    %205 = math.rsqrt %204 : vector<17x1xf32>
    %206 = vector.broadcast %205 : vector<17x1xf32> to vector<17x128xf32>
    %207 = arith.mulf %197, %206 : vector<17x128xf32>
    %208 = vector.broadcast %25 : vector<1x128xf32> to vector<17x128xf32>
    %209 = arith.mulf %207, %208 : vector<17x128xf32>
    %210 = vector.broadcast %27 : vector<1x128xf32> to vector<17x128xf32>
    %211 = arith.addf %209, %210 : vector<17x128xf32>
    %c0_81 = arith.constant 0 : index
    %c0_82 = arith.constant 0 : index
    %212 = vector.load %arg27[%c0_81, %c0_82] : memref<17x128xf32, #tpu.memory_space<vmem>>, vector<17x128xf32>
    tpu.vector_store %arg27[%c0_81, %c0_82], %211 {strides = array<i32>} : memref<17x128xf32, #tpu.memory_space<vmem>>, vector<17x128xf32>,
    %c1_i32 = arith.constant 1 : i32
    %213 = arith.cmpi eq, %arg1, %c1_i32 : i32
    %214 = arith.extui %213 : i1 to i32
    %c0_i32_83 = arith.constant 0 : i32
    %215 = arith.cmpi ne, %214, %c0_i32_83 : i32
    scf.if %215 {
      %216 = vector.extract_strided_slice %211 {offsets = [9, 0], sizes = [8, 128], strides = [1, 1]} : vector<17x128xf32> to vector<8x128xf32>
      %217 = arith.truncf %216 : vector<8x128xf32> to vector<8x128xbf16>
      %c0_84 = arith.constant 0 : index
      %c0_85 = arith.constant 0 : index
      %218 = vector.load %arg24[%c0_84, %c0_85] : memref<128x128xbf16, #tpu.memory_space<vmem>>, vector<128x128xbf16>
      %cst_86 = arith.constant dense<0.000000e+00> : vector<8x128xf32>
      %219 = tpu.matmul %217, %218, %cst_86 {dimension_numbers = #tpu.dot_dimension_numbers<[1], [0], [0], [1], [0, 0, 1, 1], [], []>} : vector<8x128xbf16>, vector<128x128xbf16>, vector<8x128xf32> -> vector<8x128xf32>
      %c0_87 = arith.constant 0 : index
      %c0_88 = arith.constant 0 : index
      %220 = vector.load %arg25[%c0_87, %c0_88] : memref<1x128xf32, #tpu.memory_space<vmem>>, vector<1x128xf32>
      %221 = vector.broadcast %220 : vector<1x128xf32> to vector<8x128xf32>
      %222 = arith.addf %219, %221 : vector<8x128xf32>
      %c0_89 = arith.constant 0 : index
      %c0_90 = arith.constant 0 : index
      %c0_91 = arith.constant 0 : index
      %223 = vector.load %arg26[%c0_89, %c0_90, %c0_91] : memref<1x8x128xf32, #tpu.memory_space<vmem>>, vector<1x8x128xf32>
      %224 = vector.shape_cast %223 : vector<1x8x128xf32> to vector<8x128xf32>
      %225 = vector.shape_cast %222 : vector<8x128xf32> to vector<1x8x128xf32>
      tpu.vector_store %arg26[%c0_89, %c0_90, %c0_91], %225 {strides = array<i32>} : memref<1x8x128xf32, #tpu.memory_space<vmem>>, vector<1x8x128xf32>,
    } else {
    }
    return
  }
  func.func @transform_0(%arg0: i32, %arg1: i32) -> (i32, i32, i32) {
    %c0_i32 = arith.constant 0 : i32
    %c0_i32_0 = arith.constant 0 : i32
    %c0_i32_1 = arith.constant 0 : i32
    return %arg0, %c0_i32, %c0_i32_0 : i32, i32, i32
  }
  func.func @transform_1(%arg0: i32, %arg1: i32) -> (i32, i32, i32) {
    %c0_i32 = arith.constant 0 : i32
    %c0_i32_0 = arith.constant 0 : i32
    %c0_i32_1 = arith.constant 0 : i32
    return %arg0, %c0_i32, %c0_i32_0 : i32, i32, i32
  }
  func.func @transform_2(%arg0: i32, %arg1: i32) -> (i32, i32, i32) {
    %c0_i32 = arith.constant 0 : i32
    %c0_i32_0 = arith.constant 0 : i32
    %c0_i32_1 = arith.constant 0 : i32
    return %arg0, %c0_i32, %c0_i32_0 : i32, i32, i32
  }
  func.func @transform_3(%arg0: i32, %arg1: i32) -> (i32, i32) {
    %c0_i32 = arith.constant 0 : i32
    %c0_i32_0 = arith.constant 0 : i32
    %c0_i32_1 = arith.constant 0 : i32
    return %c0_i32, %c0_i32_0 : i32, i32
  }
  func.func @transform_4(%arg0: i32, %arg1: i32) -> (i32, i32) {
    %c0_i32 = arith.constant 0 : i32
    %c0_i32_0 = arith.constant 0 : i32
    %c0_i32_1 = arith.constant 0 : i32
    return %c0_i32, %c0_i32_0 : i32, i32
  }
  func.func @transform_5(%arg0: i32, %arg1: i32) -> (i32, i32) {
    %c0_i32 = arith.constant 0 : i32
    %c0_i32_0 = arith.constant 0 : i32
    %c0_i32_1 = arith.constant 0 : i32
    return %c0_i32, %c0_i32_0 : i32, i32
  }
  func.func @transform_6(%arg0: i32, %arg1: i32) -> (i32, i32) {
    %c0_i32 = arith.constant 0 : i32
    %c0_i32_0 = arith.constant 0 : i32
    %c0_i32_1 = arith.constant 0 : i32
    return %c0_i32, %c0_i32_0 : i32, i32
  }
  func.func @transform_7(%arg0: i32, %arg1: i32) -> (i32, i32) {
    %c0_i32 = arith.constant 0 : i32
    %c0_i32_0 = arith.constant 0 : i32
    %c0_i32_1 = arith.constant 0 : i32
    return %c0_i32, %c0_i32_0 : i32, i32
  }
  func.func @transform_8(%arg0: i32, %arg1: i32) -> (i32, i32) {
    %c0_i32 = arith.constant 0 : i32
    %c0_i32_0 = arith.constant 0 : i32
    %c0_i32_1 = arith.constant 0 : i32
    return %c0_i32, %c0_i32_0 : i32, i32
  }
  func.func @transform_9(%arg0: i32, %arg1: i32) -> (i32, i32) {
    %c0_i32 = arith.constant 0 : i32
    %c0_i32_0 = arith.constant 0 : i32
    %c0_i32_1 = arith.constant 0 : i32
    return %c0_i32, %c0_i32_0 : i32, i32
  }
  func.func @transform_10(%arg0: i32, %arg1: i32) -> (i32, i32, i32) {
    %c0_i32 = arith.constant 0 : i32
    %c0_i32_0 = arith.constant 0 : i32
    %c0_i32_1 = arith.constant 0 : i32
    return %arg1, %c0_i32, %c0_i32_0 : i32, i32, i32
  }
  func.func @transform_11(%arg0: i32, %arg1: i32) -> (i32, i32, i32) {
    %c0_i32 = arith.constant 0 : i32
    %c0_i32_0 = arith.constant 0 : i32
    %c0_i32_1 = arith.constant 0 : i32
    return %arg1, %c0_i32, %c0_i32_0 : i32, i32, i32
  }
  func.func @transform_12(%arg0: i32, %arg1: i32) -> (i32, i32, i32) {
    %c0_i32 = arith.constant 0 : i32
    %c0_i32_0 = arith.constant 0 : i32
    %c0_i32_1 = arith.constant 0 : i32
    return %arg1, %c0_i32, %c0_i32_0 : i32, i32, i32
  }
  func.func @transform_13(%arg0: i32, %arg1: i32) -> (i32, i32, i32) {
    %c0_i32 = arith.constant 0 : i32
    %c0_i32_0 = arith.constant 0 : i32
    %c0_i32_1 = arith.constant 0 : i32
    return %arg1, %c0_i32, %c0_i32_0 : i32, i32, i32
  }
  func.func @transform_14(%arg0: i32, %arg1: i32) -> (i32, i32, i32) {
    %c0_i32 = arith.constant 0 : i32
    %c0_i32_0 = arith.constant 0 : i32
    %c0_i32_1 = arith.constant 0 : i32
    return %arg1, %c0_i32, %c0_i32_0 : i32, i32, i32
  }
  func.func @transform_15(%arg0: i32, %arg1: i32) -> (i32, i32, i32) {
    %c0_i32 = arith.constant 0 : i32
    %c0_i32_0 = arith.constant 0 : i32
    %c0_i32_1 = arith.constant 0 : i32
    return %arg1, %c0_i32, %c0_i32_0 : i32, i32, i32
  }
  func.func @transform_16(%arg0: i32, %arg1: i32) -> (i32, i32, i32) {
    %c0_i32 = arith.constant 0 : i32
    %c0_i32_0 = arith.constant 0 : i32
    %c0_i32_1 = arith.constant 0 : i32
    return %arg1, %c0_i32, %c0_i32_0 : i32, i32, i32
  }
  func.func @transform_17(%arg0: i32, %arg1: i32) -> (i32, i32, i32) {
    %c0_i32 = arith.constant 0 : i32
    %c0_i32_0 = arith.constant 0 : i32
    %c0_i32_1 = arith.constant 0 : i32
    return %arg1, %c0_i32, %c0_i32_0 : i32, i32, i32
  }
  func.func @transform_18(%arg0: i32, %arg1: i32) -> (i32, i32, i32) {
    %c0_i32 = arith.constant 0 : i32
    %c0_i32_0 = arith.constant 0 : i32
    %c0_i32_1 = arith.constant 0 : i32
    return %arg1, %c0_i32, %c0_i32_0 : i32, i32, i32
  }
  func.func @transform_19(%arg0: i32, %arg1: i32) -> (i32, i32, i32) {
    %c0_i32 = arith.constant 0 : i32
    %c0_i32_0 = arith.constant 0 : i32
    %c0_i32_1 = arith.constant 0 : i32
    return %arg1, %c0_i32, %c0_i32_0 : i32, i32, i32
  }
  func.func @transform_20(%arg0: i32, %arg1: i32) -> (i32, i32, i32) {
    %c0_i32 = arith.constant 0 : i32
    %c0_i32_0 = arith.constant 0 : i32
    %c0_i32_1 = arith.constant 0 : i32
    return %arg1, %c0_i32, %c0_i32_0 : i32, i32, i32
  }
  func.func @transform_21(%arg0: i32, %arg1: i32) -> (i32, i32, i32) {
    %c0_i32 = arith.constant 0 : i32
    %c0_i32_0 = arith.constant 0 : i32
    %c0_i32_1 = arith.constant 0 : i32
    return %arg1, %c0_i32, %c0_i32_0 : i32, i32, i32
  }
  func.func @transform_22(%arg0: i32, %arg1: i32) -> (i32, i32) {
    %c0_i32 = arith.constant 0 : i32
    %c0_i32_0 = arith.constant 0 : i32
    %c0_i32_1 = arith.constant 0 : i32
    return %c0_i32, %c0_i32_0 : i32, i32
  }
  func.func @transform_23(%arg0: i32, %arg1: i32) -> (i32, i32) {
    %c0_i32 = arith.constant 0 : i32
    %c0_i32_0 = arith.constant 0 : i32
    %c0_i32_1 = arith.constant 0 : i32
    return %c0_i32, %c0_i32_0 : i32, i32
  }
  func.func @transform_24(%arg0: i32, %arg1: i32) -> (i32, i32, i32) {
    %c0_i32 = arith.constant 0 : i32
    %c0_i32_0 = arith.constant 0 : i32
    %c0_i32_1 = arith.constant 0 : i32
    return %arg0, %c0_i32, %c0_i32_0 : i32, i32, i32
  }
}

</mosaic_0001>

<llo_original>
// kernel: concat_seq_encoder_m2mdm_forward.2
$region0: #{concat_seq_encoder_m2mdm_forward.2}
  #allocation0 [shape = 'u32[]', space=smem, size = 0x4, offset = 0x4, fixed_abs, tag = 'smem constant byte address 0x4 - core index']
  #allocation1 [shape = 'u32[144,128]{1,0:T(1,128)}', space=vmem, size = 0x12000, scoped, tag = 'internal scratch']
  %s0 = inlined_call_operand.vmem [shape: f32[2,8,128], index: 0, kind: input, shape index: {}]
  %s1 = inlined_call_operand.vmem [shape: f32[8,128], index: 1, kind: input, shape index: {}]
  %s2 = inlined_call_operand.hbm [shape: bf16[128,128], index: 2, kind: input, shape index: {}]
  %s3 = inlined_call_operand.hbm [shape: f32[1,128], index: 3, kind: input, shape index: {}]
  %s4 = inlined_call_operand.hbm [shape: bf16[2,128,384], index: 4, kind: input, shape index: {}]
  %s5 = inlined_call_operand.hbm [shape: f32[2,1,384], index: 5, kind: input, shape index: {}]
  %s6 = inlined_call_operand.vmem [shape: bf16[2,128,128], index: 6, kind: input, shape index: {}]
  %s7 = inlined_call_operand.hbm [shape: f32[2,1,128], index: 7, kind: input, shape index: {}]
  %s8 = inlined_call_operand.hbm [shape: f32[2,1,128], index: 8, kind: input, shape index: {}]
  %s9 = inlined_call_operand.hbm [shape: f32[2,1,128], index: 9, kind: input, shape index: {}]
  %s10 = inlined_call_operand.hbm [shape: bf16[2,128,128], index: 10, kind: input, shape index: {}]
  %s11 = inlined_call_operand.hbm [shape: f32[2,1,128], index: 11, kind: input, shape index: {}]
  %s12 = inlined_call_operand.hbm [shape: bf16[2,128,128], index: 12, kind: input, shape index: {}]
  %s13 = inlined_call_operand.hbm [shape: f32[2,1,128], index: 13, kind: input, shape index: {}]
  %s14 = inlined_call_operand.hbm [shape: f32[2,1,128], index: 14, kind: input, shape index: {}]
  %s15 = inlined_call_operand.hbm [shape: f32[2,1,128], index: 15, kind: input, shape index: {}]
  %s16 = inlined_call_operand.vmem [shape: f32[2,8,128], index: 16, kind: output, shape index: {}]
  %s17 = sld [smem:[#allocation0]]
  $region153: #{concat_seq_encoder_m2mdm_forward.2} parent=0
    _
  %s19 = ssub.s32 1, %s17
  %s20 = scalar_select 0, %s19, %s17
  $region1: #{concat_seq_encoder_m2mdm_forward.2} parent=0
    #allocation2 [shape = 'u8[32768]{0}', space=vmem, size = 0x8000, scoped, tag = 'input window, operand 2, single buffered']
    #allocation3 [shape = 's32[2]{0}', space=sflag, size = 0x8, scoped, tag = 'scoped memory for concat_seq_encoder_m2mdm_forward.2']
    #allocation4 [shape = 'u8[512]{0}', space=vmem, size = 0x400, scoped, tag = 'input window, operand 3, single buffered']
    #allocation5 [shape = 's32[1]{0}', space=sflag, size = 0x4, scoped, tag = 'scoped memory for concat_seq_encoder_m2mdm_forward.2']
    #allocation6 [shape = 'u8[196608]{0}', space=vmem, size = 0x30000, scoped, tag = 'input window, operand 4']
    #allocation7 [shape = 'u8[3072]{0}', space=vmem, size = 0xc00, scoped, tag = 'input window, operand 5']
    #allocation8 [shape = 'u8[1024]{0}', space=vmem, size = 0x400, scoped, tag = 'input window, operand 7']
    #allocation9 [shape = 'u8[1024]{0}', space=vmem, size = 0x400, scoped, tag = 'input window, operand 8']
    #allocation10 [shape = 'u8[1024]{0}', space=vmem, size = 0x400, scoped, tag = 'input window, operand 9']
    #allocation11 [shape = 'u8[65536]{0}', space=vmem, size = 0x10000, scoped, tag = 'input window, operand 10']
    #allocation12 [shape = 'u8[1024]{0}', space=vmem, size = 0x400, scoped, tag = 'input window, operand 11']
    #allocation13 [shape = 'u8[65536]{0}', space=vmem, size = 0x10000, scoped, tag = 'input window, operand 12']
    #allocation14 [shape = 'u8[1024]{0}', space=vmem, size = 0x400, scoped, tag = 'input window, operand 13']
    #allocation15 [shape = 'u8[1024]{0}', space=vmem, size = 0x400, scoped, tag = 'input window, operand 14']
    #allocation16 [shape = 'u8[1024]{0}', space=vmem, size = 0x400, scoped, tag = 'input window, operand 15']
    %21 = vsyncpa [#allocation3], 0
    %22 = vsyncpa [#allocation5], 0
    loop: start=0, step=1, limit=6
    $region2: #{concat_seq_encoder_m2mdm_forward.2} parent=1 // loop_pre_header
      _
    $region3: #{concat_seq_encoder_m2mdm_forward.2} parent=1 // loop_header
      %s24 = sphi 0, %s28
      %p25 = scmp.ge.s32.totalorder %s24, 6
      %s31 = sphi 0, %s43
      %s32 = sphi 0, %s39
      %s33 = sphi 0, %s31
      %s34 = sphi 0, %s32
      %s35 = sphi 0, %s33
      %s36 = sphi 0, %s34
      %s46 = sphi 0, %s48
      %s49 = sphi 0, %s46
      %s50 = sphi 0, %s49
      %s66 = sphi 0, %s50
      %s70 = sphi 0, %s70
      %s72 = sphi 0, %s70
      %s73 = sphi 0, %s72
      %s87 = sphi 0, %s73
      %s91 = sphi 0, %s91
      %s93 = sphi 0, %s91
      %s94 = sphi 0, %s93
      %s108 = sphi 0, %s94
      %s112 = sphi 0, %s112
      %s114 = sphi 0, %s112
      %s115 = sphi 0, %s114
      %s129 = sphi 0, %s115
      %s135 = sphi 0, %s137
      %s138 = sphi 0, %s135
      %s139 = sphi 0, %s138
      %s155 = sphi 0, %s139
      %s161 = sphi 0, %s163
      %s164 = sphi 0, %s161
      %s165 = sphi 0, %s164
      %s181 = sphi 0, %s165
      %s187 = sphi 0, %s189
      %s190 = sphi 0, %s187
      %s191 = sphi 0, %s190
      %s207 = sphi 0, %s191
      %s213 = sphi 0, %s215
      %s216 = sphi 0, %s213
      %s217 = sphi 0, %s216
      %s233 = sphi 0, %s217
      %s239 = sphi 0, %s241
      %s242 = sphi 0, %s239
      %s243 = sphi 0, %s242
      %s259 = sphi 0, %s243
      %s265 = sphi 0, %s267
      %s268 = sphi 0, %s265
      %s269 = sphi 0, %s268
      %s285 = sphi 0, %s269
      %s291 = sphi 0, %s293
      %s294 = sphi 0, %s291
      %s295 = sphi 0, %s294
      %s311 = sphi 0, %s295
      %s317 = sphi 0, %s319
      %s320 = sphi 0, %s317
      %s321 = sphi 0, %s320
      %s337 = sphi 0, %s321
      %s343 = sphi 0, %s345
      %s346 = sphi 0, %s343
      %s347 = sphi 0, %s346
      %s363 = sphi 0, %s347
      %s369 = sphi 0, %s371
      %s372 = sphi 0, %s369
      %s373 = sphi 0, %s372
      %s389 = sphi 0, %s373
      %s395 = sphi 0, %s397
      %s398 = sphi 0, %s395
      %s399 = sphi 0, %s398
      %s415 = sphi 0, %s399
      %s421 = sphi 0, %s423
      %s424 = sphi 0, %s421
      %s425 = sphi 0, %s424
      %s441 = sphi 0, %s425
      %s447 = sphi 0, %s449
      %s450 = sphi 0, %s447
      %s451 = sphi 0, %s450
      %s467 = sphi 0, %s451
    $region4: #{concat_seq_encoder_m2mdm_forward.2} parent=1 // loop_header_branch
      %27 = sbr.rel (%p25) target = $region8
    $region5: #{concat_seq_encoder_m2mdm_forward.2} parent=1 // loop_body
      %s29 = ssub.s32 %s24, 1
      %s30 = ssub.s32 %s24, 2
      %s37 = sadd.s32 1, %s32
      %p38 = scmp.ge.s32.totalorder %s37, 2
      %s39 = scalar_select %p38, 0, %s37
      %s40 = sadd.s32 1, %s31
      %s41 = scalar_select %p38, %s40, %s31
      %p42 = scmp.ge.s32.totalorder %s41, 2
      %s43 = scalar_select %p42, 0, %s41
      %s44 = ssub.s32 %s31, %s43
      %p45 = scmp.eq.s32.totalorder %s44, 0
      %s47 = sadd.s32 %s46, 1
      %s48 = scalar_select %p45, %s46, %s47
      %p51 = pneg %p45
      %p52 = scmp.eq.s32.totalorder %s24, 3
      %p53 = por %p51, %p52
      %p54 = scmp.ne.s32.totalorder %s46, %s49
      %p55 = scmp.eq.s32.totalorder %s24, 0
      %p56 = por %p54, %p55
      %p57 = scmp.ne.s32.totalorder %s46, %s49
      %p58 = scmp.eq.s32.totalorder %s29, 3
      %p59 = por %p57, %p58
      %p60 = scmp.ne.s32.totalorder %s49, %s50
      %p61 = scmp.eq.s32.totalorder %s29, 0
      %p62 = por %p60, %p61
      %p63 = scmp.ne.s32.totalorder %s49, %s50
      %p64 = scmp.eq.s32.totalorder %s30, 3
      %p65 = por %p63, %p64
      %p67 = scmp.ne.s32.totalorder %s50, %s66
      %p68 = scmp.eq.s32.totalorder %s30, 0
      %p69 = por %p67, %p68
      %s71 = sadd.s32 %s70, 1
      %p74 = scmp.eq.s32.totalorder %s24, 3
      %p75 = scmp.ne.s32.totalorder %s70, %s72
      %p76 = scmp.eq.s32.totalorder %s24, 0
      %p77 = por %p75, %p76
      %p78 = scmp.ne.s32.totalorder %s70, %s72
      %p79 = scmp.eq.s32.totalorder %s29, 3
      %p80 = por %p78, %p79
      %p81 = scmp.ne.s32.totalorder %s72, %s73
      %p82 = scmp.eq.s32.totalorder %s29, 0
      %p83 = por %p81, %p82
      %p84 = scmp.ne.s32.totalorder %s72, %s73
      %p85 = scmp.eq.s32.totalorder %s30, 3
      %p86 = por %p84, %p85
      %p88 = scmp.ne.s32.totalorder %s73, %s87
      %p89 = scmp.eq.s32.totalorder %s30, 0
      %p90 = por %p88, %p89
      %s92 = sadd.s32 %s91, 1
      %p95 = scmp.eq.s32.totalorder %s24, 3
      %p96 = scmp.ne.s32.totalorder %s91, %s93
      %p97 = scmp.eq.s32.totalorder %s24, 0
      %p98 = por %p96, %p97
      %p99 = scmp.ne.s32.totalorder %s91, %s93
      %p100 = scmp.eq.s32.totalorder %s29, 3
      %p101 = por %p99, %p100
      %p102 = scmp.ne.s32.totalorder %s93, %s94
      %p103 = scmp.eq.s32.totalorder %s29, 0
      %p104 = por %p102, %p103
      %p105 = scmp.ne.s32.totalorder %s93, %s94
      %p106 = scmp.eq.s32.totalorder %s30, 3
      %p107 = por %p105, %p106
      %p109 = scmp.ne.s32.totalorder %s94, %s108
      %p110 = scmp.eq.s32.totalorder %s30, 0
      %p111 = por %p109, %p110
      %s113 = sadd.s32 %s112, 1
      %p116 = scmp.eq.s32.totalorder %s24, 3
      %p117 = scmp.ne.s32.totalorder %s112, %s114
      %p118 = scmp.eq.s32.totalorder %s24, 0
      %p119 = por %p117, %p118
      %p120 = scmp.ne.s32.totalorder %s112, %s114
      %p121 = scmp.eq.s32.totalorder %s29, 3
      %p122 = por %p120, %p121
      %p123 = scmp.ne.s32.totalorder %s114, %s115
      %p124 = scmp.eq.s32.totalorder %s29, 0
      %p125 = por %p123, %p124
      %p126 = scmp.ne.s32.totalorder %s114, %s115
      %p127 = scmp.eq.s32.totalorder %s30, 3
      %p128 = por %p126, %p127
      %p130 = scmp.ne.s32.totalorder %s115, %s129
      %p131 = scmp.eq.s32.totalorder %s30, 0
      %p132 = por %p130, %p131
      %s133 = ssub.s32 %s32, %s39
      %p134 = scmp.eq.s32.totalorder %s133, 0
      %s136 = sadd.s32 %s135, 1
      %s137 = scalar_select %p134, %s135, %s136
      %p140 = pneg %p134
      %p141 = scmp.eq.s32.totalorder %s24, 3
      %p142 = por %p140, %p141
      %p143 = scmp.ne.s32.totalorder %s135, %s138
      %p144 = scmp.eq.s32.totalorder %s24, 0
      %p145 = por %p143, %p144
      %p146 = scmp.ne.s32.totalorder %s135, %s138
      %p147 = scmp.eq.s32.totalorder %s29, 3
      %p148 = por %p146, %p147
      %p149 = scmp.ne.s32.totalorder %s138, %s139
      %p150 = scmp.eq.s32.totalorder %s29, 0
      %p151 = por %p149, %p150
      %p152 = scmp.ne.s32.totalorder %s138, %s139
      %p153 = scmp.eq.s32.totalorder %s30, 3
      %p154 = por %p152, %p153
      %p156 = scmp.ne.s32.totalorder %s139, %s155
      %p157 = scmp.eq.s32.totalorder %s30, 0
      %p158 = por %p156, %p157
      %s159 = ssub.s32 %s32, %s39
      %p160 = scmp.eq.s32.totalorder %s159, 0
      %s162 = sadd.s32 %s161, 1
      %s163 = scalar_select %p160, %s161, %s162
      %p166 = pneg %p160
      %p167 = scmp.eq.s32.totalorder %s24, 3
      %p168 = por %p166, %p167
      %p169 = scmp.ne.s32.totalorder %s161, %s164
      %p170 = scmp.eq.s32.totalorder %s24, 0
      %p171 = por %p169, %p170
      %p172 = scmp.ne.s32.totalorder %s161, %s164
      %p173 = scmp.eq.s32.totalorder %s29, 3
      %p174 = por %p172, %p173
      %p175 = scmp.ne.s32.totalorder %s164, %s165
      %p176 = scmp.eq.s32.totalorder %s29, 0
      %p177 = por %p175, %p176
      %p178 = scmp.ne.s32.totalorder %s164, %s165
      %p179 = scmp.eq.s32.totalorder %s30, 3
      %p180 = por %p178, %p179
      %p182 = scmp.ne.s32.totalorder %s165, %s181
      %p183 = scmp.eq.s32.totalorder %s30, 0
      %p184 = por %p182, %p183
      %s185 = ssub.s32 %s32, %s39
      %p186 = scmp.eq.s32.totalorder %s185, 0
      %s188 = sadd.s32 %s187, 1
      %s189 = scalar_select %p186, %s187, %s188
      %p192 = pneg %p186
      %p193 = scmp.eq.s32.totalorder %s24, 3
      %p194 = por %p192, %p193
      %p195 = scmp.ne.s32.totalorder %s187, %s190
      %p196 = scmp.eq.s32.totalorder %s24, 0
      %p197 = por %p195, %p196
      %p198 = scmp.ne.s32.totalorder %s187, %s190
      %p199 = scmp.eq.s32.totalorder %s29, 3
      %p200 = por %p198, %p199
      %p201 = scmp.ne.s32.totalorder %s190, %s191
      %p202 = scmp.eq.s32.totalorder %s29, 0
      %p203 = por %p201, %p202
      %p204 = scmp.ne.s32.totalorder %s190, %s191
      %p205 = scmp.eq.s32.totalorder %s30, 3
      %p206 = por %p204, %p205
      %p208 = scmp.ne.s32.totalorder %s191, %s207
      %p209 = scmp.eq.s32.totalorder %s30, 0
      %p210 = por %p208, %p209
      %s211 = ssub.s32 %s32, %s39
      %p212 = scmp.eq.s32.totalorder %s211, 0
      %s214 = sadd.s32 %s213, 1
      %s215 = scalar_select %p212, %s213, %s214
      %p218 = pneg %p212
      %p219 = scmp.eq.s32.totalorder %s24, 3
      %p220 = por %p218, %p219
      %p221 = scmp.ne.s32.totalorder %s213, %s216
      %p222 = scmp.eq.s32.totalorder %s24, 0
      %p223 = por %p221, %p222
      %p224 = scmp.ne.s32.totalorder %s213, %s216
      %p225 = scmp.eq.s32.totalorder %s29, 3
      %p226 = por %p224, %p225
      %p227 = scmp.ne.s32.totalorder %s216, %s217
      %p228 = scmp.eq.s32.totalorder %s29, 0
      %p229 = por %p227, %p228
      %p230 = scmp.ne.s32.totalorder %s216, %s217
      %p231 = scmp.eq.s32.totalorder %s30, 3
      %p232 = por %p230, %p231
      %p234 = scmp.ne.s32.totalorder %s217, %s233
      %p235 = scmp.eq.s32.totalorder %s30, 0
      %p236 = por %p234, %p235
      %s237 = ssub.s32 %s32, %s39
      %p238 = scmp.eq.s32.totalorder %s237, 0
      %s240 = sadd.s32 %s239, 1
      %s241 = scalar_select %p238, %s239, %s240
      %p244 = pneg %p238
      %p245 = scmp.eq.s32.totalorder %s24, 3
      %p246 = por %p244, %p245
      %p247 = scmp.ne.s32.totalorder %s239, %s242
      %p248 = scmp.eq.s32.totalorder %s24, 0
      %p249 = por %p247, %p248
      %p250 = scmp.ne.s32.totalorder %s239, %s242
      %p251 = scmp.eq.s32.totalorder %s29, 3
      %p252 = por %p250, %p251
      %p253 = scmp.ne.s32.totalorder %s242, %s243
      %p254 = scmp.eq.s32.totalorder %s29, 0
      %p255 = por %p253, %p254
      %p256 = scmp.ne.s32.totalorder %s242, %s243
      %p257 = scmp.eq.s32.totalorder %s30, 3
      %p258 = por %p256, %p257
      %p260 = scmp.ne.s32.totalorder %s243, %s259
      %p261 = scmp.eq.s32.totalorder %s30, 0
      %p262 = por %p260, %p261
      %s263 = ssub.s32 %s32, %s39
      %p264 = scmp.eq.s32.totalorder %s263, 0
      %s266 = sadd.s32 %s265, 1
      %s267 = scalar_select %p264, %s265, %s266
      %p270 = pneg %p264
      %p271 = scmp.eq.s32.totalorder %s24, 3
      %p272 = por %p270, %p271
      %p273 = scmp.ne.s32.totalorder %s265, %s268
      %p274 = scmp.eq.s32.totalorder %s24, 0
      %p275 = por %p273, %p274
      %p276 = scmp.ne.s32.totalorder %s265, %s268
      %p277 = scmp.eq.s32.totalorder %s29, 3
      %p278 = por %p276, %p277
      %p279 = scmp.ne.s32.totalorder %s268, %s269
      %p280 = scmp.eq.s32.totalorder %s29, 0
      %p281 = por %p279, %p280
      %p282 = scmp.ne.s32.totalorder %s268, %s269
      %p283 = scmp.eq.s32.totalorder %s30, 3
      %p284 = por %p282, %p283
      %p286 = scmp.ne.s32.totalorder %s269, %s285
      %p287 = scmp.eq.s32.totalorder %s30, 0
      %p288 = por %p286, %p287
      %s289 = ssub.s32 %s32, %s39
      %p290 = scmp.eq.s32.totalorder %s289, 0
      %s292 = sadd.s32 %s291, 1
      %s293 = scalar_select %p290, %s291, %s292
      %p296 = pneg %p290
      %p297 = scmp.eq.s32.totalorder %s24, 3
      %p298 = por %p296, %p297
      %p299 = scmp.ne.s32.totalorder %s291, %s294
      %p300 = scmp.eq.s32.totalorder %s24, 0
      %p301 = por %p299, %p300
      %p302 = scmp.ne.s32.totalorder %s291, %s294
      %p303 = scmp.eq.s32.totalorder %s29, 3
      %p304 = por %p302, %p303
      %p305 = scmp.ne.s32.totalorder %s294, %s295
      %p306 = scmp.eq.s32.totalorder %s29, 0
      %p307 = por %p305, %p306
      %p308 = scmp.ne.s32.totalorder %s294, %s295
      %p309 = scmp.eq.s32.totalorder %s30, 3
      %p310 = por %p308, %p309
      %p312 = scmp.ne.s32.totalorder %s295, %s311
      %p313 = scmp.eq.s32.totalorder %s30, 0
      %p314 = por %p312, %p313
      %s315 = ssub.s32 %s32, %s39
      %p316 = scmp.eq.s32.totalorder %s315, 0
      %s318 = sadd.s32 %s317, 1
      %s319 = scalar_select %p316, %s317, %s318
      %p322 = pneg %p316
      %p323 = scmp.eq.s32.totalorder %s24, 3
      %p324 = por %p322, %p323
      %p325 = scmp.ne.s32.totalorder %s317, %s320
      %p326 = scmp.eq.s32.totalorder %s24, 0
      %p327 = por %p325, %p326
      %p328 = scmp.ne.s32.totalorder %s317, %s320
      %p329 = scmp.eq.s32.totalorder %s29, 3
      %p330 = por %p328, %p329
      %p331 = scmp.ne.s32.totalorder %s320, %s321
      %p332 = scmp.eq.s32.totalorder %s29, 0
      %p333 = por %p331, %p332
      %p334 = scmp.ne.s32.totalorder %s320, %s321
      %p335 = scmp.eq.s32.totalorder %s30, 3
      %p336 = por %p334, %p335
      %p338 = scmp.ne.s32.totalorder %s321, %s337
      %p339 = scmp.eq.s32.totalorder %s30, 0
      %p340 = por %p338, %p339
      %s341 = ssub.s32 %s32, %s39
      %p342 = scmp.eq.s32.totalorder %s341, 0
      %s344 = sadd.s32 %s343, 1
      %s345 = scalar_select %p342, %s343, %s344
      %p348 = pneg %p342
      %p349 = scmp.eq.s32.totalorder %s24, 3
      %p350 = por %p348, %p349
      %p351 = scmp.ne.s32.totalorder %s343, %s346
      %p352 = scmp.eq.s32.totalorder %s24, 0
      %p353 = por %p351, %p352
      %p354 = scmp.ne.s32.totalorder %s343, %s346
      %p355 = scmp.eq.s32.totalorder %s29, 3
      %p356 = por %p354, %p355
      %p357 = scmp.ne.s32.totalorder %s346, %s347
      %p358 = scmp.eq.s32.totalorder %s29, 0
      %p359 = por %p357, %p358
      %p360 = scmp.ne.s32.totalorder %s346, %s347
      %p361 = scmp.eq.s32.totalorder %s30, 3
      %p362 = por %p360, %p361
      %p364 = scmp.ne.s32.totalorder %s347, %s363
      %p365 = scmp.eq.s32.totalorder %s30, 0
      %p366 = por %p364, %p365
      %s367 = ssub.s32 %s32, %s39
      %p368 = scmp.eq.s32.totalorder %s367, 0
      %s370 = sadd.s32 %s369, 1
      %s371 = scalar_select %p368, %s369, %s370
      %p374 = pneg %p368
      %p375 = scmp.eq.s32.totalorder %s24, 3
      %p376 = por %p374, %p375
      %p377 = scmp.ne.s32.totalorder %s369, %s372
      %p378 = scmp.eq.s32.totalorder %s24, 0
      %p379 = por %p377, %p378
      %p380 = scmp.ne.s32.totalorder %s369, %s372
      %p381 = scmp.eq.s32.totalorder %s29, 3
      %p382 = por %p380, %p381
      %p383 = scmp.ne.s32.totalorder %s372, %s373
      %p384 = scmp.eq.s32.totalorder %s29, 0
      %p385 = por %p383, %p384
      %p386 = scmp.ne.s32.totalorder %s372, %s373
      %p387 = scmp.eq.s32.totalorder %s30, 3
      %p388 = por %p386, %p387
      %p390 = scmp.ne.s32.totalorder %s373, %s389
      %p391 = scmp.eq.s32.totalorder %s30, 0
      %p392 = por %p390, %p391
      %s393 = ssub.s32 %s32, %s39
      %p394 = scmp.eq.s32.totalorder %s393, 0
      %s396 = sadd.s32 %s395, 1
      %s397 = scalar_select %p394, %s395, %s396
      %p400 = pneg %p394
      %p401 = scmp.eq.s32.totalorder %s24, 3
      %p402 = por %p400, %p401
      %p403 = scmp.ne.s32.totalorder %s395, %s398
      %p404 = scmp.eq.s32.totalorder %s24, 0
      %p405 = por %p403, %p404
      %p406 = scmp.ne.s32.totalorder %s395, %s398
      %p407 = scmp.eq.s32.totalorder %s29, 3
      %p408 = por %p406, %p407
      %p409 = scmp.ne.s32.totalorder %s398, %s399
      %p410 = scmp.eq.s32.totalorder %s29, 0
      %p411 = por %p409, %p410
      %p412 = scmp.ne.s32.totalorder %s398, %s399
      %p413 = scmp.eq.s32.totalorder %s30, 3
      %p414 = por %p412, %p413
      %p416 = scmp.ne.s32.totalorder %s399, %s415
      %p417 = scmp.eq.s32.totalorder %s30, 0
      %p418 = por %p416, %p417
      %s419 = ssub.s32 %s32, %s39
      %p420 = scmp.eq.s32.totalorder %s419, 0
      %s422 = sadd.s32 %s421, 1
      %s423 = scalar_select %p420, %s421, %s422
      %p426 = pneg %p420
      %p427 = scmp.eq.s32.totalorder %s24, 3
      %p428 = por %p426, %p427
      %p429 = scmp.ne.s32.totalorder %s421, %s424
      %p430 = scmp.eq.s32.totalorder %s24, 0
      %p431 = por %p429, %p430
      %p432 = scmp.ne.s32.totalorder %s421, %s424
      %p433 = scmp.eq.s32.totalorder %s29, 3
      %p434 = por %p432, %p433
      %p435 = scmp.ne.s32.totalorder %s424, %s425
      %p436 = scmp.eq.s32.totalorder %s29, 0
      %p437 = por %p435, %p436
      %p438 = scmp.ne.s32.totalorder %s424, %s425
      %p439 = scmp.eq.s32.totalorder %s30, 3
      %p440 = por %p438, %p439
      %p442 = scmp.ne.s32.totalorder %s425, %s441
      %p443 = scmp.eq.s32.totalorder %s30, 0
      %p444 = por %p442, %p443
      %s445 = ssub.s32 %s31, %s43
      %p446 = scmp.eq.s32.totalorder %s445, 0
      %s448 = sadd.s32 %s447, 1
      %s449 = scalar_select %p446, %s447, %s448
      %p452 = pneg %p446
      %p453 = scmp.eq.s32.totalorder %s24, 3
      %p454 = por %p452, %p453
      %p455 = scmp.ne.s32.totalorder %s447, %s450
      %p456 = scmp.eq.s32.totalorder %s24, 0
      %p457 = por %p455, %p456
      %p458 = scmp.ne.s32.totalorder %s447, %s450
      %p459 = scmp.eq.s32.totalorder %s29, 3
      %p460 = por %p458, %p459
      %p461 = scmp.ne.s32.totalorder %s450, %s451
      %p462 = scmp.eq.s32.totalorder %s29, 0
      %p463 = por %p461, %p462
      %p464 = scmp.ne.s32.totalorder %s450, %s451
      %p465 = scmp.eq.s32.totalorder %s30, 3
      %p466 = por %p464, %p465
      %p468 = scmp.ne.s32.totalorder %s451, %s467
      %p469 = scmp.eq.s32.totalorder %s30, 0
      %p470 = por %p468, %p469
      %p471 = scmp.le.s32.totalorder 1, %s24
      %p472 = scmp.lt.s32.totalorder %s24, 5
      %p473 = pnand %p471, %p472
      %p474 = pneg %p473
      // Predicated region
      $region9: #{concat_seq_encoder_m2mdm_forward.2} parent=5 // pred_check
        _
      $region10: #{concat_seq_encoder_m2mdm_forward.2} parent=5 // pred_check_branch
        %476 = sbr.rel (%p473) target = $region12
      $region11: #{concat_seq_encoder_m2mdm_forward.2} parent=5 // pred_region
        %s477 = ssub.s32 %s24, 1
        // Predicated region
        $region13: #{concat_seq_encoder_m2mdm_forward.2} parent=11 // pred_check
          %p478 = pneg %p83
        $region14: #{concat_seq_encoder_m2mdm_forward.2} parent=11 // pred_check_branch
          %480 = sbr.rel (%p478) target = $region16
        $region15: #{concat_seq_encoder_m2mdm_forward.2} parent=11 // pred_region
          _
        $region16: #{concat_seq_encoder_m2mdm_forward.2} parent=11 // pred_fallthru
          _
        // Predicated region
        $region17: #{concat_seq_encoder_m2mdm_forward.2} parent=11 // pred_check
          %p481 = pneg %p104
        $region18: #{concat_seq_encoder_m2mdm_forward.2} parent=11 // pred_check_branch
          %483 = sbr.rel (%p481) target = $region20
        $region19: #{concat_seq_encoder_m2mdm_forward.2} parent=11 // pred_region
          %s485 = ssub.s32 1024, 1024
          %486 = vsyncadd [#allocation3], %s485
          %s487 = sshll.u32 [#allocation2], 4
          %s488 = int_to_ptr.vmem [resolvable:$true] %s487
          %493 = dma.hbm_to_vmem [thread:$0]  %s2, 1024, %s488, [#allocation3], 64, 64, 4
        $region20: #{concat_seq_encoder_m2mdm_forward.2} parent=11 // pred_fallthru
          _
        // Predicated region
        $region21: #{concat_seq_encoder_m2mdm_forward.2} parent=11 // pred_check
          %p494 = pneg %p125
        $region22: #{concat_seq_encoder_m2mdm_forward.2} parent=11 // pred_check_branch
          %496 = sbr.rel (%p494) target = $region24
        $region23: #{concat_seq_encoder_m2mdm_forward.2} parent=11 // pred_region
          %s498 = ssub.s32 16, 16
          %499 = vsyncadd [#allocation5], %s498
          %s501 = sshll.u32 [#allocation4], 4
          %s502 = int_to_ptr.vmem [resolvable:$true] %s501
          %504 = dma.hbm_to_vmem [thread:$0]  %s3, 16, %s502, [#allocation5]
        $region24: #{concat_seq_encoder_m2mdm_forward.2} parent=11 // pred_fallthru
          _
      $region12: #{concat_seq_encoder_m2mdm_forward.2} parent=5 // pred_fallthru
        _
      %p505 = scmp.lt.s32.totalorder %s24, 4
      // Predicated region
      $region25: #{concat_seq_encoder_m2mdm_forward.2} parent=5 // pred_check
        %p506 = pneg %p505
      $region26: #{concat_seq_encoder_m2mdm_forward.2} parent=5 // pred_check_branch
        %508 = sbr.rel (%p506) target = $region28
      $region27: #{concat_seq_encoder_m2mdm_forward.2} parent=5 // pred_region
        // Predicated region
        $region29: #{concat_seq_encoder_m2mdm_forward.2} parent=27 // pred_check
          %p509 = pneg %p56
        $region30: #{concat_seq_encoder_m2mdm_forward.2} parent=27 // pred_check_branch
          %511 = sbr.rel (%p509) target = $region32
        $region31: #{concat_seq_encoder_m2mdm_forward.2} parent=27 // pred_region
          %p512 = scmp.lt.s32.totalorder %s31, 1
          %s513 = scalar_select %p512, %s31, 1
          %s514 = smul.addr %s513, 8
          %s515 = scalar_lea.vmem %s0, %s514
        $region32: #{concat_seq_encoder_m2mdm_forward.2} parent=27 // pred_fallthru
          _
        // Predicated region
        $region33: #{concat_seq_encoder_m2mdm_forward.2} parent=27 // pred_check
          %p516 = pneg %p145
        $region34: #{concat_seq_encoder_m2mdm_forward.2} parent=27 // pred_check_branch
          %518 = sbr.rel (%p516) target = $region36
        $region35: #{concat_seq_encoder_m2mdm_forward.2} parent=27 // pred_region
          %s519 = sand.u32 %s24, 1
          %s520 = scalar_lea.sflag [#allocation3], %s519
          %s521 = sand.u32 %s135, 1
          %s522 = smul.addr %s521, 192
          %s523 = scalar_lea.vmem [#allocation6], %s522
          %s525 = ssub.s32 3072, 3072
          %526 = vsyncadd %s520, %s525
          %s527 = smul.addr %s32, 48
          %s528 = smul.addr %s527, 64
          %s529 = scalar_lea.hbm %s4, %s528
          %s530 = sshll.u32 %s523, 4
          %s531 = int_to_ptr.vmem [resolvable:$true] %s530
          %536 = dma.hbm_to_vmem [thread:$0]  %s529, 3072, %s531, %s520, 192, 192, 12
        $region36: #{concat_seq_encoder_m2mdm_forward.2} parent=27 // pred_fallthru
          _
        // Predicated region
        $region37: #{concat_seq_encoder_m2mdm_forward.2} parent=27 // pred_check
          %p537 = pneg %p171
        $region38: #{concat_seq_encoder_m2mdm_forward.2} parent=27 // pred_check_branch
          %539 = sbr.rel (%p537) target = $region40
        $region39: #{concat_seq_encoder_m2mdm_forward.2} parent=27 // pred_region
          %s540 = sand.u32 %s24, 1
          %s541 = scalar_lea.sflag [#allocation3], %s540
          %s542 = sand.u32 %s161, 1
          %s543 = smul.addr %s542, 3
          %s544 = scalar_lea.vmem [#allocation7], %s543
          %s546 = ssub.s32 48, 48
          %547 = vsyncadd %s541, %s546
          %s548 = smul.addr %s32, 3
          %s549 = smul.addr %s548, 16
          %s550 = scalar_lea.hbm %s5, %s549
          %s552 = sshll.u32 %s544, 4
          %s553 = int_to_ptr.vmem [resolvable:$true] %s552
          %555 = dma.hbm_to_vmem [thread:$0]  %s550, 48, %s553, %s541
        $region40: #{concat_seq_encoder_m2mdm_forward.2} parent=27 // pred_fallthru
          _
        // Predicated region
        $region41: #{concat_seq_encoder_m2mdm_forward.2} parent=27 // pred_check
          %p556 = pneg %p197
        $region42: #{concat_seq_encoder_m2mdm_forward.2} parent=27 // pred_check_branch
          %558 = sbr.rel (%p556) target = $region44
        $region43: #{concat_seq_encoder_m2mdm_forward.2} parent=27 // pred_region
          %p559 = scmp.lt.s32.totalorder %s32, 1
          %s560 = scalar_select %p559, %s32, 1
          %s561 = smul.addr %s560, 16
          %s562 = smul.addr %s561, 4
          %s563 = scalar_lea.vmem %s6, %s562
        $region44: #{concat_seq_encoder_m2mdm_forward.2} parent=27 // pred_fallthru
          _
        // Predicated region
        $region45: #{concat_seq_encoder_m2mdm_forward.2} parent=27 // pred_check
          %p564 = pneg %p223
        $region46: #{concat_seq_encoder_m2mdm_forward.2} parent=27 // pred_check_branch
          %566 = sbr.rel (%p564) target = $region48
        $region47: #{concat_seq_encoder_m2mdm_forward.2} parent=27 // pred_region
          %s567 = sand.u32 %s24, 1
          %s568 = scalar_lea.sflag [#allocation3], %s567
          %s569 = sand.u32 %s213, 1
          %s570 = scalar_lea.vmem [#allocation8], %s569
          %s572 = ssub.s32 16, 16
          %573 = vsyncadd %s568, %s572
          %s574 = smul.addr %s32, 16
          %s575 = scalar_lea.hbm %s7, %s574
          %s577 = sshll.u32 %s570, 4
          %s578 = int_to_ptr.vmem [resolvable:$true] %s577
          %580 = dma.hbm_to_vmem [thread:$0]  %s575, 16, %s578, %s568
        $region48: #{concat_seq_encoder_m2mdm_forward.2} parent=27 // pred_fallthru
          _
        // Predicated region
        $region49: #{concat_seq_encoder_m2mdm_forward.2} parent=27 // pred_check
          %p581 = pneg %p249
        $region50: #{concat_seq_encoder_m2mdm_forward.2} parent=27 // pred_check_branch
          %583 = sbr.rel (%p581) target = $region52
        $region51: #{concat_seq_encoder_m2mdm_forward.2} parent=27 // pred_region
          %s584 = sand.u32 %s24, 1
          %s585 = scalar_lea.sflag [#allocation3], %s584
          %s586 = sand.u32 %s239, 1
          %s587 = scalar_lea.vmem [#allocation9], %s586
          %s589 = ssub.s32 16, 16
          %590 = vsyncadd %s585, %s589
          %s591 = smul.addr %s32, 16
          %s592 = scalar_lea.hbm %s8, %s591
          %s594 = sshll.u32 %s587, 4
          %s595 = int_to_ptr.vmem [resolvable:$true] %s594
          %597 = dma.hbm_to_vmem [thread:$0]  %s592, 16, %s595, %s585
        $region52: #{concat_seq_encoder_m2mdm_forward.2} parent=27 // pred_fallthru
          _
        // Predicated region
        $region53: #{concat_seq_encoder_m2mdm_forward.2} parent=27 // pred_check
          %p598 = pneg %p275
        $region54: #{concat_seq_encoder_m2mdm_forward.2} parent=27 // pred_check_branch
          %600 = sbr.rel (%p598) target = $region56
        $region55: #{concat_seq_encoder_m2mdm_forward.2} parent=27 // pred_region
          %s601 = sand.u32 %s24, 1
          %s602 = scalar_lea.sflag [#allocation3], %s601
          %s603 = sand.u32 %s265, 1
          %s604 = scalar_lea.vmem [#allocation10], %s603
          %s606 = ssub.s32 16, 16
          %607 = vsyncadd %s602, %s606
          %s608 = smul.addr %s32, 16
          %s609 = scalar_lea.hbm %s9, %s608
          %s611 = sshll.u32 %s604, 4
          %s612 = int_to_ptr.vmem [resolvable:$true] %s611
          %614 = dma.hbm_to_vmem [thread:$0]  %s609, 16, %s612, %s602
        $region56: #{concat_seq_encoder_m2mdm_forward.2} parent=27 // pred_fallthru
          _
        // Predicated region
        $region57: #{concat_seq_encoder_m2mdm_forward.2} parent=27 // pred_check
          %p615 = pneg %p301
        $region58: #{concat_seq_encoder_m2mdm_forward.2} parent=27 // pred_check_branch
          %617 = sbr.rel (%p615) target = $region60
        $region59: #{concat_seq_encoder_m2mdm_forward.2} parent=27 // pred_region
          %s618 = sand.u32 %s24, 1
          %s619 = scalar_lea.sflag [#allocation3], %s618
          %s620 = sand.u32 %s291, 1
          %s621 = smul.addr %s620, 64
          %s622 = scalar_lea.vmem [#allocation11], %s621
          %s624 = ssub.s32 1024, 1024
          %625 = vsyncadd %s619, %s624
          %s626 = smul.addr %s32, 16
          %s627 = smul.addr %s626, 64
          %s628 = scalar_lea.hbm %s10, %s627
          %s629 = sshll.u32 %s622, 4
          %s630 = int_to_ptr.vmem [resolvable:$true] %s629
          %635 = dma.hbm_to_vmem [thread:$0]  %s628, 1024, %s630, %s619, 64, 64, 4
        $region60: #{concat_seq_encoder_m2mdm_forward.2} parent=27 // pred_fallthru
          _
        // Predicated region
        $region61: #{concat_seq_encoder_m2mdm_forward.2} parent=27 // pred_check
          %p636 = pneg %p327
        $region62: #{concat_seq_encoder_m2mdm_forward.2} parent=27 // pred_check_branch
          %638 = sbr.rel (%p636) target = $region64
        $region63: #{concat_seq_encoder_m2mdm_forward.2} parent=27 // pred_region
          %s639 = sand.u32 %s24, 1
          %s640 = scalar_lea.sflag [#allocation3], %s639
          %s641 = sand.u32 %s317, 1
          %s642 = scalar_lea.vmem [#allocation12], %s641
          %s644 = ssub.s32 16, 16
          %645 = vsyncadd %s640, %s644
          %s646 = smul.addr %s32, 16
          %s647 = scalar_lea.hbm %s11, %s646
          %s649 = sshll.u32 %s642, 4
          %s650 = int_to_ptr.vmem [resolvable:$true] %s649
          %652 = dma.hbm_to_vmem [thread:$0]  %s647, 16, %s650, %s640
        $region64: #{concat_seq_encoder_m2mdm_forward.2} parent=27 // pred_fallthru
          _
        // Predicated region
        $region65: #{concat_seq_encoder_m2mdm_forward.2} parent=27 // pred_check
          %p653 = pneg %p353
        $region66: #{concat_seq_encoder_m2mdm_forward.2} parent=27 // pred_check_branch
          %655 = sbr.rel (%p653) target = $region68
        $region67: #{concat_seq_encoder_m2mdm_forward.2} parent=27 // pred_region
          %s656 = sand.u32 %s24, 1
          %s657 = scalar_lea.sflag [#allocation3], %s656
          %s658 = sand.u32 %s343, 1
          %s659 = smul.addr %s658, 64
          %s660 = scalar_lea.vmem [#allocation13], %s659
          %s662 = ssub.s32 1024, 1024
          %663 = vsyncadd %s657, %s662
          %s664 = smul.addr %s32, 16
          %s665 = smul.addr %s664, 64
          %s666 = scalar_lea.hbm %s12, %s665
          %s667 = sshll.u32 %s660, 4
          %s668 = int_to_ptr.vmem [resolvable:$true] %s667
          %673 = dma.hbm_to_vmem [thread:$0]  %s666, 1024, %s668, %s657, 64, 64, 4
        $region68: #{concat_seq_encoder_m2mdm_forward.2} parent=27 // pred_fallthru
          _
        // Predicated region
        $region69: #{concat_seq_encoder_m2mdm_forward.2} parent=27 // pred_check
          %p674 = pneg %p379
        $region70: #{concat_seq_encoder_m2mdm_forward.2} parent=27 // pred_check_branch
          %676 = sbr.rel (%p674) target = $region72
        $region71: #{concat_seq_encoder_m2mdm_forward.2} parent=27 // pred_region
          %s677 = sand.u32 %s24, 1
          %s678 = scalar_lea.sflag [#allocation3], %s677
          %s679 = sand.u32 %s369, 1
          %s680 = scalar_lea.vmem [#allocation14], %s679
          %s682 = ssub.s32 16, 16
          %683 = vsyncadd %s678, %s682
          %s684 = smul.addr %s32, 16
          %s685 = scalar_lea.hbm %s13, %s684
          %s687 = sshll.u32 %s680, 4
          %s688 = int_to_ptr.vmem [resolvable:$true] %s687
          %690 = dma.hbm_to_vmem [thread:$0]  %s685, 16, %s688, %s678
        $region72: #{concat_seq_encoder_m2mdm_forward.2} parent=27 // pred_fallthru
          _
        // Predicated region
        $region73: #{concat_seq_encoder_m2mdm_forward.2} parent=27 // pred_check
          %p691 = pneg %p405
        $region74: #{concat_seq_encoder_m2mdm_forward.2} parent=27 // pred_check_branch
          %693 = sbr.rel (%p691) target = $region76
        $region75: #{concat_seq_encoder_m2mdm_forward.2} parent=27 // pred_region
          %s694 = sand.u32 %s24, 1
          %s695 = scalar_lea.sflag [#allocation3], %s694
          %s696 = sand.u32 %s395, 1
          %s697 = scalar_lea.vmem [#allocation15], %s696
          %s699 = ssub.s32 16, 16
          %700 = vsyncadd %s695, %s699
          %s701 = smul.addr %s32, 16
          %s702 = scalar_lea.hbm %s14, %s701
          %s704 = sshll.u32 %s697, 4
          %s705 = int_to_ptr.vmem [resolvable:$true] %s704
          %707 = dma.hbm_to_vmem [thread:$0]  %s702, 16, %s705, %s695
        $region76: #{concat_seq_encoder_m2mdm_forward.2} parent=27 // pred_fallthru
          _
        // Predicated region
        $region77: #{concat_seq_encoder_m2mdm_forward.2} parent=27 // pred_check
          %p708 = pneg %p431
        $region78: #{concat_seq_encoder_m2mdm_forward.2} parent=27 // pred_check_branch
          %710 = sbr.rel (%p708) target = $region80
        $region79: #{concat_seq_encoder_m2mdm_forward.2} parent=27 // pred_region
          %s711 = sand.u32 %s24, 1
          %s712 = scalar_lea.sflag [#allocation3], %s711
          %s713 = sand.u32 %s421, 1
          %s714 = scalar_lea.vmem [#allocation16], %s713
          %s716 = ssub.s32 16, 16
          %717 = vsyncadd %s712, %s716
          %s718 = smul.addr %s32, 16
          %s719 = scalar_lea.hbm %s15, %s718
          %s721 = sshll.u32 %s714, 4
          %s722 = int_to_ptr.vmem [resolvable:$true] %s721
          %724 = dma.hbm_to_vmem [thread:$0]  %s719, 16, %s722, %s712
        $region80: #{concat_seq_encoder_m2mdm_forward.2} parent=27 // pred_fallthru
          _
      $region28: #{concat_seq_encoder_m2mdm_forward.2} parent=5 // pred_fallthru
        _
      %p725 = scmp.le.s32.totalorder 1, %s24
      %p726 = scmp.lt.s32.totalorder %s24, 5
      %p727 = pnand %p725, %p726
      %p728 = pneg %p727
      // Predicated region
      $region81: #{concat_seq_encoder_m2mdm_forward.2} parent=5 // pred_check
        _
      $region82: #{concat_seq_encoder_m2mdm_forward.2} parent=5 // pred_check_branch
        %730 = sbr.rel (%p727) target = $region84
      $region83: #{concat_seq_encoder_m2mdm_forward.2} parent=5 // pred_region
        %s731 = ssub.s32 %s24, 1
        // Predicated region
        $region85: #{concat_seq_encoder_m2mdm_forward.2} parent=83 // pred_check
          %p732 = pneg %p104
        $region86: #{concat_seq_encoder_m2mdm_forward.2} parent=83 // pred_check_branch
          %734 = sbr.rel (%p732) target = $region88
        $region87: #{concat_seq_encoder_m2mdm_forward.2} parent=83 // pred_region
          %735 = dma.done [#allocation3], 1024
        $region88: #{concat_seq_encoder_m2mdm_forward.2} parent=83 // pred_fallthru
          _
        // Predicated region
        $region89: #{concat_seq_encoder_m2mdm_forward.2} parent=83 // pred_check
          %p736 = pneg %p125
        $region90: #{concat_seq_encoder_m2mdm_forward.2} parent=83 // pred_check_branch
          %738 = sbr.rel (%p736) target = $region92
        $region91: #{concat_seq_encoder_m2mdm_forward.2} parent=83 // pred_region
          %739 = dma.done [#allocation5], 16
        $region92: #{concat_seq_encoder_m2mdm_forward.2} parent=83 // pred_fallthru
          _
        %s740 = sand.u32 %s29, 1
        %s741 = scalar_lea.sflag [#allocation3], %s740
        %s742 = sand.u32 %s138, 1
        %s743 = smul.addr %s742, 192
        %s744 = scalar_lea.vmem [#allocation6], %s743
        // Predicated region
        $region93: #{concat_seq_encoder_m2mdm_forward.2} parent=83 // pred_check
          %p745 = pneg %p151
        $region94: #{concat_seq_encoder_m2mdm_forward.2} parent=83 // pred_check_branch
          %747 = sbr.rel (%p745) target = $region96
        $region95: #{concat_seq_encoder_m2mdm_forward.2} parent=83 // pred_region
          %748 = dma.done %s741, 3072
        $region96: #{concat_seq_encoder_m2mdm_forward.2} parent=83 // pred_fallthru
          _
        %s749 = sand.u32 %s29, 1
        %s750 = scalar_lea.sflag [#allocation3], %s749
        %s751 = sand.u32 %s164, 1
        %s752 = smul.addr %s751, 3
        %s753 = scalar_lea.vmem [#allocation7], %s752
        // Predicated region
        $region97: #{concat_seq_encoder_m2mdm_forward.2} parent=83 // pred_check
          %p754 = pneg %p177
        $region98: #{concat_seq_encoder_m2mdm_forward.2} parent=83 // pred_check_branch
          %756 = sbr.rel (%p754) target = $region100
        $region99: #{concat_seq_encoder_m2mdm_forward.2} parent=83 // pred_region
          %757 = dma.done %s750, 48
        $region100: #{concat_seq_encoder_m2mdm_forward.2} parent=83 // pred_fallthru
          _
        %s758 = sand.u32 %s29, 1
        %s759 = scalar_lea.sflag [#allocation3], %s758
        %s760 = sand.u32 %s216, 1
        %s761 = scalar_lea.vmem [#allocation8], %s760
        // Predicated region
        $region101: #{concat_seq_encoder_m2mdm_forward.2} parent=83 // pred_check
          %p762 = pneg %p229
        $region102: #{concat_seq_encoder_m2mdm_forward.2} parent=83 // pred_check_branch
          %764 = sbr.rel (%p762) target = $region104
        $region103: #{concat_seq_encoder_m2mdm_forward.2} parent=83 // pred_region
          %765 = dma.done %s759, 16
        $region104: #{concat_seq_encoder_m2mdm_forward.2} parent=83 // pred_fallthru
          _
        %s766 = sand.u32 %s29, 1
        %s767 = scalar_lea.sflag [#allocation3], %s766
        %s768 = sand.u32 %s242, 1
        %s769 = scalar_lea.vmem [#allocation9], %s768
        // Predicated region
        $region105: #{concat_seq_encoder_m2mdm_forward.2} parent=83 // pred_check
          %p770 = pneg %p255
        $region106: #{concat_seq_encoder_m2mdm_forward.2} parent=83 // pred_check_branch
          %772 = sbr.rel (%p770) target = $region108
        $region107: #{concat_seq_encoder_m2mdm_forward.2} parent=83 // pred_region
          %773 = dma.done %s767, 16
        $region108: #{concat_seq_encoder_m2mdm_forward.2} parent=83 // pred_fallthru
          _
        %s774 = sand.u32 %s29, 1
        %s775 = scalar_lea.sflag [#allocation3], %s774
        %s776 = sand.u32 %s268, 1
        %s777 = scalar_lea.vmem [#allocation10], %s776
        // Predicated region
        $region109: #{concat_seq_encoder_m2mdm_forward.2} parent=83 // pred_check
          %p778 = pneg %p281
        $region110: #{concat_seq_encoder_m2mdm_forward.2} parent=83 // pred_check_branch
          %780 = sbr.rel (%p778) target = $region112
        $region111: #{concat_seq_encoder_m2mdm_forward.2} parent=83 // pred_region
          %781 = dma.done %s775, 16
        $region112: #{concat_seq_encoder_m2mdm_forward.2} parent=83 // pred_fallthru
          _
        %s782 = sand.u32 %s29, 1
        %s783 = scalar_lea.sflag [#allocation3], %s782
        %s784 = sand.u32 %s294, 1
        %s785 = smul.addr %s784, 64
        %s786 = scalar_lea.vmem [#allocation11], %s785
        // Predicated region
        $region113: #{concat_seq_encoder_m2mdm_forward.2} parent=83 // pred_check
          %p787 = pneg %p307
        $region114: #{concat_seq_encoder_m2mdm_forward.2} parent=83 // pred_check_branch
          %789 = sbr.rel (%p787) target = $region116
        $region115: #{concat_seq_encoder_m2mdm_forward.2} parent=83 // pred_region
          %790 = dma.done %s783, 1024
        $region116: #{concat_seq_encoder_m2mdm_forward.2} parent=83 // pred_fallthru
          _
        %s791 = sand.u32 %s29, 1
        %s792 = scalar_lea.sflag [#allocation3], %s791
        %s793 = sand.u32 %s320, 1
        %s794 = scalar_lea.vmem [#allocation12], %s793
        // Predicated region
        $region117: #{concat_seq_encoder_m2mdm_forward.2} parent=83 // pred_check
          %p795 = pneg %p333
        $region118: #{concat_seq_encoder_m2mdm_forward.2} parent=83 // pred_check_branch
          %797 = sbr.rel (%p795) target = $region120
        $region119: #{concat_seq_encoder_m2mdm_forward.2} parent=83 // pred_region
          %798 = dma.done %s792, 16
        $region120: #{concat_seq_encoder_m2mdm_forward.2} parent=83 // pred_fallthru
          _
        %s799 = sand.u32 %s29, 1
        %s800 = scalar_lea.sflag [#allocation3], %s799
        %s801 = sand.u32 %s346, 1
        %s802 = smul.addr %s801, 64
        %s803 = scalar_lea.vmem [#allocation13], %s802
        // Predicated region
        $region121: #{concat_seq_encoder_m2mdm_forward.2} parent=83 // pred_check
          %p804 = pneg %p359
        $region122: #{concat_seq_encoder_m2mdm_forward.2} parent=83 // pred_check_branch
          %806 = sbr.rel (%p804) target = $region124
        $region123: #{concat_seq_encoder_m2mdm_forward.2} parent=83 // pred_region
          %807 = dma.done %s800, 1024
        $region124: #{concat_seq_encoder_m2mdm_forward.2} parent=83 // pred_fallthru
          _
        %s808 = sand.u32 %s29, 1
        %s809 = scalar_lea.sflag [#allocation3], %s808
        %s810 = sand.u32 %s372, 1
        %s811 = scalar_lea.vmem [#allocation14], %s810
        // Predicated region
        $region125: #{concat_seq_encoder_m2mdm_forward.2} parent=83 // pred_check
          %p812 = pneg %p385
        $region126: #{concat_seq_encoder_m2mdm_forward.2} parent=83 // pred_check_branch
          %814 = sbr.rel (%p812) target = $region128
        $region127: #{concat_seq_encoder_m2mdm_forward.2} parent=83 // pred_region
          %815 = dma.done %s809, 16
        $region128: #{concat_seq_encoder_m2mdm_forward.2} parent=83 // pred_fallthru
          _
        %s816 = sand.u32 %s29, 1
        %s817 = scalar_lea.sflag [#allocation3], %s816
        %s818 = sand.u32 %s398, 1
        %s819 = scalar_lea.vmem [#allocation15], %s818
        // Predicated region
        $region129: #{concat_seq_encoder_m2mdm_forward.2} parent=83 // pred_check
          %p820 = pneg %p411
        $region130: #{concat_seq_encoder_m2mdm_forward.2} parent=83 // pred_check_branch
          %822 = sbr.rel (%p820) target = $region132
        $region131: #{concat_seq_encoder_m2mdm_forward.2} parent=83 // pred_region
          %823 = dma.done %s817, 16
        $region132: #{concat_seq_encoder_m2mdm_forward.2} parent=83 // pred_fallthru
          _
        %s824 = sand.u32 %s29, 1
        %s825 = scalar_lea.sflag [#allocation3], %s824
        %s826 = sand.u32 %s424, 1
        %s827 = scalar_lea.vmem [#allocation16], %s826
        // Predicated region
        $region133: #{concat_seq_encoder_m2mdm_forward.2} parent=83 // pred_check
          %p828 = pneg %p437
        $region134: #{concat_seq_encoder_m2mdm_forward.2} parent=83 // pred_check_branch
          %830 = sbr.rel (%p828) target = $region136
        $region135: #{concat_seq_encoder_m2mdm_forward.2} parent=83 // pred_region
          %831 = dma.done %s825, 16
        $region136: #{concat_seq_encoder_m2mdm_forward.2} parent=83 // pred_fallthru
          _
        %p832 = scmp.lt.s32.totalorder %s33, 1
        %s833 = scalar_select %p832, %s33, 1
        %s834 = smul.addr %s833, 8
        %s835 = scalar_lea.vmem %s0, %s834
        %p836 = pneg %p62
        %p837 = pneg %p59
        %p838 = pneg %p83
        %p839 = pneg %p80
        %p840 = pneg %p104
        %p841 = pneg %p101
        %p842 = pneg %p125
        %p843 = pneg %p122
        %s844 = sand.u32 %s29, 1
        %s845 = scalar_lea.sflag [#allocation3], %s844
        %s846 = sand.u32 %s138, 1
        %s847 = smul.addr %s846, 192
        %s848 = scalar_lea.vmem [#allocation6], %s847
        %p849 = pneg %p151
        %p850 = pneg %p148
        %s851 = sand.u32 %s29, 1
        %s852 = scalar_lea.sflag [#allocation3], %s851
        %s853 = sand.u32 %s164, 1
        %s854 = smul.addr %s853, 3
        %s855 = scalar_lea.vmem [#allocation7], %s854
        %p856 = pneg %p177
        %p857 = pneg %p174
        %p858 = scmp.lt.s32.totalorder %s34, 1
        %s859 = scalar_select %p858, %s34, 1
        %s860 = smul.addr %s859, 16
        %s861 = smul.addr %s860, 4
        %s862 = scalar_lea.vmem %s6, %s861
        %p863 = pneg %p203
        %p864 = pneg %p200
        %s865 = sand.u32 %s29, 1
        %s866 = scalar_lea.sflag [#allocation3], %s865
        %s867 = sand.u32 %s216, 1
        %s868 = scalar_lea.vmem [#allocation8], %s867
        %p869 = pneg %p229
        %p870 = pneg %p226
        %s871 = sand.u32 %s29, 1
        %s872 = scalar_lea.sflag [#allocation3], %s871
        %s873 = sand.u32 %s242, 1
        %s874 = scalar_lea.vmem [#allocation9], %s873
        %p875 = pneg %p255
        %p876 = pneg %p252
        %s877 = sand.u32 %s29, 1
        %s878 = scalar_lea.sflag [#allocation3], %s877
        %s879 = sand.u32 %s268, 1
        %s880 = scalar_lea.vmem [#allocation10], %s879
        %p881 = pneg %p281
        %p882 = pneg %p278
        %s883 = sand.u32 %s29, 1
        %s884 = scalar_lea.sflag [#allocation3], %s883
        %s885 = sand.u32 %s294, 1
        %s886 = smul.addr %s885, 64
        %s887 = scalar_lea.vmem [#allocation11], %s886
        %p888 = pneg %p307
        %p889 = pneg %p304
        %s890 = sand.u32 %s29, 1
        %s891 = scalar_lea.sflag [#allocation3], %s890
        %s892 = sand.u32 %s320, 1
        %s893 = scalar_lea.vmem [#allocation12], %s892
        %p894 = pneg %p333
        %p895 = pneg %p330
        %s896 = sand.u32 %s29, 1
        %s897 = scalar_lea.sflag [#allocation3], %s896
        %s898 = sand.u32 %s346, 1
        %s899 = smul.addr %s898, 64
        %s900 = scalar_lea.vmem [#allocation13], %s899
        %p901 = pneg %p359
        %p902 = pneg %p356
        %s903 = sand.u32 %s29, 1
        %s904 = scalar_lea.sflag [#allocation3], %s903
        %s905 = sand.u32 %s372, 1
        %s906 = scalar_lea.vmem [#allocation14], %s905
        %p907 = pneg %p385
        %p908 = pneg %p382
        %s909 = sand.u32 %s29, 1
        %s910 = scalar_lea.sflag [#allocation3], %s909
        %s911 = sand.u32 %s398, 1
        %s912 = scalar_lea.vmem [#allocation15], %s911
        %p913 = pneg %p411
        %p914 = pneg %p408
        %s915 = sand.u32 %s29, 1
        %s916 = scalar_lea.sflag [#allocation3], %s915
        %s917 = sand.u32 %s424, 1
        %s918 = scalar_lea.vmem [#allocation16], %s917
        %p919 = pneg %p437
        %p920 = pneg %p434
        %p921 = pneg %p463
        %p922 = pneg %p460
        %p923 = scmp.lt.s32.totalorder %s33, 1
        %s924 = scalar_select %p923, %s33, 1
        %s925 = smul.addr %s924, 8
        %s926 = scalar_lea.vmem %s16, %s925
        %p927 = scmp.lt.s32.totalorder %s33, 1
        %s928 = scalar_select %p927, %s33, 1
        %s929 = smul.addr %s928, 8
        %s930 = scalar_lea.vmem %s0, %s929
        %p931 = scmp.lt.s32.totalorder %s34, 1
        %s932 = scalar_select %p931, %s34, 1
        %s933 = smul.addr %s932, 16
        %s934 = smul.addr %s933, 4
        %s935 = scalar_lea.vmem %s6, %s934
        %p936 = scmp.lt.s32.totalorder %s33, 1
        %s937 = scalar_select %p936, %s33, 1
        %s938 = smul.addr %s937, 8
        %s939 = scalar_lea.vmem %s16, %s938
        %p941 = scmp.eq.s32.totalorder %s34, 0
        // Predicated region
        $region137: #{concat_seq_encoder_m2mdm_forward.2} parent=83 // pred_check
          %p942 = pneg %p941
        $region138: #{concat_seq_encoder_m2mdm_forward.2} parent=83 // pred_check_branch
          %944 = sbr.rel (%p942) target = $region140
        $region139: #{concat_seq_encoder_m2mdm_forward.2} parent=83 // pred_region
          %v945 = vld [vmem:[%s930] sm:$0xff]
          %v946 = vpack.c.bf16 %v945, %v945
          %v947 = vld [vmem:[#allocation2] sm:$0xf]
          %v948 = vld [vmem:[#allocation2 + $0x4] sm:$0xf]
          %v949 = vld [vmem:[#allocation2 + $0x8] sm:$0xf]
          %v950 = vld [vmem:[#allocation2 + $0xc] sm:$0xf]
          %v951 = vld [vmem:[#allocation2 + $0x10] sm:$0xf]
          %v952 = vld [vmem:[#allocation2 + $0x14] sm:$0xf]
          %v953 = vld [vmem:[#allocation2 + $0x18] sm:$0xf]
          %v954 = vld [vmem:[#allocation2 + $0x1c] sm:$0xf]
          %v955 = vld [vmem:[#allocation2 + $0x20] sm:$0xf]
          %v956 = vld [vmem:[#allocation2 + $0x24] sm:$0xf]
          %v957 = vld [vmem:[#allocation2 + $0x28] sm:$0xf]
          %v958 = vld [vmem:[#allocation2 + $0x2c] sm:$0xf]
          %v959 = vld [vmem:[#allocation2 + $0x30] sm:$0xf]
          %v960 = vld [vmem:[#allocation2 + $0x34] sm:$0xf]
          %v961 = vld [vmem:[#allocation2 + $0x38] sm:$0xf]
          %v962 = vld [vmem:[#allocation2 + $0x3c] sm:$0xf]
          %v963 = vld [vmem:[#allocation4] sm:$0x1]
          %v965 = vlaneseq
          %v966 = vshrl.u32 %v965, 7
          %v967 = vsub.s32 0, %v966
          %v968 = vrot.slane %v963, %v967
          %v986 = vunpack.c.l.b16 %v947
          %v987 = vunpack.c.l.b16 %v948
          %v988 = vunpack.c.l.b16 %v949
          %v989 = vunpack.c.l.b16 %v950
          %v990 = vunpack.c.l.b16 %v951
          %v991 = vunpack.c.l.b16 %v952
          %v992 = vunpack.c.l.b16 %v953
          %v993 = vunpack.c.l.b16 %v954
          %v994 = vunpack.c.l.b16 %v955
          %v995 = vunpack.c.l.b16 %v956
          %v996 = vunpack.c.l.b16 %v957
          %v997 = vunpack.c.l.b16 %v958
          %v998 = vunpack.c.l.b16 %v959
          %v999 = vunpack.c.l.b16 %v960
          %v1000 = vunpack.c.l.b16 %v961
          %v1001 = vunpack.c.l.b16 %v962
          %v1002 = vpack.c.b16 %v987, %v986
          %v1003 = vpack.c.b16 %v989, %v988
          %v1004 = vpack.c.b16 %v991, %v990
          %v1005 = vpack.c.b16 %v993, %v992
          %v1006 = vpack.c.b16 %v995, %v994
          %v1007 = vpack.c.b16 %v997, %v996
          %v1008 = vpack.c.b16 %v999, %v998
          %v1009 = vpack.c.b16 %v1001, %v1000
          %1018 = vmatprep.subr.bf16.mxu0 0
          %1019 = vmatpush1.bf16.msra.mxu0 %v1002
          %1020 = vmatprep.subr.bf16.mxu0 0
          %1021 = vmatpush1.bf16.msra.mxu0 %v1003
          %1022 = vmatprep.subr.bf16.mxu0 0
          %1023 = vmatpush1.bf16.msra.mxu0 %v1004
          %1024 = vmatprep.subr.bf16.mxu0 0
          %1025 = vmatpush1.bf16.msra.mxu0 %v1005
          %1026 = vmatprep.subr.bf16.mxu0 0
          %1027 = vmatpush1.bf16.msra.mxu0 %v1006
          %1028 = vmatprep.subr.bf16.mxu0 0
          %1029 = vmatpush1.bf16.msra.mxu0 %v1007
          %1030 = vmatprep.subr.bf16.mxu0 0
          %1031 = vmatpush1.bf16.msra.mxu0 %v1008
          %1032 = vmatprep.subr.bf16.mxu0 0
          %1033 = vmatpush1.bf16.msra.mxu0 %v1009
          %1034 = vmatprep.subr.bf16.mxu0 0
          %1035 = vmatpush1.bf16.msra.mxu0 0
          %1036 = vmatprep.subr.bf16.mxu0 0
          %1037 = vmatpush1.bf16.msra.mxu0 0
          %1038 = vmatprep.subr.bf16.mxu0 0
          %1039 = vmatpush1.bf16.msra.mxu0 0
          %1040 = vmatprep.subr.bf16.mxu0 0
          %1041 = vmatpush1.bf16.msra.mxu0 0
          %1042 = vmatprep.subr.bf16.mxu0 0
          %1043 = vmatpush1.bf16.msra.mxu0 0
          %1044 = vmatprep.subr.bf16.mxu0 0
          %1045 = vmatpush1.bf16.msra.mxu0 0
          %1046 = vmatprep.subr.bf16.mxu0 0
          %1047 = vmatpush1.bf16.msra.mxu0 0
          %1048 = vmatprep.subr.bf16.mxu0 0
          %1049 = vmatpush1.bf16.msra.mxu0 0
          %1050 = vmatprep.mubr.bf16.mxu0 0
          %1051 = vmatmul.mubr.bf16.gmra.mrb[0].mxu0 %v946
          %v1052 = vpop.f32.mrb[0].mxu0
          %v1053 = vadd.f32 %v968, %v1052
          %v1054 = vpop.f32.mrb[0].mxu0
          %v1055 = vpop.f32.mrb[0].mxu0
          %v1056 = vpop.f32.mrb[0].mxu0
          %1057 = vdwg.mxu0
          %v1058 = vld [vmem:[%s1] sm:$0xff]
          %v1059 = vadd.f32 %v1053, %v1058
          %1060 = vst [vmem:[%s939] sm:$0xff] %v1059
        $region140: #{concat_seq_encoder_m2mdm_forward.2} parent=83 // pred_fallthru
          _
        %v1061 = vld [vmem:[%s939] sm:$0xff]
        %v1062 = vld [vmem:[%s744] sm:$0xff]
        %v1063 = vld [vmem:[%s744 + $0x8] sm:$0xf]
        %v1064 = vld [vmem:[%s744 + $0xc] sm:$0xff]
        %v1065 = vld [vmem:[%s744 + $0x14] sm:$0xf]
        %v1066 = vld [vmem:[%s744 + $0x18] sm:$0xff]
        %v1067 = vld [vmem:[%s744 + $0x20] sm:$0xf]
        %v1068 = vld [vmem:[%s744 + $0x24] sm:$0xff]
        %v1069 = vld [vmem:[%s744 + $0x2c] sm:$0xf]
        %v1070 = vld [vmem:[%s744 + $0x30] sm:$0xff]
        %v1071 = vld [vmem:[%s744 + $0x38] sm:$0xf]
        %v1072 = vld [vmem:[%s744 + $0x3c] sm:$0xff]
        %v1073 = vld [vmem:[%s744 + $0x44] sm:$0xf]
        %v1074 = vld [vmem:[%s744 + $0x48] sm:$0xff]
        %v1075 = vld [vmem:[%s744 + $0x50] sm:$0xf]
        %v1076 = vld [vmem:[%s744 + $0x54] sm:$0xff]
        %v1077 = vld [vmem:[%s744 + $0x5c] sm:$0xf]
        %v1078 = vld [vmem:[%s744 + $0x60] sm:$0xff]
        %v1079 = vld [vmem:[%s744 + $0x68] sm:$0xf]
        %v1080 = vld [vmem:[%s744 + $0x6c] sm:$0xff]
        %v1081 = vld [vmem:[%s744 + $0x74] sm:$0xf]
        %v1082 = vld [vmem:[%s744 + $0x78] sm:$0xff]
        %v1083 = vld [vmem:[%s744 + $0x80] sm:$0xf]
        %v1084 = vld [vmem:[%s744 + $0x84] sm:$0xff]
        %v1085 = vld [vmem:[%s744 + $0x8c] sm:$0xf]
        %v1086 = vld [vmem:[%s744 + $0x90] sm:$0xff]
        %v1087 = vld [vmem:[%s744 + $0x98] sm:$0xf]
        %v1088 = vld [vmem:[%s744 + $0x9c] sm:$0xff]
        %v1089 = vld [vmem:[%s744 + $0xa4] sm:$0xf]
        %v1090 = vld [vmem:[%s744 + $0xa8] sm:$0xff]
        %v1091 = vld [vmem:[%s744 + $0xb0] sm:$0xf]
        %v1092 = vld [vmem:[%s744 + $0xb4] sm:$0xff]
        %v1093 = vld [vmem:[%s744 + $0xbc] sm:$0xf]
        %v1094 = vld [vmem:[%s753] sm:$0x7]
        %v1095 = vld [vmem:[%s935] sm:$0xf]
        %v1096 = vld [vmem:[%s935 + $0x4] sm:$0xf]
        %v1097 = vld [vmem:[%s935 + $0x8] sm:$0xf]
        %v1098 = vld [vmem:[%s935 + $0xc] sm:$0xf]
        %v1099 = vld [vmem:[%s935 + $0x10] sm:$0xf]
        %v1100 = vld [vmem:[%s935 + $0x14] sm:$0xf]
        %v1101 = vld [vmem:[%s935 + $0x18] sm:$0xf]
        %v1102 = vld [vmem:[%s935 + $0x1c] sm:$0xf]
        %v1103 = vld [vmem:[%s935 + $0x20] sm:$0xf]
        %v1104 = vld [vmem:[%s935 + $0x24] sm:$0xf]
        %v1105 = vld [vmem:[%s935 + $0x28] sm:$0xf]
        %v1106 = vld [vmem:[%s935 + $0x2c] sm:$0xf]
        %v1107 = vld [vmem:[%s935 + $0x30] sm:$0xf]
        %v1108 = vld [vmem:[%s935 + $0x34] sm:$0xf]
        %v1109 = vld [vmem:[%s935 + $0x38] sm:$0xf]
        %v1110 = vld [vmem:[%s935 + $0x3c] sm:$0xf]
        %v1111 = vld [vmem:[%s761] sm:$0x1]
        %v1112 = vld [vmem:[%s769] sm:$0x1]
        %v1113 = vld [vmem:[%s777] sm:$0x1]
        %v1114 = vld [vmem:[%s786] sm:$0xf]
        %v1115 = vld [vmem:[%s786 + $0x4] sm:$0xf]
        %v1116 = vld [vmem:[%s786 + $0x8] sm:$0xf]
        %v1117 = vld [vmem:[%s786 + $0xc] sm:$0xf]
        %v1118 = vld [vmem:[%s786 + $0x10] sm:$0xf]
        %v1119 = vld [vmem:[%s786 + $0x14] sm:$0xf]
        %v1120 = vld [vmem:[%s786 + $0x18] sm:$0xf]
        %v1121 = vld [vmem:[%s786 + $0x1c] sm:$0xf]
        %v1122 = vld [vmem:[%s786 + $0x20] sm:$0xf]
        %v1123 = vld [vmem:[%s786 + $0x24] sm:$0xf]
        %v1124 = vld [vmem:[%s786 + $0x28] sm:$0xf]
        %v1125 = vld [vmem:[%s786 + $0x2c] sm:$0xf]
        %v1126 = vld [vmem:[%s786 + $0x30] sm:$0xf]
        %v1127 = vld [vmem:[%s786 + $0x34] sm:$0xf]
        %v1128 = vld [vmem:[%s786 + $0x38] sm:$0xf]
        %v1129 = vld [vmem:[%s786 + $0x3c] sm:$0xf]
        %v1130 = vld [vmem:[%s794] sm:$0x1]
        %v1131 = vld [vmem:[%s803] sm:$0xf]
        %v1132 = vld [vmem:[%s803 + $0x4] sm:$0xf]
        %v1133 = vld [vmem:[%s803 + $0x8] sm:$0xf]
        %v1134 = vld [vmem:[%s803 + $0xc] sm:$0xf]
        %v1135 = vld [vmem:[%s803 + $0x10] sm:$0xf]
        %v1136 = vld [vmem:[%s803 + $0x14] sm:$0xf]
        %v1137 = vld [vmem:[%s803 + $0x18] sm:$0xf]
        %v1138 = vld [vmem:[%s803 + $0x1c] sm:$0xf]
        %v1139 = vld [vmem:[%s803 + $0x20] sm:$0xf]
        %v1140 = vld [vmem:[%s803 + $0x24] sm:$0xf]
        %v1141 = vld [vmem:[%s803 + $0x28] sm:$0xf]
        %v1142 = vld [vmem:[%s803 + $0x2c] sm:$0xf]
        %v1143 = vld [vmem:[%s803 + $0x30] sm:$0xf]
        %v1144 = vld [vmem:[%s803 + $0x34] sm:$0xf]
        %v1145 = vld [vmem:[%s803 + $0x38] sm:$0xf]
        %v1146 = vld [vmem:[%s803 + $0x3c] sm:$0xf]
        %v1147 = vld [vmem:[%s811] sm:$0x1]
        %v1148 = vld [vmem:[%s819] sm:$0x1]
        %v1149 = vld [vmem:[%s827] sm:$0x1]
        %v1150 = vlaneseq
        %v1151 = vand.u32 %v1150, 127
        %vm1152 = vcmp.lt.s32.totalorder %v1151, 32
        %v1153 = vsel %vm1152, 1, 0
        %v1154 = vcvt.s32.f32 %v1153
        %v1155 = vpack.c.bf16 %v1061, %v1061
        %v1157 = vlaneseq
        %v1158 = vshrl.u32 %v1157, 7
        %v1159 = vsub.s32 0, %v1158
        %v1160 = vrot.slane %v1094, %v1159
        %v1161 = vlaneseq
        %v1162 = vshrl.u32 %v1161, 7
        %v1163 = vsub.s32 1, %v1162
        %v1164 = vrot.slane %v1094, %v1163
        %v1165 = vlaneseq
        %v1166 = vshrl.u32 %v1165, 7
        %v1167 = vsub.s32 2, %v1166
        %v1168 = vrot.slane %v1094, %v1167
        %v1204 = vunpack.c.l.b16 %v1062
        %v1205 = vunpack.c.h.b16 %v1062
        %v1206 = vunpack.c.l.b16 %v1063
        %v1207 = vunpack.c.l.b16 %v1064
        %v1208 = vunpack.c.h.b16 %v1064
        %v1209 = vunpack.c.l.b16 %v1065
        %v1210 = vunpack.c.l.b16 %v1066
        %v1211 = vunpack.c.h.b16 %v1066
        %v1212 = vunpack.c.l.b16 %v1067
        %v1213 = vunpack.c.l.b16 %v1068
        %v1214 = vunpack.c.h.b16 %v1068
        %v1215 = vunpack.c.l.b16 %v1069
        %v1216 = vunpack.c.l.b16 %v1070
        %v1217 = vunpack.c.h.b16 %v1070
        %v1218 = vunpack.c.l.b16 %v1071
        %v1219 = vunpack.c.l.b16 %v1072
        %v1220 = vunpack.c.h.b16 %v1072
        %v1221 = vunpack.c.l.b16 %v1073
        %v1222 = vunpack.c.l.b16 %v1074
        %v1223 = vunpack.c.h.b16 %v1074
        %v1224 = vunpack.c.l.b16 %v1075
        %v1225 = vunpack.c.l.b16 %v1076
        %v1226 = vunpack.c.h.b16 %v1076
        %v1227 = vunpack.c.l.b16 %v1077
        %v1228 = vunpack.c.l.b16 %v1078
        %v1229 = vunpack.c.h.b16 %v1078
        %v1230 = vunpack.c.l.b16 %v1079
        %v1231 = vunpack.c.l.b16 %v1080
        %v1232 = vunpack.c.h.b16 %v1080
        %v1233 = vunpack.c.l.b16 %v1081
        %v1234 = vunpack.c.l.b16 %v1082
        %v1235 = vunpack.c.h.b16 %v1082
        %v1236 = vunpack.c.l.b16 %v1083
        %v1237 = vunpack.c.l.b16 %v1084
        %v1238 = vunpack.c.h.b16 %v1084
        %v1239 = vunpack.c.l.b16 %v1085
        %v1240 = vunpack.c.l.b16 %v1086
        %v1241 = vunpack.c.h.b16 %v1086
        %v1242 = vunpack.c.l.b16 %v1087
        %v1243 = vunpack.c.l.b16 %v1088
        %v1244 = vunpack.c.h.b16 %v1088
        %v1245 = vunpack.c.l.b16 %v1089
        %v1246 = vunpack.c.l.b16 %v1090
        %v1247 = vunpack.c.h.b16 %v1090
        %v1248 = vunpack.c.l.b16 %v1091
        %v1249 = vunpack.c.l.b16 %v1092
        %v1250 = vunpack.c.h.b16 %v1092
        %v1251 = vunpack.c.l.b16 %v1093
        %v1252 = vpack.c.b16 %v1207, %v1204
        %v1253 = vpack.c.b16 %v1208, %v1205
        %v1254 = vpack.c.b16 %v1209, %v1206
        %v1255 = vpack.c.b16 %v1213, %v1210
        %v1256 = vpack.c.b16 %v1214, %v1211
        %v1257 = vpack.c.b16 %v1215, %v1212
        %v1258 = vpack.c.b16 %v1219, %v1216
        %v1259 = vpack.c.b16 %v1220, %v1217
        %v1260 = vpack.c.b16 %v1221, %v1218
        %v1261 = vpack.c.b16 %v1225, %v1222
        %v1262 = vpack.c.b16 %v1226, %v1223
        %v1263 = vpack.c.b16 %v1227, %v1224
        %v1264 = vpack.c.b16 %v1231, %v1228
        %v1265 = vpack.c.b16 %v1232, %v1229
        %v1266 = vpack.c.b16 %v1233, %v1230
        %v1267 = vpack.c.b16 %v1237, %v1234
        %v1268 = vpack.c.b16 %v1238, %v1235
        %v1269 = vpack.c.b16 %v1239, %v1236
        %v1270 = vpack.c.b16 %v1243, %v1240
        %v1271 = vpack.c.b16 %v1244, %v1241
        %v1272 = vpack.c.b16 %v1245, %v1242
        %v1273 = vpack.c.b16 %v1249, %v1246
        %v1274 = vpack.c.b16 %v1250, %v1247
        %v1275 = vpack.c.b16 %v1251, %v1248
        %1300 = vmatprep.subr.bf16.mxu0 %v1253
        %1301 = vmatpush1.bf16.msra.mxu0 %v1252
        %1302 = vmatprep.subr.bf16.mxu0 %v1256
        %1303 = vmatpush1.bf16.msra.mxu0 %v1255
        %1304 = vmatprep.subr.bf16.mxu0 %v1259
        %1305 = vmatpush1.bf16.msra.mxu0 %v1258
        %1306 = vmatprep.subr.bf16.mxu0 %v1262
        %1307 = vmatpush1.bf16.msra.mxu0 %v1261
        %1308 = vmatprep.subr.bf16.mxu0 %v1265
        %1309 = vmatpush1.bf16.msra.mxu0 %v1264
        %1310 = vmatprep.subr.bf16.mxu0 %v1268
        %1311 = vmatpush1.bf16.msra.mxu0 %v1267
        %1312 = vmatprep.subr.bf16.mxu0 %v1271
        %1313 = vmatpush1.bf16.msra.mxu0 %v1270
        %1314 = vmatprep.subr.bf16.mxu0 %v1274
        %1315 = vmatpush1.bf16.msra.mxu0 %v1273
        %1316 = vmatprep.subr.bf16.mxu0 0
        %1317 = vmatpush1.bf16.msra.mxu0 0
        %1318 = vmatprep.subr.bf16.mxu0 0
        %1319 = vmatpush1.bf16.msra.mxu0 0
        %1320 = vmatprep.subr.bf16.mxu0 0
        %1321 = vmatpush1.bf16.msra.mxu0 0
        %1322 = vmatprep.subr.bf16.mxu0 0
        %1323 = vmatpush1.bf16.msra.mxu0 0
        %1324 = vmatprep.subr.bf16.mxu0 0
        %1325 = vmatpush1.bf16.msra.mxu0 0
        %1326 = vmatprep.subr.bf16.mxu0 0
        %1327 = vmatpush1.bf16.msra.mxu0 0
        %1328 = vmatprep.subr.bf16.mxu0 0
        %1329 = vmatpush1.bf16.msra.mxu0 0
        %1330 = vmatprep.subr.bf16.mxu0 0
        %1331 = vmatpush1.bf16.msra.mxu0 0
        %1332 = vmatprep.mubr.bf16.mxu0 0
        %1333 = vmatmul.mubr.bf16.gmra.mrb[0].mxu0 %v1155
        %v1334 = vpop.f32.mrb[0].mxu0
        %v1335 = vadd.f32 %v1160, %v1334
        %v1336 = vpop.f32.mrb[0].mxu0
        %v1337 = vadd.f32 %v1164, %v1336
        %v1338 = vpop.f32.mrb[0].mxu0
        %v1339 = vpop.f32.mrb[0].mxu0
        %1340 = vdwg.mxu0
        %1341 = vmatprep.subr.bf16.mxu0 0
        %1342 = vmatpush1.bf16.msra.mxu0 %v1254
        %1343 = vmatprep.subr.bf16.mxu0 0
        %1344 = vmatpush1.bf16.msra.mxu0 %v1257
        %1345 = vmatprep.subr.bf16.mxu0 0
        %1346 = vmatpush1.bf16.msra.mxu0 %v1260
        %1347 = vmatprep.subr.bf16.mxu0 0
        %1348 = vmatpush1.bf16.msra.mxu0 %v1263
        %1349 = vmatprep.subr.bf16.mxu0 0
        %1350 = vmatpush1.bf16.msra.mxu0 %v1266
        %1351 = vmatprep.subr.bf16.mxu0 0
        %1352 = vmatpush1.bf16.msra.mxu0 %v1269
        %1353 = vmatprep.subr.bf16.mxu0 0
        %1354 = vmatpush1.bf16.msra.mxu0 %v1272
        %1355 = vmatprep.subr.bf16.mxu0 0
        %1356 = vmatpush1.bf16.msra.mxu0 %v1275
        %1357 = vmatprep.subr.bf16.mxu0 0
        %1358 = vmatpush1.bf16.msra.mxu0 0
        %1359 = vmatprep.subr.bf16.mxu0 0
        %1360 = vmatpush1.bf16.msra.mxu0 0
        %1361 = vmatprep.subr.bf16.mxu0 0
        %1362 = vmatpush1.bf16.msra.mxu0 0
        %1363 = vmatprep.subr.bf16.mxu0 0
        %1364 = vmatpush1.bf16.msra.mxu0 0
        %1365 = vmatprep.subr.bf16.mxu0 0
        %1366 = vmatpush1.bf16.msra.mxu0 0
        %1367 = vmatprep.subr.bf16.mxu0 0
        %1368 = vmatpush1.bf16.msra.mxu0 0
        %1369 = vmatprep.subr.bf16.mxu0 0
        %1370 = vmatpush1.bf16.msra.mxu0 0
        %1371 = vmatprep.subr.bf16.mxu0 0
        %1372 = vmatpush1.bf16.msra.mxu0 0
        %1373 = vmatprep.mubr.bf16.mxu0 0
        %1374 = vmatmul.mubr.bf16.gmra.mrb[0].mxu0 %v1155
        %v1375 = vpop.f32.mrb[0].mxu0
        %v1376 = vadd.f32 %v1168, %v1375
        %v1377 = vpop.f32.mrb[0].mxu0
        %v1378 = vpop.f32.mrb[0].mxu0
        %v1379 = vpop.f32.mrb[0].mxu0
        %1380 = vdwg.mxu0
        %vm1381 = vcmp.ge.s32.totalorder %v1151, 0
        %vm1382 = vcmp.lt.s32.totalorder %v1151, 8
        %vm1383 = vmand %vm1381, %vm1382
        %v1384 = vsel %vm1383, 1, 0
        %v1385 = vcvt.s32.f32 %v1384
        %v1386 = vmul.f32 %v1335, %v1385
        %1387 = vmatprep.subr.mxu0 0.0
        %1388 = vmatpush1.xpose.msra.mxu0 %v1337
        %1389 = vmatprep.subr.mxu0 0.0
        %1390 = vmatpush1.xpose.msra.mxu0 0.0
        %1391 = vmatprep.subr.mxu0 0.0
        %1392 = vmatpush1.xpose.msra.mxu0 0.0
        %1393 = vmatprep.subr.mxu0 0.0
        %1394 = vmatpush1.xpose.msra.mxu0 0.0
        %1395 = vmatprep.subr.mxu0 0.0
        %1396 = vmatpush1.xpose.msra.mxu0 0.0
        %1397 = vmatprep.subr.mxu0 0.0
        %1398 = vmatpush1.xpose.msra.mxu0 0.0
        %1399 = vmatprep.subr.mxu0 0.0
        %1400 = vmatpush1.xpose.msra.mxu0 0.0
        %1401 = vmatprep.subr.mxu0 0.0
        %1402 = vmatpush1.xpose.msra.mxu0 0.0
        %1403 = vmatprep.subr.mxu0 0.0
        %1404 = vmatpush1.xpose.msra.mxu0 0.0
        %1405 = vmatprep.subr.mxu0 0.0
        %1406 = vmatpush1.xpose.msra.mxu0 0.0
        %1407 = vmatprep.subr.mxu0 0.0
        %1408 = vmatpush1.xpose.msra.mxu0 0.0
        %1409 = vmatprep.subr.mxu0 0.0
        %1410 = vmatpush1.xpose.msra.mxu0 0.0
        %1411 = vmatprep.subr.mxu0 0.0
        %1412 = vmatpush1.xpose.msra.mxu0 0.0
        %1413 = vmatprep.subr.mxu0 0.0
        %1414 = vmatpush1.xpose.msra.mxu0 0.0
        %1415 = vmatprep.subr.mxu0 0.0
        %1416 = vmatpush1.xpose.msra.mxu0 0.0
        %1417 = vmatprep.subr.mxu0 0.0
        %1418 = vmatpush1.xpose.msra.mxu0 0.0
        %1419 = vmatprep.subr.mxu0 0.0
        %1420 = vmatpush1.xpose.msra.mxu0 0.0
        %1421 = vmatprep.subr.mxu0 0.0
        %1422 = vmatpush1.xpose.msra.mxu0 0.0
        %1423 = vmatprep.subr.mxu0 0.0
        %1424 = vmatpush1.xpose.msra.mxu0 0.0
        %1425 = vmatprep.subr.mxu0 0.0
        %1426 = vmatpush1.xpose.msra.mxu0 0.0
        %1427 = vmatprep.subr.mxu0 0.0
        %1428 = vmatpush1.xpose.msra.mxu0 0.0
        %1429 = vmatprep.subr.mxu0 0.0
        %1430 = vmatpush1.xpose.msra.mxu0 0.0
        %1431 = vmatprep.subr.mxu0 0.0
        %1432 = vmatpush1.xpose.msra.mxu0 0.0
        %1433 = vmatprep.subr.mxu0 0.0
        %1434 = vmatpush1.xpose.msra.mxu0 0.0
        %1435 = vmatprep.subr.mxu0 0.0
        %1436 = vmatpush1.xpose.msra.mxu0 0.0
        %1437 = vmatprep.subr.mxu0 0.0
        %1438 = vmatpush1.xpose.msra.mxu0 0.0
        %1439 = vmatprep.subr.mxu0 0.0
        %1440 = vmatpush1.xpose.msra.mxu0 0.0
        %1441 = vmatprep.subr.mxu0 0.0
        %1442 = vmatpush1.xpose.msra.mxu0 0.0
        %1443 = vmatprep.subr.mxu0 0.0
        %1444 = vmatpush1.xpose.msra.mxu0 0.0
        %1445 = vmatprep.subr.mxu0 0.0
        %1446 = vmatpush1.xpose.msra.mxu0 0.0
        %1447 = vmatprep.subr.mxu0 0.0
        %1448 = vmatpush1.xpose.msra.mxu0 0.0
        %1449 = vmatprep.subr.mxu0 0.0
        %1450 = vmatpush1.xpose.msra.mxu0 0.0
        %1451 = vmatprep.mubr.f32.mxu0 0.0
        %1452 = vmatmul.mubr.f32.gmra.mrb[0].mxu0 %v1386
        %v1453 = vpop.f32.mrb[0].mxu0
        %v1454 = vadd.f32 0.0, %v1453
        %v1455 = vpop.f32.mrb[0].mxu0
        %1456 = vdwg.mxu0
        %v1457 = vmul.f32 %v1454, 0.35355338
        %vm1458 = vcmask 64512
        %v1459 = vsel %vm1458, %v1457, -inf
        %1460 = vmax.xlane.f32.xlu0 %v1459
        %v1461 = vpop.xlane.xlu0 %1460
        %v1462 = vsub.f32 %v1457, %v1461
        %v1463 = vmul.f32 %v1462, 1.442695
        %v1464 = vpow.pop %v1463
        %v1465 = vsel %vm1458, %v1464, 0.0
        %1466 = vadd.xlane.f32.xlu0 %v1465
        %v1467 = vpop.xlane.xlu0 %1466
        %v1468 = vrcp.pop %v1467
        %v1469 = vmul.f32 %v1464, %v1468
        %v1470 = vmul.f32 %v1376, %v1385
        %vm1471 = vcmp.ge.s32.totalorder %v1151, 8
        %vm1472 = vcmp.lt.s32.totalorder %v1151, 16
        %vm1473 = vmand %vm1471, %vm1472
        %v1474 = vsel %vm1473, 1, 0
        %v1475 = vcvt.s32.f32 %v1474
        %v1476 = vmul.f32 %v1335, %v1475
        %1477 = vmatprep.subr.mxu0 0.0
        %1478 = vmatpush1.xpose.msra.mxu0 %v1337
        %1479 = vmatprep.subr.mxu0 0.0
        %1480 = vmatpush1.xpose.msra.mxu0 0.0
        %1481 = vmatprep.subr.mxu0 0.0
        %1482 = vmatpush1.xpose.msra.mxu0 0.0
        %1483 = vmatprep.subr.mxu0 0.0
        %1484 = vmatpush1.xpose.msra.mxu0 0.0
        %1485 = vmatprep.subr.mxu0 0.0
        %1486 = vmatpush1.xpose.msra.mxu0 0.0
        %1487 = vmatprep.subr.mxu0 0.0
        %1488 = vmatpush1.xpose.msra.mxu0 0.0
        %1489 = vmatprep.subr.mxu0 0.0
        %1490 = vmatpush1.xpose.msra.mxu0 0.0
        %1491 = vmatprep.subr.mxu0 0.0
        %1492 = vmatpush1.xpose.msra.mxu0 0.0
        %1493 = vmatprep.subr.mxu0 0.0
        %1494 = vmatpush1.xpose.msra.mxu0 0.0
        %1495 = vmatprep.subr.mxu0 0.0
        %1496 = vmatpush1.xpose.msra.mxu0 0.0
        %1497 = vmatprep.subr.mxu0 0.0
        %1498 = vmatpush1.xpose.msra.mxu0 0.0
        %1499 = vmatprep.subr.mxu0 0.0
        %1500 = vmatpush1.xpose.msra.mxu0 0.0
        %1501 = vmatprep.subr.mxu0 0.0
        %1502 = vmatpush1.xpose.msra.mxu0 0.0
        %1503 = vmatprep.subr.mxu0 0.0
        %1504 = vmatpush1.xpose.msra.mxu0 0.0
        %1505 = vmatprep.subr.mxu0 0.0
        %1506 = vmatpush1.xpose.msra.mxu0 0.0
        %1507 = vmatprep.subr.mxu0 0.0
        %1508 = vmatpush1.xpose.msra.mxu0 0.0
        %1509 = vmatprep.subr.mxu0 0.0
        %1510 = vmatpush1.xpose.msra.mxu0 0.0
        %1511 = vmatprep.subr.mxu0 0.0
        %1512 = vmatpush1.xpose.msra.mxu0 0.0
        %1513 = vmatprep.subr.mxu0 0.0
        %1514 = vmatpush1.xpose.msra.mxu0 0.0
        %1515 = vmatprep.subr.mxu0 0.0
        %1516 = vmatpush1.xpose.msra.mxu0 0.0
        %1517 = vmatprep.subr.mxu0 0.0
        %1518 = vmatpush1.xpose.msra.mxu0 0.0
        %1519 = vmatprep.subr.mxu0 0.0
        %1520 = vmatpush1.xpose.msra.mxu0 0.0
        %1521 = vmatprep.subr.mxu0 0.0
        %1522 = vmatpush1.xpose.msra.mxu0 0.0
        %1523 = vmatprep.subr.mxu0 0.0
        %1524 = vmatpush1.xpose.msra.mxu0 0.0
        %1525 = vmatprep.subr.mxu0 0.0
        %1526 = vmatpush1.xpose.msra.mxu0 0.0
        %1527 = vmatprep.subr.mxu0 0.0
        %1528 = vmatpush1.xpose.msra.mxu0 0.0
        %1529 = vmatprep.subr.mxu0 0.0
        %1530 = vmatpush1.xpose.msra.mxu0 0.0
        %1531 = vmatprep.subr.mxu0 0.0
        %1532 = vmatpush1.xpose.msra.mxu0 0.0
        %1533 = vmatprep.subr.mxu0 0.0
        %1534 = vmatpush1.xpose.msra.mxu0 0.0
        %1535 = vmatprep.subr.mxu0 0.0
        %1536 = vmatpush1.xpose.msra.mxu0 0.0
        %1537 = vmatprep.subr.mxu0 0.0
        %1538 = vmatpush1.xpose.msra.mxu0 0.0
        %1539 = vmatprep.subr.mxu0 0.0
        %1540 = vmatpush1.xpose.msra.mxu0 0.0
        %1541 = vmatprep.mubr.f32.mxu0 0.0
        %1542 = vmatmul.mubr.f32.gmra.mrb[0].mxu0 %v1476
        %v1543 = vpop.f32.mrb[0].mxu0
        %v1544 = vadd.f32 0.0, %v1543
        %v1545 = vpop.f32.mrb[0].mxu0
        %1546 = vdwg.mxu0
        %v1547 = vmul.f32 %v1544, 0.35355338
        %v1548 = vsel %vm1458, %v1547, -inf
        %1549 = vmax.xlane.f32.xlu0 %v1548
        %v1550 = vpop.xlane.xlu0 %1549
        %v1551 = vsub.f32 %v1547, %v1550
        %v1552 = vmul.f32 %v1551, 1.442695
        %v1553 = vpow.pop %v1552
        %v1554 = vsel %vm1458, %v1553, 0.0
        %1555 = vadd.xlane.f32.xlu0 %v1554
        %v1556 = vpop.xlane.xlu0 %1555
        %v1557 = vrcp.pop %v1556
        %v1558 = vmul.f32 %v1553, %v1557
        %v1559 = vmul.f32 %v1376, %v1475
        %v1561 = vsel %vm1458, %v1558, 0
        %1563 = vmatprep.subr.mxu0 0.0
        %1564 = vmatpush1.msra.mxu0 %v1559
        %1565 = vmatprep.subr.mxu0 0.0
        %1566 = vmatpush1.msra.mxu0 0.0
        %1567 = vmatprep.subr.mxu0 0.0
        %1568 = vmatpush1.msra.mxu0 0.0
        %1569 = vmatprep.subr.mxu0 0.0
        %1570 = vmatpush1.msra.mxu0 0.0
        %1571 = vmatprep.subr.mxu0 0.0
        %1572 = vmatpush1.msra.mxu0 0.0
        %1573 = vmatprep.subr.mxu0 0.0
        %1574 = vmatpush1.msra.mxu0 0.0
        %1575 = vmatprep.subr.mxu0 0.0
        %1576 = vmatpush1.msra.mxu0 0.0
        %1577 = vmatprep.subr.mxu0 0.0
        %1578 = vmatpush1.msra.mxu0 0.0
        %1579 = vmatprep.subr.mxu0 0.0
        %1580 = vmatpush1.msra.mxu0 0.0
        %1581 = vmatprep.subr.mxu0 0.0
        %1582 = vmatpush1.msra.mxu0 0.0
        %1583 = vmatprep.subr.mxu0 0.0
        %1584 = vmatpush1.msra.mxu0 0.0
        %1585 = vmatprep.subr.mxu0 0.0
        %1586 = vmatpush1.msra.mxu0 0.0
        %1587 = vmatprep.subr.mxu0 0.0
        %1588 = vmatpush1.msra.mxu0 0.0
        %1589 = vmatprep.subr.mxu0 0.0
        %1590 = vmatpush1.msra.mxu0 0.0
        %1591 = vmatprep.subr.mxu0 0.0
        %1592 = vmatpush1.msra.mxu0 0.0
        %1593 = vmatprep.subr.mxu0 0.0
        %1594 = vmatpush1.msra.mxu0 0.0
        %1595 = vmatprep.subr.mxu0 0.0
        %1596 = vmatpush1.msra.mxu0 0.0
        %1597 = vmatprep.subr.mxu0 0.0
        %1598 = vmatpush1.msra.mxu0 0.0
        %1599 = vmatprep.subr.mxu0 0.0
        %1600 = vmatpush1.msra.mxu0 0.0
        %1601 = vmatprep.subr.mxu0 0.0
        %1602 = vmatpush1.msra.mxu0 0.0
        %1603 = vmatprep.subr.mxu0 0.0
        %1604 = vmatpush1.msra.mxu0 0.0
        %1605 = vmatprep.subr.mxu0 0.0
        %1606 = vmatpush1.msra.mxu0 0.0
        %1607 = vmatprep.subr.mxu0 0.0
        %1608 = vmatpush1.msra.mxu0 0.0
        %1609 = vmatprep.subr.mxu0 0.0
        %1610 = vmatpush1.msra.mxu0 0.0
        %1611 = vmatprep.subr.mxu0 0.0
        %1612 = vmatpush1.msra.mxu0 0.0
        %1613 = vmatprep.subr.mxu0 0.0
        %1614 = vmatpush1.msra.mxu0 0.0
        %1615 = vmatprep.subr.mxu0 0.0
        %1616 = vmatpush1.msra.mxu0 0.0
        %1617 = vmatprep.subr.mxu0 0.0
        %1618 = vmatpush1.msra.mxu0 0.0
        %1619 = vmatprep.subr.mxu0 0.0
        %1620 = vmatpush1.msra.mxu0 0.0
        %1621 = vmatprep.subr.mxu0 0.0
        %1622 = vmatpush1.msra.mxu0 0.0
        %1623 = vmatprep.subr.mxu0 0.0
        %1624 = vmatpush1.msra.mxu0 0.0
        %1625 = vmatprep.subr.mxu0 0.0
        %1626 = vmatpush1.msra.mxu0 0.0
        %1627 = vmatprep.mubr.f32.mxu0 0.0
        %1628 = vmatmul.mubr.f32.gmra.mrb[0].mxu0 %v1561
        %v1629 = vpop.f32.mrb[0].mxu0
        %v1630 = vadd.f32 0.0, %v1629
        %v1631 = vpop.f32.mrb[0].mxu0
        %1632 = vdwg.mxu0
        %v1634 = vsel %vm1458, %v1469, 0
        %1636 = vmatprep.subr.mxu0 0.0
        %1637 = vmatpush1.msra.mxu0 %v1470
        %1638 = vmatprep.subr.mxu0 0.0
        %1639 = vmatpush1.msra.mxu0 0.0
        %1640 = vmatprep.subr.mxu0 0.0
        %1641 = vmatpush1.msra.mxu0 0.0
        %1642 = vmatprep.subr.mxu0 0.0
        %1643 = vmatpush1.msra.mxu0 0.0
        %1644 = vmatprep.subr.mxu0 0.0
        %1645 = vmatpush1.msra.mxu0 0.0
        %1646 = vmatprep.subr.mxu0 0.0
        %1647 = vmatpush1.msra.mxu0 0.0
        %1648 = vmatprep.subr.mxu0 0.0
        %1649 = vmatpush1.msra.mxu0 0.0
        %1650 = vmatprep.subr.mxu0 0.0
        %1651 = vmatpush1.msra.mxu0 0.0
        %1652 = vmatprep.subr.mxu0 0.0
        %1653 = vmatpush1.msra.mxu0 0.0
        %1654 = vmatprep.subr.mxu0 0.0
        %1655 = vmatpush1.msra.mxu0 0.0
        %1656 = vmatprep.subr.mxu0 0.0
        %1657 = vmatpush1.msra.mxu0 0.0
        %1658 = vmatprep.subr.mxu0 0.0
        %1659 = vmatpush1.msra.mxu0 0.0
        %1660 = vmatprep.subr.mxu0 0.0
        %1661 = vmatpush1.msra.mxu0 0.0
        %1662 = vmatprep.subr.mxu0 0.0
        %1663 = vmatpush1.msra.mxu0 0.0
        %1664 = vmatprep.subr.mxu0 0.0
        %1665 = vmatpush1.msra.mxu0 0.0
        %1666 = vmatprep.subr.mxu0 0.0
        %1667 = vmatpush1.msra.mxu0 0.0
        %1668 = vmatprep.subr.mxu0 0.0
        %1669 = vmatpush1.msra.mxu0 0.0
        %1670 = vmatprep.subr.mxu0 0.0
        %1671 = vmatpush1.msra.mxu0 0.0
        %1672 = vmatprep.subr.mxu0 0.0
        %1673 = vmatpush1.msra.mxu0 0.0
        %1674 = vmatprep.subr.mxu0 0.0
        %1675 = vmatpush1.msra.mxu0 0.0
        %1676 = vmatprep.subr.mxu0 0.0
        %1677 = vmatpush1.msra.mxu0 0.0
        %1678 = vmatprep.subr.mxu0 0.0
        %1679 = vmatpush1.msra.mxu0 0.0
        %1680 = vmatprep.subr.mxu0 0.0
        %1681 = vmatpush1.msra.mxu0 0.0
        %1682 = vmatprep.subr.mxu0 0.0
        %1683 = vmatpush1.msra.mxu0 0.0
        %1684 = vmatprep.subr.mxu0 0.0
        %1685 = vmatpush1.msra.mxu0 0.0
        %1686 = vmatprep.subr.mxu0 0.0
        %1687 = vmatpush1.msra.mxu0 0.0
        %1688 = vmatprep.subr.mxu0 0.0
        %1689 = vmatpush1.msra.mxu0 0.0
        %1690 = vmatprep.subr.mxu0 0.0
        %1691 = vmatpush1.msra.mxu0 0.0
        %1692 = vmatprep.subr.mxu0 0.0
        %1693 = vmatpush1.msra.mxu0 0.0
        %1694 = vmatprep.subr.mxu0 0.0
        %1695 = vmatpush1.msra.mxu0 0.0
        %1696 = vmatprep.subr.mxu0 0.0
        %1697 = vmatpush1.msra.mxu0 0.0
        %1698 = vmatprep.subr.mxu0 0.0
        %1699 = vmatpush1.msra.mxu0 0.0
        %1700 = vmatprep.mubr.f32.mxu0 0.0
        %1701 = vmatmul.mubr.f32.gmra.mrb[0].mxu0 %v1634
        %v1702 = vpop.f32.mrb[0].mxu0
        %v1703 = vadd.f32 %v1630, %v1702
        %v1704 = vpop.f32.mrb[0].mxu0
        %1705 = vdwg.mxu0
        %vm1706 = vcmp.ge.s32.totalorder %v1151, 16
        %vm1707 = vcmp.lt.s32.totalorder %v1151, 24
        %vm1708 = vmand %vm1706, %vm1707
        %v1709 = vsel %vm1708, 1, 0
        %v1710 = vcvt.s32.f32 %v1709
        %v1711 = vmul.f32 %v1335, %v1710
        %1712 = vmatprep.subr.mxu0 0.0
        %1713 = vmatpush1.xpose.msra.mxu0 %v1337
        %1714 = vmatprep.subr.mxu0 0.0
        %1715 = vmatpush1.xpose.msra.mxu0 0.0
        %1716 = vmatprep.subr.mxu0 0.0
        %1717 = vmatpush1.xpose.msra.mxu0 0.0
        %1718 = vmatprep.subr.mxu0 0.0
        %1719 = vmatpush1.xpose.msra.mxu0 0.0
        %1720 = vmatprep.subr.mxu0 0.0
        %1721 = vmatpush1.xpose.msra.mxu0 0.0
        %1722 = vmatprep.subr.mxu0 0.0
        %1723 = vmatpush1.xpose.msra.mxu0 0.0
        %1724 = vmatprep.subr.mxu0 0.0
        %1725 = vmatpush1.xpose.msra.mxu0 0.0
        %1726 = vmatprep.subr.mxu0 0.0
        %1727 = vmatpush1.xpose.msra.mxu0 0.0
        %1728 = vmatprep.subr.mxu0 0.0
        %1729 = vmatpush1.xpose.msra.mxu0 0.0
        %1730 = vmatprep.subr.mxu0 0.0
        %1731 = vmatpush1.xpose.msra.mxu0 0.0
        %1732 = vmatprep.subr.mxu0 0.0
        %1733 = vmatpush1.xpose.msra.mxu0 0.0
        %1734 = vmatprep.subr.mxu0 0.0
        %1735 = vmatpush1.xpose.msra.mxu0 0.0
        %1736 = vmatprep.subr.mxu0 0.0
        %1737 = vmatpush1.xpose.msra.mxu0 0.0
        %1738 = vmatprep.subr.mxu0 0.0
        %1739 = vmatpush1.xpose.msra.mxu0 0.0
        %1740 = vmatprep.subr.mxu0 0.0
        %1741 = vmatpush1.xpose.msra.mxu0 0.0
        %1742 = vmatprep.subr.mxu0 0.0
        %1743 = vmatpush1.xpose.msra.mxu0 0.0
        %1744 = vmatprep.subr.mxu0 0.0
        %1745 = vmatpush1.xpose.msra.mxu0 0.0
        %1746 = vmatprep.subr.mxu0 0.0
        %1747 = vmatpush1.xpose.msra.mxu0 0.0
        %1748 = vmatprep.subr.mxu0 0.0
        %1749 = vmatpush1.xpose.msra.mxu0 0.0
        %1750 = vmatprep.subr.mxu0 0.0
        %1751 = vmatpush1.xpose.msra.mxu0 0.0
        %1752 = vmatprep.subr.mxu0 0.0
        %1753 = vmatpush1.xpose.msra.mxu0 0.0
        %1754 = vmatprep.subr.mxu0 0.0
        %1755 = vmatpush1.xpose.msra.mxu0 0.0
        %1756 = vmatprep.subr.mxu0 0.0
        %1757 = vmatpush1.xpose.msra.mxu0 0.0
        %1758 = vmatprep.subr.mxu0 0.0
        %1759 = vmatpush1.xpose.msra.mxu0 0.0
        %1760 = vmatprep.subr.mxu0 0.0
        %1761 = vmatpush1.xpose.msra.mxu0 0.0
        %1762 = vmatprep.subr.mxu0 0.0
        %1763 = vmatpush1.xpose.msra.mxu0 0.0
        %1764 = vmatprep.subr.mxu0 0.0
        %1765 = vmatpush1.xpose.msra.mxu0 0.0
        %1766 = vmatprep.subr.mxu0 0.0
        %1767 = vmatpush1.xpose.msra.mxu0 0.0
        %1768 = vmatprep.subr.mxu0 0.0
        %1769 = vmatpush1.xpose.msra.mxu0 0.0
        %1770 = vmatprep.subr.mxu0 0.0
        %1771 = vmatpush1.xpose.msra.mxu0 0.0
        %1772 = vmatprep.subr.mxu0 0.0
        %1773 = vmatpush1.xpose.msra.mxu0 0.0
        %1774 = vmatprep.subr.mxu0 0.0
        %1775 = vmatpush1.xpose.msra.mxu0 0.0
        %1776 = vmatprep.mubr.f32.mxu0 0.0
        %1777 = vmatmul.mubr.f32.gmra.mrb[0].mxu0 %v1711
        %v1778 = vpop.f32.mrb[0].mxu0
        %v1779 = vadd.f32 0.0, %v1778
        %v1780 = vpop.f32.mrb[0].mxu0
        %1781 = vdwg.mxu0
        %v1782 = vmul.f32 %v1779, 0.35355338
        %v1783 = vsel %vm1458, %v1782, -inf
        %1784 = vmax.xlane.f32.xlu0 %v1783
        %v1785 = vpop.xlane.xlu0 %1784
        %v1786 = vsub.f32 %v1782, %v1785
        %v1787 = vmul.f32 %v1786, 1.442695
        %v1788 = vpow.pop %v1787
        %v1789 = vsel %vm1458, %v1788, 0.0
        %1790 = vadd.xlane.f32.xlu0 %v1789
        %v1791 = vpop.xlane.xlu0 %1790
        %v1792 = vrcp.pop %v1791
        %v1793 = vmul.f32 %v1788, %v1792
        %v1794 = vmul.f32 %v1376, %v1710
        %v1796 = vsel %vm1458, %v1793, 0
        %1798 = vmatprep.subr.mxu0 0.0
        %1799 = vmatpush1.msra.mxu0 %v1794
        %1800 = vmatprep.subr.mxu0 0.0
        %1801 = vmatpush1.msra.mxu0 0.0
        %1802 = vmatprep.subr.mxu0 0.0
        %1803 = vmatpush1.msra.mxu0 0.0
        %1804 = vmatprep.subr.mxu0 0.0
        %1805 = vmatpush1.msra.mxu0 0.0
        %1806 = vmatprep.subr.mxu0 0.0
        %1807 = vmatpush1.msra.mxu0 0.0
        %1808 = vmatprep.subr.mxu0 0.0
        %1809 = vmatpush1.msra.mxu0 0.0
        %1810 = vmatprep.subr.mxu0 0.0
        %1811 = vmatpush1.msra.mxu0 0.0
        %1812 = vmatprep.subr.mxu0 0.0
        %1813 = vmatpush1.msra.mxu0 0.0
        %1814 = vmatprep.subr.mxu0 0.0
        %1815 = vmatpush1.msra.mxu0 0.0
        %1816 = vmatprep.subr.mxu0 0.0
        %1817 = vmatpush1.msra.mxu0 0.0
        %1818 = vmatprep.subr.mxu0 0.0
        %1819 = vmatpush1.msra.mxu0 0.0
        %1820 = vmatprep.subr.mxu0 0.0
        %1821 = vmatpush1.msra.mxu0 0.0
        %1822 = vmatprep.subr.mxu0 0.0
        %1823 = vmatpush1.msra.mxu0 0.0
        %1824 = vmatprep.subr.mxu0 0.0
        %1825 = vmatpush1.msra.mxu0 0.0
        %1826 = vmatprep.subr.mxu0 0.0
        %1827 = vmatpush1.msra.mxu0 0.0
        %1828 = vmatprep.subr.mxu0 0.0
        %1829 = vmatpush1.msra.mxu0 0.0
        %1830 = vmatprep.subr.mxu0 0.0
        %1831 = vmatpush1.msra.mxu0 0.0
        %1832 = vmatprep.subr.mxu0 0.0
        %1833 = vmatpush1.msra.mxu0 0.0
        %1834 = vmatprep.subr.mxu0 0.0
        %1835 = vmatpush1.msra.mxu0 0.0
        %1836 = vmatprep.subr.mxu0 0.0
        %1837 = vmatpush1.msra.mxu0 0.0
        %1838 = vmatprep.subr.mxu0 0.0
        %1839 = vmatpush1.msra.mxu0 0.0
        %1840 = vmatprep.subr.mxu0 0.0
        %1841 = vmatpush1.msra.mxu0 0.0
        %1842 = vmatprep.subr.mxu0 0.0
        %1843 = vmatpush1.msra.mxu0 0.0
        %1844 = vmatprep.subr.mxu0 0.0
        %1845 = vmatpush1.msra.mxu0 0.0
        %1846 = vmatprep.subr.mxu0 0.0
        %1847 = vmatpush1.msra.mxu0 0.0
        %1848 = vmatprep.subr.mxu0 0.0
        %1849 = vmatpush1.msra.mxu0 0.0
        %1850 = vmatprep.subr.mxu0 0.0
        %1851 = vmatpush1.msra.mxu0 0.0
        %1852 = vmatprep.subr.mxu0 0.0
        %1853 = vmatpush1.msra.mxu0 0.0
        %1854 = vmatprep.subr.mxu0 0.0
        %1855 = vmatpush1.msra.mxu0 0.0
        %1856 = vmatprep.subr.mxu0 0.0
        %1857 = vmatpush1.msra.mxu0 0.0
        %1858 = vmatprep.subr.mxu0 0.0
        %1859 = vmatpush1.msra.mxu0 0.0
        %1860 = vmatprep.subr.mxu0 0.0
        %1861 = vmatpush1.msra.mxu0 0.0
        %1862 = vmatprep.mubr.f32.mxu0 0.0
        %1863 = vmatmul.mubr.f32.gmra.mrb[0].mxu0 %v1796
        %v1864 = vpop.f32.mrb[0].mxu0
        %v1865 = vadd.f32 0.0, %v1864
        %v1866 = vpop.f32.mrb[0].mxu0
        %1867 = vdwg.mxu0
        %v1868 = vadd.f32 %v1703, %v1865
        %vm1869 = vcmp.ge.s32.totalorder %v1151, 24
        %vm1870 = vmand %vm1869, %vm1152
        %v1871 = vsel %vm1870, 1, 0
        %v1872 = vcvt.s32.f32 %v1871
        %v1873 = vmul.f32 %v1335, %v1872
        %1874 = vmatprep.subr.mxu0 0.0
        %1875 = vmatpush1.xpose.msra.mxu0 %v1337
        %1876 = vmatprep.subr.mxu0 0.0
        %1877 = vmatpush1.xpose.msra.mxu0 0.0
        %1878 = vmatprep.subr.mxu0 0.0
        %1879 = vmatpush1.xpose.msra.mxu0 0.0
        %1880 = vmatprep.subr.mxu0 0.0
        %1881 = vmatpush1.xpose.msra.mxu0 0.0
        %1882 = vmatprep.subr.mxu0 0.0
        %1883 = vmatpush1.xpose.msra.mxu0 0.0
        %1884 = vmatprep.subr.mxu0 0.0
        %1885 = vmatpush1.xpose.msra.mxu0 0.0
        %1886 = vmatprep.subr.mxu0 0.0
        %1887 = vmatpush1.xpose.msra.mxu0 0.0
        %1888 = vmatprep.subr.mxu0 0.0
        %1889 = vmatpush1.xpose.msra.mxu0 0.0
        %1890 = vmatprep.subr.mxu0 0.0
        %1891 = vmatpush1.xpose.msra.mxu0 0.0
        %1892 = vmatprep.subr.mxu0 0.0
        %1893 = vmatpush1.xpose.msra.mxu0 0.0
        %1894 = vmatprep.subr.mxu0 0.0
        %1895 = vmatpush1.xpose.msra.mxu0 0.0
        %1896 = vmatprep.subr.mxu0 0.0
        %1897 = vmatpush1.xpose.msra.mxu0 0.0
        %1898 = vmatprep.subr.mxu0 0.0
        %1899 = vmatpush1.xpose.msra.mxu0 0.0
        %1900 = vmatprep.subr.mxu0 0.0
        %1901 = vmatpush1.xpose.msra.mxu0 0.0
        %1902 = vmatprep.subr.mxu0 0.0
        %1903 = vmatpush1.xpose.msra.mxu0 0.0
        %1904 = vmatprep.subr.mxu0 0.0
        %1905 = vmatpush1.xpose.msra.mxu0 0.0
        %1906 = vmatprep.subr.mxu0 0.0
        %1907 = vmatpush1.xpose.msra.mxu0 0.0
        %1908 = vmatprep.subr.mxu0 0.0
        %1909 = vmatpush1.xpose.msra.mxu0 0.0
        %1910 = vmatprep.subr.mxu0 0.0
        %1911 = vmatpush1.xpose.msra.mxu0 0.0
        %1912 = vmatprep.subr.mxu0 0.0
        %1913 = vmatpush1.xpose.msra.mxu0 0.0
        %1914 = vmatprep.subr.mxu0 0.0
        %1915 = vmatpush1.xpose.msra.mxu0 0.0
        %1916 = vmatprep.subr.mxu0 0.0
        %1917 = vmatpush1.xpose.msra.mxu0 0.0
        %1918 = vmatprep.subr.mxu0 0.0
        %1919 = vmatpush1.xpose.msra.mxu0 0.0
        %1920 = vmatprep.subr.mxu0 0.0
        %1921 = vmatpush1.xpose.msra.mxu0 0.0
        %1922 = vmatprep.subr.mxu0 0.0
        %1923 = vmatpush1.xpose.msra.mxu0 0.0
        %1924 = vmatprep.subr.mxu0 0.0
        %1925 = vmatpush1.xpose.msra.mxu0 0.0
        %1926 = vmatprep.subr.mxu0 0.0
        %1927 = vmatpush1.xpose.msra.mxu0 0.0
        %1928 = vmatprep.subr.mxu0 0.0
        %1929 = vmatpush1.xpose.msra.mxu0 0.0
        %1930 = vmatprep.subr.mxu0 0.0
        %1931 = vmatpush1.xpose.msra.mxu0 0.0
        %1932 = vmatprep.subr.mxu0 0.0
        %1933 = vmatpush1.xpose.msra.mxu0 0.0
        %1934 = vmatprep.subr.mxu0 0.0
        %1935 = vmatpush1.xpose.msra.mxu0 0.0
        %1936 = vmatprep.subr.mxu0 0.0
        %1937 = vmatpush1.xpose.msra.mxu0 0.0
        %1938 = vmatprep.mubr.f32.mxu0 0.0
        %1939 = vmatmul.mubr.f32.gmra.mrb[0].mxu0 %v1873
        %v1940 = vpop.f32.mrb[0].mxu0
        %v1941 = vadd.f32 0.0, %v1940
        %v1942 = vpop.f32.mrb[0].mxu0
        %1943 = vdwg.mxu0
        %v1944 = vmul.f32 %v1941, 0.35355338
        %v1945 = vsel %vm1458, %v1944, -inf
        %1946 = vmax.xlane.f32.xlu0 %v1945
        %v1947 = vpop.xlane.xlu0 %1946
        %v1948 = vsub.f32 %v1944, %v1947
        %v1949 = vmul.f32 %v1948, 1.442695
        %v1950 = vpow.pop %v1949
        %v1951 = vsel %vm1458, %v1950, 0.0
        %1952 = vadd.xlane.f32.xlu0 %v1951
        %v1953 = vpop.xlane.xlu0 %1952
        %v1954 = vrcp.pop %v1953
        %v1955 = vmul.f32 %v1950, %v1954
        %v1956 = vmul.f32 %v1376, %v1872
        %v1958 = vsel %vm1458, %v1955, 0
        %1960 = vmatprep.subr.mxu0 0.0
        %1961 = vmatpush1.msra.mxu0 %v1956
        %1962 = vmatprep.subr.mxu0 0.0
        %1963 = vmatpush1.msra.mxu0 0.0
        %1964 = vmatprep.subr.mxu0 0.0
        %1965 = vmatpush1.msra.mxu0 0.0
        %1966 = vmatprep.subr.mxu0 0.0
        %1967 = vmatpush1.msra.mxu0 0.0
        %1968 = vmatprep.subr.mxu0 0.0
        %1969 = vmatpush1.msra.mxu0 0.0
        %1970 = vmatprep.subr.mxu0 0.0
        %1971 = vmatpush1.msra.mxu0 0.0
        %1972 = vmatprep.subr.mxu0 0.0
        %1973 = vmatpush1.msra.mxu0 0.0
        %1974 = vmatprep.subr.mxu0 0.0
        %1975 = vmatpush1.msra.mxu0 0.0
        %1976 = vmatprep.subr.mxu0 0.0
        %1977 = vmatpush1.msra.mxu0 0.0
        %1978 = vmatprep.subr.mxu0 0.0
        %1979 = vmatpush1.msra.mxu0 0.0
        %1980 = vmatprep.subr.mxu0 0.0
        %1981 = vmatpush1.msra.mxu0 0.0
        %1982 = vmatprep.subr.mxu0 0.0
        %1983 = vmatpush1.msra.mxu0 0.0
        %1984 = vmatprep.subr.mxu0 0.0
        %1985 = vmatpush1.msra.mxu0 0.0
        %1986 = vmatprep.subr.mxu0 0.0
        %1987 = vmatpush1.msra.mxu0 0.0
        %1988 = vmatprep.subr.mxu0 0.0
        %1989 = vmatpush1.msra.mxu0 0.0
        %1990 = vmatprep.subr.mxu0 0.0
        %1991 = vmatpush1.msra.mxu0 0.0
        %1992 = vmatprep.subr.mxu0 0.0
        %1993 = vmatpush1.msra.mxu0 0.0
        %1994 = vmatprep.subr.mxu0 0.0
        %1995 = vmatpush1.msra.mxu0 0.0
        %1996 = vmatprep.subr.mxu0 0.0
        %1997 = vmatpush1.msra.mxu0 0.0
        %1998 = vmatprep.subr.mxu0 0.0
        %1999 = vmatpush1.msra.mxu0 0.0
        %2000 = vmatprep.subr.mxu0 0.0
        %2001 = vmatpush1.msra.mxu0 0.0
        %2002 = vmatprep.subr.mxu0 0.0
        %2003 = vmatpush1.msra.mxu0 0.0
        %2004 = vmatprep.subr.mxu0 0.0
        %2005 = vmatpush1.msra.mxu0 0.0
        %2006 = vmatprep.subr.mxu0 0.0
        %2007 = vmatpush1.msra.mxu0 0.0
        %2008 = vmatprep.subr.mxu0 0.0
        %2009 = vmatpush1.msra.mxu0 0.0
        %2010 = vmatprep.subr.mxu0 0.0
        %2011 = vmatpush1.msra.mxu0 0.0
        %2012 = vmatprep.subr.mxu0 0.0
        %2013 = vmatpush1.msra.mxu0 0.0
        %2014 = vmatprep.subr.mxu0 0.0
        %2015 = vmatpush1.msra.mxu0 0.0
        %2016 = vmatprep.subr.mxu0 0.0
        %2017 = vmatpush1.msra.mxu0 0.0
        %2018 = vmatprep.subr.mxu0 0.0
        %2019 = vmatpush1.msra.mxu0 0.0
        %2020 = vmatprep.subr.mxu0 0.0
        %2021 = vmatpush1.msra.mxu0 0.0
        %2022 = vmatprep.subr.mxu0 0.0
        %2023 = vmatpush1.msra.mxu0 0.0
        %2024 = vmatprep.mubr.f32.mxu0 0.0
        %2025 = vmatmul.mubr.f32.gmra.mrb[0].mxu0 %v1958
        %v2026 = vpop.f32.mrb[0].mxu0
        %v2027 = vadd.f32 0.0, %v2026
        %v2028 = vpop.f32.mrb[0].mxu0
        %2029 = vdwg.mxu0
        %v2030 = vadd.f32 %v1868, %v2027
        %v2031 = vpack.c.bf16 %v2030, %v2030
        %v2033 = vlaneseq
        %v2034 = vshrl.u32 %v2033, 7
        %v2035 = vsub.s32 0, %v2034
        %v2036 = vrot.slane %v1111, %v2035
        %v2054 = vunpack.c.l.b16 %v1095
        %v2055 = vunpack.c.l.b16 %v1096
        %v2056 = vunpack.c.l.b16 %v1097
        %v2057 = vunpack.c.l.b16 %v1098
        %v2058 = vunpack.c.l.b16 %v1099
        %v2059 = vunpack.c.l.b16 %v1100
        %v2060 = vunpack.c.l.b16 %v1101
        %v2061 = vunpack.c.l.b16 %v1102
        %v2062 = vunpack.c.l.b16 %v1103
        %v2063 = vunpack.c.l.b16 %v1104
        %v2064 = vunpack.c.l.b16 %v1105
        %v2065 = vunpack.c.l.b16 %v1106
        %v2066 = vunpack.c.l.b16 %v1107
        %v2067 = vunpack.c.l.b16 %v1108
        %v2068 = vunpack.c.l.b16 %v1109
        %v2069 = vunpack.c.l.b16 %v1110
        %v2070 = vpack.c.b16 %v2055, %v2054
        %v2071 = vpack.c.b16 %v2057, %v2056
        %v2072 = vpack.c.b16 %v2059, %v2058
        %v2073 = vpack.c.b16 %v2061, %v2060
        %v2074 = vpack.c.b16 %v2063, %v2062
        %v2075 = vpack.c.b16 %v2065, %v2064
        %v2076 = vpack.c.b16 %v2067, %v2066
        %v2077 = vpack.c.b16 %v2069, %v2068
        %2086 = vmatprep.subr.bf16.mxu0 0
        %2087 = vmatpush1.bf16.msra.mxu0 %v2070
        %2088 = vmatprep.subr.bf16.mxu0 0
        %2089 = vmatpush1.bf16.msra.mxu0 %v2071
        %2090 = vmatprep.subr.bf16.mxu0 0
        %2091 = vmatpush1.bf16.msra.mxu0 %v2072
        %2092 = vmatprep.subr.bf16.mxu0 0
        %2093 = vmatpush1.bf16.msra.mxu0 %v2073
        %2094 = vmatprep.subr.bf16.mxu0 0
        %2095 = vmatpush1.bf16.msra.mxu0 %v2074
        %2096 = vmatprep.subr.bf16.mxu0 0
        %2097 = vmatpush1.bf16.msra.mxu0 %v2075
        %2098 = vmatprep.subr.bf16.mxu0 0
        %2099 = vmatpush1.bf16.msra.mxu0 %v2076
        %2100 = vmatprep.subr.bf16.mxu0 0
        %2101 = vmatpush1.bf16.msra.mxu0 %v2077
        %2102 = vmatprep.subr.bf16.mxu0 0
        %2103 = vmatpush1.bf16.msra.mxu0 0
        %2104 = vmatprep.subr.bf16.mxu0 0
        %2105 = vmatpush1.bf16.msra.mxu0 0
        %2106 = vmatprep.subr.bf16.mxu0 0
        %2107 = vmatpush1.bf16.msra.mxu0 0
        %2108 = vmatprep.subr.bf16.mxu0 0
        %2109 = vmatpush1.bf16.msra.mxu0 0
        %2110 = vmatprep.subr.bf16.mxu0 0
        %2111 = vmatpush1.bf16.msra.mxu0 0
        %2112 = vmatprep.subr.bf16.mxu0 0
        %2113 = vmatpush1.bf16.msra.mxu0 0
        %2114 = vmatprep.subr.bf16.mxu0 0
        %2115 = vmatpush1.bf16.msra.mxu0 0
        %2116 = vmatprep.subr.bf16.mxu0 0
        %2117 = vmatpush1.bf16.msra.mxu0 0
        %2118 = vmatprep.mubr.bf16.mxu0 0
        %2119 = vmatmul.mubr.bf16.gmra.mrb[0].mxu0 %v2031
        %v2120 = vpop.f32.mrb[0].mxu0
        %v2121 = vadd.f32 %v2036, %v2120
        %v2122 = vpop.f32.mrb[0].mxu0
        %v2123 = vpop.f32.mrb[0].mxu0
        %v2124 = vpop.f32.mrb[0].mxu0
        %2125 = vdwg.mxu0
        %v2126 = vadd.f32 %v1061, %v2121
        %2127 = vadd.xlane.f32.xlu0 %v2126
        %v2128 = vpop.xlane.xlu0 %2127
        %v2129 = vrcp.pop 32.0
        %v2130 = vmul.f32 %v2128, %v2129
        %v2131 = vsub.f32 %v2126, %v2130
        %v2132 = vmul.f32 %v2131, %v1154
        %v2133 = vmul.f32 %v2132, %v2132
        %2134 = vadd.xlane.f32.xlu0 %v2133
        %v2135 = vpop.xlane.xlu0 %2134
        %v2136 = vmul.f32 %v2135, %v2129
        %v2137 = vadd.f32 %v2136, 1e-05
        %v2138 = vrsqrt.pop %v2137
        %v2139 = vmul.f32 %v2132, %v2138
        %v2141 = vlaneseq
        %v2142 = vshrl.u32 %v2141, 7
        %v2143 = vsub.s32 0, %v2142
        %v2144 = vrot.slane %v1112, %v2143
        %v2146 = vmul.f32 %v2139, %v2144
        %v2148 = vlaneseq
        %v2149 = vshrl.u32 %v2148, 7
        %v2150 = vsub.s32 0, %v2149
        %v2151 = vrot.slane %v1113, %v2150
        %v2153 = vadd.f32 %v2146, %v2151
        %v2154 = vpack.c.bf16 %v2153, %v2153
        %v2156 = vlaneseq
        %v2157 = vshrl.u32 %v2156, 7
        %v2158 = vsub.s32 0, %v2157
        %v2159 = vrot.slane %v1130, %v2158
        %v2177 = vunpack.c.l.b16 %v1114
        %v2178 = vunpack.c.l.b16 %v1115
        %v2179 = vunpack.c.l.b16 %v1116
        %v2180 = vunpack.c.l.b16 %v1117
        %v2181 = vunpack.c.l.b16 %v1118
        %v2182 = vunpack.c.l.b16 %v1119
        %v2183 = vunpack.c.l.b16 %v1120
        %v2184 = vunpack.c.l.b16 %v1121
        %v2185 = vunpack.c.l.b16 %v1122
        %v2186 = vunpack.c.l.b16 %v1123
        %v2187 = vunpack.c.l.b16 %v1124
        %v2188 = vunpack.c.l.b16 %v1125
        %v2189 = vunpack.c.l.b16 %v1126
        %v2190 = vunpack.c.l.b16 %v1127
        %v2191 = vunpack.c.l.b16 %v1128
        %v2192 = vunpack.c.l.b16 %v1129
        %v2193 = vpack.c.b16 %v2178, %v2177
        %v2194 = vpack.c.b16 %v2180, %v2179
        %v2195 = vpack.c.b16 %v2182, %v2181
        %v2196 = vpack.c.b16 %v2184, %v2183
        %v2197 = vpack.c.b16 %v2186, %v2185
        %v2198 = vpack.c.b16 %v2188, %v2187
        %v2199 = vpack.c.b16 %v2190, %v2189
        %v2200 = vpack.c.b16 %v2192, %v2191
        %2209 = vmatprep.subr.bf16.mxu0 0
        %2210 = vmatpush1.bf16.msra.mxu0 %v2193
        %2211 = vmatprep.subr.bf16.mxu0 0
        %2212 = vmatpush1.bf16.msra.mxu0 %v2194
        %2213 = vmatprep.subr.bf16.mxu0 0
        %2214 = vmatpush1.bf16.msra.mxu0 %v2195
        %2215 = vmatprep.subr.bf16.mxu0 0
        %2216 = vmatpush1.bf16.msra.mxu0 %v2196
        %2217 = vmatprep.subr.bf16.mxu0 0
        %2218 = vmatpush1.bf16.msra.mxu0 %v2197
        %2219 = vmatprep.subr.bf16.mxu0 0
        %2220 = vmatpush1.bf16.msra.mxu0 %v2198
        %2221 = vmatprep.subr.bf16.mxu0 0
        %2222 = vmatpush1.bf16.msra.mxu0 %v2199
        %2223 = vmatprep.subr.bf16.mxu0 0
        %2224 = vmatpush1.bf16.msra.mxu0 %v2200
        %2225 = vmatprep.subr.bf16.mxu0 0
        %2226 = vmatpush1.bf16.msra.mxu0 0
        %2227 = vmatprep.subr.bf16.mxu0 0
        %2228 = vmatpush1.bf16.msra.mxu0 0
        %2229 = vmatprep.subr.bf16.mxu0 0
        %2230 = vmatpush1.bf16.msra.mxu0 0
        %2231 = vmatprep.subr.bf16.mxu0 0
        %2232 = vmatpush1.bf16.msra.mxu0 0
        %2233 = vmatprep.subr.bf16.mxu0 0
        %2234 = vmatpush1.bf16.msra.mxu0 0
        %2235 = vmatprep.subr.bf16.mxu0 0
        %2236 = vmatpush1.bf16.msra.mxu0 0
        %2237 = vmatprep.subr.bf16.mxu0 0
        %2238 = vmatpush1.bf16.msra.mxu0 0
        %2239 = vmatprep.subr.bf16.mxu0 0
        %2240 = vmatpush1.bf16.msra.mxu0 0
        %2241 = vmatprep.mubr.bf16.mxu0 0
        %2242 = vmatmul.mubr.bf16.gmra.mrb[0].mxu0 %v2154
        %v2243 = vpop.f32.mrb[0].mxu0
        %v2244 = vadd.f32 %v2159, %v2243
        %v2245 = vpop.f32.mrb[0].mxu0
        %v2246 = vpop.f32.mrb[0].mxu0
        %v2247 = vpop.f32.mrb[0].mxu0
        %2248 = vdwg.mxu0
        %v2249 = vmul.f32 %v2244, 0.5
        %v2250 = vmul.f32 %v2244, 0.044715
        %v2251 = vmul.f32 %v2250, %v2244
        %v2252 = vmul.f32 %v2251, %v2244
        %v2253 = vadd.f32 %v2244, %v2252
        %v2254 = vmul.f32 %v2253, 0.7978846
        %v2255 = vtanh.pop %v2254
        %v2256 = vadd.f32 %v2255, 1.0
        %v2257 = vmul.f32 %v2249, %v2256
        %v2258 = vpack.c.bf16 %v2257, %v2257
        %v2260 = vlaneseq
        %v2261 = vshrl.u32 %v2260, 7
        %v2262 = vsub.s32 0, %v2261
        %v2263 = vrot.slane %v1147, %v2262
        %v2281 = vunpack.c.l.b16 %v1131
        %v2282 = vunpack.c.l.b16 %v1132
        %v2283 = vunpack.c.l.b16 %v1133
        %v2284 = vunpack.c.l.b16 %v1134
        %v2285 = vunpack.c.l.b16 %v1135
        %v2286 = vunpack.c.l.b16 %v1136
        %v2287 = vunpack.c.l.b16 %v1137
        %v2288 = vunpack.c.l.b16 %v1138
        %v2289 = vunpack.c.l.b16 %v1139
        %v2290 = vunpack.c.l.b16 %v1140
        %v2291 = vunpack.c.l.b16 %v1141
        %v2292 = vunpack.c.l.b16 %v1142
        %v2293 = vunpack.c.l.b16 %v1143
        %v2294 = vunpack.c.l.b16 %v1144
        %v2295 = vunpack.c.l.b16 %v1145
        %v2296 = vunpack.c.l.b16 %v1146
        %v2297 = vpack.c.b16 %v2282, %v2281
        %v2298 = vpack.c.b16 %v2284, %v2283
        %v2299 = vpack.c.b16 %v2286, %v2285
        %v2300 = vpack.c.b16 %v2288, %v2287
        %v2301 = vpack.c.b16 %v2290, %v2289
        %v2302 = vpack.c.b16 %v2292, %v2291
        %v2303 = vpack.c.b16 %v2294, %v2293
        %v2304 = vpack.c.b16 %v2296, %v2295
        %2313 = vmatprep.subr.bf16.mxu0 0
        %2314 = vmatpush1.bf16.msra.mxu0 %v2297
        %2315 = vmatprep.subr.bf16.mxu0 0
        %2316 = vmatpush1.bf16.msra.mxu0 %v2298
        %2317 = vmatprep.subr.bf16.mxu0 0
        %2318 = vmatpush1.bf16.msra.mxu0 %v2299
        %2319 = vmatprep.subr.bf16.mxu0 0
        %2320 = vmatpush1.bf16.msra.mxu0 %v2300
        %2321 = vmatprep.subr.bf16.mxu0 0
        %2322 = vmatpush1.bf16.msra.mxu0 %v2301
        %2323 = vmatprep.subr.bf16.mxu0 0
        %2324 = vmatpush1.bf16.msra.mxu0 %v2302
        %2325 = vmatprep.subr.bf16.mxu0 0
        %2326 = vmatpush1.bf16.msra.mxu0 %v2303
        %2327 = vmatprep.subr.bf16.mxu0 0
        %2328 = vmatpush1.bf16.msra.mxu0 %v2304
        %2329 = vmatprep.subr.bf16.mxu0 0
        %2330 = vmatpush1.bf16.msra.mxu0 0
        %2331 = vmatprep.subr.bf16.mxu0 0
        %2332 = vmatpush1.bf16.msra.mxu0 0
        %2333 = vmatprep.subr.bf16.mxu0 0
        %2334 = vmatpush1.bf16.msra.mxu0 0
        %2335 = vmatprep.subr.bf16.mxu0 0
        %2336 = vmatpush1.bf16.msra.mxu0 0
        %2337 = vmatprep.subr.bf16.mxu0 0
        %2338 = vmatpush1.bf16.msra.mxu0 0
        %2339 = vmatprep.subr.bf16.mxu0 0
        %2340 = vmatpush1.bf16.msra.mxu0 0
        %2341 = vmatprep.subr.bf16.mxu0 0
        %2342 = vmatpush1.bf16.msra.mxu0 0
        %2343 = vmatprep.subr.bf16.mxu0 0
        %2344 = vmatpush1.bf16.msra.mxu0 0
        %2345 = vmatprep.mubr.bf16.mxu0 0
        %2346 = vmatmul.mubr.bf16.gmra.mrb[0].mxu0 %v2258
        %v2347 = vpop.f32.mrb[0].mxu0
        %v2348 = vadd.f32 %v2263, %v2347
        %v2349 = vpop.f32.mrb[0].mxu0
        %v2350 = vpop.f32.mrb[0].mxu0
        %v2351 = vpop.f32.mrb[0].mxu0
        %2352 = vdwg.mxu0
        %v2353 = vadd.f32 %v2153, %v2348
        %2354 = vadd.xlane.f32.xlu0 %v2353
        %v2355 = vpop.xlane.xlu0 %2354
        %v2356 = vmul.f32 %v2355, %v2129
        %v2357 = vsub.f32 %v2353, %v2356
        %v2358 = vmul.f32 %v2357, %v1154
        %v2359 = vmul.f32 %v2358, %v2358
        %2360 = vadd.xlane.f32.xlu0 %v2359
        %v2361 = vpop.xlane.xlu0 %2360
        %v2362 = vmul.f32 %v2361, %v2129
        %v2363 = vadd.f32 %v2362, 1e-05
        %v2364 = vrsqrt.pop %v2363
        %v2365 = vmul.f32 %v2358, %v2364
        %v2367 = vlaneseq
        %v2368 = vshrl.u32 %v2367, 7
        %v2369 = vsub.s32 0, %v2368
        %v2370 = vrot.slane %v1148, %v2369
        %v2372 = vmul.f32 %v2365, %v2370
        %v2374 = vlaneseq
        %v2375 = vshrl.u32 %v2374, 7
        %v2376 = vsub.s32 0, %v2375
        %v2377 = vrot.slane %v1149, %v2376
        %v2379 = vadd.f32 %v2372, %v2377
        %2380 = vst [vmem:[%s939] sm:$0xff] %v2379
        %p2381 = scmp.lt.s32.totalorder %s33, 1
        %s2382 = scalar_select %p2381, %s33, 1
        %s2383 = smul.addr %s2382, 8
        %s2384 = scalar_lea.vmem %s16, %s2383
        // Predicated region
        $region141: #{concat_seq_encoder_m2mdm_forward.2} parent=83 // pred_check
          %p2385 = pneg %p460
        $region142: #{concat_seq_encoder_m2mdm_forward.2} parent=83 // pred_check_branch
          %2387 = sbr.rel (%p2385) target = $region144
        $region143: #{concat_seq_encoder_m2mdm_forward.2} parent=83 // pred_region
          _
        $region144: #{concat_seq_encoder_m2mdm_forward.2} parent=83 // pred_fallthru
          _
      $region84: #{concat_seq_encoder_m2mdm_forward.2} parent=5 // pred_fallthru
        _
      %p2388 = scmp.le.s32.totalorder 2, %s24
      // Predicated region
      $region145: #{concat_seq_encoder_m2mdm_forward.2} parent=5 // pred_check
        %p2389 = pneg %p2388
      $region146: #{concat_seq_encoder_m2mdm_forward.2} parent=5 // pred_check_branch
        %2391 = sbr.rel (%p2389) target = $region148
      $region147: #{concat_seq_encoder_m2mdm_forward.2} parent=5 // pred_region
        %s2392 = ssub.s32 %s24, 2
        // Predicated region
        $region149: #{concat_seq_encoder_m2mdm_forward.2} parent=147 // pred_check
          %p2393 = pneg %p466
        $region150: #{concat_seq_encoder_m2mdm_forward.2} parent=147 // pred_check_branch
          %2395 = sbr.rel (%p2393) target = $region152
        $region151: #{concat_seq_encoder_m2mdm_forward.2} parent=147 // pred_region
          %p2396 = scmp.lt.s32.totalorder %s35, 1
          %s2397 = scalar_select %p2396, %s35, 1
          %s2398 = smul.addr %s2397, 8
          %s2399 = scalar_lea.vmem %s16, %s2398
        $region152: #{concat_seq_encoder_m2mdm_forward.2} parent=147 // pred_fallthru
          _
      $region148: #{concat_seq_encoder_m2mdm_forward.2} parent=5 // pred_fallthru
        _
    $region6: #{concat_seq_encoder_m2mdm_forward.2} parent=1 // loop_footer
      %s28 = sadd.s32 1, %s24
    $region7: #{concat_seq_encoder_m2mdm_forward.2} parent=1 // loop_footer_branch
      %23 = sbr.rel target = $region3
    $region8: #{concat_seq_encoder_m2mdm_forward.2} parent=1 // loop_exit
      _
    %2400 = vsyncpa [#allocation3], 1
    %s2401 = scalar_lea.sflag [#allocation3], 1
    %2402 = vsyncpa %s2401, 1
    %2403 = vsyncpa [#allocation5], 1

// kernel: concat_seq_encoder_m2mdm_forward.3
$region0: #{concat_seq_encoder_m2mdm_forward.3}
  #allocation0 [shape = 'u32[]', space=smem, size = 0x4, offset = 0x4, fixed_abs, tag = 'smem constant byte address 0x4 - core index']
  #allocation1 [shape = 'u32[144,128]{1,0:T(1,128)}', space=vmem, size = 0x12000, scoped, tag = 'internal scratch']
  #allocation2 [shape = 'f32[17,128]{1,0:T(8,128)}', space=vmem, size = 0x3000, scoped, tag = 'scratch operand']
  %s0 = inlined_call_operand.vmem [shape: f32[2,1,128], index: 0, kind: input, shape index: {}]
  %s1 = inlined_call_operand.vmem [shape: f32[2,8,128], index: 1, kind: input, shape index: {}]
  %s2 = inlined_call_operand.vmem [shape: f32[2,8,128], index: 2, kind: input, shape index: {}]
  %s3 = inlined_call_operand.vmem [shape: bf16[128,128], index: 3, kind: input, shape index: {}]
  %s4 = inlined_call_operand.vmem [shape: f32[1,128], index: 4, kind: input, shape index: {}]
  %s5 = inlined_call_operand.vmem [shape: bf16[128,128], index: 5, kind: input, shape index: {}]
  %s6 = inlined_call_operand.vmem [shape: f32[1,128], index: 6, kind: input, shape index: {}]
  %s7 = inlined_call_operand.vmem [shape: bf16[128,128], index: 7, kind: input, shape index: {}]
  %s8 = inlined_call_operand.vmem [shape: f32[1,128], index: 8, kind: input, shape index: {}]
  %s9 = inlined_call_operand.vmem [shape: f32[17,128], index: 9, kind: input, shape index: {}]
  %s10 = inlined_call_operand.vmem [shape: bf16[2,128,384], index: 10, kind: input, shape index: {}]
  %s11 = inlined_call_operand.vmem [shape: f32[2,1,384], index: 11, kind: input, shape index: {}]
  %s12 = inlined_call_operand.vmem [shape: bf16[2,128,128], index: 12, kind: input, shape index: {}]
  %s13 = inlined_call_operand.vmem [shape: f32[2,1,128], index: 13, kind: input, shape index: {}]
  %s14 = inlined_call_operand.vmem [shape: f32[2,1,128], index: 14, kind: input, shape index: {}]
  %s15 = inlined_call_operand.vmem [shape: f32[2,1,128], index: 15, kind: input, shape index: {}]
  %s16 = inlined_call_operand.vmem [shape: bf16[2,128,128], index: 16, kind: input, shape index: {}]
  %s17 = inlined_call_operand.vmem [shape: f32[2,1,128], index: 17, kind: input, shape index: {}]
  %s18 = inlined_call_operand.vmem [shape: bf16[2,128,128], index: 18, kind: input, shape index: {}]
  %s19 = inlined_call_operand.vmem [shape: f32[2,1,128], index: 19, kind: input, shape index: {}]
  %s20 = inlined_call_operand.vmem [shape: f32[2,1,128], index: 20, kind: input, shape index: {}]
  %s21 = inlined_call_operand.vmem [shape: f32[2,1,128], index: 21, kind: input, shape index: {}]
  %s22 = inlined_call_operand.vmem [shape: bf16[128,128], index: 22, kind: input, shape index: {}]
  %s23 = inlined_call_operand.hbm [shape: f32[1,128], index: 23, kind: input, shape index: {}]
  %s24 = inlined_call_operand.vmem [shape: f32[2,8,128], index: 24, kind: output, shape index: {}]
  %s25 = sld [smem:[#allocation0]]
  $region141: #{concat_seq_encoder_m2mdm_forward.3} parent=0
    _
  %s27 = ssub.s32 1, %s25
  %s28 = scalar_select 0, %s27, %s25
  $region1: #{concat_seq_encoder_m2mdm_forward.3} parent=0
    #allocation3 [shape = 'u8[512]{0}', space=vmem, size = 0x400, scoped, tag = 'input window, operand 23, single buffered']
    #allocation4 [shape = 's32[2]{0}', space=sflag, size = 0x8, scoped, tag = 'scoped memory for concat_seq_encoder_m2mdm_forward.3']
    %29 = vsyncpa [#allocation4], 0
    loop: start=0, step=1, limit=6
    $region2: #{concat_seq_encoder_m2mdm_forward.3} parent=1 // loop_pre_header
      _
    $region3: #{concat_seq_encoder_m2mdm_forward.3} parent=1 // loop_header
      %s31 = sphi 0, %s35
      %p32 = scmp.ge.s32.totalorder %s31, 6
      %s38 = sphi 0, %s50
      %s39 = sphi 0, %s46
      %s40 = sphi 0, %s38
      %s41 = sphi 0, %s39
      %s42 = sphi 0, %s40
      %s43 = sphi 0, %s41
      %s53 = sphi 0, %s55
      %s56 = sphi 0, %s53
      %s57 = sphi 0, %s56
      %s73 = sphi 0, %s57
      %s79 = sphi 0, %s81
      %s82 = sphi 0, %s79
      %s83 = sphi 0, %s82
      %s99 = sphi 0, %s83
      %s105 = sphi 0, %s107
      %s108 = sphi 0, %s105
      %s109 = sphi 0, %s108
      %s125 = sphi 0, %s109
      %s129 = sphi 0, %s129
      %s131 = sphi 0, %s129
      %s132 = sphi 0, %s131
      %s146 = sphi 0, %s132
      %s150 = sphi 0, %s150
      %s152 = sphi 0, %s150
      %s153 = sphi 0, %s152
      %s167 = sphi 0, %s153
      %s171 = sphi 0, %s171
      %s173 = sphi 0, %s171
      %s174 = sphi 0, %s173
      %s188 = sphi 0, %s174
      %s192 = sphi 0, %s192
      %s194 = sphi 0, %s192
      %s195 = sphi 0, %s194
      %s209 = sphi 0, %s195
      %s213 = sphi 0, %s213
      %s215 = sphi 0, %s213
      %s216 = sphi 0, %s215
      %s230 = sphi 0, %s216
      %s234 = sphi 0, %s234
      %s236 = sphi 0, %s234
      %s237 = sphi 0, %s236
      %s251 = sphi 0, %s237
      %s255 = sphi 0, %s255
      %s257 = sphi 0, %s255
      %s258 = sphi 0, %s257
      %s272 = sphi 0, %s258
      %s278 = sphi 0, %s280
      %s281 = sphi 0, %s278
      %s282 = sphi 0, %s281
      %s298 = sphi 0, %s282
      %s304 = sphi 0, %s306
      %s307 = sphi 0, %s304
      %s308 = sphi 0, %s307
      %s324 = sphi 0, %s308
      %s330 = sphi 0, %s332
      %s333 = sphi 0, %s330
      %s334 = sphi 0, %s333
      %s350 = sphi 0, %s334
      %s356 = sphi 0, %s358
      %s359 = sphi 0, %s356
      %s360 = sphi 0, %s359
      %s376 = sphi 0, %s360
      %s382 = sphi 0, %s384
      %s385 = sphi 0, %s382
      %s386 = sphi 0, %s385
      %s402 = sphi 0, %s386
      %s408 = sphi 0, %s410
      %s411 = sphi 0, %s408
      %s412 = sphi 0, %s411
      %s428 = sphi 0, %s412
      %s434 = sphi 0, %s436
      %s437 = sphi 0, %s434
      %s438 = sphi 0, %s437
      %s454 = sphi 0, %s438
      %s460 = sphi 0, %s462
      %s463 = sphi 0, %s460
      %s464 = sphi 0, %s463
      %s480 = sphi 0, %s464
      %s486 = sphi 0, %s488
      %s489 = sphi 0, %s486
      %s490 = sphi 0, %s489
      %s506 = sphi 0, %s490
      %s512 = sphi 0, %s514
      %s515 = sphi 0, %s512
      %s516 = sphi 0, %s515
      %s532 = sphi 0, %s516
      %s538 = sphi 0, %s540
      %s541 = sphi 0, %s538
      %s542 = sphi 0, %s541
      %s558 = sphi 0, %s542
      %s564 = sphi 0, %s566
      %s567 = sphi 0, %s564
      %s568 = sphi 0, %s567
      %s584 = sphi 0, %s568
      %s588 = sphi 0, %s588
      %s590 = sphi 0, %s588
      %s591 = sphi 0, %s590
      %s605 = sphi 0, %s591
      %s609 = sphi 0, %s609
      %s611 = sphi 0, %s609
      %s612 = sphi 0, %s611
      %s626 = sphi 0, %s612
      %s632 = sphi 0, %s634
      %s635 = sphi 0, %s632
      %s636 = sphi 0, %s635
      %s652 = sphi 0, %s636
    $region4: #{concat_seq_encoder_m2mdm_forward.3} parent=1 // loop_header_branch
      %34 = sbr.rel (%p32) target = $region8
    $region5: #{concat_seq_encoder_m2mdm_forward.3} parent=1 // loop_body
      %s36 = ssub.s32 %s31, 1
      %s37 = ssub.s32 %s31, 2
      %s44 = sadd.s32 1, %s39
      %p45 = scmp.ge.s32.totalorder %s44, 2
      %s46 = scalar_select %p45, 0, %s44
      %s47 = sadd.s32 1, %s38
      %s48 = scalar_select %p45, %s47, %s38
      %p49 = scmp.ge.s32.totalorder %s48, 2
      %s50 = scalar_select %p49, 0, %s48
      %s51 = ssub.s32 %s38, %s50
      %p52 = scmp.eq.s32.totalorder %s51, 0
      %s54 = sadd.s32 %s53, 1
      %s55 = scalar_select %p52, %s53, %s54
      %p58 = pneg %p52
      %p59 = scmp.eq.s32.totalorder %s31, 3
      %p60 = por %p58, %p59
      %p61 = scmp.ne.s32.totalorder %s53, %s56
      %p62 = scmp.eq.s32.totalorder %s31, 0
      %p63 = por %p61, %p62
      %p64 = scmp.ne.s32.totalorder %s53, %s56
      %p65 = scmp.eq.s32.totalorder %s36, 3
      %p66 = por %p64, %p65
      %p67 = scmp.ne.s32.totalorder %s56, %s57
      %p68 = scmp.eq.s32.totalorder %s36, 0
      %p69 = por %p67, %p68
      %p70 = scmp.ne.s32.totalorder %s56, %s57
      %p71 = scmp.eq.s32.totalorder %s37, 3
      %p72 = por %p70, %p71
      %p74 = scmp.ne.s32.totalorder %s57, %s73
      %p75 = scmp.eq.s32.totalorder %s37, 0
      %p76 = por %p74, %p75
      %s77 = ssub.s32 %s38, %s50
      %p78 = scmp.eq.s32.totalorder %s77, 0
      %s80 = sadd.s32 %s79, 1
      %s81 = scalar_select %p78, %s79, %s80
      %p84 = pneg %p78
      %p85 = scmp.eq.s32.totalorder %s31, 3
      %p86 = por %p84, %p85
      %p87 = scmp.ne.s32.totalorder %s79, %s82
      %p88 = scmp.eq.s32.totalorder %s31, 0
      %p89 = por %p87, %p88
      %p90 = scmp.ne.s32.totalorder %s79, %s82
      %p91 = scmp.eq.s32.totalorder %s36, 3
      %p92 = por %p90, %p91
      %p93 = scmp.ne.s32.totalorder %s82, %s83
      %p94 = scmp.eq.s32.totalorder %s36, 0
      %p95 = por %p93, %p94
      %p96 = scmp.ne.s32.totalorder %s82, %s83
      %p97 = scmp.eq.s32.totalorder %s37, 3
      %p98 = por %p96, %p97
      %p100 = scmp.ne.s32.totalorder %s83, %s99
      %p101 = scmp.eq.s32.totalorder %s37, 0
      %p102 = por %p100, %p101
      %s103 = ssub.s32 %s38, %s50
      %p104 = scmp.eq.s32.totalorder %s103, 0
      %s106 = sadd.s32 %s105, 1
      %s107 = scalar_select %p104, %s105, %s106
      %p110 = pneg %p104
      %p111 = scmp.eq.s32.totalorder %s31, 3
      %p112 = por %p110, %p111
      %p113 = scmp.ne.s32.totalorder %s105, %s108
      %p114 = scmp.eq.s32.totalorder %s31, 0
      %p115 = por %p113, %p114
      %p116 = scmp.ne.s32.totalorder %s105, %s108
      %p117 = scmp.eq.s32.totalorder %s36, 3
      %p118 = por %p116, %p117
      %p119 = scmp.ne.s32.totalorder %s108, %s109
      %p120 = scmp.eq.s32.totalorder %s36, 0
      %p121 = por %p119, %p120
      %p122 = scmp.ne.s32.totalorder %s108, %s109
      %p123 = scmp.eq.s32.totalorder %s37, 3
      %p124 = por %p122, %p123
      %p126 = scmp.ne.s32.totalorder %s109, %s125
      %p127 = scmp.eq.s32.totalorder %s37, 0
      %p128 = por %p126, %p127
      %s130 = sadd.s32 %s129, 1
      %p133 = scmp.eq.s32.totalorder %s31, 3
      %p134 = scmp.ne.s32.totalorder %s129, %s131
      %p135 = scmp.eq.s32.totalorder %s31, 0
      %p136 = por %p134, %p135
      %p137 = scmp.ne.s32.totalorder %s129, %s131
      %p138 = scmp.eq.s32.totalorder %s36, 3
      %p139 = por %p137, %p138
      %p140 = scmp.ne.s32.totalorder %s131, %s132
      %p141 = scmp.eq.s32.totalorder %s36, 0
      %p142 = por %p140, %p141
      %p143 = scmp.ne.s32.totalorder %s131, %s132
      %p144 = scmp.eq.s32.totalorder %s37, 3
      %p145 = por %p143, %p144
      %p147 = scmp.ne.s32.totalorder %s132, %s146
      %p148 = scmp.eq.s32.totalorder %s37, 0
      %p149 = por %p147, %p148
      %s151 = sadd.s32 %s150, 1
      %p154 = scmp.eq.s32.totalorder %s31, 3
      %p155 = scmp.ne.s32.totalorder %s150, %s152
      %p156 = scmp.eq.s32.totalorder %s31, 0
      %p157 = por %p155, %p156
      %p158 = scmp.ne.s32.totalorder %s150, %s152
      %p159 = scmp.eq.s32.totalorder %s36, 3
      %p160 = por %p158, %p159
      %p161 = scmp.ne.s32.totalorder %s152, %s153
      %p162 = scmp.eq.s32.totalorder %s36, 0
      %p163 = por %p161, %p162
      %p164 = scmp.ne.s32.totalorder %s152, %s153
      %p165 = scmp.eq.s32.totalorder %s37, 3
      %p166 = por %p164, %p165
      %p168 = scmp.ne.s32.totalorder %s153, %s167
      %p169 = scmp.eq.s32.totalorder %s37, 0
      %p170 = por %p168, %p169
      %s172 = sadd.s32 %s171, 1
      %p175 = scmp.eq.s32.totalorder %s31, 3
      %p176 = scmp.ne.s32.totalorder %s171, %s173
      %p177 = scmp.eq.s32.totalorder %s31, 0
      %p178 = por %p176, %p177
      %p179 = scmp.ne.s32.totalorder %s171, %s173
      %p180 = scmp.eq.s32.totalorder %s36, 3
      %p181 = por %p179, %p180
      %p182 = scmp.ne.s32.totalorder %s173, %s174
      %p183 = scmp.eq.s32.totalorder %s36, 0
      %p184 = por %p182, %p183
      %p185 = scmp.ne.s32.totalorder %s173, %s174
      %p186 = scmp.eq.s32.totalorder %s37, 3
      %p187 = por %p185, %p186
      %p189 = scmp.ne.s32.totalorder %s174, %s188
      %p190 = scmp.eq.s32.totalorder %s37, 0
      %p191 = por %p189, %p190
      %s193 = sadd.s32 %s192, 1
      %p196 = scmp.eq.s32.totalorder %s31, 3
      %p197 = scmp.ne.s32.totalorder %s192, %s194
      %p198 = scmp.eq.s32.totalorder %s31, 0
      %p199 = por %p197, %p198
      %p200 = scmp.ne.s32.totalorder %s192, %s194
      %p201 = scmp.eq.s32.totalorder %s36, 3
      %p202 = por %p200, %p201
      %p203 = scmp.ne.s32.totalorder %s194, %s195
      %p204 = scmp.eq.s32.totalorder %s36, 0
      %p205 = por %p203, %p204
      %p206 = scmp.ne.s32.totalorder %s194, %s195
      %p207 = scmp.eq.s32.totalorder %s37, 3
      %p208 = por %p206, %p207
      %p210 = scmp.ne.s32.totalorder %s195, %s209
      %p211 = scmp.eq.s32.totalorder %s37, 0
      %p212 = por %p210, %p211
      %s214 = sadd.s32 %s213, 1
      %p217 = scmp.eq.s32.totalorder %s31, 3
      %p218 = scmp.ne.s32.totalorder %s213, %s215
      %p219 = scmp.eq.s32.totalorder %s31, 0
      %p220 = por %p218, %p219
      %p221 = scmp.ne.s32.totalorder %s213, %s215
      %p222 = scmp.eq.s32.totalorder %s36, 3
      %p223 = por %p221, %p222
      %p224 = scmp.ne.s32.totalorder %s215, %s216
      %p225 = scmp.eq.s32.totalorder %s36, 0
      %p226 = por %p224, %p225
      %p227 = scmp.ne.s32.totalorder %s215, %s216
      %p228 = scmp.eq.s32.totalorder %s37, 3
      %p229 = por %p227, %p228
      %p231 = scmp.ne.s32.totalorder %s216, %s230
      %p232 = scmp.eq.s32.totalorder %s37, 0
      %p233 = por %p231, %p232
      %s235 = sadd.s32 %s234, 1
      %p238 = scmp.eq.s32.totalorder %s31, 3
      %p239 = scmp.ne.s32.totalorder %s234, %s236
      %p240 = scmp.eq.s32.totalorder %s31, 0
      %p241 = por %p239, %p240
      %p242 = scmp.ne.s32.totalorder %s234, %s236
      %p243 = scmp.eq.s32.totalorder %s36, 3
      %p244 = por %p242, %p243
      %p245 = scmp.ne.s32.totalorder %s236, %s237
      %p246 = scmp.eq.s32.totalorder %s36, 0
      %p247 = por %p245, %p246
      %p248 = scmp.ne.s32.totalorder %s236, %s237
      %p249 = scmp.eq.s32.totalorder %s37, 3
      %p250 = por %p248, %p249
      %p252 = scmp.ne.s32.totalorder %s237, %s251
      %p253 = scmp.eq.s32.totalorder %s37, 0
      %p254 = por %p252, %p253
      %s256 = sadd.s32 %s255, 1
      %p259 = scmp.eq.s32.totalorder %s31, 3
      %p260 = scmp.ne.s32.totalorder %s255, %s257
      %p261 = scmp.eq.s32.totalorder %s31, 0
      %p262 = por %p260, %p261
      %p263 = scmp.ne.s32.totalorder %s255, %s257
      %p264 = scmp.eq.s32.totalorder %s36, 3
      %p265 = por %p263, %p264
      %p266 = scmp.ne.s32.totalorder %s257, %s258
      %p267 = scmp.eq.s32.totalorder %s36, 0
      %p268 = por %p266, %p267
      %p269 = scmp.ne.s32.totalorder %s257, %s258
      %p270 = scmp.eq.s32.totalorder %s37, 3
      %p271 = por %p269, %p270
      %p273 = scmp.ne.s32.totalorder %s258, %s272
      %p274 = scmp.eq.s32.totalorder %s37, 0
      %p275 = por %p273, %p274
      %s276 = ssub.s32 %s39, %s46
      %p277 = scmp.eq.s32.totalorder %s276, 0
      %s279 = sadd.s32 %s278, 1
      %s280 = scalar_select %p277, %s278, %s279
      %p283 = pneg %p277
      %p284 = scmp.eq.s32.totalorder %s31, 3
      %p285 = por %p283, %p284
      %p286 = scmp.ne.s32.totalorder %s278, %s281
      %p287 = scmp.eq.s32.totalorder %s31, 0
      %p288 = por %p286, %p287
      %p289 = scmp.ne.s32.totalorder %s278, %s281
      %p290 = scmp.eq.s32.totalorder %s36, 3
      %p291 = por %p289, %p290
      %p292 = scmp.ne.s32.totalorder %s281, %s282
      %p293 = scmp.eq.s32.totalorder %s36, 0
      %p294 = por %p292, %p293
      %p295 = scmp.ne.s32.totalorder %s281, %s282
      %p296 = scmp.eq.s32.totalorder %s37, 3
      %p297 = por %p295, %p296
      %p299 = scmp.ne.s32.totalorder %s282, %s298
      %p300 = scmp.eq.s32.totalorder %s37, 0
      %p301 = por %p299, %p300
      %s302 = ssub.s32 %s39, %s46
      %p303 = scmp.eq.s32.totalorder %s302, 0
      %s305 = sadd.s32 %s304, 1
      %s306 = scalar_select %p303, %s304, %s305
      %p309 = pneg %p303
      %p310 = scmp.eq.s32.totalorder %s31, 3
      %p311 = por %p309, %p310
      %p312 = scmp.ne.s32.totalorder %s304, %s307
      %p313 = scmp.eq.s32.totalorder %s31, 0
      %p314 = por %p312, %p313
      %p315 = scmp.ne.s32.totalorder %s304, %s307
      %p316 = scmp.eq.s32.totalorder %s36, 3
      %p317 = por %p315, %p316
      %p318 = scmp.ne.s32.totalorder %s307, %s308
      %p319 = scmp.eq.s32.totalorder %s36, 0
      %p320 = por %p318, %p319
      %p321 = scmp.ne.s32.totalorder %s307, %s308
      %p322 = scmp.eq.s32.totalorder %s37, 3
      %p323 = por %p321, %p322
      %p325 = scmp.ne.s32.totalorder %s308, %s324
      %p326 = scmp.eq.s32.totalorder %s37, 0
      %p327 = por %p325, %p326
      %s328 = ssub.s32 %s39, %s46
      %p329 = scmp.eq.s32.totalorder %s328, 0
      %s331 = sadd.s32 %s330, 1
      %s332 = scalar_select %p329, %s330, %s331
      %p335 = pneg %p329
      %p336 = scmp.eq.s32.totalorder %s31, 3
      %p337 = por %p335, %p336
      %p338 = scmp.ne.s32.totalorder %s330, %s333
      %p339 = scmp.eq.s32.totalorder %s31, 0
      %p340 = por %p338, %p339
      %p341 = scmp.ne.s32.totalorder %s330, %s333
      %p342 = scmp.eq.s32.totalorder %s36, 3
      %p343 = por %p341, %p342
      %p344 = scmp.ne.s32.totalorder %s333, %s334
      %p345 = scmp.eq.s32.totalorder %s36, 0
      %p346 = por %p344, %p345
      %p347 = scmp.ne.s32.totalorder %s333, %s334
      %p348 = scmp.eq.s32.totalorder %s37, 3
      %p349 = por %p347, %p348
      %p351 = scmp.ne.s32.totalorder %s334, %s350
      %p352 = scmp.eq.s32.totalorder %s37, 0
      %p353 = por %p351, %p352
      %s354 = ssub.s32 %s39, %s46
      %p355 = scmp.eq.s32.totalorder %s354, 0
      %s357 = sadd.s32 %s356, 1
      %s358 = scalar_select %p355, %s356, %s357
      %p361 = pneg %p355
      %p362 = scmp.eq.s32.totalorder %s31, 3
      %p363 = por %p361, %p362
      %p364 = scmp.ne.s32.totalorder %s356, %s359
      %p365 = scmp.eq.s32.totalorder %s31, 0
      %p366 = por %p364, %p365
      %p367 = scmp.ne.s32.totalorder %s356, %s359
      %p368 = scmp.eq.s32.totalorder %s36, 3
      %p369 = por %p367, %p368
      %p370 = scmp.ne.s32.totalorder %s359, %s360
      %p371 = scmp.eq.s32.totalorder %s36, 0
      %p372 = por %p370, %p371
      %p373 = scmp.ne.s32.totalorder %s359, %s360
      %p374 = scmp.eq.s32.totalorder %s37, 3
      %p375 = por %p373, %p374
      %p377 = scmp.ne.s32.totalorder %s360, %s376
      %p378 = scmp.eq.s32.totalorder %s37, 0
      %p379 = por %p377, %p378
      %s380 = ssub.s32 %s39, %s46
      %p381 = scmp.eq.s32.totalorder %s380, 0
      %s383 = sadd.s32 %s382, 1
      %s384 = scalar_select %p381, %s382, %s383
      %p387 = pneg %p381
      %p388 = scmp.eq.s32.totalorder %s31, 3
      %p389 = por %p387, %p388
      %p390 = scmp.ne.s32.totalorder %s382, %s385
      %p391 = scmp.eq.s32.totalorder %s31, 0
      %p392 = por %p390, %p391
      %p393 = scmp.ne.s32.totalorder %s382, %s385
      %p394 = scmp.eq.s32.totalorder %s36, 3
      %p395 = por %p393, %p394
      %p396 = scmp.ne.s32.totalorder %s385, %s386
      %p397 = scmp.eq.s32.totalorder %s36, 0
      %p398 = por %p396, %p397
      %p399 = scmp.ne.s32.totalorder %s385, %s386
      %p400 = scmp.eq.s32.totalorder %s37, 3
      %p401 = por %p399, %p400
      %p403 = scmp.ne.s32.totalorder %s386, %s402
      %p404 = scmp.eq.s32.totalorder %s37, 0
      %p405 = por %p403, %p404
      %s406 = ssub.s32 %s39, %s46
      %p407 = scmp.eq.s32.totalorder %s406, 0
      %s409 = sadd.s32 %s408, 1
      %s410 = scalar_select %p407, %s408, %s409
      %p413 = pneg %p407
      %p414 = scmp.eq.s32.totalorder %s31, 3
      %p415 = por %p413, %p414
      %p416 = scmp.ne.s32.totalorder %s408, %s411
      %p417 = scmp.eq.s32.totalorder %s31, 0
      %p418 = por %p416, %p417
      %p419 = scmp.ne.s32.totalorder %s408, %s411
      %p420 = scmp.eq.s32.totalorder %s36, 3
      %p421 = por %p419, %p420
      %p422 = scmp.ne.s32.totalorder %s411, %s412
      %p423 = scmp.eq.s32.totalorder %s36, 0
      %p424 = por %p422, %p423
      %p425 = scmp.ne.s32.totalorder %s411, %s412
      %p426 = scmp.eq.s32.totalorder %s37, 3
      %p427 = por %p425, %p426
      %p429 = scmp.ne.s32.totalorder %s412, %s428
      %p430 = scmp.eq.s32.totalorder %s37, 0
      %p431 = por %p429, %p430
      %s432 = ssub.s32 %s39, %s46
      %p433 = scmp.eq.s32.totalorder %s432, 0
      %s435 = sadd.s32 %s434, 1
      %s436 = scalar_select %p433, %s434, %s435
      %p439 = pneg %p433
      %p440 = scmp.eq.s32.totalorder %s31, 3
      %p441 = por %p439, %p440
      %p442 = scmp.ne.s32.totalorder %s434, %s437
      %p443 = scmp.eq.s32.totalorder %s31, 0
      %p444 = por %p442, %p443
      %p445 = scmp.ne.s32.totalorder %s434, %s437
      %p446 = scmp.eq.s32.totalorder %s36, 3
      %p447 = por %p445, %p446
      %p448 = scmp.ne.s32.totalorder %s437, %s438
      %p449 = scmp.eq.s32.totalorder %s36, 0
      %p450 = por %p448, %p449
      %p451 = scmp.ne.s32.totalorder %s437, %s438
      %p452 = scmp.eq.s32.totalorder %s37, 3
      %p453 = por %p451, %p452
      %p455 = scmp.ne.s32.totalorder %s438, %s454
      %p456 = scmp.eq.s32.totalorder %s37, 0
      %p457 = por %p455, %p456
      %s458 = ssub.s32 %s39, %s46
      %p459 = scmp.eq.s32.totalorder %s458, 0
      %s461 = sadd.s32 %s460, 1
      %s462 = scalar_select %p459, %s460, %s461
      %p465 = pneg %p459
      %p466 = scmp.eq.s32.totalorder %s31, 3
      %p467 = por %p465, %p466
      %p468 = scmp.ne.s32.totalorder %s460, %s463
      %p469 = scmp.eq.s32.totalorder %s31, 0
      %p470 = por %p468, %p469
      %p471 = scmp.ne.s32.totalorder %s460, %s463
      %p472 = scmp.eq.s32.totalorder %s36, 3
      %p473 = por %p471, %p472
      %p474 = scmp.ne.s32.totalorder %s463, %s464
      %p475 = scmp.eq.s32.totalorder %s36, 0
      %p476 = por %p474, %p475
      %p477 = scmp.ne.s32.totalorder %s463, %s464
      %p478 = scmp.eq.s32.totalorder %s37, 3
      %p479 = por %p477, %p478
      %p481 = scmp.ne.s32.totalorder %s464, %s480
      %p482 = scmp.eq.s32.totalorder %s37, 0
      %p483 = por %p481, %p482
      %s484 = ssub.s32 %s39, %s46
      %p485 = scmp.eq.s32.totalorder %s484, 0
      %s487 = sadd.s32 %s486, 1
      %s488 = scalar_select %p485, %s486, %s487
      %p491 = pneg %p485
      %p492 = scmp.eq.s32.totalorder %s31, 3
      %p493 = por %p491, %p492
      %p494 = scmp.ne.s32.totalorder %s486, %s489
      %p495 = scmp.eq.s32.totalorder %s31, 0
      %p496 = por %p494, %p495
      %p497 = scmp.ne.s32.totalorder %s486, %s489
      %p498 = scmp.eq.s32.totalorder %s36, 3
      %p499 = por %p497, %p498
      %p500 = scmp.ne.s32.totalorder %s489, %s490
      %p501 = scmp.eq.s32.totalorder %s36, 0
      %p502 = por %p500, %p501
      %p503 = scmp.ne.s32.totalorder %s489, %s490
      %p504 = scmp.eq.s32.totalorder %s37, 3
      %p505 = por %p503, %p504
      %p507 = scmp.ne.s32.totalorder %s490, %s506
      %p508 = scmp.eq.s32.totalorder %s37, 0
      %p509 = por %p507, %p508
      %s510 = ssub.s32 %s39, %s46
      %p511 = scmp.eq.s32.totalorder %s510, 0
      %s513 = sadd.s32 %s512, 1
      %s514 = scalar_select %p511, %s512, %s513
      %p517 = pneg %p511
      %p518 = scmp.eq.s32.totalorder %s31, 3
      %p519 = por %p517, %p518
      %p520 = scmp.ne.s32.totalorder %s512, %s515
      %p521 = scmp.eq.s32.totalorder %s31, 0
      %p522 = por %p520, %p521
      %p523 = scmp.ne.s32.totalorder %s512, %s515
      %p524 = scmp.eq.s32.totalorder %s36, 3
      %p525 = por %p523, %p524
      %p526 = scmp.ne.s32.totalorder %s515, %s516
      %p527 = scmp.eq.s32.totalorder %s36, 0
      %p528 = por %p526, %p527
      %p529 = scmp.ne.s32.totalorder %s515, %s516
      %p530 = scmp.eq.s32.totalorder %s37, 3
      %p531 = por %p529, %p530
      %p533 = scmp.ne.s32.totalorder %s516, %s532
      %p534 = scmp.eq.s32.totalorder %s37, 0
      %p535 = por %p533, %p534
      %s536 = ssub.s32 %s39, %s46
      %p537 = scmp.eq.s32.totalorder %s536, 0
      %s539 = sadd.s32 %s538, 1
      %s540 = scalar_select %p537, %s538, %s539
      %p543 = pneg %p537
      %p544 = scmp.eq.s32.totalorder %s31, 3
      %p545 = por %p543, %p544
      %p546 = scmp.ne.s32.totalorder %s538, %s541
      %p547 = scmp.eq.s32.totalorder %s31, 0
      %p548 = por %p546, %p547
      %p549 = scmp.ne.s32.totalorder %s538, %s541
      %p550 = scmp.eq.s32.totalorder %s36, 3
      %p551 = por %p549, %p550
      %p552 = scmp.ne.s32.totalorder %s541, %s542
      %p553 = scmp.eq.s32.totalorder %s36, 0
      %p554 = por %p552, %p553
      %p555 = scmp.ne.s32.totalorder %s541, %s542
      %p556 = scmp.eq.s32.totalorder %s37, 3
      %p557 = por %p555, %p556
      %p559 = scmp.ne.s32.totalorder %s542, %s558
      %p560 = scmp.eq.s32.totalorder %s37, 0
      %p561 = por %p559, %p560
      %s562 = ssub.s32 %s39, %s46
      %p563 = scmp.eq.s32.totalorder %s562, 0
      %s565 = sadd.s32 %s564, 1
      %s566 = scalar_select %p563, %s564, %s565
      %p569 = pneg %p563
      %p570 = scmp.eq.s32.totalorder %s31, 3
      %p571 = por %p569, %p570
      %p572 = scmp.ne.s32.totalorder %s564, %s567
      %p573 = scmp.eq.s32.totalorder %s31, 0
      %p574 = por %p572, %p573
      %p575 = scmp.ne.s32.totalorder %s564, %s567
      %p576 = scmp.eq.s32.totalorder %s36, 3
      %p577 = por %p575, %p576
      %p578 = scmp.ne.s32.totalorder %s567, %s568
      %p579 = scmp.eq.s32.totalorder %s36, 0
      %p580 = por %p578, %p579
      %p581 = scmp.ne.s32.totalorder %s567, %s568
      %p582 = scmp.eq.s32.totalorder %s37, 3
      %p583 = por %p581, %p582
      %p585 = scmp.ne.s32.totalorder %s568, %s584
      %p586 = scmp.eq.s32.totalorder %s37, 0
      %p587 = por %p585, %p586
      %s589 = sadd.s32 %s588, 1
      %p592 = scmp.eq.s32.totalorder %s31, 3
      %p593 = scmp.ne.s32.totalorder %s588, %s590
      %p594 = scmp.eq.s32.totalorder %s31, 0
      %p595 = por %p593, %p594
      %p596 = scmp.ne.s32.totalorder %s588, %s590
      %p597 = scmp.eq.s32.totalorder %s36, 3
      %p598 = por %p596, %p597
      %p599 = scmp.ne.s32.totalorder %s590, %s591
      %p600 = scmp.eq.s32.totalorder %s36, 0
      %p601 = por %p599, %p600
      %p602 = scmp.ne.s32.totalorder %s590, %s591
      %p603 = scmp.eq.s32.totalorder %s37, 3
      %p604 = por %p602, %p603
      %p606 = scmp.ne.s32.totalorder %s591, %s605
      %p607 = scmp.eq.s32.totalorder %s37, 0
      %p608 = por %p606, %p607
      %s610 = sadd.s32 %s609, 1
      %p613 = scmp.eq.s32.totalorder %s31, 3
      %p614 = scmp.ne.s32.totalorder %s609, %s611
      %p615 = scmp.eq.s32.totalorder %s31, 0
      %p616 = por %p614, %p615
      %p617 = scmp.ne.s32.totalorder %s609, %s611
      %p618 = scmp.eq.s32.totalorder %s36, 3
      %p619 = por %p617, %p618
      %p620 = scmp.ne.s32.totalorder %s611, %s612
      %p621 = scmp.eq.s32.totalorder %s36, 0
      %p622 = por %p620, %p621
      %p623 = scmp.ne.s32.totalorder %s611, %s612
      %p624 = scmp.eq.s32.totalorder %s37, 3
      %p625 = por %p623, %p624
      %p627 = scmp.ne.s32.totalorder %s612, %s626
      %p628 = scmp.eq.s32.totalorder %s37, 0
      %p629 = por %p627, %p628
      %s630 = ssub.s32 %s38, %s50
      %p631 = scmp.eq.s32.totalorder %s630, 0
      %s633 = sadd.s32 %s632, 1
      %s634 = scalar_select %p631, %s632, %s633
      %p637 = pneg %p631
      %p638 = scmp.eq.s32.totalorder %s31, 3
      %p639 = por %p637, %p638
      %p640 = scmp.ne.s32.totalorder %s632, %s635
      %p641 = scmp.eq.s32.totalorder %s31, 0
      %p642 = por %p640, %p641
      %p643 = scmp.ne.s32.totalorder %s632, %s635
      %p644 = scmp.eq.s32.totalorder %s36, 3
      %p645 = por %p643, %p644
      %p646 = scmp.ne.s32.totalorder %s635, %s636
      %p647 = scmp.eq.s32.totalorder %s36, 0
      %p648 = por %p646, %p647
      %p649 = scmp.ne.s32.totalorder %s635, %s636
      %p650 = scmp.eq.s32.totalorder %s37, 3
      %p651 = por %p649, %p650
      %p653 = scmp.ne.s32.totalorder %s636, %s652
      %p654 = scmp.eq.s32.totalorder %s37, 0
      %p655 = por %p653, %p654
      %p656 = scmp.le.s32.totalorder 1, %s31
      %p657 = scmp.lt.s32.totalorder %s31, 5
      %p658 = pnand %p656, %p657
      %p659 = pneg %p658
      // Predicated region
      $region9: #{concat_seq_encoder_m2mdm_forward.3} parent=5 // pred_check
        _
      $region10: #{concat_seq_encoder_m2mdm_forward.3} parent=5 // pred_check_branch
        %661 = sbr.rel (%p658) target = $region12
      $region11: #{concat_seq_encoder_m2mdm_forward.3} parent=5 // pred_region
        %s662 = ssub.s32 %s31, 1
        // Predicated region
        $region13: #{concat_seq_encoder_m2mdm_forward.3} parent=11 // pred_check
          %p663 = pneg %p142
        $region14: #{concat_seq_encoder_m2mdm_forward.3} parent=11 // pred_check_branch
          %665 = sbr.rel (%p663) target = $region16
        $region15: #{concat_seq_encoder_m2mdm_forward.3} parent=11 // pred_region
          _
        $region16: #{concat_seq_encoder_m2mdm_forward.3} parent=11 // pred_fallthru
          _
        // Predicated region
        $region17: #{concat_seq_encoder_m2mdm_forward.3} parent=11 // pred_check
          %p666 = pneg %p163
        $region18: #{concat_seq_encoder_m2mdm_forward.3} parent=11 // pred_check_branch
          %668 = sbr.rel (%p666) target = $region20
        $region19: #{concat_seq_encoder_m2mdm_forward.3} parent=11 // pred_region
          _
        $region20: #{concat_seq_encoder_m2mdm_forward.3} parent=11 // pred_fallthru
          _
        // Predicated region
        $region21: #{concat_seq_encoder_m2mdm_forward.3} parent=11 // pred_check
          %p669 = pneg %p184
        $region22: #{concat_seq_encoder_m2mdm_forward.3} parent=11 // pred_check_branch
          %671 = sbr.rel (%p669) target = $region24
        $region23: #{concat_seq_encoder_m2mdm_forward.3} parent=11 // pred_region
          _
        $region24: #{concat_seq_encoder_m2mdm_forward.3} parent=11 // pred_fallthru
          _
        // Predicated region
        $region25: #{concat_seq_encoder_m2mdm_forward.3} parent=11 // pred_check
          %p672 = pneg %p205
        $region26: #{concat_seq_encoder_m2mdm_forward.3} parent=11 // pred_check_branch
          %674 = sbr.rel (%p672) target = $region28
        $region27: #{concat_seq_encoder_m2mdm_forward.3} parent=11 // pred_region
          _
        $region28: #{concat_seq_encoder_m2mdm_forward.3} parent=11 // pred_fallthru
          _
        // Predicated region
        $region29: #{concat_seq_encoder_m2mdm_forward.3} parent=11 // pred_check
          %p675 = pneg %p226
        $region30: #{concat_seq_encoder_m2mdm_forward.3} parent=11 // pred_check_branch
          %677 = sbr.rel (%p675) target = $region32
        $region31: #{concat_seq_encoder_m2mdm_forward.3} parent=11 // pred_region
          _
        $region32: #{concat_seq_encoder_m2mdm_forward.3} parent=11 // pred_fallthru
          _
        // Predicated region
        $region33: #{concat_seq_encoder_m2mdm_forward.3} parent=11 // pred_check
          %p678 = pneg %p247
        $region34: #{concat_seq_encoder_m2mdm_forward.3} parent=11 // pred_check_branch
          %680 = sbr.rel (%p678) target = $region36
        $region35: #{concat_seq_encoder_m2mdm_forward.3} parent=11 // pred_region
          _
        $region36: #{concat_seq_encoder_m2mdm_forward.3} parent=11 // pred_fallthru
          _
        // Predicated region
        $region37: #{concat_seq_encoder_m2mdm_forward.3} parent=11 // pred_check
          %p681 = pneg %p268
        $region38: #{concat_seq_encoder_m2mdm_forward.3} parent=11 // pred_check_branch
          %683 = sbr.rel (%p681) target = $region40
        $region39: #{concat_seq_encoder_m2mdm_forward.3} parent=11 // pred_region
          _
        $region40: #{concat_seq_encoder_m2mdm_forward.3} parent=11 // pred_fallthru
          _
        // Predicated region
        $region41: #{concat_seq_encoder_m2mdm_forward.3} parent=11 // pred_check
          %p684 = pneg %p601
        $region42: #{concat_seq_encoder_m2mdm_forward.3} parent=11 // pred_check_branch
          %686 = sbr.rel (%p684) target = $region44
        $region43: #{concat_seq_encoder_m2mdm_forward.3} parent=11 // pred_region
          _
        $region44: #{concat_seq_encoder_m2mdm_forward.3} parent=11 // pred_fallthru
          _
        // Predicated region
        $region45: #{concat_seq_encoder_m2mdm_forward.3} parent=11 // pred_check
          %p687 = pneg %p622
        $region46: #{concat_seq_encoder_m2mdm_forward.3} parent=11 // pred_check_branch
          %689 = sbr.rel (%p687) target = $region48
        $region47: #{concat_seq_encoder_m2mdm_forward.3} parent=11 // pred_region
          %s691 = ssub.s32 16, 16
          %692 = vsyncadd [#allocation4], %s691
          %s694 = sshll.u32 [#allocation3], 4
          %s695 = int_to_ptr.vmem [resolvable:$true] %s694
          %697 = dma.hbm_to_vmem [thread:$0]  %s23, 16, %s695, [#allocation4]
        $region48: #{concat_seq_encoder_m2mdm_forward.3} parent=11 // pred_fallthru
          _
      $region12: #{concat_seq_encoder_m2mdm_forward.3} parent=5 // pred_fallthru
        _
      %p698 = scmp.lt.s32.totalorder %s31, 4
      // Predicated region
      $region49: #{concat_seq_encoder_m2mdm_forward.3} parent=5 // pred_check
        %p699 = pneg %p698
      $region50: #{concat_seq_encoder_m2mdm_forward.3} parent=5 // pred_check_branch
        %701 = sbr.rel (%p699) target = $region52
      $region51: #{concat_seq_encoder_m2mdm_forward.3} parent=5 // pred_region
        // Predicated region
        $region53: #{concat_seq_encoder_m2mdm_forward.3} parent=51 // pred_check
          %p702 = pneg %p63
        $region54: #{concat_seq_encoder_m2mdm_forward.3} parent=51 // pred_check_branch
          %704 = sbr.rel (%p702) target = $region56
        $region55: #{concat_seq_encoder_m2mdm_forward.3} parent=51 // pred_region
          %p705 = scmp.lt.s32.totalorder %s38, 1
          %s706 = scalar_select %p705, %s38, 1
          %s707 = scalar_lea.vmem %s0, %s706
        $region56: #{concat_seq_encoder_m2mdm_forward.3} parent=51 // pred_fallthru
          _
        // Predicated region
        $region57: #{concat_seq_encoder_m2mdm_forward.3} parent=51 // pred_check
          %p708 = pneg %p89
        $region58: #{concat_seq_encoder_m2mdm_forward.3} parent=51 // pred_check_branch
          %710 = sbr.rel (%p708) target = $region60
        $region59: #{concat_seq_encoder_m2mdm_forward.3} parent=51 // pred_region
          %p711 = scmp.lt.s32.totalorder %s38, 1
          %s712 = scalar_select %p711, %s38, 1
          %s713 = smul.addr %s712, 8
          %s714 = scalar_lea.vmem %s1, %s713
        $region60: #{concat_seq_encoder_m2mdm_forward.3} parent=51 // pred_fallthru
          _
        // Predicated region
        $region61: #{concat_seq_encoder_m2mdm_forward.3} parent=51 // pred_check
          %p715 = pneg %p115
        $region62: #{concat_seq_encoder_m2mdm_forward.3} parent=51 // pred_check_branch
          %717 = sbr.rel (%p715) target = $region64
        $region63: #{concat_seq_encoder_m2mdm_forward.3} parent=51 // pred_region
          %p718 = scmp.lt.s32.totalorder %s38, 1
          %s719 = scalar_select %p718, %s38, 1
          %s720 = smul.addr %s719, 8
          %s721 = scalar_lea.vmem %s2, %s720
        $region64: #{concat_seq_encoder_m2mdm_forward.3} parent=51 // pred_fallthru
          _
        // Predicated region
        $region65: #{concat_seq_encoder_m2mdm_forward.3} parent=51 // pred_check
          %p722 = pneg %p288
        $region66: #{concat_seq_encoder_m2mdm_forward.3} parent=51 // pred_check_branch
          %724 = sbr.rel (%p722) target = $region68
        $region67: #{concat_seq_encoder_m2mdm_forward.3} parent=51 // pred_region
          %p725 = scmp.lt.s32.totalorder %s39, 1
          %s726 = scalar_select %p725, %s39, 1
          %s727 = smul.addr %s726, 48
          %s728 = smul.addr %s727, 4
          %s729 = scalar_lea.vmem %s10, %s728
        $region68: #{concat_seq_encoder_m2mdm_forward.3} parent=51 // pred_fallthru
          _
        // Predicated region
        $region69: #{concat_seq_encoder_m2mdm_forward.3} parent=51 // pred_check
          %p730 = pneg %p314
        $region70: #{concat_seq_encoder_m2mdm_forward.3} parent=51 // pred_check_branch
          %732 = sbr.rel (%p730) target = $region72
        $region71: #{concat_seq_encoder_m2mdm_forward.3} parent=51 // pred_region
          %p733 = scmp.lt.s32.totalorder %s39, 1
          %s734 = scalar_select %p733, %s39, 1
          %s735 = smul.addr %s734, 3
          %s736 = scalar_lea.vmem %s11, %s735
        $region72: #{concat_seq_encoder_m2mdm_forward.3} parent=51 // pred_fallthru
          _
        // Predicated region
        $region73: #{concat_seq_encoder_m2mdm_forward.3} parent=51 // pred_check
          %p737 = pneg %p340
        $region74: #{concat_seq_encoder_m2mdm_forward.3} parent=51 // pred_check_branch
          %739 = sbr.rel (%p737) target = $region76
        $region75: #{concat_seq_encoder_m2mdm_forward.3} parent=51 // pred_region
          %p740 = scmp.lt.s32.totalorder %s39, 1
          %s741 = scalar_select %p740, %s39, 1
          %s742 = smul.addr %s741, 16
          %s743 = smul.addr %s742, 4
          %s744 = scalar_lea.vmem %s12, %s743
        $region76: #{concat_seq_encoder_m2mdm_forward.3} parent=51 // pred_fallthru
          _
        // Predicated region
        $region77: #{concat_seq_encoder_m2mdm_forward.3} parent=51 // pred_check
          %p745 = pneg %p366
        $region78: #{concat_seq_encoder_m2mdm_forward.3} parent=51 // pred_check_branch
          %747 = sbr.rel (%p745) target = $region80
        $region79: #{concat_seq_encoder_m2mdm_forward.3} parent=51 // pred_region
          %p748 = scmp.lt.s32.totalorder %s39, 1
          %s749 = scalar_select %p748, %s39, 1
          %s750 = scalar_lea.vmem %s13, %s749
        $region80: #{concat_seq_encoder_m2mdm_forward.3} parent=51 // pred_fallthru
          _
        // Predicated region
        $region81: #{concat_seq_encoder_m2mdm_forward.3} parent=51 // pred_check
          %p751 = pneg %p392
        $region82: #{concat_seq_encoder_m2mdm_forward.3} parent=51 // pred_check_branch
          %753 = sbr.rel (%p751) target = $region84
        $region83: #{concat_seq_encoder_m2mdm_forward.3} parent=51 // pred_region
          %p754 = scmp.lt.s32.totalorder %s39, 1
          %s755 = scalar_select %p754, %s39, 1
          %s756 = scalar_lea.vmem %s14, %s755
        $region84: #{concat_seq_encoder_m2mdm_forward.3} parent=51 // pred_fallthru
          _
        // Predicated region
        $region85: #{concat_seq_encoder_m2mdm_forward.3} parent=51 // pred_check
          %p757 = pneg %p418
        $region86: #{concat_seq_encoder_m2mdm_forward.3} parent=51 // pred_check_branch
          %759 = sbr.rel (%p757) target = $region88
        $region87: #{concat_seq_encoder_m2mdm_forward.3} parent=51 // pred_region
          %p760 = scmp.lt.s32.totalorder %s39, 1
          %s761 = scalar_select %p760, %s39, 1
          %s762 = scalar_lea.vmem %s15, %s761
        $region88: #{concat_seq_encoder_m2mdm_forward.3} parent=51 // pred_fallthru
          _
        // Predicated region
        $region89: #{concat_seq_encoder_m2mdm_forward.3} parent=51 // pred_check
          %p763 = pneg %p444
        $region90: #{concat_seq_encoder_m2mdm_forward.3} parent=51 // pred_check_branch
          %765 = sbr.rel (%p763) target = $region92
        $region91: #{concat_seq_encoder_m2mdm_forward.3} parent=51 // pred_region
          %p766 = scmp.lt.s32.totalorder %s39, 1
          %s767 = scalar_select %p766, %s39, 1
          %s768 = smul.addr %s767, 16
          %s769 = smul.addr %s768, 4
          %s770 = scalar_lea.vmem %s16, %s769
        $region92: #{concat_seq_encoder_m2mdm_forward.3} parent=51 // pred_fallthru
          _
        // Predicated region
        $region93: #{concat_seq_encoder_m2mdm_forward.3} parent=51 // pred_check
          %p771 = pneg %p470
        $region94: #{concat_seq_encoder_m2mdm_forward.3} parent=51 // pred_check_branch
          %773 = sbr.rel (%p771) target = $region96
        $region95: #{concat_seq_encoder_m2mdm_forward.3} parent=51 // pred_region
          %p774 = scmp.lt.s32.totalorder %s39, 1
          %s775 = scalar_select %p774, %s39, 1
          %s776 = scalar_lea.vmem %s17, %s775
        $region96: #{concat_seq_encoder_m2mdm_forward.3} parent=51 // pred_fallthru
          _
        // Predicated region
        $region97: #{concat_seq_encoder_m2mdm_forward.3} parent=51 // pred_check
          %p777 = pneg %p496
        $region98: #{concat_seq_encoder_m2mdm_forward.3} parent=51 // pred_check_branch
          %779 = sbr.rel (%p777) target = $region100
        $region99: #{concat_seq_encoder_m2mdm_forward.3} parent=51 // pred_region
          %p780 = scmp.lt.s32.totalorder %s39, 1
          %s781 = scalar_select %p780, %s39, 1
          %s782 = smul.addr %s781, 16
          %s783 = smul.addr %s782, 4
          %s784 = scalar_lea.vmem %s18, %s783
        $region100: #{concat_seq_encoder_m2mdm_forward.3} parent=51 // pred_fallthru
          _
        // Predicated region
        $region101: #{concat_seq_encoder_m2mdm_forward.3} parent=51 // pred_check
          %p785 = pneg %p522
        $region102: #{concat_seq_encoder_m2mdm_forward.3} parent=51 // pred_check_branch
          %787 = sbr.rel (%p785) target = $region104
        $region103: #{concat_seq_encoder_m2mdm_forward.3} parent=51 // pred_region
          %p788 = scmp.lt.s32.totalorder %s39, 1
          %s789 = scalar_select %p788, %s39, 1
          %s790 = scalar_lea.vmem %s19, %s789
        $region104: #{concat_seq_encoder_m2mdm_forward.3} parent=51 // pred_fallthru
          _
        // Predicated region
        $region105: #{concat_seq_encoder_m2mdm_forward.3} parent=51 // pred_check
          %p791 = pneg %p548
        $region106: #{concat_seq_encoder_m2mdm_forward.3} parent=51 // pred_check_branch
          %793 = sbr.rel (%p791) target = $region108
        $region107: #{concat_seq_encoder_m2mdm_forward.3} parent=51 // pred_region
          %p794 = scmp.lt.s32.totalorder %s39, 1
          %s795 = scalar_select %p794, %s39, 1
          %s796 = scalar_lea.vmem %s20, %s795
        $region108: #{concat_seq_encoder_m2mdm_forward.3} parent=51 // pred_fallthru
          _
        // Predicated region
        $region109: #{concat_seq_encoder_m2mdm_forward.3} parent=51 // pred_check
          %p797 = pneg %p574
        $region110: #{concat_seq_encoder_m2mdm_forward.3} parent=51 // pred_check_branch
          %799 = sbr.rel (%p797) target = $region112
        $region111: #{concat_seq_encoder_m2mdm_forward.3} parent=51 // pred_region
          %p800 = scmp.lt.s32.totalorder %s39, 1
          %s801 = scalar_select %p800, %s39, 1
          %s802 = scalar_lea.vmem %s21, %s801
        $region112: #{concat_seq_encoder_m2mdm_forward.3} parent=51 // pred_fallthru
          _
      $region52: #{concat_seq_encoder_m2mdm_forward.3} parent=5 // pred_fallthru
        _
      %p803 = scmp.le.s32.totalorder 1, %s31
      %p804 = scmp.lt.s32.totalorder %s31, 5
      %p805 = pnand %p803, %p804
      %p806 = pneg %p805
      // Predicated region
      $region113: #{concat_seq_encoder_m2mdm_forward.3} parent=5 // pred_check
        _
      $region114: #{concat_seq_encoder_m2mdm_forward.3} parent=5 // pred_check_branch
        %808 = sbr.rel (%p805) target = $region116
      $region115: #{concat_seq_encoder_m2mdm_forward.3} parent=5 // pred_region
        %s809 = ssub.s32 %s31, 1
        // Predicated region
        $region117: #{concat_seq_encoder_m2mdm_forward.3} parent=115 // pred_check
          %p810 = pneg %p622
        $region118: #{concat_seq_encoder_m2mdm_forward.3} parent=115 // pred_check_branch
          %812 = sbr.rel (%p810) target = $region120
        $region119: #{concat_seq_encoder_m2mdm_forward.3} parent=115 // pred_region
          %813 = dma.done [#allocation4], 16
        $region120: #{concat_seq_encoder_m2mdm_forward.3} parent=115 // pred_fallthru
          _
        %p814 = scmp.lt.s32.totalorder %s40, 1
        %s815 = scalar_select %p814, %s40, 1
        %s816 = scalar_lea.vmem %s0, %s815
        %p817 = pneg %p69
        %p818 = pneg %p66
        %p819 = scmp.lt.s32.totalorder %s40, 1
        %s820 = scalar_select %p819, %s40, 1
        %s821 = smul.addr %s820, 8
        %s822 = scalar_lea.vmem %s1, %s821
        %p823 = pneg %p95
        %p824 = pneg %p92
        %p825 = scmp.lt.s32.totalorder %s40, 1
        %s826 = scalar_select %p825, %s40, 1
        %s827 = smul.addr %s826, 8
        %s828 = scalar_lea.vmem %s2, %s827
        %p829 = pneg %p121
        %p830 = pneg %p118
        %p831 = pneg %p142
        %p832 = pneg %p139
        %p833 = pneg %p163
        %p834 = pneg %p160
        %p835 = pneg %p184
        %p836 = pneg %p181
        %p837 = pneg %p205
        %p838 = pneg %p202
        %p839 = pneg %p226
        %p840 = pneg %p223
        %p841 = pneg %p247
        %p842 = pneg %p244
        %p843 = pneg %p268
        %p844 = pneg %p265
        %p845 = scmp.lt.s32.totalorder %s41, 1
        %s846 = scalar_select %p845, %s41, 1
        %s847 = smul.addr %s846, 48
        %s848 = smul.addr %s847, 4
        %s849 = scalar_lea.vmem %s10, %s848
        %p850 = pneg %p294
        %p851 = pneg %p291
        %p852 = scmp.lt.s32.totalorder %s41, 1
        %s853 = scalar_select %p852, %s41, 1
        %s854 = smul.addr %s853, 3
        %s855 = scalar_lea.vmem %s11, %s854
        %p856 = pneg %p320
        %p857 = pneg %p317
        %p858 = scmp.lt.s32.totalorder %s41, 1
        %s859 = scalar_select %p858, %s41, 1
        %s860 = smul.addr %s859, 16
        %s861 = smul.addr %s860, 4
        %s862 = scalar_lea.vmem %s12, %s861
        %p863 = pneg %p346
        %p864 = pneg %p343
        %p865 = scmp.lt.s32.totalorder %s41, 1
        %s866 = scalar_select %p865, %s41, 1
        %s867 = scalar_lea.vmem %s13, %s866
        %p868 = pneg %p372
        %p869 = pneg %p369
        %p870 = scmp.lt.s32.totalorder %s41, 1
        %s871 = scalar_select %p870, %s41, 1
        %s872 = scalar_lea.vmem %s14, %s871
        %p873 = pneg %p398
        %p874 = pneg %p395
        %p875 = scmp.lt.s32.totalorder %s41, 1
        %s876 = scalar_select %p875, %s41, 1
        %s877 = scalar_lea.vmem %s15, %s876
        %p878 = pneg %p424
        %p879 = pneg %p421
        %p880 = scmp.lt.s32.totalorder %s41, 1
        %s881 = scalar_select %p880, %s41, 1
        %s882 = smul.addr %s881, 16
        %s883 = smul.addr %s882, 4
        %s884 = scalar_lea.vmem %s16, %s883
        %p885 = pneg %p450
        %p886 = pneg %p447
        %p887 = scmp.lt.s32.totalorder %s41, 1
        %s888 = scalar_select %p887, %s41, 1
        %s889 = scalar_lea.vmem %s17, %s888
        %p890 = pneg %p476
        %p891 = pneg %p473
        %p892 = scmp.lt.s32.totalorder %s41, 1
        %s893 = scalar_select %p892, %s41, 1
        %s894 = smul.addr %s893, 16
        %s895 = smul.addr %s894, 4
        %s896 = scalar_lea.vmem %s18, %s895
        %p897 = pneg %p502
        %p898 = pneg %p499
        %p899 = scmp.lt.s32.totalorder %s41, 1
        %s900 = scalar_select %p899, %s41, 1
        %s901 = scalar_lea.vmem %s19, %s900
        %p902 = pneg %p528
        %p903 = pneg %p525
        %p904 = scmp.lt.s32.totalorder %s41, 1
        %s905 = scalar_select %p904, %s41, 1
        %s906 = scalar_lea.vmem %s20, %s905
        %p907 = pneg %p554
        %p908 = pneg %p551
        %p909 = scmp.lt.s32.totalorder %s41, 1
        %s910 = scalar_select %p909, %s41, 1
        %s911 = scalar_lea.vmem %s21, %s910
        %p912 = pneg %p580
        %p913 = pneg %p577
        %p914 = pneg %p601
        %p915 = pneg %p598
        %p916 = pneg %p622
        %p917 = pneg %p619
        %p918 = pneg %p648
        %p919 = pneg %p645
        %p920 = scmp.lt.s32.totalorder %s40, 1
        %s921 = scalar_select %p920, %s40, 1
        %s922 = smul.addr %s921, 8
        %s923 = scalar_lea.vmem %s24, %s922
        %p924 = scmp.lt.s32.totalorder %s40, 1
        %s925 = scalar_select %p924, %s40, 1
        %s926 = scalar_lea.vmem %s0, %s925
        %p927 = scmp.lt.s32.totalorder %s40, 1
        %s928 = scalar_select %p927, %s40, 1
        %s929 = smul.addr %s928, 8
        %s930 = scalar_lea.vmem %s1, %s929
        %p931 = scmp.lt.s32.totalorder %s40, 1
        %s932 = scalar_select %p931, %s40, 1
        %s933 = smul.addr %s932, 8
        %s934 = scalar_lea.vmem %s2, %s933
        %p935 = scmp.lt.s32.totalorder %s41, 1
        %s936 = scalar_select %p935, %s41, 1
        %s937 = smul.addr %s936, 48
        %s938 = smul.addr %s937, 4
        %s939 = scalar_lea.vmem %s10, %s938
        %p940 = scmp.lt.s32.totalorder %s41, 1
        %s941 = scalar_select %p940, %s41, 1
        %s942 = smul.addr %s941, 3
        %s943 = scalar_lea.vmem %s11, %s942
        %p944 = scmp.lt.s32.totalorder %s41, 1
        %s945 = scalar_select %p944, %s41, 1
        %s946 = smul.addr %s945, 16
        %s947 = smul.addr %s946, 4
        %s948 = scalar_lea.vmem %s12, %s947
        %p949 = scmp.lt.s32.totalorder %s41, 1
        %s950 = scalar_select %p949, %s41, 1
        %s951 = scalar_lea.vmem %s13, %s950
        %p952 = scmp.lt.s32.totalorder %s41, 1
        %s953 = scalar_select %p952, %s41, 1
        %s954 = scalar_lea.vmem %s14, %s953
        %p955 = scmp.lt.s32.totalorder %s41, 1
        %s956 = scalar_select %p955, %s41, 1
        %s957 = scalar_lea.vmem %s15, %s956
        %p958 = scmp.lt.s32.totalorder %s41, 1
        %s959 = scalar_select %p958, %s41, 1
        %s960 = smul.addr %s959, 16
        %s961 = smul.addr %s960, 4
        %s962 = scalar_lea.vmem %s16, %s961
        %p963 = scmp.lt.s32.totalorder %s41, 1
        %s964 = scalar_select %p963, %s41, 1
        %s965 = scalar_lea.vmem %s17, %s964
        %p966 = scmp.lt.s32.totalorder %s41, 1
        %s967 = scalar_select %p966, %s41, 1
        %s968 = smul.addr %s967, 16
        %s969 = smul.addr %s968, 4
        %s970 = scalar_lea.vmem %s18, %s969
        %p971 = scmp.lt.s32.totalorder %s41, 1
        %s972 = scalar_select %p971, %s41, 1
        %s973 = scalar_lea.vmem %s19, %s972
        %p974 = scmp.lt.s32.totalorder %s41, 1
        %s975 = scalar_select %p974, %s41, 1
        %s976 = scalar_lea.vmem %s20, %s975
        %p977 = scmp.lt.s32.totalorder %s41, 1
        %s978 = scalar_select %p977, %s41, 1
        %s979 = scalar_lea.vmem %s21, %s978
        %p980 = scmp.lt.s32.totalorder %s40, 1
        %s981 = scalar_select %p980, %s40, 1
        %s982 = smul.addr %s981, 8
        %s983 = scalar_lea.vmem %s24, %s982
        %p985 = scmp.eq.s32.totalorder %s41, 0
        // Predicated region
        $region121: #{concat_seq_encoder_m2mdm_forward.3} parent=115 // pred_check
          %p986 = pneg %p985
        $region122: #{concat_seq_encoder_m2mdm_forward.3} parent=115 // pred_check_branch
          %988 = sbr.rel (%p986) target = $region124
        $region123: #{concat_seq_encoder_m2mdm_forward.3} parent=115 // pred_region
          %v989 = vld [vmem:[%s926] sm:$0x1]
          %v990 = vpack.c.bf16 %v989, %v989
          %v991 = vld [vmem:[%s3] sm:$0xf]
          %v992 = vld [vmem:[%s3 + $0x4] sm:$0xf]
          %v993 = vld [vmem:[%s3 + $0x8] sm:$0xf]
          %v994 = vld [vmem:[%s3 + $0xc] sm:$0xf]
          %v995 = vld [vmem:[%s3 + $0x10] sm:$0xf]
          %v996 = vld [vmem:[%s3 + $0x14] sm:$0xf]
          %v997 = vld [vmem:[%s3 + $0x18] sm:$0xf]
          %v998 = vld [vmem:[%s3 + $0x1c] sm:$0xf]
          %v999 = vld [vmem:[%s3 + $0x20] sm:$0xf]
          %v1000 = vld [vmem:[%s3 + $0x24] sm:$0xf]
          %v1001 = vld [vmem:[%s3 + $0x28] sm:$0xf]
          %v1002 = vld [vmem:[%s3 + $0x2c] sm:$0xf]
          %v1003 = vld [vmem:[%s3 + $0x30] sm:$0xf]
          %v1004 = vld [vmem:[%s3 + $0x34] sm:$0xf]
          %v1005 = vld [vmem:[%s3 + $0x38] sm:$0xf]
          %v1006 = vld [vmem:[%s3 + $0x3c] sm:$0xf]
          %v1007 = vld [vmem:[%s4] sm:$0x1]
          %v1024 = vunpack.c.l.b16 %v991
          %v1025 = vunpack.c.l.b16 %v992
          %v1026 = vunpack.c.l.b16 %v993
          %v1027 = vunpack.c.l.b16 %v994
          %v1028 = vunpack.c.l.b16 %v995
          %v1029 = vunpack.c.l.b16 %v996
          %v1030 = vunpack.c.l.b16 %v997
          %v1031 = vunpack.c.l.b16 %v998
          %v1032 = vunpack.c.l.b16 %v999
          %v1033 = vunpack.c.l.b16 %v1000
          %v1034 = vunpack.c.l.b16 %v1001
          %v1035 = vunpack.c.l.b16 %v1002
          %v1036 = vunpack.c.l.b16 %v1003
          %v1037 = vunpack.c.l.b16 %v1004
          %v1038 = vunpack.c.l.b16 %v1005
          %v1039 = vunpack.c.l.b16 %v1006
          %v1040 = vpack.c.b16 %v1025, %v1024
          %v1041 = vpack.c.b16 %v1027, %v1026
          %v1042 = vpack.c.b16 %v1029, %v1028
          %v1043 = vpack.c.b16 %v1031, %v1030
          %v1044 = vpack.c.b16 %v1033, %v1032
          %v1045 = vpack.c.b16 %v1035, %v1034
          %v1046 = vpack.c.b16 %v1037, %v1036
          %v1047 = vpack.c.b16 %v1039, %v1038
          %1056 = vmatprep.subr.bf16.mxu0 0
          %1057 = vmatpush1.bf16.msra.mxu0 %v1040
          %1058 = vmatprep.subr.bf16.mxu0 0
          %1059 = vmatpush1.bf16.msra.mxu0 %v1041
          %1060 = vmatprep.subr.bf16.mxu0 0
          %1061 = vmatpush1.bf16.msra.mxu0 %v1042
          %1062 = vmatprep.subr.bf16.mxu0 0
          %1063 = vmatpush1.bf16.msra.mxu0 %v1043
          %1064 = vmatprep.subr.bf16.mxu0 0
          %1065 = vmatpush1.bf16.msra.mxu0 %v1044
          %1066 = vmatprep.subr.bf16.mxu0 0
          %1067 = vmatpush1.bf16.msra.mxu0 %v1045
          %1068 = vmatprep.subr.bf16.mxu0 0
          %1069 = vmatpush1.bf16.msra.mxu0 %v1046
          %1070 = vmatprep.subr.bf16.mxu0 0
          %1071 = vmatpush1.bf16.msra.mxu0 %v1047
          %1072 = vmatprep.subr.bf16.mxu0 0
          %1073 = vmatpush1.bf16.msra.mxu0 0
          %1074 = vmatprep.subr.bf16.mxu0 0
          %1075 = vmatpush1.bf16.msra.mxu0 0
          %1076 = vmatprep.subr.bf16.mxu0 0
          %1077 = vmatpush1.bf16.msra.mxu0 0
          %1078 = vmatprep.subr.bf16.mxu0 0
          %1079 = vmatpush1.bf16.msra.mxu0 0
          %1080 = vmatprep.subr.bf16.mxu0 0
          %1081 = vmatpush1.bf16.msra.mxu0 0
          %1082 = vmatprep.subr.bf16.mxu0 0
          %1083 = vmatpush1.bf16.msra.mxu0 0
          %1084 = vmatprep.subr.bf16.mxu0 0
          %1085 = vmatpush1.bf16.msra.mxu0 0
          %1086 = vmatprep.subr.bf16.mxu0 0
          %1087 = vmatpush1.bf16.msra.mxu0 0
          %1088 = vmatprep.mubr.bf16.mxu0 0
          %1089 = vmatmul.mubr.bf16.gmra.mrb[0].mxu0 %v990
          %v1090 = vpop.f32.mrb[0].mxu0
          %v1091 = vadd.f32 %v1007, %v1090
          %v1092 = vpop.f32.mrb[0].mxu0
          %v1093 = vpop.f32.mrb[0].mxu0
          %v1094 = vpop.f32.mrb[0].mxu0
          %1095 = vdwg.mxu0
          %v1096 = vxor.u32 %v1091, 2147483648
          %v1097 = vmul.f32 %v1096, 1.442695
          %v1098 = vpow.pop %v1097
          %v1099 = vadd.f32 %v1098, 1.0
          %v1100 = vrcp.pop %v1099
          %v1101 = vmul.f32 1.0, %v1100
          %v1102 = vmul.f32 %v1091, %v1101
          %v1103 = vpack.c.bf16 %v1102, %v1102
          %v1104 = vld [vmem:[%s5] sm:$0xf]
          %v1105 = vld [vmem:[%s5 + $0x4] sm:$0xf]
          %v1106 = vld [vmem:[%s5 + $0x8] sm:$0xf]
          %v1107 = vld [vmem:[%s5 + $0xc] sm:$0xf]
          %v1108 = vld [vmem:[%s5 + $0x10] sm:$0xf]
          %v1109 = vld [vmem:[%s5 + $0x14] sm:$0xf]
          %v1110 = vld [vmem:[%s5 + $0x18] sm:$0xf]
          %v1111 = vld [vmem:[%s5 + $0x1c] sm:$0xf]
          %v1112 = vld [vmem:[%s5 + $0x20] sm:$0xf]
          %v1113 = vld [vmem:[%s5 + $0x24] sm:$0xf]
          %v1114 = vld [vmem:[%s5 + $0x28] sm:$0xf]
          %v1115 = vld [vmem:[%s5 + $0x2c] sm:$0xf]
          %v1116 = vld [vmem:[%s5 + $0x30] sm:$0xf]
          %v1117 = vld [vmem:[%s5 + $0x34] sm:$0xf]
          %v1118 = vld [vmem:[%s5 + $0x38] sm:$0xf]
          %v1119 = vld [vmem:[%s5 + $0x3c] sm:$0xf]
          %v1120 = vld [vmem:[%s6] sm:$0x1]
          %v1137 = vunpack.c.l.b16 %v1104
          %v1138 = vunpack.c.l.b16 %v1105
          %v1139 = vunpack.c.l.b16 %v1106
          %v1140 = vunpack.c.l.b16 %v1107
          %v1141 = vunpack.c.l.b16 %v1108
          %v1142 = vunpack.c.l.b16 %v1109
          %v1143 = vunpack.c.l.b16 %v1110
          %v1144 = vunpack.c.l.b16 %v1111
          %v1145 = vunpack.c.l.b16 %v1112
          %v1146 = vunpack.c.l.b16 %v1113
          %v1147 = vunpack.c.l.b16 %v1114
          %v1148 = vunpack.c.l.b16 %v1115
          %v1149 = vunpack.c.l.b16 %v1116
          %v1150 = vunpack.c.l.b16 %v1117
          %v1151 = vunpack.c.l.b16 %v1118
          %v1152 = vunpack.c.l.b16 %v1119
          %v1153 = vpack.c.b16 %v1138, %v1137
          %v1154 = vpack.c.b16 %v1140, %v1139
          %v1155 = vpack.c.b16 %v1142, %v1141
          %v1156 = vpack.c.b16 %v1144, %v1143
          %v1157 = vpack.c.b16 %v1146, %v1145
          %v1158 = vpack.c.b16 %v1148, %v1147
          %v1159 = vpack.c.b16 %v1150, %v1149
          %v1160 = vpack.c.b16 %v1152, %v1151
          %1169 = vmatprep.subr.bf16.mxu0 0
          %1170 = vmatpush1.bf16.msra.mxu0 %v1153
          %1171 = vmatprep.subr.bf16.mxu0 0
          %1172 = vmatpush1.bf16.msra.mxu0 %v1154
          %1173 = vmatprep.subr.bf16.mxu0 0
          %1174 = vmatpush1.bf16.msra.mxu0 %v1155
          %1175 = vmatprep.subr.bf16.mxu0 0
          %1176 = vmatpush1.bf16.msra.mxu0 %v1156
          %1177 = vmatprep.subr.bf16.mxu0 0
          %1178 = vmatpush1.bf16.msra.mxu0 %v1157
          %1179 = vmatprep.subr.bf16.mxu0 0
          %1180 = vmatpush1.bf16.msra.mxu0 %v1158
          %1181 = vmatprep.subr.bf16.mxu0 0
          %1182 = vmatpush1.bf16.msra.mxu0 %v1159
          %1183 = vmatprep.subr.bf16.mxu0 0
          %1184 = vmatpush1.bf16.msra.mxu0 %v1160
          %1185 = vmatprep.subr.bf16.mxu0 0
          %1186 = vmatpush1.bf16.msra.mxu0 0
          %1187 = vmatprep.subr.bf16.mxu0 0
          %1188 = vmatpush1.bf16.msra.mxu0 0
          %1189 = vmatprep.subr.bf16.mxu0 0
          %1190 = vmatpush1.bf16.msra.mxu0 0
          %1191 = vmatprep.subr.bf16.mxu0 0
          %1192 = vmatpush1.bf16.msra.mxu0 0
          %1193 = vmatprep.subr.bf16.mxu0 0
          %1194 = vmatpush1.bf16.msra.mxu0 0
          %1195 = vmatprep.subr.bf16.mxu0 0
          %1196 = vmatpush1.bf16.msra.mxu0 0
          %1197 = vmatprep.subr.bf16.mxu0 0
          %1198 = vmatpush1.bf16.msra.mxu0 0
          %1199 = vmatprep.subr.bf16.mxu0 0
          %1200 = vmatpush1.bf16.msra.mxu0 0
          %1201 = vmatprep.mubr.bf16.mxu0 0
          %1202 = vmatmul.mubr.bf16.gmra.mrb[0].mxu0 %v1103
          %v1203 = vpop.f32.mrb[0].mxu0
          %v1204 = vadd.f32 %v1120, %v1203
          %v1205 = vpop.f32.mrb[0].mxu0
          %v1206 = vpop.f32.mrb[0].mxu0
          %v1207 = vpop.f32.mrb[0].mxu0
          %1208 = vdwg.mxu0
          %v1209 = vld [vmem:[%s934] sm:$0xff]
          %v1210 = vpack.c.bf16 %v1209, %v1209
          %v1211 = vld [vmem:[%s7] sm:$0xf]
          %v1212 = vld [vmem:[%s7 + $0x4] sm:$0xf]
          %v1213 = vld [vmem:[%s7 + $0x8] sm:$0xf]
          %v1214 = vld [vmem:[%s7 + $0xc] sm:$0xf]
          %v1215 = vld [vmem:[%s7 + $0x10] sm:$0xf]
          %v1216 = vld [vmem:[%s7 + $0x14] sm:$0xf]
          %v1217 = vld [vmem:[%s7 + $0x18] sm:$0xf]
          %v1218 = vld [vmem:[%s7 + $0x1c] sm:$0xf]
          %v1219 = vld [vmem:[%s7 + $0x20] sm:$0xf]
          %v1220 = vld [vmem:[%s7 + $0x24] sm:$0xf]
          %v1221 = vld [vmem:[%s7 + $0x28] sm:$0xf]
          %v1222 = vld [vmem:[%s7 + $0x2c] sm:$0xf]
          %v1223 = vld [vmem:[%s7 + $0x30] sm:$0xf]
          %v1224 = vld [vmem:[%s7 + $0x34] sm:$0xf]
          %v1225 = vld [vmem:[%s7 + $0x38] sm:$0xf]
          %v1226 = vld [vmem:[%s7 + $0x3c] sm:$0xf]
          %v1227 = vld [vmem:[%s8] sm:$0x1]
          %v1229 = vlaneseq
          %v1230 = vshrl.u32 %v1229, 7
          %v1231 = vsub.s32 0, %v1230
          %v1232 = vrot.slane %v1227, %v1231
          %v1250 = vunpack.c.l.b16 %v1211
          %v1251 = vunpack.c.l.b16 %v1212
          %v1252 = vunpack.c.l.b16 %v1213
          %v1253 = vunpack.c.l.b16 %v1214
          %v1254 = vunpack.c.l.b16 %v1215
          %v1255 = vunpack.c.l.b16 %v1216
          %v1256 = vunpack.c.l.b16 %v1217
          %v1257 = vunpack.c.l.b16 %v1218
          %v1258 = vunpack.c.l.b16 %v1219
          %v1259 = vunpack.c.l.b16 %v1220
          %v1260 = vunpack.c.l.b16 %v1221
          %v1261 = vunpack.c.l.b16 %v1222
          %v1262 = vunpack.c.l.b16 %v1223
          %v1263 = vunpack.c.l.b16 %v1224
          %v1264 = vunpack.c.l.b16 %v1225
          %v1265 = vunpack.c.l.b16 %v1226
          %v1266 = vpack.c.b16 %v1251, %v1250
          %v1267 = vpack.c.b16 %v1253, %v1252
          %v1268 = vpack.c.b16 %v1255, %v1254
          %v1269 = vpack.c.b16 %v1257, %v1256
          %v1270 = vpack.c.b16 %v1259, %v1258
          %v1271 = vpack.c.b16 %v1261, %v1260
          %v1272 = vpack.c.b16 %v1263, %v1262
          %v1273 = vpack.c.b16 %v1265, %v1264
          %1282 = vmatprep.subr.bf16.mxu0 0
          %1283 = vmatpush1.bf16.msra.mxu0 %v1266
          %1284 = vmatprep.subr.bf16.mxu0 0
          %1285 = vmatpush1.bf16.msra.mxu0 %v1267
          %1286 = vmatprep.subr.bf16.mxu0 0
          %1287 = vmatpush1.bf16.msra.mxu0 %v1268
          %1288 = vmatprep.subr.bf16.mxu0 0
          %1289 = vmatpush1.bf16.msra.mxu0 %v1269
          %1290 = vmatprep.subr.bf16.mxu0 0
          %1291 = vmatpush1.bf16.msra.mxu0 %v1270
          %1292 = vmatprep.subr.bf16.mxu0 0
          %1293 = vmatpush1.bf16.msra.mxu0 %v1271
          %1294 = vmatprep.subr.bf16.mxu0 0
          %1295 = vmatpush1.bf16.msra.mxu0 %v1272
          %1296 = vmatprep.subr.bf16.mxu0 0
          %1297 = vmatpush1.bf16.msra.mxu0 %v1273
          %1298 = vmatprep.subr.bf16.mxu0 0
          %1299 = vmatpush1.bf16.msra.mxu0 0
          %1300 = vmatprep.subr.bf16.mxu0 0
          %1301 = vmatpush1.bf16.msra.mxu0 0
          %1302 = vmatprep.subr.bf16.mxu0 0
          %1303 = vmatpush1.bf16.msra.mxu0 0
          %1304 = vmatprep.subr.bf16.mxu0 0
          %1305 = vmatpush1.bf16.msra.mxu0 0
          %1306 = vmatprep.subr.bf16.mxu0 0
          %1307 = vmatpush1.bf16.msra.mxu0 0
          %1308 = vmatprep.subr.bf16.mxu0 0
          %1309 = vmatpush1.bf16.msra.mxu0 0
          %1310 = vmatprep.subr.bf16.mxu0 0
          %1311 = vmatpush1.bf16.msra.mxu0 0
          %1312 = vmatprep.subr.bf16.mxu0 0
          %1313 = vmatpush1.bf16.msra.mxu0 0
          %1314 = vmatprep.mubr.bf16.mxu0 0
          %1315 = vmatmul.mubr.bf16.gmra.mrb[0].mxu0 %v1210
          %v1316 = vpop.f32.mrb[0].mxu0
          %v1317 = vadd.f32 %v1232, %v1316
          %v1318 = vpop.f32.mrb[0].mxu0
          %v1319 = vpop.f32.mrb[0].mxu0
          %v1320 = vpop.f32.mrb[0].mxu0
          %1321 = vdwg.mxu0
          %v1322 = vld [vmem:[%s9] sm:$0x1]
          %v1323 = vadd.f32 %v1204, %v1322
          %1324 = vst [vmem:[#allocation2] sm:$0x1] %v1323
          %v1325 = vld [vmem:[%s930] sm:$0xff]
          %v1326 = vld [vmem:[%s9 + $0x1] sm:$0xff]
          %v1327 = vadd.f32 %v1325, %v1326
          %1328 = vst [vmem:[#allocation2 + $0x1] sm:$0xff] %v1327
          %v1329 = vld [vmem:[%s9 + $0x9] sm:$0xff]
          %v1330 = vadd.f32 %v1317, %v1329
          %1331 = vst [vmem:[#allocation2 + $0x9] sm:$0xff] %v1330
        $region124: #{concat_seq_encoder_m2mdm_forward.3} parent=115 // pred_fallthru
          _
        %v1332 = vld [vmem:[#allocation2] sm:$0xff]
        %v1333 = vld [vmem:[#allocation2 + $0x8] sm:$0xff]
        %v1334 = vld [vmem:[#allocation2 + $0x10] sm:$0x1]
        %v1335 = vld [vmem:[%s939] sm:$0xff]
        %v1336 = vld [vmem:[%s939 + $0x8] sm:$0xf]
        %v1337 = vld [vmem:[%s939 + $0xc] sm:$0xff]
        %v1338 = vld [vmem:[%s939 + $0x14] sm:$0xf]
        %v1339 = vld [vmem:[%s939 + $0x18] sm:$0xff]
        %v1340 = vld [vmem:[%s939 + $0x20] sm:$0xf]
        %v1341 = vld [vmem:[%s939 + $0x24] sm:$0xff]
        %v1342 = vld [vmem:[%s939 + $0x2c] sm:$0xf]
        %v1343 = vld [vmem:[%s939 + $0x30] sm:$0xff]
        %v1344 = vld [vmem:[%s939 + $0x38] sm:$0xf]
        %v1345 = vld [vmem:[%s939 + $0x3c] sm:$0xff]
        %v1346 = vld [vmem:[%s939 + $0x44] sm:$0xf]
        %v1347 = vld [vmem:[%s939 + $0x48] sm:$0xff]
        %v1348 = vld [vmem:[%s939 + $0x50] sm:$0xf]
        %v1349 = vld [vmem:[%s939 + $0x54] sm:$0xff]
        %v1350 = vld [vmem:[%s939 + $0x5c] sm:$0xf]
        %v1351 = vld [vmem:[%s939 + $0x60] sm:$0xff]
        %v1352 = vld [vmem:[%s939 + $0x68] sm:$0xf]
        %v1353 = vld [vmem:[%s939 + $0x6c] sm:$0xff]
        %v1354 = vld [vmem:[%s939 + $0x74] sm:$0xf]
        %v1355 = vld [vmem:[%s939 + $0x78] sm:$0xff]
        %v1356 = vld [vmem:[%s939 + $0x80] sm:$0xf]
        %v1357 = vld [vmem:[%s939 + $0x84] sm:$0xff]
        %v1358 = vld [vmem:[%s939 + $0x8c] sm:$0xf]
        %v1359 = vld [vmem:[%s939 + $0x90] sm:$0xff]
        %v1360 = vld [vmem:[%s939 + $0x98] sm:$0xf]
        %v1361 = vld [vmem:[%s939 + $0x9c] sm:$0xff]
        %v1362 = vld [vmem:[%s939 + $0xa4] sm:$0xf]
        %v1363 = vld [vmem:[%s939 + $0xa8] sm:$0xff]
        %v1364 = vld [vmem:[%s939 + $0xb0] sm:$0xf]
        %v1365 = vld [vmem:[%s939 + $0xb4] sm:$0xff]
        %v1366 = vld [vmem:[%s939 + $0xbc] sm:$0xf]
        %v1367 = vld [vmem:[%s943] sm:$0x7]
        %v1368 = vld [vmem:[%s948] sm:$0xf]
        %v1369 = vld [vmem:[%s948 + $0x4] sm:$0xf]
        %v1370 = vld [vmem:[%s948 + $0x8] sm:$0xf]
        %v1371 = vld [vmem:[%s948 + $0xc] sm:$0xf]
        %v1372 = vld [vmem:[%s948 + $0x10] sm:$0xf]
        %v1373 = vld [vmem:[%s948 + $0x14] sm:$0xf]
        %v1374 = vld [vmem:[%s948 + $0x18] sm:$0xf]
        %v1375 = vld [vmem:[%s948 + $0x1c] sm:$0xf]
        %v1376 = vld [vmem:[%s948 + $0x20] sm:$0xf]
        %v1377 = vld [vmem:[%s948 + $0x24] sm:$0xf]
        %v1378 = vld [vmem:[%s948 + $0x28] sm:$0xf]
        %v1379 = vld [vmem:[%s948 + $0x2c] sm:$0xf]
        %v1380 = vld [vmem:[%s948 + $0x30] sm:$0xf]
        %v1381 = vld [vmem:[%s948 + $0x34] sm:$0xf]
        %v1382 = vld [vmem:[%s948 + $0x38] sm:$0xf]
        %v1383 = vld [vmem:[%s948 + $0x3c] sm:$0xf]
        %v1384 = vld [vmem:[%s951] sm:$0x1]
        %v1385 = vld [vmem:[%s954] sm:$0x1]
        %v1386 = vld [vmem:[%s957] sm:$0x1]
        %v1387 = vld [vmem:[%s962] sm:$0xf]
        %v1388 = vld [vmem:[%s962 + $0x4] sm:$0xf]
        %v1389 = vld [vmem:[%s962 + $0x8] sm:$0xf]
        %v1390 = vld [vmem:[%s962 + $0xc] sm:$0xf]
        %v1391 = vld [vmem:[%s962 + $0x10] sm:$0xf]
        %v1392 = vld [vmem:[%s962 + $0x14] sm:$0xf]
        %v1393 = vld [vmem:[%s962 + $0x18] sm:$0xf]
        %v1394 = vld [vmem:[%s962 + $0x1c] sm:$0xf]
        %v1395 = vld [vmem:[%s962 + $0x20] sm:$0xf]
        %v1396 = vld [vmem:[%s962 + $0x24] sm:$0xf]
        %v1397 = vld [vmem:[%s962 + $0x28] sm:$0xf]
        %v1398 = vld [vmem:[%s962 + $0x2c] sm:$0xf]
        %v1399 = vld [vmem:[%s962 + $0x30] sm:$0xf]
        %v1400 = vld [vmem:[%s962 + $0x34] sm:$0xf]
        %v1401 = vld [vmem:[%s962 + $0x38] sm:$0xf]
        %v1402 = vld [vmem:[%s962 + $0x3c] sm:$0xf]
        %v1403 = vld [vmem:[%s965] sm:$0x1]
        %v1404 = vld [vmem:[%s970] sm:$0xf]
        %v1405 = vld [vmem:[%s970 + $0x4] sm:$0xf]
        %v1406 = vld [vmem:[%s970 + $0x8] sm:$0xf]
        %v1407 = vld [vmem:[%s970 + $0xc] sm:$0xf]
        %v1408 = vld [vmem:[%s970 + $0x10] sm:$0xf]
        %v1409 = vld [vmem:[%s970 + $0x14] sm:$0xf]
        %v1410 = vld [vmem:[%s970 + $0x18] sm:$0xf]
        %v1411 = vld [vmem:[%s970 + $0x1c] sm:$0xf]
        %v1412 = vld [vmem:[%s970 + $0x20] sm:$0xf]
        %v1413 = vld [vmem:[%s970 + $0x24] sm:$0xf]
        %v1414 = vld [vmem:[%s970 + $0x28] sm:$0xf]
        %v1415 = vld [vmem:[%s970 + $0x2c] sm:$0xf]
        %v1416 = vld [vmem:[%s970 + $0x30] sm:$0xf]
        %v1417 = vld [vmem:[%s970 + $0x34] sm:$0xf]
        %v1418 = vld [vmem:[%s970 + $0x38] sm:$0xf]
        %v1419 = vld [vmem:[%s970 + $0x3c] sm:$0xf]
        %v1420 = vld [vmem:[%s973] sm:$0x1]
        %v1421 = vld [vmem:[%s976] sm:$0x1]
        %v1422 = vld [vmem:[%s979] sm:$0x1]
        %v1423 = vlaneseq
        %v1424 = vand.u32 %v1423, 127
        %vm1425 = vcmp.lt.s32.totalorder %v1424, 32
        %v1426 = vsel %vm1425, 1, 0
        %v1427 = vcvt.s32.f32 %v1426
        %v1428 = vpack.c.bf16 %v1333, %v1332
        %v1429 = vpack.c.bf16 %v1334, %v1334
        %v1431 = vlaneseq
        %v1432 = vshrl.u32 %v1431, 7
        %v1433 = vsub.s32 0, %v1432
        %v1434 = vrot.slane %v1367, %v1433
        %v1435 = vlaneseq
        %v1436 = vshrl.u32 %v1435, 7
        %v1437 = vsub.s32 1, %v1436
        %v1438 = vrot.slane %v1367, %v1437
        %v1439 = vlaneseq
        %v1440 = vshrl.u32 %v1439, 7
        %v1441 = vsub.s32 2, %v1440
        %v1442 = vrot.slane %v1367, %v1441
        %v1478 = vunpack.c.l.b16 %v1335
        %v1479 = vunpack.c.h.b16 %v1335
        %v1480 = vunpack.c.l.b16 %v1336
        %v1481 = vunpack.c.l.b16 %v1337
        %v1482 = vunpack.c.h.b16 %v1337
        %v1483 = vunpack.c.l.b16 %v1338
        %v1484 = vunpack.c.l.b16 %v1339
        %v1485 = vunpack.c.h.b16 %v1339
        %v1486 = vunpack.c.l.b16 %v1340
        %v1487 = vunpack.c.l.b16 %v1341
        %v1488 = vunpack.c.h.b16 %v1341
        %v1489 = vunpack.c.l.b16 %v1342
        %v1490 = vunpack.c.l.b16 %v1343
        %v1491 = vunpack.c.h.b16 %v1343
        %v1492 = vunpack.c.l.b16 %v1344
        %v1493 = vunpack.c.l.b16 %v1345
        %v1494 = vunpack.c.h.b16 %v1345
        %v1495 = vunpack.c.l.b16 %v1346
        %v1496 = vunpack.c.l.b16 %v1347
        %v1497 = vunpack.c.h.b16 %v1347
        %v1498 = vunpack.c.l.b16 %v1348
        %v1499 = vunpack.c.l.b16 %v1349
        %v1500 = vunpack.c.h.b16 %v1349
        %v1501 = vunpack.c.l.b16 %v1350
        %v1502 = vunpack.c.l.b16 %v1351
        %v1503 = vunpack.c.h.b16 %v1351
        %v1504 = vunpack.c.l.b16 %v1352
        %v1505 = vunpack.c.l.b16 %v1353
        %v1506 = vunpack.c.h.b16 %v1353
        %v1507 = vunpack.c.l.b16 %v1354
        %v1508 = vunpack.c.l.b16 %v1355
        %v1509 = vunpack.c.h.b16 %v1355
        %v1510 = vunpack.c.l.b16 %v1356
        %v1511 = vunpack.c.l.b16 %v1357
        %v1512 = vunpack.c.h.b16 %v1357
        %v1513 = vunpack.c.l.b16 %v1358
        %v1514 = vunpack.c.l.b16 %v1359
        %v1515 = vunpack.c.h.b16 %v1359
        %v1516 = vunpack.c.l.b16 %v1360
        %v1517 = vunpack.c.l.b16 %v1361
        %v1518 = vunpack.c.h.b16 %v1361
        %v1519 = vunpack.c.l.b16 %v1362
        %v1520 = vunpack.c.l.b16 %v1363
        %v1521 = vunpack.c.h.b16 %v1363
        %v1522 = vunpack.c.l.b16 %v1364
        %v1523 = vunpack.c.l.b16 %v1365
        %v1524 = vunpack.c.h.b16 %v1365
        %v1525 = vunpack.c.l.b16 %v1366
        %v1526 = vpack.c.b16 %v1481, %v1478
        %v1527 = vpack.c.b16 %v1482, %v1479
        %v1528 = vpack.c.b16 %v1483, %v1480
        %v1529 = vpack.c.b16 %v1487, %v1484
        %v1530 = vpack.c.b16 %v1488, %v1485
        %v1531 = vpack.c.b16 %v1489, %v1486
        %v1532 = vpack.c.b16 %v1493, %v1490
        %v1533 = vpack.c.b16 %v1494, %v1491
        %v1534 = vpack.c.b16 %v1495, %v1492
        %v1535 = vpack.c.b16 %v1499, %v1496
        %v1536 = vpack.c.b16 %v1500, %v1497
        %v1537 = vpack.c.b16 %v1501, %v1498
        %v1538 = vpack.c.b16 %v1505, %v1502
        %v1539 = vpack.c.b16 %v1506, %v1503
        %v1540 = vpack.c.b16 %v1507, %v1504
        %v1541 = vpack.c.b16 %v1511, %v1508
        %v1542 = vpack.c.b16 %v1512, %v1509
        %v1543 = vpack.c.b16 %v1513, %v1510
        %v1544 = vpack.c.b16 %v1517, %v1514
        %v1545 = vpack.c.b16 %v1518, %v1515
        %v1546 = vpack.c.b16 %v1519, %v1516
        %v1547 = vpack.c.b16 %v1523, %v1520
        %v1548 = vpack.c.b16 %v1524, %v1521
        %v1549 = vpack.c.b16 %v1525, %v1522
        %1574 = vmatprep.subr.bf16.mxu0 %v1527
        %1575 = vmatpush1.bf16.msra.mxu0 %v1526
        %1576 = vmatprep.subr.bf16.mxu0 %v1530
        %1577 = vmatpush1.bf16.msra.mxu0 %v1529
        %1578 = vmatprep.subr.bf16.mxu0 %v1533
        %1579 = vmatpush1.bf16.msra.mxu0 %v1532
        %1580 = vmatprep.subr.bf16.mxu0 %v1536
        %1581 = vmatpush1.bf16.msra.mxu0 %v1535
        %1582 = vmatprep.subr.bf16.mxu0 %v1539
        %1583 = vmatpush1.bf16.msra.mxu0 %v1538
        %1584 = vmatprep.subr.bf16.mxu0 %v1542
        %1585 = vmatpush1.bf16.msra.mxu0 %v1541
        %1586 = vmatprep.subr.bf16.mxu0 %v1545
        %1587 = vmatpush1.bf16.msra.mxu0 %v1544
        %1588 = vmatprep.subr.bf16.mxu0 %v1548
        %1589 = vmatpush1.bf16.msra.mxu0 %v1547
        %1590 = vmatprep.subr.bf16.mxu0 0
        %1591 = vmatpush1.bf16.msra.mxu0 0
        %1592 = vmatprep.subr.bf16.mxu0 0
        %1593 = vmatpush1.bf16.msra.mxu0 0
        %1594 = vmatprep.subr.bf16.mxu0 0
        %1595 = vmatpush1.bf16.msra.mxu0 0
        %1596 = vmatprep.subr.bf16.mxu0 0
        %1597 = vmatpush1.bf16.msra.mxu0 0
        %1598 = vmatprep.subr.bf16.mxu0 0
        %1599 = vmatpush1.bf16.msra.mxu0 0
        %1600 = vmatprep.subr.bf16.mxu0 0
        %1601 = vmatpush1.bf16.msra.mxu0 0
        %1602 = vmatprep.subr.bf16.mxu0 0
        %1603 = vmatpush1.bf16.msra.mxu0 0
        %1604 = vmatprep.subr.bf16.mxu0 0
        %1605 = vmatpush1.bf16.msra.mxu0 0
        %1606 = vmatprep.mubr.bf16.mxu0 0
        %1607 = vmatmul.mubr.bf16.gmra.mrb[0].mxu0 %v1428
        %v1608 = vpop.f32.mrb[0].mxu0
        %v1609 = vadd.f32 %v1434, %v1608
        %v1610 = vpop.f32.mrb[0].mxu0
        %v1611 = vadd.f32 %v1438, %v1610
        %v1612 = vpop.f32.mrb[0].mxu0
        %v1613 = vadd.f32 %v1434, %v1612
        %v1614 = vpop.f32.mrb[0].mxu0
        %v1615 = vadd.f32 %v1438, %v1614
        %1616 = vmatprep.mubr.bf16.mxu0 0
        %1617 = vmatmul.mubr.bf16.gmra.mrb[0].mxu0 %v1429
        %v1618 = vpop.f32.mrb[0].mxu0
        %v1619 = vadd.f32 %v1434, %v1618
        %v1620 = vpop.f32.mrb[0].mxu0
        %v1621 = vadd.f32 %v1438, %v1620
        %v1622 = vpop.f32.mrb[0].mxu0
        %v1623 = vpop.f32.mrb[0].mxu0
        %1624 = vdwg.mxu0
        %1625 = vmatprep.subr.bf16.mxu0 0
        %1626 = vmatpush1.bf16.msra.mxu0 %v1528
        %1627 = vmatprep.subr.bf16.mxu0 0
        %1628 = vmatpush1.bf16.msra.mxu0 %v1531
        %1629 = vmatprep.subr.bf16.mxu0 0
        %1630 = vmatpush1.bf16.msra.mxu0 %v1534
        %1631 = vmatprep.subr.bf16.mxu0 0
        %1632 = vmatpush1.bf16.msra.mxu0 %v1537
        %1633 = vmatprep.subr.bf16.mxu0 0
        %1634 = vmatpush1.bf16.msra.mxu0 %v1540
        %1635 = vmatprep.subr.bf16.mxu0 0
        %1636 = vmatpush1.bf16.msra.mxu0 %v1543
        %1637 = vmatprep.subr.bf16.mxu0 0
        %1638 = vmatpush1.bf16.msra.mxu0 %v1546
        %1639 = vmatprep.subr.bf16.mxu0 0
        %1640 = vmatpush1.bf16.msra.mxu0 %v1549
        %1641 = vmatprep.subr.bf16.mxu0 0
        %1642 = vmatpush1.bf16.msra.mxu0 0
        %1643 = vmatprep.subr.bf16.mxu0 0
        %1644 = vmatpush1.bf16.msra.mxu0 0
        %1645 = vmatprep.subr.bf16.mxu0 0
        %1646 = vmatpush1.bf16.msra.mxu0 0
        %1647 = vmatprep.subr.bf16.mxu0 0
        %1648 = vmatpush1.bf16.msra.mxu0 0
        %1649 = vmatprep.subr.bf16.mxu0 0
        %1650 = vmatpush1.bf16.msra.mxu0 0
        %1651 = vmatprep.subr.bf16.mxu0 0
        %1652 = vmatpush1.bf16.msra.mxu0 0
        %1653 = vmatprep.subr.bf16.mxu0 0
        %1654 = vmatpush1.bf16.msra.mxu0 0
        %1655 = vmatprep.subr.bf16.mxu0 0
        %1656 = vmatpush1.bf16.msra.mxu0 0
        %1657 = vmatprep.mubr.bf16.mxu0 0
        %1658 = vmatmul.mubr.bf16.gmra.mrb[0].mxu0 %v1428
        %v1659 = vpop.f32.mrb[0].mxu0
        %v1660 = vadd.f32 %v1442, %v1659
        %v1661 = vpop.f32.mrb[0].mxu0
        %v1662 = vpop.f32.mrb[0].mxu0
        %v1663 = vadd.f32 %v1442, %v1662
        %v1664 = vpop.f32.mrb[0].mxu0
        %1665 = vmatprep.mubr.bf16.mxu0 0
        %1666 = vmatmul.mubr.bf16.gmra.mrb[0].mxu0 %v1429
        %v1667 = vpop.f32.mrb[0].mxu0
        %v1668 = vadd.f32 %v1442, %v1667
        %v1669 = vpop.f32.mrb[0].mxu0
        %v1670 = vpop.f32.mrb[0].mxu0
        %v1671 = vpop.f32.mrb[0].mxu0
        %1672 = vdwg.mxu0
        %vm1673 = vcmp.ge.s32.totalorder %v1424, 0
        %vm1674 = vcmp.lt.s32.totalorder %v1424, 8
        %vm1675 = vmand %vm1673, %vm1674
        %v1676 = vsel %vm1675, 1, 0
        %v1677 = vcvt.s32.f32 %v1676
        %v1678 = vmul.f32 %v1609, %v1677
        %v1679 = vmul.f32 %v1613, %v1677
        %v1680 = vmul.f32 %v1619, %v1677
        %1681 = vmatprep.subr.mxu0 0.0
        %1682 = vmatpush1.xpose.msra.mxu0 %v1611
        %1683 = vmatprep.subr.mxu0 0.0
        %1684 = vmatpush1.xpose.msra.mxu0 %v1615
        %1685 = vmatprep.subr.mxu0 0.0
        %1686 = vmatpush1.xpose.msra.mxu0 %v1621
        %1687 = vmatprep.subr.mxu0 0.0
        %1688 = vmatpush1.xpose.msra.mxu0 0.0
        %1689 = vmatprep.subr.mxu0 0.0
        %1690 = vmatpush1.xpose.msra.mxu0 0.0
        %1691 = vmatprep.subr.mxu0 0.0
        %1692 = vmatpush1.xpose.msra.mxu0 0.0
        %1693 = vmatprep.subr.mxu0 0.0
        %1694 = vmatpush1.xpose.msra.mxu0 0.0
        %1695 = vmatprep.subr.mxu0 0.0
        %1696 = vmatpush1.xpose.msra.mxu0 0.0
        %1697 = vmatprep.subr.mxu0 0.0
        %1698 = vmatpush1.xpose.msra.mxu0 0.0
        %1699 = vmatprep.subr.mxu0 0.0
        %1700 = vmatpush1.xpose.msra.mxu0 0.0
        %1701 = vmatprep.subr.mxu0 0.0
        %1702 = vmatpush1.xpose.msra.mxu0 0.0
        %1703 = vmatprep.subr.mxu0 0.0
        %1704 = vmatpush1.xpose.msra.mxu0 0.0
        %1705 = vmatprep.subr.mxu0 0.0
        %1706 = vmatpush1.xpose.msra.mxu0 0.0
        %1707 = vmatprep.subr.mxu0 0.0
        %1708 = vmatpush1.xpose.msra.mxu0 0.0
        %1709 = vmatprep.subr.mxu0 0.0
        %1710 = vmatpush1.xpose.msra.mxu0 0.0
        %1711 = vmatprep.subr.mxu0 0.0
        %1712 = vmatpush1.xpose.msra.mxu0 0.0
        %1713 = vmatprep.subr.mxu0 0.0
        %1714 = vmatpush1.xpose.msra.mxu0 0.0
        %1715 = vmatprep.subr.mxu0 0.0
        %1716 = vmatpush1.xpose.msra.mxu0 0.0
        %1717 = vmatprep.subr.mxu0 0.0
        %1718 = vmatpush1.xpose.msra.mxu0 0.0
        %1719 = vmatprep.subr.mxu0 0.0
        %1720 = vmatpush1.xpose.msra.mxu0 0.0
        %1721 = vmatprep.subr.mxu0 0.0
        %1722 = vmatpush1.xpose.msra.mxu0 0.0
        %1723 = vmatprep.subr.mxu0 0.0
        %1724 = vmatpush1.xpose.msra.mxu0 0.0
        %1725 = vmatprep.subr.mxu0 0.0
        %1726 = vmatpush1.xpose.msra.mxu0 0.0
        %1727 = vmatprep.subr.mxu0 0.0
        %1728 = vmatpush1.xpose.msra.mxu0 0.0
        %1729 = vmatprep.subr.mxu0 0.0
        %1730 = vmatpush1.xpose.msra.mxu0 0.0
        %1731 = vmatprep.subr.mxu0 0.0
        %1732 = vmatpush1.xpose.msra.mxu0 0.0
        %1733 = vmatprep.subr.mxu0 0.0
        %1734 = vmatpush1.xpose.msra.mxu0 0.0
        %1735 = vmatprep.subr.mxu0 0.0
        %1736 = vmatpush1.xpose.msra.mxu0 0.0
        %1737 = vmatprep.subr.mxu0 0.0
        %1738 = vmatpush1.xpose.msra.mxu0 0.0
        %1739 = vmatprep.subr.mxu0 0.0
        %1740 = vmatpush1.xpose.msra.mxu0 0.0
        %1741 = vmatprep.subr.mxu0 0.0
        %1742 = vmatpush1.xpose.msra.mxu0 0.0
        %1743 = vmatprep.subr.mxu0 0.0
        %1744 = vmatpush1.xpose.msra.mxu0 0.0
        %1745 = vmatprep.mubr.f32.mxu0 0.0
        %1746 = vmatmul.mubr.f32.gmra.mrb[0].mxu0 %v1678
        %v1747 = vpop.f32.mrb[0].mxu0
        %v1748 = vadd.f32 0.0, %v1747
        %v1749 = vpop.f32.mrb[0].mxu0
        %1750 = vmatprep.mubr.f32.mxu0 0.0
        %1751 = vmatmul.mubr.f32.gmra.mrb[0].mxu0 %v1679
        %v1752 = vpop.f32.mrb[0].mxu0
        %v1753 = vadd.f32 0.0, %v1752
        %v1754 = vpop.f32.mrb[0].mxu0
        %1755 = vmatprep.mubr.f32.mxu0 0.0
        %1756 = vmatmul.mubr.f32.gmra.mrb[0].mxu0 %v1680
        %v1757 = vpop.f32.mrb[0].mxu0
        %v1758 = vadd.f32 0.0, %v1757
        %v1759 = vpop.f32.mrb[0].mxu0
        %1760 = vdwg.mxu0
        %v1761 = vmul.f32 %v1748, 0.35355338
        %v1762 = vmul.f32 %v1753, 0.35355338
        %v1763 = vmul.f32 %v1758, 0.35355338
        %vm1764 = vcmask 138240
        %v1765 = vsel %vm1764, %v1761, -inf
        %1766 = vmax.xlane.f32.xlu0 %v1765
        %v1767 = vpop.xlane.xlu0 %1766
        %v1768 = vsel %vm1764, %v1762, -inf
        %1769 = vmax.xlane.f32.xlu0 %v1768
        %v1770 = vpop.xlane.xlu0 %1769
        %vm1771 = vcmask 131072
        %v1772 = vsel %vm1771, %v1763, -inf
        %1773 = vmax.xlane.f32.xlu0 %v1772
        %v1774 = vpop.xlane.xlu0 %1773
        %v1775 = vsub.f32 %v1761, %v1767
        %v1776 = vsub.f32 %v1762, %v1770
        %v1777 = vsub.f32 %v1763, %v1774
        %v1778 = vmul.f32 %v1775, 1.442695
        %v1779 = vpow.pop %v1778
        %v1780 = vmul.f32 %v1776, 1.442695
        %v1781 = vpow.pop %v1780
        %v1782 = vmul.f32 %v1777, 1.442695
        %v1783 = vpow.pop %v1782
        %v1784 = vsel %vm1764, %v1779, 0.0
        %1785 = vadd.xlane.f32.xlu0 %v1784
        %v1786 = vpop.xlane.xlu0 %1785
        %v1787 = vsel %vm1764, %v1781, 0.0
        %1788 = vadd.xlane.f32.xlu0 %v1787
        %v1789 = vpop.xlane.xlu0 %1788
        %v1790 = vsel %vm1771, %v1783, 0.0
        %1791 = vadd.xlane.f32.xlu0 %v1790
        %v1792 = vpop.xlane.xlu0 %1791
        %v1793 = vrcp.pop %v1786
        %v1794 = vmul.f32 %v1779, %v1793
        %v1795 = vrcp.pop %v1789
        %v1796 = vmul.f32 %v1781, %v1795
        %v1797 = vrcp.pop %v1792
        %v1798 = vmul.f32 %v1783, %v1797
        %v1799 = vmul.f32 %v1660, %v1677
        %v1800 = vmul.f32 %v1663, %v1677
        %v1801 = vmul.f32 %v1668, %v1677
        %vm1802 = vcmp.ge.s32.totalorder %v1424, 8
        %vm1803 = vcmp.lt.s32.totalorder %v1424, 16
        %vm1804 = vmand %vm1802, %vm1803
        %v1805 = vsel %vm1804, 1, 0
        %v1806 = vcvt.s32.f32 %v1805
        %v1807 = vmul.f32 %v1609, %v1806
        %v1808 = vmul.f32 %v1613, %v1806
        %v1809 = vmul.f32 %v1619, %v1806
        %1810 = vmatprep.subr.mxu0 0.0
        %1811 = vmatpush1.xpose.msra.mxu0 %v1611
        %1812 = vmatprep.subr.mxu0 0.0
        %1813 = vmatpush1.xpose.msra.mxu0 %v1615
        %1814 = vmatprep.subr.mxu0 0.0
        %1815 = vmatpush1.xpose.msra.mxu0 %v1621
        %1816 = vmatprep.subr.mxu0 0.0
        %1817 = vmatpush1.xpose.msra.mxu0 0.0
        %1818 = vmatprep.subr.mxu0 0.0
        %1819 = vmatpush1.xpose.msra.mxu0 0.0
        %1820 = vmatprep.subr.mxu0 0.0
        %1821 = vmatpush1.xpose.msra.mxu0 0.0
        %1822 = vmatprep.subr.mxu0 0.0
        %1823 = vmatpush1.xpose.msra.mxu0 0.0
        %1824 = vmatprep.subr.mxu0 0.0
        %1825 = vmatpush1.xpose.msra.mxu0 0.0
        %1826 = vmatprep.subr.mxu0 0.0
        %1827 = vmatpush1.xpose.msra.mxu0 0.0
        %1828 = vmatprep.subr.mxu0 0.0
        %1829 = vmatpush1.xpose.msra.mxu0 0.0
        %1830 = vmatprep.subr.mxu0 0.0
        %1831 = vmatpush1.xpose.msra.mxu0 0.0
        %1832 = vmatprep.subr.mxu0 0.0
        %1833 = vmatpush1.xpose.msra.mxu0 0.0
        %1834 = vmatprep.subr.mxu0 0.0
        %1835 = vmatpush1.xpose.msra.mxu0 0.0
        %1836 = vmatprep.subr.mxu0 0.0
        %1837 = vmatpush1.xpose.msra.mxu0 0.0
        %1838 = vmatprep.subr.mxu0 0.0
        %1839 = vmatpush1.xpose.msra.mxu0 0.0
        %1840 = vmatprep.subr.mxu0 0.0
        %1841 = vmatpush1.xpose.msra.mxu0 0.0
        %1842 = vmatprep.subr.mxu0 0.0
        %1843 = vmatpush1.xpose.msra.mxu0 0.0
        %1844 = vmatprep.subr.mxu0 0.0
        %1845 = vmatpush1.xpose.msra.mxu0 0.0
        %1846 = vmatprep.subr.mxu0 0.0
        %1847 = vmatpush1.xpose.msra.mxu0 0.0
        %1848 = vmatprep.subr.mxu0 0.0
        %1849 = vmatpush1.xpose.msra.mxu0 0.0
        %1850 = vmatprep.subr.mxu0 0.0
        %1851 = vmatpush1.xpose.msra.mxu0 0.0
        %1852 = vmatprep.subr.mxu0 0.0
        %1853 = vmatpush1.xpose.msra.mxu0 0.0
        %1854 = vmatprep.subr.mxu0 0.0
        %1855 = vmatpush1.xpose.msra.mxu0 0.0
        %1856 = vmatprep.subr.mxu0 0.0
        %1857 = vmatpush1.xpose.msra.mxu0 0.0
        %1858 = vmatprep.subr.mxu0 0.0
        %1859 = vmatpush1.xpose.msra.mxu0 0.0
        %1860 = vmatprep.subr.mxu0 0.0
        %1861 = vmatpush1.xpose.msra.mxu0 0.0
        %1862 = vmatprep.subr.mxu0 0.0
        %1863 = vmatpush1.xpose.msra.mxu0 0.0
        %1864 = vmatprep.subr.mxu0 0.0
        %1865 = vmatpush1.xpose.msra.mxu0 0.0
        %1866 = vmatprep.subr.mxu0 0.0
        %1867 = vmatpush1.xpose.msra.mxu0 0.0
        %1868 = vmatprep.subr.mxu0 0.0
        %1869 = vmatpush1.xpose.msra.mxu0 0.0
        %1870 = vmatprep.subr.mxu0 0.0
        %1871 = vmatpush1.xpose.msra.mxu0 0.0
        %1872 = vmatprep.subr.mxu0 0.0
        %1873 = vmatpush1.xpose.msra.mxu0 0.0
        %1874 = vmatprep.mubr.f32.mxu0 0.0
        %1875 = vmatmul.mubr.f32.gmra.mrb[0].mxu0 %v1807
        %v1876 = vpop.f32.mrb[0].mxu0
        %v1877 = vadd.f32 0.0, %v1876
        %v1878 = vpop.f32.mrb[0].mxu0
        %1879 = vmatprep.mubr.f32.mxu0 0.0
        %1880 = vmatmul.mubr.f32.gmra.mrb[0].mxu0 %v1808
        %v1881 = vpop.f32.mrb[0].mxu0
        %v1882 = vadd.f32 0.0, %v1881
        %v1883 = vpop.f32.mrb[0].mxu0
        %1884 = vmatprep.mubr.f32.mxu0 0.0
        %1885 = vmatmul.mubr.f32.gmra.mrb[0].mxu0 %v1809
        %v1886 = vpop.f32.mrb[0].mxu0
        %v1887 = vadd.f32 0.0, %v1886
        %v1888 = vpop.f32.mrb[0].mxu0
        %1889 = vdwg.mxu0
        %v1890 = vmul.f32 %v1877, 0.35355338
        %v1891 = vmul.f32 %v1882, 0.35355338
        %v1892 = vmul.f32 %v1887, 0.35355338
        %v1893 = vsel %vm1764, %v1890, -inf
        %1894 = vmax.xlane.f32.xlu0 %v1893
        %v1895 = vpop.xlane.xlu0 %1894
        %v1896 = vsel %vm1764, %v1891, -inf
        %1897 = vmax.xlane.f32.xlu0 %v1896
        %v1898 = vpop.xlane.xlu0 %1897
        %v1899 = vsel %vm1771, %v1892, -inf
        %1900 = vmax.xlane.f32.xlu0 %v1899
        %v1901 = vpop.xlane.xlu0 %1900
        %v1902 = vsub.f32 %v1890, %v1895
        %v1903 = vsub.f32 %v1891, %v1898
        %v1904 = vsub.f32 %v1892, %v1901
        %v1905 = vmul.f32 %v1902, 1.442695
        %v1906 = vpow.pop %v1905
        %v1907 = vmul.f32 %v1903, 1.442695
        %v1908 = vpow.pop %v1907
        %v1909 = vmul.f32 %v1904, 1.442695
        %v1910 = vpow.pop %v1909
        %v1911 = vsel %vm1764, %v1906, 0.0
        %1912 = vadd.xlane.f32.xlu0 %v1911
        %v1913 = vpop.xlane.xlu0 %1912
        %v1914 = vsel %vm1764, %v1908, 0.0
        %1915 = vadd.xlane.f32.xlu0 %v1914
        %v1916 = vpop.xlane.xlu0 %1915
        %v1917 = vsel %vm1771, %v1910, 0.0
        %1918 = vadd.xlane.f32.xlu0 %v1917
        %v1919 = vpop.xlane.xlu0 %1918
        %v1920 = vrcp.pop %v1913
        %v1921 = vmul.f32 %v1906, %v1920
        %v1922 = vrcp.pop %v1916
        %v1923 = vmul.f32 %v1908, %v1922
        %v1924 = vrcp.pop %v1919
        %v1925 = vmul.f32 %v1910, %v1924
        %v1926 = vmul.f32 %v1660, %v1806
        %v1927 = vmul.f32 %v1663, %v1806
        %v1928 = vmul.f32 %v1668, %v1806
        %v1930 = vsel %vm1764, %v1921, 0
        %v1933 = vsel %vm1764, %v1923, 0
        %v1936 = vsel %vm1764, %v1925, 0
        %vm1938 = vcmask 1040384
        %v1940 = vsel %vm1938, %v1928, 0
        %1942 = vmatprep.subr.mxu0 0.0
        %1943 = vmatpush1.msra.mxu0 %v1926
        %1944 = vmatprep.subr.mxu0 0.0
        %1945 = vmatpush1.msra.mxu0 %v1927
        %1946 = vmatprep.subr.mxu0 0.0
        %1947 = vmatpush1.msra.mxu0 %v1940
        %1948 = vmatprep.subr.mxu0 0.0
        %1949 = vmatpush1.msra.mxu0 0.0
        %1950 = vmatprep.subr.mxu0 0.0
        %1951 = vmatpush1.msra.mxu0 0.0
        %1952 = vmatprep.subr.mxu0 0.0
        %1953 = vmatpush1.msra.mxu0 0.0
        %1954 = vmatprep.subr.mxu0 0.0
        %1955 = vmatpush1.msra.mxu0 0.0
        %1956 = vmatprep.subr.mxu0 0.0
        %1957 = vmatpush1.msra.mxu0 0.0
        %1958 = vmatprep.subr.mxu0 0.0
        %1959 = vmatpush1.msra.mxu0 0.0
        %1960 = vmatprep.subr.mxu0 0.0
        %1961 = vmatpush1.msra.mxu0 0.0
        %1962 = vmatprep.subr.mxu0 0.0
        %1963 = vmatpush1.msra.mxu0 0.0
        %1964 = vmatprep.subr.mxu0 0.0
        %1965 = vmatpush1.msra.mxu0 0.0
        %1966 = vmatprep.subr.mxu0 0.0
        %1967 = vmatpush1.msra.mxu0 0.0
        %1968 = vmatprep.subr.mxu0 0.0
        %1969 = vmatpush1.msra.mxu0 0.0
        %1970 = vmatprep.subr.mxu0 0.0
        %1971 = vmatpush1.msra.mxu0 0.0
        %1972 = vmatprep.subr.mxu0 0.0
        %1973 = vmatpush1.msra.mxu0 0.0
        %1974 = vmatprep.subr.mxu0 0.0
        %1975 = vmatpush1.msra.mxu0 0.0
        %1976 = vmatprep.subr.mxu0 0.0
        %1977 = vmatpush1.msra.mxu0 0.0
        %1978 = vmatprep.subr.mxu0 0.0
        %1979 = vmatpush1.msra.mxu0 0.0
        %1980 = vmatprep.subr.mxu0 0.0
        %1981 = vmatpush1.msra.mxu0 0.0
        %1982 = vmatprep.subr.mxu0 0.0
        %1983 = vmatpush1.msra.mxu0 0.0
        %1984 = vmatprep.subr.mxu0 0.0
        %1985 = vmatpush1.msra.mxu0 0.0
        %1986 = vmatprep.subr.mxu0 0.0
        %1987 = vmatpush1.msra.mxu0 0.0
        %1988 = vmatprep.subr.mxu0 0.0
        %1989 = vmatpush1.msra.mxu0 0.0
        %1990 = vmatprep.subr.mxu0 0.0
        %1991 = vmatpush1.msra.mxu0 0.0
        %1992 = vmatprep.subr.mxu0 0.0
        %1993 = vmatpush1.msra.mxu0 0.0
        %1994 = vmatprep.subr.mxu0 0.0
        %1995 = vmatpush1.msra.mxu0 0.0
        %1996 = vmatprep.subr.mxu0 0.0
        %1997 = vmatpush1.msra.mxu0 0.0
        %1998 = vmatprep.subr.mxu0 0.0
        %1999 = vmatpush1.msra.mxu0 0.0
        %2000 = vmatprep.subr.mxu0 0.0
        %2001 = vmatpush1.msra.mxu0 0.0
        %2002 = vmatprep.subr.mxu0 0.0
        %2003 = vmatpush1.msra.mxu0 0.0
        %2004 = vmatprep.subr.mxu0 0.0
        %2005 = vmatpush1.msra.mxu0 0.0
        %2006 = vmatprep.mubr.f32.mxu0 0.0
        %2007 = vmatmul.mubr.f32.gmra.mrb[0].mxu0 %v1930
        %v2008 = vpop.f32.mrb[0].mxu0
        %v2009 = vadd.f32 0.0, %v2008
        %v2010 = vpop.f32.mrb[0].mxu0
        %2011 = vmatprep.mubr.f32.mxu0 0.0
        %2012 = vmatmul.mubr.f32.gmra.mrb[0].mxu0 %v1933
        %v2013 = vpop.f32.mrb[0].mxu0
        %v2014 = vadd.f32 0.0, %v2013
        %v2015 = vpop.f32.mrb[0].mxu0
        %2016 = vmatprep.mubr.f32.mxu0 0.0
        %2017 = vmatmul.mubr.f32.gmra.mrb[0].mxu0 %v1936
        %v2018 = vpop.f32.mrb[0].mxu0
        %v2019 = vadd.f32 0.0, %v2018
        %v2020 = vpop.f32.mrb[0].mxu0
        %2021 = vdwg.mxu0
        %v2023 = vsel %vm1764, %v1794, 0
        %v2026 = vsel %vm1764, %v1796, 0
        %v2029 = vsel %vm1764, %v1798, 0
        %v2032 = vsel %vm1938, %v1801, 0
        %2034 = vmatprep.subr.mxu0 0.0
        %2035 = vmatpush1.msra.mxu0 %v1799
        %2036 = vmatprep.subr.mxu0 0.0
        %2037 = vmatpush1.msra.mxu0 %v1800
        %2038 = vmatprep.subr.mxu0 0.0
        %2039 = vmatpush1.msra.mxu0 %v2032
        %2040 = vmatprep.subr.mxu0 0.0
        %2041 = vmatpush1.msra.mxu0 0.0
        %2042 = vmatprep.subr.mxu0 0.0
        %2043 = vmatpush1.msra.mxu0 0.0
        %2044 = vmatprep.subr.mxu0 0.0
        %2045 = vmatpush1.msra.mxu0 0.0
        %2046 = vmatprep.subr.mxu0 0.0
        %2047 = vmatpush1.msra.mxu0 0.0
        %2048 = vmatprep.subr.mxu0 0.0
        %2049 = vmatpush1.msra.mxu0 0.0
        %2050 = vmatprep.subr.mxu0 0.0
        %2051 = vmatpush1.msra.mxu0 0.0
        %2052 = vmatprep.subr.mxu0 0.0
        %2053 = vmatpush1.msra.mxu0 0.0
        %2054 = vmatprep.subr.mxu0 0.0
        %2055 = vmatpush1.msra.mxu0 0.0
        %2056 = vmatprep.subr.mxu0 0.0
        %2057 = vmatpush1.msra.mxu0 0.0
        %2058 = vmatprep.subr.mxu0 0.0
        %2059 = vmatpush1.msra.mxu0 0.0
        %2060 = vmatprep.subr.mxu0 0.0
        %2061 = vmatpush1.msra.mxu0 0.0
        %2062 = vmatprep.subr.mxu0 0.0
        %2063 = vmatpush1.msra.mxu0 0.0
        %2064 = vmatprep.subr.mxu0 0.0
        %2065 = vmatpush1.msra.mxu0 0.0
        %2066 = vmatprep.subr.mxu0 0.0
        %2067 = vmatpush1.msra.mxu0 0.0
        %2068 = vmatprep.subr.mxu0 0.0
        %2069 = vmatpush1.msra.mxu0 0.0
        %2070 = vmatprep.subr.mxu0 0.0
        %2071 = vmatpush1.msra.mxu0 0.0
        %2072 = vmatprep.subr.mxu0 0.0
        %2073 = vmatpush1.msra.mxu0 0.0
        %2074 = vmatprep.subr.mxu0 0.0
        %2075 = vmatpush1.msra.mxu0 0.0
        %2076 = vmatprep.subr.mxu0 0.0
        %2077 = vmatpush1.msra.mxu0 0.0
        %2078 = vmatprep.subr.mxu0 0.0
        %2079 = vmatpush1.msra.mxu0 0.0
        %2080 = vmatprep.subr.mxu0 0.0
        %2081 = vmatpush1.msra.mxu0 0.0
        %2082 = vmatprep.subr.mxu0 0.0
        %2083 = vmatpush1.msra.mxu0 0.0
        %2084 = vmatprep.subr.mxu0 0.0
        %2085 = vmatpush1.msra.mxu0 0.0
        %2086 = vmatprep.subr.mxu0 0.0
        %2087 = vmatpush1.msra.mxu0 0.0
        %2088 = vmatprep.subr.mxu0 0.0
        %2089 = vmatpush1.msra.mxu0 0.0
        %2090 = vmatprep.subr.mxu0 0.0
        %2091 = vmatpush1.msra.mxu0 0.0
        %2092 = vmatprep.subr.mxu0 0.0
        %2093 = vmatpush1.msra.mxu0 0.0
        %2094 = vmatprep.subr.mxu0 0.0
        %2095 = vmatpush1.msra.mxu0 0.0
        %2096 = vmatprep.subr.mxu0 0.0
        %2097 = vmatpush1.msra.mxu0 0.0
        %2098 = vmatprep.mubr.f32.mxu0 0.0
        %2099 = vmatmul.mubr.f32.gmra.mrb[0].mxu0 %v2023
        %v2100 = vpop.f32.mrb[0].mxu0
        %v2101 = vadd.f32 %v2009, %v2100
        %v2102 = vpop.f32.mrb[0].mxu0
        %2103 = vmatprep.mubr.f32.mxu0 0.0
        %2104 = vmatmul.mubr.f32.gmra.mrb[0].mxu0 %v2026
        %v2105 = vpop.f32.mrb[0].mxu0
        %v2106 = vadd.f32 %v2014, %v2105
        %v2107 = vpop.f32.mrb[0].mxu0
        %2108 = vmatprep.mubr.f32.mxu0 0.0
        %2109 = vmatmul.mubr.f32.gmra.mrb[0].mxu0 %v2029
        %v2110 = vpop.f32.mrb[0].mxu0
        %v2111 = vadd.f32 %v2019, %v2110
        %v2112 = vpop.f32.mrb[0].mxu0
        %2113 = vdwg.mxu0
        %vm2114 = vcmp.ge.s32.totalorder %v1424, 16
        %vm2115 = vcmp.lt.s32.totalorder %v1424, 24
        %vm2116 = vmand %vm2114, %vm2115
        %v2117 = vsel %vm2116, 1, 0
        %v2118 = vcvt.s32.f32 %v2117
        %v2119 = vmul.f32 %v1609, %v2118
        %v2120 = vmul.f32 %v1613, %v2118
        %v2121 = vmul.f32 %v1619, %v2118
        %2122 = vmatprep.subr.mxu0 0.0
        %2123 = vmatpush1.xpose.msra.mxu0 %v1611
        %2124 = vmatprep.subr.mxu0 0.0
        %2125 = vmatpush1.xpose.msra.mxu0 %v1615
        %2126 = vmatprep.subr.mxu0 0.0
        %2127 = vmatpush1.xpose.msra.mxu0 %v1621
        %2128 = vmatprep.subr.mxu0 0.0
        %2129 = vmatpush1.xpose.msra.mxu0 0.0
        %2130 = vmatprep.subr.mxu0 0.0
        %2131 = vmatpush1.xpose.msra.mxu0 0.0
        %2132 = vmatprep.subr.mxu0 0.0
        %2133 = vmatpush1.xpose.msra.mxu0 0.0
        %2134 = vmatprep.subr.mxu0 0.0
        %2135 = vmatpush1.xpose.msra.mxu0 0.0
        %2136 = vmatprep.subr.mxu0 0.0
        %2137 = vmatpush1.xpose.msra.mxu0 0.0
        %2138 = vmatprep.subr.mxu0 0.0
        %2139 = vmatpush1.xpose.msra.mxu0 0.0
        %2140 = vmatprep.subr.mxu0 0.0
        %2141 = vmatpush1.xpose.msra.mxu0 0.0
        %2142 = vmatprep.subr.mxu0 0.0
        %2143 = vmatpush1.xpose.msra.mxu0 0.0
        %2144 = vmatprep.subr.mxu0 0.0
        %2145 = vmatpush1.xpose.msra.mxu0 0.0
        %2146 = vmatprep.subr.mxu0 0.0
        %2147 = vmatpush1.xpose.msra.mxu0 0.0
        %2148 = vmatprep.subr.mxu0 0.0
        %2149 = vmatpush1.xpose.msra.mxu0 0.0
        %2150 = vmatprep.subr.mxu0 0.0
        %2151 = vmatpush1.xpose.msra.mxu0 0.0
        %2152 = vmatprep.subr.mxu0 0.0
        %2153 = vmatpush1.xpose.msra.mxu0 0.0
        %2154 = vmatprep.subr.mxu0 0.0
        %2155 = vmatpush1.xpose.msra.mxu0 0.0
        %2156 = vmatprep.subr.mxu0 0.0
        %2157 = vmatpush1.xpose.msra.mxu0 0.0
        %2158 = vmatprep.subr.mxu0 0.0
        %2159 = vmatpush1.xpose.msra.mxu0 0.0
        %2160 = vmatprep.subr.mxu0 0.0
        %2161 = vmatpush1.xpose.msra.mxu0 0.0
        %2162 = vmatprep.subr.mxu0 0.0
        %2163 = vmatpush1.xpose.msra.mxu0 0.0
        %2164 = vmatprep.subr.mxu0 0.0
        %2165 = vmatpush1.xpose.msra.mxu0 0.0
        %2166 = vmatprep.subr.mxu0 0.0
        %2167 = vmatpush1.xpose.msra.mxu0 0.0
        %2168 = vmatprep.subr.mxu0 0.0
        %2169 = vmatpush1.xpose.msra.mxu0 0.0
        %2170 = vmatprep.subr.mxu0 0.0
        %2171 = vmatpush1.xpose.msra.mxu0 0.0
        %2172 = vmatprep.subr.mxu0 0.0
        %2173 = vmatpush1.xpose.msra.mxu0 0.0
        %2174 = vmatprep.subr.mxu0 0.0
        %2175 = vmatpush1.xpose.msra.mxu0 0.0
        %2176 = vmatprep.subr.mxu0 0.0
        %2177 = vmatpush1.xpose.msra.mxu0 0.0
        %2178 = vmatprep.subr.mxu0 0.0
        %2179 = vmatpush1.xpose.msra.mxu0 0.0
        %2180 = vmatprep.subr.mxu0 0.0
        %2181 = vmatpush1.xpose.msra.mxu0 0.0
        %2182 = vmatprep.subr.mxu0 0.0
        %2183 = vmatpush1.xpose.msra.mxu0 0.0
        %2184 = vmatprep.subr.mxu0 0.0
        %2185 = vmatpush1.xpose.msra.mxu0 0.0
        %2186 = vmatprep.mubr.f32.mxu0 0.0
        %2187 = vmatmul.mubr.f32.gmra.mrb[0].mxu0 %v2119
        %v2188 = vpop.f32.mrb[0].mxu0
        %v2189 = vadd.f32 0.0, %v2188
        %v2190 = vpop.f32.mrb[0].mxu0
        %2191 = vmatprep.mubr.f32.mxu0 0.0
        %2192 = vmatmul.mubr.f32.gmra.mrb[0].mxu0 %v2120
        %v2193 = vpop.f32.mrb[0].mxu0
        %v2194 = vadd.f32 0.0, %v2193
        %v2195 = vpop.f32.mrb[0].mxu0
        %2196 = vmatprep.mubr.f32.mxu0 0.0
        %2197 = vmatmul.mubr.f32.gmra.mrb[0].mxu0 %v2121
        %v2198 = vpop.f32.mrb[0].mxu0
        %v2199 = vadd.f32 0.0, %v2198
        %v2200 = vpop.f32.mrb[0].mxu0
        %2201 = vdwg.mxu0
        %v2202 = vmul.f32 %v2189, 0.35355338
        %v2203 = vmul.f32 %v2194, 0.35355338
        %v2204 = vmul.f32 %v2199, 0.35355338
        %v2205 = vsel %vm1764, %v2202, -inf
        %2206 = vmax.xlane.f32.xlu0 %v2205
        %v2207 = vpop.xlane.xlu0 %2206
        %v2208 = vsel %vm1764, %v2203, -inf
        %2209 = vmax.xlane.f32.xlu0 %v2208
        %v2210 = vpop.xlane.xlu0 %2209
        %v2211 = vsel %vm1771, %v2204, -inf
        %2212 = vmax.xlane.f32.xlu0 %v2211
        %v2213 = vpop.xlane.xlu0 %2212
        %v2214 = vsub.f32 %v2202, %v2207
        %v2215 = vsub.f32 %v2203, %v2210
        %v2216 = vsub.f32 %v2204, %v2213
        %v2217 = vmul.f32 %v2214, 1.442695
        %v2218 = vpow.pop %v2217
        %v2219 = vmul.f32 %v2215, 1.442695
        %v2220 = vpow.pop %v2219
        %v2221 = vmul.f32 %v2216, 1.442695
        %v2222 = vpow.pop %v2221
        %v2223 = vsel %vm1764, %v2218, 0.0
        %2224 = vadd.xlane.f32.xlu0 %v2223
        %v2225 = vpop.xlane.xlu0 %2224
        %v2226 = vsel %vm1764, %v2220, 0.0
        %2227 = vadd.xlane.f32.xlu0 %v2226
        %v2228 = vpop.xlane.xlu0 %2227
        %v2229 = vsel %vm1771, %v2222, 0.0
        %2230 = vadd.xlane.f32.xlu0 %v2229
        %v2231 = vpop.xlane.xlu0 %2230
        %v2232 = vrcp.pop %v2225
        %v2233 = vmul.f32 %v2218, %v2232
        %v2234 = vrcp.pop %v2228
        %v2235 = vmul.f32 %v2220, %v2234
        %v2236 = vrcp.pop %v2231
        %v2237 = vmul.f32 %v2222, %v2236
        %v2238 = vmul.f32 %v1660, %v2118
        %v2239 = vmul.f32 %v1663, %v2118
        %v2240 = vmul.f32 %v1668, %v2118
        %v2242 = vsel %vm1764, %v2233, 0
        %v2245 = vsel %vm1764, %v2235, 0
        %v2248 = vsel %vm1764, %v2237, 0
        %v2251 = vsel %vm1938, %v2240, 0
        %2253 = vmatprep.subr.mxu0 0.0
        %2254 = vmatpush1.msra.mxu0 %v2238
        %2255 = vmatprep.subr.mxu0 0.0
        %2256 = vmatpush1.msra.mxu0 %v2239
        %2257 = vmatprep.subr.mxu0 0.0
        %2258 = vmatpush1.msra.mxu0 %v2251
        %2259 = vmatprep.subr.mxu0 0.0
        %2260 = vmatpush1.msra.mxu0 0.0
        %2261 = vmatprep.subr.mxu0 0.0
        %2262 = vmatpush1.msra.mxu0 0.0
        %2263 = vmatprep.subr.mxu0 0.0
        %2264 = vmatpush1.msra.mxu0 0.0
        %2265 = vmatprep.subr.mxu0 0.0
        %2266 = vmatpush1.msra.mxu0 0.0
        %2267 = vmatprep.subr.mxu0 0.0
        %2268 = vmatpush1.msra.mxu0 0.0
        %2269 = vmatprep.subr.mxu0 0.0
        %2270 = vmatpush1.msra.mxu0 0.0
        %2271 = vmatprep.subr.mxu0 0.0
        %2272 = vmatpush1.msra.mxu0 0.0
        %2273 = vmatprep.subr.mxu0 0.0
        %2274 = vmatpush1.msra.mxu0 0.0
        %2275 = vmatprep.subr.mxu0 0.0
        %2276 = vmatpush1.msra.mxu0 0.0
        %2277 = vmatprep.subr.mxu0 0.0
        %2278 = vmatpush1.msra.mxu0 0.0
        %2279 = vmatprep.subr.mxu0 0.0
        %2280 = vmatpush1.msra.mxu0 0.0
        %2281 = vmatprep.subr.mxu0 0.0
        %2282 = vmatpush1.msra.mxu0 0.0
        %2283 = vmatprep.subr.mxu0 0.0
        %2284 = vmatpush1.msra.mxu0 0.0
        %2285 = vmatprep.subr.mxu0 0.0
        %2286 = vmatpush1.msra.mxu0 0.0
        %2287 = vmatprep.subr.mxu0 0.0
        %2288 = vmatpush1.msra.mxu0 0.0
        %2289 = vmatprep.subr.mxu0 0.0
        %2290 = vmatpush1.msra.mxu0 0.0
        %2291 = vmatprep.subr.mxu0 0.0
        %2292 = vmatpush1.msra.mxu0 0.0
        %2293 = vmatprep.subr.mxu0 0.0
        %2294 = vmatpush1.msra.mxu0 0.0
        %2295 = vmatprep.subr.mxu0 0.0
        %2296 = vmatpush1.msra.mxu0 0.0
        %2297 = vmatprep.subr.mxu0 0.0
        %2298 = vmatpush1.msra.mxu0 0.0
        %2299 = vmatprep.subr.mxu0 0.0
        %2300 = vmatpush1.msra.mxu0 0.0
        %2301 = vmatprep.subr.mxu0 0.0
        %2302 = vmatpush1.msra.mxu0 0.0
        %2303 = vmatprep.subr.mxu0 0.0
        %2304 = vmatpush1.msra.mxu0 0.0
        %2305 = vmatprep.subr.mxu0 0.0
        %2306 = vmatpush1.msra.mxu0 0.0
        %2307 = vmatprep.subr.mxu0 0.0
        %2308 = vmatpush1.msra.mxu0 0.0
        %2309 = vmatprep.subr.mxu0 0.0
        %2310 = vmatpush1.msra.mxu0 0.0
        %2311 = vmatprep.subr.mxu0 0.0
        %2312 = vmatpush1.msra.mxu0 0.0
        %2313 = vmatprep.subr.mxu0 0.0
        %2314 = vmatpush1.msra.mxu0 0.0
        %2315 = vmatprep.subr.mxu0 0.0
        %2316 = vmatpush1.msra.mxu0 0.0
        %2317 = vmatprep.mubr.f32.mxu0 0.0
        %2318 = vmatmul.mubr.f32.gmra.mrb[0].mxu0 %v2242
        %v2319 = vpop.f32.mrb[0].mxu0
        %v2320 = vadd.f32 0.0, %v2319
        %v2321 = vpop.f32.mrb[0].mxu0
        %2322 = vmatprep.mubr.f32.mxu0 0.0
        %2323 = vmatmul.mubr.f32.gmra.mrb[0].mxu0 %v2245
        %v2324 = vpop.f32.mrb[0].mxu0
        %v2325 = vadd.f32 0.0, %v2324
        %v2326 = vpop.f32.mrb[0].mxu0
        %2327 = vmatprep.mubr.f32.mxu0 0.0
        %2328 = vmatmul.mubr.f32.gmra.mrb[0].mxu0 %v2248
        %v2329 = vpop.f32.mrb[0].mxu0
        %v2330 = vadd.f32 0.0, %v2329
        %v2331 = vpop.f32.mrb[0].mxu0
        %2332 = vdwg.mxu0
        %v2333 = vadd.f32 %v2101, %v2320
        %v2334 = vadd.f32 %v2106, %v2325
        %v2335 = vadd.f32 %v2111, %v2330
        %vm2336 = vcmp.ge.s32.totalorder %v1424, 24
        %vm2337 = vmand %vm2336, %vm1425
        %v2338 = vsel %vm2337, 1, 0
        %v2339 = vcvt.s32.f32 %v2338
        %v2340 = vmul.f32 %v1609, %v2339
        %v2341 = vmul.f32 %v1613, %v2339
        %v2342 = vmul.f32 %v1619, %v2339
        %2343 = vmatprep.subr.mxu0 0.0
        %2344 = vmatpush1.xpose.msra.mxu0 %v1611
        %2345 = vmatprep.subr.mxu0 0.0
        %2346 = vmatpush1.xpose.msra.mxu0 %v1615
        %2347 = vmatprep.subr.mxu0 0.0
        %2348 = vmatpush1.xpose.msra.mxu0 %v1621
        %2349 = vmatprep.subr.mxu0 0.0
        %2350 = vmatpush1.xpose.msra.mxu0 0.0
        %2351 = vmatprep.subr.mxu0 0.0
        %2352 = vmatpush1.xpose.msra.mxu0 0.0
        %2353 = vmatprep.subr.mxu0 0.0
        %2354 = vmatpush1.xpose.msra.mxu0 0.0
        %2355 = vmatprep.subr.mxu0 0.0
        %2356 = vmatpush1.xpose.msra.mxu0 0.0
        %2357 = vmatprep.subr.mxu0 0.0
        %2358 = vmatpush1.xpose.msra.mxu0 0.0
        %2359 = vmatprep.subr.mxu0 0.0
        %2360 = vmatpush1.xpose.msra.mxu0 0.0
        %2361 = vmatprep.subr.mxu0 0.0
        %2362 = vmatpush1.xpose.msra.mxu0 0.0
        %2363 = vmatprep.subr.mxu0 0.0
        %2364 = vmatpush1.xpose.msra.mxu0 0.0
        %2365 = vmatprep.subr.mxu0 0.0
        %2366 = vmatpush1.xpose.msra.mxu0 0.0
        %2367 = vmatprep.subr.mxu0 0.0
        %2368 = vmatpush1.xpose.msra.mxu0 0.0
        %2369 = vmatprep.subr.mxu0 0.0
        %2370 = vmatpush1.xpose.msra.mxu0 0.0
        %2371 = vmatprep.subr.mxu0 0.0
        %2372 = vmatpush1.xpose.msra.mxu0 0.0
        %2373 = vmatprep.subr.mxu0 0.0
        %2374 = vmatpush1.xpose.msra.mxu0 0.0
        %2375 = vmatprep.subr.mxu0 0.0
        %2376 = vmatpush1.xpose.msra.mxu0 0.0
        %2377 = vmatprep.subr.mxu0 0.0
        %2378 = vmatpush1.xpose.msra.mxu0 0.0
        %2379 = vmatprep.subr.mxu0 0.0
        %2380 = vmatpush1.xpose.msra.mxu0 0.0
        %2381 = vmatprep.subr.mxu0 0.0
        %2382 = vmatpush1.xpose.msra.mxu0 0.0
        %2383 = vmatprep.subr.mxu0 0.0
        %2384 = vmatpush1.xpose.msra.mxu0 0.0
        %2385 = vmatprep.subr.mxu0 0.0
        %2386 = vmatpush1.xpose.msra.mxu0 0.0
        %2387 = vmatprep.subr.mxu0 0.0
        %2388 = vmatpush1.xpose.msra.mxu0 0.0
        %2389 = vmatprep.subr.mxu0 0.0
        %2390 = vmatpush1.xpose.msra.mxu0 0.0
        %2391 = vmatprep.subr.mxu0 0.0
        %2392 = vmatpush1.xpose.msra.mxu0 0.0
        %2393 = vmatprep.subr.mxu0 0.0
        %2394 = vmatpush1.xpose.msra.mxu0 0.0
        %2395 = vmatprep.subr.mxu0 0.0
        %2396 = vmatpush1.xpose.msra.mxu0 0.0
        %2397 = vmatprep.subr.mxu0 0.0
        %2398 = vmatpush1.xpose.msra.mxu0 0.0
        %2399 = vmatprep.subr.mxu0 0.0
        %2400 = vmatpush1.xpose.msra.mxu0 0.0
        %2401 = vmatprep.subr.mxu0 0.0
        %2402 = vmatpush1.xpose.msra.mxu0 0.0
        %2403 = vmatprep.subr.mxu0 0.0
        %2404 = vmatpush1.xpose.msra.mxu0 0.0
        %2405 = vmatprep.subr.mxu0 0.0
        %2406 = vmatpush1.xpose.msra.mxu0 0.0
        %2407 = vmatprep.mubr.f32.mxu0 0.0
        %2408 = vmatmul.mubr.f32.gmra.mrb[0].mxu0 %v2340
        %v2409 = vpop.f32.mrb[0].mxu0
        %v2410 = vadd.f32 0.0, %v2409
        %v2411 = vpop.f32.mrb[0].mxu0
        %2412 = vmatprep.mubr.f32.mxu0 0.0
        %2413 = vmatmul.mubr.f32.gmra.mrb[0].mxu0 %v2341
        %v2414 = vpop.f32.mrb[0].mxu0
        %v2415 = vadd.f32 0.0, %v2414
        %v2416 = vpop.f32.mrb[0].mxu0
        %2417 = vmatprep.mubr.f32.mxu0 0.0
        %2418 = vmatmul.mubr.f32.gmra.mrb[0].mxu0 %v2342
        %v2419 = vpop.f32.mrb[0].mxu0
        %v2420 = vadd.f32 0.0, %v2419
        %v2421 = vpop.f32.mrb[0].mxu0
        %2422 = vdwg.mxu0
        %v2423 = vmul.f32 %v2410, 0.35355338
        %v2424 = vmul.f32 %v2415, 0.35355338
        %v2425 = vmul.f32 %v2420, 0.35355338
        %v2426 = vsel %vm1764, %v2423, -inf
        %2427 = vmax.xlane.f32.xlu0 %v2426
        %v2428 = vpop.xlane.xlu0 %2427
        %v2429 = vsel %vm1764, %v2424, -inf
        %2430 = vmax.xlane.f32.xlu0 %v2429
        %v2431 = vpop.xlane.xlu0 %2430
        %v2432 = vsel %vm1771, %v2425, -inf
        %2433 = vmax.xlane.f32.xlu0 %v2432
        %v2434 = vpop.xlane.xlu0 %2433
        %v2435 = vsub.f32 %v2423, %v2428
        %v2436 = vsub.f32 %v2424, %v2431
        %v2437 = vsub.f32 %v2425, %v2434
        %v2438 = vmul.f32 %v2435, 1.442695
        %v2439 = vpow.pop %v2438
        %v2440 = vmul.f32 %v2436, 1.442695
        %v2441 = vpow.pop %v2440
        %v2442 = vmul.f32 %v2437, 1.442695
        %v2443 = vpow.pop %v2442
        %v2444 = vsel %vm1764, %v2439, 0.0
        %2445 = vadd.xlane.f32.xlu0 %v2444
        %v2446 = vpop.xlane.xlu0 %2445
        %v2447 = vsel %vm1764, %v2441, 0.0
        %2448 = vadd.xlane.f32.xlu0 %v2447
        %v2449 = vpop.xlane.xlu0 %2448
        %v2450 = vsel %vm1771, %v2443, 0.0
        %2451 = vadd.xlane.f32.xlu0 %v2450
        %v2452 = vpop.xlane.xlu0 %2451
        %v2453 = vrcp.pop %v2446
        %v2454 = vmul.f32 %v2439, %v2453
        %v2455 = vrcp.pop %v2449
        %v2456 = vmul.f32 %v2441, %v2455
        %v2457 = vrcp.pop %v2452
        %v2458 = vmul.f32 %v2443, %v2457
        %v2459 = vmul.f32 %v1660, %v2339
        %v2460 = vmul.f32 %v1663, %v2339
        %v2461 = vmul.f32 %v1668, %v2339
        %v2463 = vsel %vm1764, %v2454, 0
        %v2466 = vsel %vm1764, %v2456, 0
        %v2469 = vsel %vm1764, %v2458, 0
        %v2472 = vsel %vm1938, %v2461, 0
        %2474 = vmatprep.subr.mxu0 0.0
        %2475 = vmatpush1.msra.mxu0 %v2459
        %2476 = vmatprep.subr.mxu0 0.0
        %2477 = vmatpush1.msra.mxu0 %v2460
        %2478 = vmatprep.subr.mxu0 0.0
        %2479 = vmatpush1.msra.mxu0 %v2472
        %2480 = vmatprep.subr.mxu0 0.0
        %2481 = vmatpush1.msra.mxu0 0.0
        %2482 = vmatprep.subr.mxu0 0.0
        %2483 = vmatpush1.msra.mxu0 0.0
        %2484 = vmatprep.subr.mxu0 0.0
        %2485 = vmatpush1.msra.mxu0 0.0
        %2486 = vmatprep.subr.mxu0 0.0
        %2487 = vmatpush1.msra.mxu0 0.0
        %2488 = vmatprep.subr.mxu0 0.0
        %2489 = vmatpush1.msra.mxu0 0.0
        %2490 = vmatprep.subr.mxu0 0.0
        %2491 = vmatpush1.msra.mxu0 0.0
        %2492 = vmatprep.subr.mxu0 0.0
        %2493 = vmatpush1.msra.mxu0 0.0
        %2494 = vmatprep.subr.mxu0 0.0
        %2495 = vmatpush1.msra.mxu0 0.0
        %2496 = vmatprep.subr.mxu0 0.0
        %2497 = vmatpush1.msra.mxu0 0.0
        %2498 = vmatprep.subr.mxu0 0.0
        %2499 = vmatpush1.msra.mxu0 0.0
        %2500 = vmatprep.subr.mxu0 0.0
        %2501 = vmatpush1.msra.mxu0 0.0
        %2502 = vmatprep.subr.mxu0 0.0
        %2503 = vmatpush1.msra.mxu0 0.0
        %2504 = vmatprep.subr.mxu0 0.0
        %2505 = vmatpush1.msra.mxu0 0.0
        %2506 = vmatprep.subr.mxu0 0.0
        %2507 = vmatpush1.msra.mxu0 0.0
        %2508 = vmatprep.subr.mxu0 0.0
        %2509 = vmatpush1.msra.mxu0 0.0
        %2510 = vmatprep.subr.mxu0 0.0
        %2511 = vmatpush1.msra.mxu0 0.0
        %2512 = vmatprep.subr.mxu0 0.0
        %2513 = vmatpush1.msra.mxu0 0.0
        %2514 = vmatprep.subr.mxu0 0.0
        %2515 = vmatpush1.msra.mxu0 0.0
        %2516 = vmatprep.subr.mxu0 0.0
        %2517 = vmatpush1.msra.mxu0 0.0
        %2518 = vmatprep.subr.mxu0 0.0
        %2519 = vmatpush1.msra.mxu0 0.0
        %2520 = vmatprep.subr.mxu0 0.0
        %2521 = vmatpush1.msra.mxu0 0.0
        %2522 = vmatprep.subr.mxu0 0.0
        %2523 = vmatpush1.msra.mxu0 0.0
        %2524 = vmatprep.subr.mxu0 0.0
        %2525 = vmatpush1.msra.mxu0 0.0
        %2526 = vmatprep.subr.mxu0 0.0
        %2527 = vmatpush1.msra.mxu0 0.0
        %2528 = vmatprep.subr.mxu0 0.0
        %2529 = vmatpush1.msra.mxu0 0.0
        %2530 = vmatprep.subr.mxu0 0.0
        %2531 = vmatpush1.msra.mxu0 0.0
        %2532 = vmatprep.subr.mxu0 0.0
        %2533 = vmatpush1.msra.mxu0 0.0
        %2534 = vmatprep.subr.mxu0 0.0
        %2535 = vmatpush1.msra.mxu0 0.0
        %2536 = vmatprep.subr.mxu0 0.0
        %2537 = vmatpush1.msra.mxu0 0.0
        %2538 = vmatprep.mubr.f32.mxu0 0.0
        %2539 = vmatmul.mubr.f32.gmra.mrb[0].mxu0 %v2463
        %v2540 = vpop.f32.mrb[0].mxu0
        %v2541 = vadd.f32 0.0, %v2540
        %v2542 = vpop.f32.mrb[0].mxu0
        %2543 = vmatprep.mubr.f32.mxu0 0.0
        %2544 = vmatmul.mubr.f32.gmra.mrb[0].mxu0 %v2466
        %v2545 = vpop.f32.mrb[0].mxu0
        %v2546 = vadd.f32 0.0, %v2545
        %v2547 = vpop.f32.mrb[0].mxu0
        %2548 = vmatprep.mubr.f32.mxu0 0.0
        %2549 = vmatmul.mubr.f32.gmra.mrb[0].mxu0 %v2469
        %v2550 = vpop.f32.mrb[0].mxu0
        %v2551 = vadd.f32 0.0, %v2550
        %v2552 = vpop.f32.mrb[0].mxu0
        %2553 = vdwg.mxu0
        %v2554 = vadd.f32 %v2333, %v2541
        %v2555 = vadd.f32 %v2334, %v2546
        %v2556 = vadd.f32 %v2335, %v2551
        %v2557 = vpack.c.bf16 %v2555, %v2554
        %v2558 = vpack.c.bf16 %v2556, %v2556
        %v2560 = vlaneseq
        %v2561 = vshrl.u32 %v2560, 7
        %v2562 = vsub.s32 0, %v2561
        %v2563 = vrot.slane %v1384, %v2562
        %v2581 = vunpack.c.l.b16 %v1368
        %v2582 = vunpack.c.l.b16 %v1369
        %v2583 = vunpack.c.l.b16 %v1370
        %v2584 = vunpack.c.l.b16 %v1371
        %v2585 = vunpack.c.l.b16 %v1372
        %v2586 = vunpack.c.l.b16 %v1373
        %v2587 = vunpack.c.l.b16 %v1374
        %v2588 = vunpack.c.l.b16 %v1375
        %v2589 = vunpack.c.l.b16 %v1376
        %v2590 = vunpack.c.l.b16 %v1377
        %v2591 = vunpack.c.l.b16 %v1378
        %v2592 = vunpack.c.l.b16 %v1379
        %v2593 = vunpack.c.l.b16 %v1380
        %v2594 = vunpack.c.l.b16 %v1381
        %v2595 = vunpack.c.l.b16 %v1382
        %v2596 = vunpack.c.l.b16 %v1383
        %v2597 = vpack.c.b16 %v2582, %v2581
        %v2598 = vpack.c.b16 %v2584, %v2583
        %v2599 = vpack.c.b16 %v2586, %v2585
        %v2600 = vpack.c.b16 %v2588, %v2587
        %v2601 = vpack.c.b16 %v2590, %v2589
        %v2602 = vpack.c.b16 %v2592, %v2591
        %v2603 = vpack.c.b16 %v2594, %v2593
        %v2604 = vpack.c.b16 %v2596, %v2595
        %2613 = vmatprep.subr.bf16.mxu0 0
        %2614 = vmatpush1.bf16.msra.mxu0 %v2597
        %2615 = vmatprep.subr.bf16.mxu0 0
        %2616 = vmatpush1.bf16.msra.mxu0 %v2598
        %2617 = vmatprep.subr.bf16.mxu0 0
        %2618 = vmatpush1.bf16.msra.mxu0 %v2599
        %2619 = vmatprep.subr.bf16.mxu0 0
        %2620 = vmatpush1.bf16.msra.mxu0 %v2600
        %2621 = vmatprep.subr.bf16.mxu0 0
        %2622 = vmatpush1.bf16.msra.mxu0 %v2601
        %2623 = vmatprep.subr.bf16.mxu0 0
        %2624 = vmatpush1.bf16.msra.mxu0 %v2602
        %2625 = vmatprep.subr.bf16.mxu0 0
        %2626 = vmatpush1.bf16.msra.mxu0 %v2603
        %2627 = vmatprep.subr.bf16.mxu0 0
        %2628 = vmatpush1.bf16.msra.mxu0 %v2604
        %2629 = vmatprep.subr.bf16.mxu0 0
        %2630 = vmatpush1.bf16.msra.mxu0 0
        %2631 = vmatprep.subr.bf16.mxu0 0
        %2632 = vmatpush1.bf16.msra.mxu0 0
        %2633 = vmatprep.subr.bf16.mxu0 0
        %2634 = vmatpush1.bf16.msra.mxu0 0
        %2635 = vmatprep.subr.bf16.mxu0 0
        %2636 = vmatpush1.bf16.msra.mxu0 0
        %2637 = vmatprep.subr.bf16.mxu0 0
        %2638 = vmatpush1.bf16.msra.mxu0 0
        %2639 = vmatprep.subr.bf16.mxu0 0
        %2640 = vmatpush1.bf16.msra.mxu0 0
        %2641 = vmatprep.subr.bf16.mxu0 0
        %2642 = vmatpush1.bf16.msra.mxu0 0
        %2643 = vmatprep.subr.bf16.mxu0 0
        %2644 = vmatpush1.bf16.msra.mxu0 0
        %2645 = vmatprep.mubr.bf16.mxu0 0
        %2646 = vmatmul.mubr.bf16.gmra.mrb[0].mxu0 %v2557
        %v2647 = vpop.f32.mrb[0].mxu0
        %v2648 = vadd.f32 %v2563, %v2647
        %v2649 = vpop.f32.mrb[0].mxu0
        %v2650 = vpop.f32.mrb[0].mxu0
        %v2651 = vadd.f32 %v2563, %v2650
        %v2652 = vpop.f32.mrb[0].mxu0
        %2653 = vmatprep.mubr.bf16.mxu0 0
        %2654 = vmatmul.mubr.bf16.gmra.mrb[0].mxu0 %v2558
        %v2655 = vpop.f32.mrb[0].mxu0
        %v2656 = vadd.f32 %v2563, %v2655
        %v2657 = vpop.f32.mrb[0].mxu0
        %v2658 = vpop.f32.mrb[0].mxu0
        %v2659 = vpop.f32.mrb[0].mxu0
        %2660 = vdwg.mxu0
        %v2661 = vadd.f32 %v1332, %v2648
        %v2662 = vadd.f32 %v1333, %v2651
        %v2663 = vadd.f32 %v1334, %v2656
        %2664 = vadd.xlane.f32.xlu0 %v2661
        %v2665 = vpop.xlane.xlu0 %2664
        %2666 = vadd.xlane.f32.xlu0 %v2662
        %v2667 = vpop.xlane.xlu0 %2666
        %v2668 = vsel %vm1938, %v2663, 0.0
        %2669 = vadd.xlane.f32.xlu0 %v2668
        %v2670 = vpop.xlane.xlu0 %2669
        %v2671 = vrcp.pop 32.0
        %v2672 = vmul.f32 %v2665, %v2671
        %v2673 = vmul.f32 %v2667, %v2671
        %v2674 = vmul.f32 %v2670, %v2671
        %v2675 = vsub.f32 %v2661, %v2672
        %v2676 = vsub.f32 %v2662, %v2673
        %v2677 = vsub.f32 %v2663, %v2674
        %v2678 = vmul.f32 %v2675, %v1427
        %v2679 = vmul.f32 %v2676, %v1427
        %v2680 = vmul.f32 %v2677, %v1427
        %v2681 = vmul.f32 %v2678, %v2678
        %v2682 = vmul.f32 %v2679, %v2679
        %v2683 = vmul.f32 %v2680, %v2680
        %2684 = vadd.xlane.f32.xlu0 %v2681
        %v2685 = vpop.xlane.xlu0 %2684
        %2686 = vadd.xlane.f32.xlu0 %v2682
        %v2687 = vpop.xlane.xlu0 %2686
        %v2688 = vsel %vm1938, %v2683, 0.0
        %2689 = vadd.xlane.f32.xlu0 %v2688
        %v2690 = vpop.xlane.xlu0 %2689
        %v2691 = vmul.f32 %v2685, %v2671
        %v2692 = vmul.f32 %v2687, %v2671
        %v2693 = vmul.f32 %v2690, %v2671
        %v2694 = vadd.f32 %v2691, 1e-05
        %v2695 = vadd.f32 %v2692, 1e-05
        %v2696 = vadd.f32 %v2693, 1e-05
        %v2697 = vrsqrt.pop %v2694
        %v2698 = vrsqrt.pop %v2695
        %v2699 = vrsqrt.pop %v2696
        %v2700 = vmul.f32 %v2678, %v2697
        %v2701 = vmul.f32 %v2679, %v2698
        %v2702 = vmul.f32 %v2680, %v2699
        %v2704 = vlaneseq
        %v2705 = vshrl.u32 %v2704, 7
        %v2706 = vsub.s32 0, %v2705
        %v2707 = vrot.slane %v1385, %v2706
        %v2709 = vmul.f32 %v2700, %v2707
        %v2710 = vmul.f32 %v2701, %v2707
        %v2711 = vmul.f32 %v2702, %v2707
        %v2713 = vlaneseq
        %v2714 = vshrl.u32 %v2713, 7
        %v2715 = vsub.s32 0, %v2714
        %v2716 = vrot.slane %v1386, %v2715
        %v2718 = vadd.f32 %v2709, %v2716
        %v2719 = vadd.f32 %v2710, %v2716
        %v2720 = vadd.f32 %v2711, %v2716
        %v2721 = vpack.c.bf16 %v2719, %v2718
        %v2722 = vpack.c.bf16 %v2720, %v2720
        %v2724 = vlaneseq
        %v2725 = vshrl.u32 %v2724, 7
        %v2726 = vsub.s32 0, %v2725
        %v2727 = vrot.slane %v1403, %v2726
        %v2745 = vunpack.c.l.b16 %v1387
        %v2746 = vunpack.c.l.b16 %v1388
        %v2747 = vunpack.c.l.b16 %v1389
        %v2748 = vunpack.c.l.b16 %v1390
        %v2749 = vunpack.c.l.b16 %v1391
        %v2750 = vunpack.c.l.b16 %v1392
        %v2751 = vunpack.c.l.b16 %v1393
        %v2752 = vunpack.c.l.b16 %v1394
        %v2753 = vunpack.c.l.b16 %v1395
        %v2754 = vunpack.c.l.b16 %v1396
        %v2755 = vunpack.c.l.b16 %v1397
        %v2756 = vunpack.c.l.b16 %v1398
        %v2757 = vunpack.c.l.b16 %v1399
        %v2758 = vunpack.c.l.b16 %v1400
        %v2759 = vunpack.c.l.b16 %v1401
        %v2760 = vunpack.c.l.b16 %v1402
        %v2761 = vpack.c.b16 %v2746, %v2745
        %v2762 = vpack.c.b16 %v2748, %v2747
        %v2763 = vpack.c.b16 %v2750, %v2749
        %v2764 = vpack.c.b16 %v2752, %v2751
        %v2765 = vpack.c.b16 %v2754, %v2753
        %v2766 = vpack.c.b16 %v2756, %v2755
        %v2767 = vpack.c.b16 %v2758, %v2757
        %v2768 = vpack.c.b16 %v2760, %v2759
        %2777 = vmatprep.subr.bf16.mxu0 0
        %2778 = vmatpush1.bf16.msra.mxu0 %v2761
        %2779 = vmatprep.subr.bf16.mxu0 0
        %2780 = vmatpush1.bf16.msra.mxu0 %v2762
        %2781 = vmatprep.subr.bf16.mxu0 0
        %2782 = vmatpush1.bf16.msra.mxu0 %v2763
        %2783 = vmatprep.subr.bf16.mxu0 0
        %2784 = vmatpush1.bf16.msra.mxu0 %v2764
        %2785 = vmatprep.subr.bf16.mxu0 0
        %2786 = vmatpush1.bf16.msra.mxu0 %v2765
        %2787 = vmatprep.subr.bf16.mxu0 0
        %2788 = vmatpush1.bf16.msra.mxu0 %v2766
        %2789 = vmatprep.subr.bf16.mxu0 0
        %2790 = vmatpush1.bf16.msra.mxu0 %v2767
        %2791 = vmatprep.subr.bf16.mxu0 0
        %2792 = vmatpush1.bf16.msra.mxu0 %v2768
        %2793 = vmatprep.subr.bf16.mxu0 0
        %2794 = vmatpush1.bf16.msra.mxu0 0
        %2795 = vmatprep.subr.bf16.mxu0 0
        %2796 = vmatpush1.bf16.msra.mxu0 0
        %2797 = vmatprep.subr.bf16.mxu0 0
        %2798 = vmatpush1.bf16.msra.mxu0 0
        %2799 = vmatprep.subr.bf16.mxu0 0
        %2800 = vmatpush1.bf16.msra.mxu0 0
        %2801 = vmatprep.subr.bf16.mxu0 0
        %2802 = vmatpush1.bf16.msra.mxu0 0
        %2803 = vmatprep.subr.bf16.mxu0 0
        %2804 = vmatpush1.bf16.msra.mxu0 0
        %2805 = vmatprep.subr.bf16.mxu0 0
        %2806 = vmatpush1.bf16.msra.mxu0 0
        %2807 = vmatprep.subr.bf16.mxu0 0
        %2808 = vmatpush1.bf16.msra.mxu0 0
        %2809 = vmatprep.mubr.bf16.mxu0 0
        %2810 = vmatmul.mubr.bf16.gmra.mrb[0].mxu0 %v2721
        %v2811 = vpop.f32.mrb[0].mxu0
        %v2812 = vadd.f32 %v2727, %v2811
        %v2813 = vpop.f32.mrb[0].mxu0
        %v2814 = vpop.f32.mrb[0].mxu0
        %v2815 = vadd.f32 %v2727, %v2814
        %v2816 = vpop.f32.mrb[0].mxu0
        %2817 = vmatprep.mubr.bf16.mxu0 0
        %2818 = vmatmul.mubr.bf16.gmra.mrb[0].mxu0 %v2722
        %v2819 = vpop.f32.mrb[0].mxu0
        %v2820 = vadd.f32 %v2727, %v2819
        %v2821 = vpop.f32.mrb[0].mxu0
        %v2822 = vpop.f32.mrb[0].mxu0
        %v2823 = vpop.f32.mrb[0].mxu0
        %2824 = vdwg.mxu0
        %v2825 = vmul.f32 %v2812, 0.5
        %v2826 = vmul.f32 %v2815, 0.5
        %v2827 = vmul.f32 %v2820, 0.5
        %v2828 = vmul.f32 %v2812, 0.044715
        %v2829 = vmul.f32 %v2815, 0.044715
        %v2830 = vmul.f32 %v2820, 0.044715
        %v2831 = vmul.f32 %v2828, %v2812
        %v2832 = vmul.f32 %v2829, %v2815
        %v2833 = vmul.f32 %v2830, %v2820
        %v2834 = vmul.f32 %v2831, %v2812
        %v2835 = vmul.f32 %v2832, %v2815
        %v2836 = vmul.f32 %v2833, %v2820
        %v2837 = vadd.f32 %v2812, %v2834
        %v2838 = vadd.f32 %v2815, %v2835
        %v2839 = vadd.f32 %v2820, %v2836
        %v2840 = vmul.f32 %v2837, 0.7978846
        %v2841 = vmul.f32 %v2838, 0.7978846
        %v2842 = vmul.f32 %v2839, 0.7978846
        %v2843 = vtanh.pop %v2840
        %v2844 = vtanh.pop %v2841
        %v2845 = vtanh.pop %v2842
        %v2846 = vadd.f32 %v2843, 1.0
        %v2847 = vadd.f32 %v2844, 1.0
        %v2848 = vadd.f32 %v2845, 1.0
        %v2849 = vmul.f32 %v2825, %v2846
        %v2850 = vmul.f32 %v2826, %v2847
        %v2851 = vmul.f32 %v2827, %v2848
        %v2852 = vpack.c.bf16 %v2850, %v2849
        %v2853 = vpack.c.bf16 %v2851, %v2851
        %v2855 = vlaneseq
        %v2856 = vshrl.u32 %v2855, 7
        %v2857 = vsub.s32 0, %v2856
        %v2858 = vrot.slane %v1420, %v2857
        %v2876 = vunpack.c.l.b16 %v1404
        %v2877 = vunpack.c.l.b16 %v1405
        %v2878 = vunpack.c.l.b16 %v1406
        %v2879 = vunpack.c.l.b16 %v1407
        %v2880 = vunpack.c.l.b16 %v1408
        %v2881 = vunpack.c.l.b16 %v1409
        %v2882 = vunpack.c.l.b16 %v1410
        %v2883 = vunpack.c.l.b16 %v1411
        %v2884 = vunpack.c.l.b16 %v1412
        %v2885 = vunpack.c.l.b16 %v1413
        %v2886 = vunpack.c.l.b16 %v1414
        %v2887 = vunpack.c.l.b16 %v1415
        %v2888 = vunpack.c.l.b16 %v1416
        %v2889 = vunpack.c.l.b16 %v1417
        %v2890 = vunpack.c.l.b16 %v1418
        %v2891 = vunpack.c.l.b16 %v1419
        %v2892 = vpack.c.b16 %v2877, %v2876
        %v2893 = vpack.c.b16 %v2879, %v2878
        %v2894 = vpack.c.b16 %v2881, %v2880
        %v2895 = vpack.c.b16 %v2883, %v2882
        %v2896 = vpack.c.b16 %v2885, %v2884
        %v2897 = vpack.c.b16 %v2887, %v2886
        %v2898 = vpack.c.b16 %v2889, %v2888
        %v2899 = vpack.c.b16 %v2891, %v2890
        %2908 = vmatprep.subr.bf16.mxu0 0
        %2909 = vmatpush1.bf16.msra.mxu0 %v2892
        %2910 = vmatprep.subr.bf16.mxu0 0
        %2911 = vmatpush1.bf16.msra.mxu0 %v2893
        %2912 = vmatprep.subr.bf16.mxu0 0
        %2913 = vmatpush1.bf16.msra.mxu0 %v2894
        %2914 = vmatprep.subr.bf16.mxu0 0
        %2915 = vmatpush1.bf16.msra.mxu0 %v2895
        %2916 = vmatprep.subr.bf16.mxu0 0
        %2917 = vmatpush1.bf16.msra.mxu0 %v2896
        %2918 = vmatprep.subr.bf16.mxu0 0
        %2919 = vmatpush1.bf16.msra.mxu0 %v2897
        %2920 = vmatprep.subr.bf16.mxu0 0
        %2921 = vmatpush1.bf16.msra.mxu0 %v2898
        %2922 = vmatprep.subr.bf16.mxu0 0
        %2923 = vmatpush1.bf16.msra.mxu0 %v2899
        %2924 = vmatprep.subr.bf16.mxu0 0
        %2925 = vmatpush1.bf16.msra.mxu0 0
        %2926 = vmatprep.subr.bf16.mxu0 0
        %2927 = vmatpush1.bf16.msra.mxu0 0
        %2928 = vmatprep.subr.bf16.mxu0 0
        %2929 = vmatpush1.bf16.msra.mxu0 0
        %2930 = vmatprep.subr.bf16.mxu0 0
        %2931 = vmatpush1.bf16.msra.mxu0 0
        %2932 = vmatprep.subr.bf16.mxu0 0
        %2933 = vmatpush1.bf16.msra.mxu0 0
        %2934 = vmatprep.subr.bf16.mxu0 0
        %2935 = vmatpush1.bf16.msra.mxu0 0
        %2936 = vmatprep.subr.bf16.mxu0 0
        %2937 = vmatpush1.bf16.msra.mxu0 0
        %2938 = vmatprep.subr.bf16.mxu0 0
        %2939 = vmatpush1.bf16.msra.mxu0 0
        %2940 = vmatprep.mubr.bf16.mxu0 0
        %2941 = vmatmul.mubr.bf16.gmra.mrb[0].mxu0 %v2852
        %v2942 = vpop.f32.mrb[0].mxu0
        %v2943 = vadd.f32 %v2858, %v2942
        %v2944 = vpop.f32.mrb[0].mxu0
        %v2945 = vpop.f32.mrb[0].mxu0
        %v2946 = vadd.f32 %v2858, %v2945
        %v2947 = vpop.f32.mrb[0].mxu0
        %2948 = vmatprep.mubr.bf16.mxu0 0
        %2949 = vmatmul.mubr.bf16.gmra.mrb[0].mxu0 %v2853
        %v2950 = vpop.f32.mrb[0].mxu0
        %v2951 = vadd.f32 %v2858, %v2950
        %v2952 = vpop.f32.mrb[0].mxu0
        %v2953 = vpop.f32.mrb[0].mxu0
        %v2954 = vpop.f32.mrb[0].mxu0
        %2955 = vdwg.mxu0
        %v2956 = vadd.f32 %v2718, %v2943
        %v2957 = vadd.f32 %v2719, %v2946
        %v2958 = vadd.f32 %v2720, %v2951
        %2959 = vadd.xlane.f32.xlu0 %v2956
        %v2960 = vpop.xlane.xlu0 %2959
        %2961 = vadd.xlane.f32.xlu0 %v2957
        %v2962 = vpop.xlane.xlu0 %2961
        %v2963 = vsel %vm1938, %v2958, 0.0
        %2964 = vadd.xlane.f32.xlu0 %v2963
        %v2965 = vpop.xlane.xlu0 %2964
        %v2966 = vmul.f32 %v2960, %v2671
        %v2967 = vmul.f32 %v2962, %v2671
        %v2968 = vmul.f32 %v2965, %v2671
        %v2969 = vsub.f32 %v2956, %v2966
        %v2970 = vsub.f32 %v2957, %v2967
        %v2971 = vsub.f32 %v2958, %v2968
        %v2972 = vmul.f32 %v2969, %v1427
        %v2973 = vmul.f32 %v2970, %v1427
        %v2974 = vmul.f32 %v2971, %v1427
        %v2975 = vmul.f32 %v2972, %v2972
        %v2976 = vmul.f32 %v2973, %v2973
        %v2977 = vmul.f32 %v2974, %v2974
        %2978 = vadd.xlane.f32.xlu0 %v2975
        %v2979 = vpop.xlane.xlu0 %2978
        %2980 = vadd.xlane.f32.xlu0 %v2976
        %v2981 = vpop.xlane.xlu0 %2980
        %v2982 = vsel %vm1938, %v2977, 0.0
        %2983 = vadd.xlane.f32.xlu0 %v2982
        %v2984 = vpop.xlane.xlu0 %2983
        %v2985 = vmul.f32 %v2979, %v2671
        %v2986 = vmul.f32 %v2981, %v2671
        %v2987 = vmul.f32 %v2984, %v2671
        %v2988 = vadd.f32 %v2985, 1e-05
        %v2989 = vadd.f32 %v2986, 1e-05
        %v2990 = vadd.f32 %v2987, 1e-05
        %v2991 = vrsqrt.pop %v2988
        %v2992 = vrsqrt.pop %v2989
        %v2993 = vrsqrt.pop %v2990
        %v2994 = vmul.f32 %v2972, %v2991
        %v2995 = vmul.f32 %v2973, %v2992
        %v2996 = vmul.f32 %v2974, %v2993
        %v2998 = vlaneseq
        %v2999 = vshrl.u32 %v2998, 7
        %v3000 = vsub.s32 0, %v2999
        %v3001 = vrot.slane %v1421, %v3000
        %v3003 = vmul.f32 %v2994, %v3001
        %v3004 = vmul.f32 %v2995, %v3001
        %v3005 = vmul.f32 %v2996, %v3001
        %v3007 = vlaneseq
        %v3008 = vshrl.u32 %v3007, 7
        %v3009 = vsub.s32 0, %v3008
        %v3010 = vrot.slane %v1422, %v3009
        %v3012 = vadd.f32 %v3003, %v3010
        %v3013 = vadd.f32 %v3004, %v3010
        %v3014 = vadd.f32 %v3005, %v3010
        %3015 = vst [vmem:[#allocation2] sm:$0xff] %v3012
        %3016 = vst [vmem:[#allocation2 + $0x8] sm:$0xff] %v3013
        %3017 = vst [vmem:[#allocation2 + $0x10] sm:$0x1] %v3014
        %p3018 = scmp.eq.s32.totalorder %s41, 1
        // Predicated region
        $region125: #{concat_seq_encoder_m2mdm_forward.3} parent=115 // pred_check
          %p3019 = pneg %p3018
        $region126: #{concat_seq_encoder_m2mdm_forward.3} parent=115 // pred_check_branch
          %3021 = sbr.rel (%p3019) target = $region128
        $region127: #{concat_seq_encoder_m2mdm_forward.3} parent=115 // pred_region
          %v3022 = vpack.c.bf16 %v3014, %v3013
          %v3023 = vld [vmem:[%s22] sm:$0xf]
          %v3024 = vld [vmem:[%s22 + $0x4] sm:$0xf]
          %v3025 = vld [vmem:[%s22 + $0x8] sm:$0xf]
          %v3026 = vld [vmem:[%s22 + $0xc] sm:$0xf]
          %v3027 = vld [vmem:[%s22 + $0x10] sm:$0xf]
          %v3028 = vld [vmem:[%s22 + $0x14] sm:$0xf]
          %v3029 = vld [vmem:[%s22 + $0x18] sm:$0xf]
          %v3030 = vld [vmem:[%s22 + $0x1c] sm:$0xf]
          %v3031 = vld [vmem:[%s22 + $0x20] sm:$0xf]
          %v3032 = vld [vmem:[%s22 + $0x24] sm:$0xf]
          %v3033 = vld [vmem:[%s22 + $0x28] sm:$0xf]
          %v3034 = vld [vmem:[%s22 + $0x2c] sm:$0xf]
          %v3035 = vld [vmem:[%s22 + $0x30] sm:$0xf]
          %v3036 = vld [vmem:[%s22 + $0x34] sm:$0xf]
          %v3037 = vld [vmem:[%s22 + $0x38] sm:$0xf]
          %v3038 = vld [vmem:[%s22 + $0x3c] sm:$0xf]
          %v3039 = vld [vmem:[#allocation3] sm:$0x1]
          %v3041 = vlaneseq
          %v3042 = vshrl.u32 %v3041, 7
          %v3043 = vsub.s32 0, %v3042
          %v3044 = vrot.slane %v3039, %v3043
          %v3047 = vshrl.u32 %v3022, 16
          %v3049 = vshll.u32 %v3022, 16
          %v3051 = vrot.slane %v3049, 1
          %v3052 = vor.u32 %v3047, %v3051
          %v3070 = vunpack.c.l.b16 %v3023
          %v3071 = vunpack.c.l.b16 %v3024
          %v3072 = vunpack.c.l.b16 %v3025
          %v3073 = vunpack.c.l.b16 %v3026
          %v3074 = vunpack.c.l.b16 %v3027
          %v3075 = vunpack.c.l.b16 %v3028
          %v3076 = vunpack.c.l.b16 %v3029
          %v3077 = vunpack.c.l.b16 %v3030
          %v3078 = vunpack.c.l.b16 %v3031
          %v3079 = vunpack.c.l.b16 %v3032
          %v3080 = vunpack.c.l.b16 %v3033
          %v3081 = vunpack.c.l.b16 %v3034
          %v3082 = vunpack.c.l.b16 %v3035
          %v3083 = vunpack.c.l.b16 %v3036
          %v3084 = vunpack.c.l.b16 %v3037
          %v3085 = vunpack.c.l.b16 %v3038
          %v3086 = vpack.c.b16 %v3071, %v3070
          %v3087 = vpack.c.b16 %v3073, %v3072
          %v3088 = vpack.c.b16 %v3075, %v3074
          %v3089 = vpack.c.b16 %v3077, %v3076
          %v3090 = vpack.c.b16 %v3079, %v3078
          %v3091 = vpack.c.b16 %v3081, %v3080
          %v3092 = vpack.c.b16 %v3083, %v3082
          %v3093 = vpack.c.b16 %v3085, %v3084
          %3102 = vmatprep.subr.bf16.mxu0 0
          %3103 = vmatpush1.bf16.msra.mxu0 %v3086
          %3104 = vmatprep.subr.bf16.mxu0 0
          %3105 = vmatpush1.bf16.msra.mxu0 %v3087
          %3106 = vmatprep.subr.bf16.mxu0 0
          %3107 = vmatpush1.bf16.msra.mxu0 %v3088
          %3108 = vmatprep.subr.bf16.mxu0 0
          %3109 = vmatpush1.bf16.msra.mxu0 %v3089
          %3110 = vmatprep.subr.bf16.mxu0 0
          %3111 = vmatpush1.bf16.msra.mxu0 %v3090
          %3112 = vmatprep.subr.bf16.mxu0 0
          %3113 = vmatpush1.bf16.msra.mxu0 %v3091
          %3114 = vmatprep.subr.bf16.mxu0 0
          %3115 = vmatpush1.bf16.msra.mxu0 %v3092
          %3116 = vmatprep.subr.bf16.mxu0 0
          %3117 = vmatpush1.bf16.msra.mxu0 %v3093
          %3118 = vmatprep.subr.bf16.mxu0 0
          %3119 = vmatpush1.bf16.msra.mxu0 0
          %3120 = vmatprep.subr.bf16.mxu0 0
          %3121 = vmatpush1.bf16.msra.mxu0 0
          %3122 = vmatprep.subr.bf16.mxu0 0
          %3123 = vmatpush1.bf16.msra.mxu0 0
          %3124 = vmatprep.subr.bf16.mxu0 0
          %3125 = vmatpush1.bf16.msra.mxu0 0
          %3126 = vmatprep.subr.bf16.mxu0 0
          %3127 = vmatpush1.bf16.msra.mxu0 0
          %3128 = vmatprep.subr.bf16.mxu0 0
          %3129 = vmatpush1.bf16.msra.mxu0 0
          %3130 = vmatprep.subr.bf16.mxu0 0
          %3131 = vmatpush1.bf16.msra.mxu0 0
          %3132 = vmatprep.subr.bf16.mxu0 0
          %3133 = vmatpush1.bf16.msra.mxu0 0
          %3134 = vmatprep.mubr.bf16.mxu0 0
          %3135 = vmatmul.mubr.bf16.gmra.mrb[0].mxu0 %v3052
          %v3136 = vpop.f32.mrb[0].mxu0
          %v3137 = vadd.f32 %v3044, %v3136
          %v3138 = vpop.f32.mrb[0].mxu0
          %v3139 = vpop.f32.mrb[0].mxu0
          %v3140 = vpop.f32.mrb[0].mxu0
          %3141 = vdwg.mxu0
          %3142 = vst [vmem:[%s983] sm:$0xff] %v3137
        $region128: #{concat_seq_encoder_m2mdm_forward.3} parent=115 // pred_fallthru
          _
        %p3143 = scmp.lt.s32.totalorder %s40, 1
        %s3144 = scalar_select %p3143, %s40, 1
        %s3145 = smul.addr %s3144, 8
        %s3146 = scalar_lea.vmem %s24, %s3145
        // Predicated region
        $region129: #{concat_seq_encoder_m2mdm_forward.3} parent=115 // pred_check
          %p3147 = pneg %p645
        $region130: #{concat_seq_encoder_m2mdm_forward.3} parent=115 // pred_check_branch
          %3149 = sbr.rel (%p3147) target = $region132
        $region131: #{concat_seq_encoder_m2mdm_forward.3} parent=115 // pred_region
          _
        $region132: #{concat_seq_encoder_m2mdm_forward.3} parent=115 // pred_fallthru
          _
      $region116: #{concat_seq_encoder_m2mdm_forward.3} parent=5 // pred_fallthru
        _
      %p3150 = scmp.le.s32.totalorder 2, %s31
      // Predicated region
      $region133: #{concat_seq_encoder_m2mdm_forward.3} parent=5 // pred_check
        %p3151 = pneg %p3150
      $region134: #{concat_seq_encoder_m2mdm_forward.3} parent=5 // pred_check_branch
        %3153 = sbr.rel (%p3151) target = $region136
      $region135: #{concat_seq_encoder_m2mdm_forward.3} parent=5 // pred_region
        %s3154 = ssub.s32 %s31, 2
        // Predicated region
        $region137: #{concat_seq_encoder_m2mdm_forward.3} parent=135 // pred_check
          %p3155 = pneg %p651
        $region138: #{concat_seq_encoder_m2mdm_forward.3} parent=135 // pred_check_branch
          %3157 = sbr.rel (%p3155) target = $region140
        $region139: #{concat_seq_encoder_m2mdm_forward.3} parent=135 // pred_region
          %p3158 = scmp.lt.s32.totalorder %s42, 1
          %s3159 = scalar_select %p3158, %s42, 1
          %s3160 = smul.addr %s3159, 8
          %s3161 = scalar_lea.vmem %s24, %s3160
        $region140: #{concat_seq_encoder_m2mdm_forward.3} parent=135 // pred_fallthru
          _
      $region136: #{concat_seq_encoder_m2mdm_forward.3} parent=5 // pred_fallthru
        _
    $region6: #{concat_seq_encoder_m2mdm_forward.3} parent=1 // loop_footer
      %s35 = sadd.s32 1, %s31
    $region7: #{concat_seq_encoder_m2mdm_forward.3} parent=1 // loop_footer_branch
      %30 = sbr.rel target = $region3
    $region8: #{concat_seq_encoder_m2mdm_forward.3} parent=1 // loop_exit
      _
    %3162 = vsyncpa [#allocation4], 1
    %s3163 = scalar_lea.sflag [#allocation4], 1
    %3164 = vsyncpa %s3163, 1

</llo_original>
